<compile_context>
chip_gen: v7x
topology: tpu7x:2x2x1
jax: 0.10.0
libtpu: 0.0.40
codegen_flags: <defaults>
</compile_context>

<pallas_src>
import math
from functools import partial

import numpy as np
import jax
import jax.numpy as jnp
from jax.experimental import pallas as pl
from jax.experimental.pallas import tpu as pltpu

# ----------------------------- configuration --------------------------------
B = 2              # batch
L = 64             # fixed_number (sequence length)
C = 4              # n_channels (in_chans)
E = 32             # emb_dim
D = 32             # dec_emb_dim
H_ENC = 2          # num_heads
H_DEC = 2          # decoder_num_heads
DEPTH = 2          # encoder depth
DEC_DEPTH = 2      # decoder depth
MASK_RATIO = 16    # used as masked_length in random_masking
START_INDEX = 20   # fixed start index -> deterministic masking
END_INDEX = START_INDEX + MASK_RATIO
GRAD_WEIGHT = 0.5
LEVEL = 1
EXTRA_EDGE = True
NORM_PIX_LOSS = False
MLP_RATIO = 4
T_DIFF = 1000
LN_EPS = 1e-6      # module uses partial(nn.LayerNorm, eps=1e-06)

# ------------------- static random_masking bookkeeping ----------------------
LEN_KEEP = L - MASK_RATIO
_ids_shuffle = np.concatenate([
    np.arange(0, START_INDEX),
    np.arange(END_INDEX, L),
    np.arange(START_INDEX, END_INDEX),
]).astype(np.int32)
IDS_RESTORE = np.argsort(_ids_shuffle).astype(np.int32)
IDS_KEEP = _ids_shuffle[:LEN_KEEP]
IDS_MASKED = _ids_shuffle[LEN_KEEP:]
_mask_shuffled = np.ones(L, np.float32)
_mask_shuffled[:LEN_KEEP] = 0.0
MASK_VEC = _mask_shuffled[IDS_RESTORE]   # 1 = masked, 0 = kept (original order)

# ------------------------------- diffusion -----------------------------------
# TODO(synk): `diffusion` object not provided; standard DDPM q_sample with a
# linear beta schedule used for noise_samples / sample_timesteps.
_betas = np.linspace(1e-4, 0.02, T_DIFF, dtype=np.float64)
ALPHA_BAR = jnp.asarray(np.cumprod(1.0 - _betas), jnp.float32)


# --------------------------- fused kernel plumbing ---------------------------
_PER_BATCH_INPUTS = ("x_vis", "x_msk", "sqrt_ab", "noise")
_FUSED_ORDER = (
    "x_vis", "x_msk", "sqrt_ab", "noise",
    "in_w", "in_b", "pos_keep", "pos_msk", "norm_ln",
    "dec_embed_w", "dec_embed_b", "dec_pos_msk", "dec_norm_ln",
    "pred_w", "pred_b", "logvar", "inv_var",
    "enc_ln1", "enc_wqkv", "enc_bqkv", "enc_wo", "enc_bo",
    "enc_ln2", "enc_w1", "enc_b1", "enc_w2", "enc_b2",
    "dec_ln1", "dec_swqkv", "dec_sbqkv", "dec_swo", "dec_sbo",
    "dec_ln2", "dec_cwq", "dec_cbq", "dec_cwkv", "dec_cbkv",
    "dec_cwo", "dec_cbo", "dec_ln3", "dec_w1", "dec_b1", "dec_w2", "dec_b2",
)


def _layer_norm(x, ln):
    g = ln[0:1, :]
    b = ln[1:2, :]
    mu = jnp.mean(x, axis=-1, keepdims=True)
    var = jnp.mean((x - mu) ** 2, axis=-1, keepdims=True)
    return (x - mu) * jax.lax.rsqrt(var + LN_EPS) * g + b


def _gelu(y):
    # TODO(synk): PyTorch nn.GELU default is exact erf; tanh approximation used.
    return 0.5 * y * (1.0 + jnp.tanh(0.7978845608028654 * (y + 0.044715 * y * y * y)))


def _matmul(x, w, b):
    return jnp.dot(x, w, preferred_element_type=jnp.float32) + b


def _mha_proj(q, k, v, w_o, b_o, n_heads):
    """Multi-head attention fused with the output projection.

    Heads are static lane slices of the packed q/k/v activations; each head's
    context is projected through its row-slice of w_o and accumulated, so no
    transposes or concatenations are needed inside the kernel.
    """
    dh = q.shape[-1] // n_heads
    scale = 1.0 / math.sqrt(dh)
    acc = None
    for h in range(n_heads):
        sl = slice(h * dh, (h + 1) * dh)
        qh, kh, vh = q[:, sl], k[:, sl], v[:, sl]
        s = jax.lax.dot_general(qh, kh, (((1,), (1,)), ((), ())),
                                preferred_element_type=jnp.float32) * scale
        s = s - jnp.max(s, axis=-1, keepdims=True)
        p = jnp.exp(s)
        p = p * pl.reciprocal(jnp.sum(p, axis=-1, keepdims=True), approx=True)
        ctx = jnp.dot(p, vh, preferred_element_type=jnp.float32)
        proj = jnp.dot(ctx, w_o[sl, :], preferred_element_type=jnp.float32)
        acc = proj if acc is None else acc + proj
    return acc + b_o


def diffmae_fused_kernel(*refs, weight):
    r = dict(zip(_FUSED_ORDER, refs[:len(_FUSED_ORDER)]))
    preds_ref, loss_num_ref = refs[len(_FUSED_ORDER):]

    x_vis_raw = r["x_vis"][0]          # [LEN_KEEP, C]  (raw kept tokens)
    x_msk_raw = r["x_msk"][0]          # [MASK_RATIO, C] (raw masked tokens)
    in_w = r["in_w"][...]
    in_b = r["in_b"][...]

    # in_layer + positional embedding; masking indices are static so kept /
    # masked token streams are embedded separately (no gather needed).
    vis = _matmul(x_vis_raw, in_w, in_b) + r["pos_keep"][...]      # [48, E]
    msk = _matmul(x_msk_raw, in_w, in_b) + r["pos_msk"][...]       # [16, E]

    # diffusion q_sample on the masked tokens (noise pre-scaled by sqrt(1-ab)).
    mask_token = r["sqrt_ab"][0] * msk + r["noise"][0]             # [16, E]

    # -------------------------------- encoder --------------------------------
    def enc_block(h, d):
        y = _layer_norm(h, r["enc_ln1"][d])
        qkv = _matmul(y, r["enc_wqkv"][d], r["enc_bqkv"][d])       # [*, 3E]
        q, k, v = qkv[:, 0:E], qkv[:, E:2 * E], qkv[:, 2 * E:3 * E]
        h = h + _mha_proj(q, k, v, r["enc_wo"][d], r["enc_bo"][d], H_ENC)
        y = _layer_norm(h, r["enc_ln2"][d])
        y = _gelu(_matmul(y, r["enc_w1"][d], r["enc_b1"][d]))
        return h + _matmul(y, r["enc_w2"][d], r["enc_b2"][d])

    h = vis
    enc_outs = []
    for d in range(DEPTH):
        h = enc_block(h, d)
        enc_outs.append(h)
    enc_outs[-1] = _layer_norm(enc_outs[-1], r["norm_ln"][...])

    # -------------------------------- decoder --------------------------------
    m = _matmul(mask_token, r["dec_embed_w"][...], r["dec_embed_b"][...])
    m = m + r["dec_pos_msk"][...]

    def dec_block(m, enc, d):
        # self-attention over mask tokens
        y = _layer_norm(m, r["dec_ln1"][d])
        qkv = _matmul(y, r["dec_swqkv"][d], r["dec_sbqkv"][d])     # [16, 3D]
        q, k, v = qkv[:, 0:D], qkv[:, D:2 * D], qkv[:, 2 * D:3 * D]
        m = m + _mha_proj(q, k, v, r["dec_swo"][d], r["dec_sbo"][d], H_DEC)
        # cross-attention to the encoder output
        y = _layer_norm(m, r["dec_ln2"][d])
        q = _matmul(y, r["dec_cwq"][d], r["dec_cbq"][d])           # [16, D]
        kv = _matmul(enc, r["dec_cwkv"][d], r["dec_cbkv"][d])      # [48, 2D]
        k, v = kv[:, 0:D], kv[:, D:2 * D]
        m = m + _mha_proj(q, k, v, r["dec_cwo"][d], r["dec_cbo"][d], H_DEC)
        # MLP
        y = _layer_norm(m, r["dec_ln3"][d])
        y = _gelu(_matmul(y, r["dec_w1"][d], r["dec_b1"][d]))
        return m + _matmul(y, r["dec_w2"][d], r["dec_b2"][d])

    for d in range(DEC_DEPTH):
        m = dec_block(m, enc_outs[DEPTH - 1 - d], d)

    x8 = _layer_norm(m, r["dec_norm_ln"][...])
    preds = _matmul(x8, r["pred_w"][...], r["pred_b"][...])        # [16, C]

    # output: predictions for the masked window
    preds_ref[0] = preds

    # masked learned-logvar L2 loss partial sum: mask==1 exactly on the masked
    # window, so only these MASK_RATIO tokens contribute.  exp(-logvar) is
    # hoisted to the wrapper (inv_var).
    tgt = x_msk_raw
    if NORM_PIX_LOSS:
        mu = jnp.mean(tgt, axis=-1, keepdims=True)
        var = jnp.sum((tgt - mu) ** 2, axis=-1, keepdims=True) / (C - 1)
        tgt = (tgt - mu) * jax.lax.rsqrt(var + 1e-6)
    diff = preds - tgt
    per_elem = weight * diff * diff * r["inv_var"][...] + r["logvar"][...]
    loss_num_ref[0] = jnp.sum(per_elem, keepdims=True) * (1.0 / C)


def _const_index_map(ndim):
    return lambda b: (0,) * ndim


def _batch_index_map(ndim):
    return lambda b: (b,) + (0,) * (ndim - 1)


def diffmae_fused_forward(arrays, batch, weight):
    flat_inputs = []
    in_specs = []
    for name in _FUSED_ORDER:
        a = arrays[name]
        flat_inputs.append(a)
        if name in _PER_BATCH_INPUTS:
            in_specs.append(pl.BlockSpec((1,) + a.shape[1:], _batch_index_map(a.ndim)))
        else:
            # whole-array weight blocks; constant block index -> kept resident
            in_specs.append(pl.BlockSpec(a.shape, _const_index_map(a.ndim)))

    out_shape = (
        jax.ShapeDtypeStruct((batch, MASK_RATIO, C), jnp.float32),   # preds
        jax.ShapeDtypeStruct((batch, 1, 1), jnp.float32),            # loss numerator
    )
    out_specs = (
        pl.BlockSpec((1, MASK_RATIO, C), _batch_index_map(3)),
        pl.BlockSpec((1, 1, 1), _batch_index_map(3)),
    )
    return pl.pallas_call(
        partial(diffmae_fused_kernel, weight=weight),
        out_shape=out_shape,
        grid=(batch,),
        in_specs=in_specs,
        out_specs=out_specs,
        compiler_params=pltpu.CompilerParams(dimension_semantics=("parallel",)),
    )(*flat_inputs)


# ------------------------------- parameter init -------------------------------
def get_sincos_positional_encoding(length, dim):
    pos = np.arange(length, dtype=np.float64)[:, None]
    div = np.exp(np.arange(0, dim, 2, dtype=np.float64) * -(np.log(10000.0) / dim))
    pe = np.zeros((length, dim), dtype=np.float64)
    pe[:, 0::2] = np.sin(pos * div)
    pe[:, 1::2] = np.cos(pos * div)
    return jnp.asarray(pe, jnp.float32)


def init_params(key):
    keys = iter(jax.random.split(key, 256))

    def xavier(shape):
        limit = math.sqrt(6.0 / (shape[0] + shape[1]))
        return jax.random.uniform(next(keys), shape, jnp.float32, -limit, limit)

    def ln_pair(dim):
        return jnp.stack([jnp.ones((dim,), jnp.float32),
                          jnp.zeros((dim,), jnp.float32)])           # [2, dim]

    pos = get_sincos_positional_encoding(L, E)
    dec_pos = get_sincos_positional_encoding(L, D)
    keep_idx = np.asarray(IDS_KEEP)
    masked_idx = np.asarray(IDS_MASKED)

    p = {
        "in_w": xavier((C, E)), "in_b": jnp.zeros((1, E), jnp.float32),
        "pos_keep": pos[keep_idx], "pos_msk": pos[masked_idx],
        "norm_ln": ln_pair(E),
        "dec_embed_w": xavier((E, D)), "dec_embed_b": jnp.zeros((1, D), jnp.float32),
        "dec_pos_msk": dec_pos[masked_idx],
        "dec_norm_ln": ln_pair(D),
        "pred_w": xavier((D, C)), "pred_b": jnp.zeros((1, C), jnp.float32),
        "logvar": jnp.zeros((1, C), jnp.float32),
    }

    enc = {k: [] for k in ("ln1", "wqkv", "bqkv", "wo", "bo",
                           "ln2", "w1", "b1", "w2", "b2")}
    for _ in range(DEPTH):
        enc["ln1"].append(ln_pair(E))
        enc["wqkv"].append(jnp.concatenate([xavier((E, E)) for _ in range(3)], axis=1))
        enc["bqkv"].append(jnp.zeros((1, 3 * E), jnp.float32))
        enc["wo"].append(xavier((E, E)))
        enc["bo"].append(jnp.zeros((1, E), jnp.float32))
        enc["ln2"].append(ln_pair(E))
        enc["w1"].append(xavier((E, MLP_RATIO * E)))
        enc["b1"].append(jnp.zeros((1, MLP_RATIO * E), jnp.float32))
        enc["w2"].append(xavier((MLP_RATIO * E, E)))
        enc["b2"].append(jnp.zeros((1, E), jnp.float32))
    for k, v in enc.items():
        p["enc_" + k] = jnp.stack(v)

    dec = {k: [] for k in ("ln1", "swqkv", "sbqkv", "swo", "sbo", "ln2",
                           "cwq", "cbq", "cwkv", "cbkv", "cwo", "cbo",
                           "ln3", "w1", "b1", "w2", "b2")}
    for _ in range(DEC_DEPTH):
        dec["ln1"].append(ln_pair(D))
        dec["swqkv"].append(jnp.concatenate([xavier((D, D)) for _ in range(3)], axis=1))
        dec["sbqkv"].append(jnp.zeros((1, 3 * D), jnp.float32))
        dec["swo"].append(xavier((D, D)))
        dec["sbo"].append(jnp.zeros((1, D), jnp.float32))
        dec["ln2"].append(ln_pair(D))
        dec["cwq"].append(xavier((D, D)))
        dec["cbq"].append(jnp.zeros((1, D), jnp.float32))
        dec["cwkv"].append(jnp.concatenate([xavier((E, D)), xavier((E, D))], axis=1))
        dec["cbkv"].append(jnp.zeros((1, 2 * D), jnp.float32))
        dec["cwo"].append(xavier((D, D)))
        dec["cbo"].append(jnp.zeros((1, D), jnp.float32))
        dec["ln3"].append(ln_pair(D))
        dec["w1"].append(xavier((D, MLP_RATIO * D)))
        dec["b1"].append(jnp.zeros((1, MLP_RATIO * D), jnp.float32))
        dec["w2"].append(xavier((MLP_RATIO * D, D)))
        dec["b2"].append(jnp.zeros((1, D), jnp.float32))
    for k, v in dec.items():
        p["dec_" + k] = jnp.stack(v)

    return p


# --------------------------------- forward ------------------------------------
def diffmae_forward(params, inputs, key, weight=10.0):
    B_, L_, C_ = inputs.shape
    k_t, k_noise = jax.random.split(key)

    # diffusion.sample_timesteps + q_sample coefficients (host-side glue)
    t = jax.random.randint(k_t, (B_,), 1, T_DIFF)
    ab = ALPHA_BAR[t]
    sqrt_ab = jnp.sqrt(ab).reshape(B_, 1, 1)
    noise = jax.random.normal(k_noise, (B_, MASK_RATIO, E), jnp.float32)
    noise_scaled = jnp.sqrt(1.0 - ab).reshape(B_, 1, 1) * noise

    arrays = dict(params)
    # static masking -> plain slices (start_index is fixed)
    arrays["x_vis"] = jnp.concatenate(
        [inputs[:, :START_INDEX, :], inputs[:, END_INDEX:, :]], axis=1)
    arrays["x_msk"] = inputs[:, START_INDEX:END_INDEX, :]
    arrays["sqrt_ab"] = sqrt_ab
    arrays["noise"] = noise_scaled
    arrays["inv_var"] = jnp.exp(-params["logvar"])       # hoisted out of kernel

    preds, loss_num = diffmae_fused_forward(arrays, B_, weight)

    # restored full sequence: raw kept tokens + predictions at the masked
    # window, back in original order (pure data movement, done host-side to
    # keep the kernel free of non-8-aligned sublane stores).
    new_preds = jnp.concatenate(
        [inputs[:, :START_INDEX, :], preds, inputs[:, END_INDEX:, :]], axis=1)

    # ------------------------- loss (host-side glue) --------------------------
    mask = jnp.broadcast_to(jnp.asarray(MASK_VEC, jnp.float32), (B_, L_))
    loss = jnp.sum(loss_num) / jnp.sum(mask)

    if NORM_PIX_LOSS:
        mean = inputs.mean(axis=-1, keepdims=True)
        var = inputs.var(axis=-1, keepdims=True, ddof=1)
        imgs_n = (inputs - mean) / (var + 1e-6) ** 0.5
    else:
        imgs_n = inputs

    # recons = predictions outside the masked window, ground truth inside
    recons = new_preds.at[:, START_INDEX:END_INDEX].set(imgs_n[:, START_INDEX:END_INDEX])

    # gradient-difference / edge loss, vectorized over the batch
    edge = jnp.float32(0.0)
    if EXTRA_EDGE:
        for j in range(1, LEVEL + 1):
            d1 = (jnp.diff(recons[:, START_INDEX - j:START_INDEX + j], n=j, axis=1)
                  - jnp.diff(new_preds[:, START_INDEX - j:START_INDEX + j], n=j, axis=1))
            edge = edge + jnp.mean(d1 ** 2) / LEVEL
            d2 = (jnp.diff(recons[:, END_INDEX - j:END_INDEX + j], n=j, axis=1)
                  - jnp.diff(new_preds[:, END_INDEX - j:END_INDEX + j], n=j, axis=1))
            edge = edge + jnp.mean(d2 ** 2) / LEVEL
        gdl = jnp.mean((jnp.diff(imgs_n, axis=1) - jnp.diff(new_preds, axis=1)) ** 2) + edge
    else:
        for j in range(1, LEVEL + 1):
            d1 = (jnp.diff(recons[:, START_INDEX - j:END_INDEX + j], n=j, axis=1)
                  - jnp.diff(new_preds[:, START_INDEX - j:END_INDEX + j], n=j, axis=1))
            edge = edge + jnp.mean(d1 ** 2) / LEVEL
        gdl = edge

    total = (1.0 - GRAD_WEIGHT) * loss + GRAD_WEIGHT * gdl
    return (preds, (total, loss, gdl), jnp.asarray(IDS_RESTORE), mask,
            jnp.asarray(IDS_MASKED), jnp.asarray(IDS_KEEP))


# ----------------------------------- main --------------------------------------
if __name__ == "__main__":
    root = jax.random.PRNGKey(0)
    k_params, k_inputs, k_fwd = jax.random.split(root, 3)

    params = init_params(k_params)
    inputs = jax.random.normal(k_inputs, (B, L, C), jnp.float32)

    fwd = jax.jit(diffmae_forward)
    preds, (total_loss, loss, gdl), ids_restore, mask, ids_masked, ids_keep = fwd(
        params, inputs, k_fwd)
    jax.block_until_ready((preds, total_loss, loss, gdl, mask))

    assert preds.shape == (B, MASK_RATIO, C)
    assert mask.shape == (B, L)
    assert jnp.isfinite(total_loss) and jnp.isfinite(loss) and jnp.isfinite(gdl)
    print("KERNEL_OK")
</pallas_src>

<mosaic_0001>
module attributes {stable_mosaic.version = 11 : i64} {
  func.func @diffmae_fused_kernel(%arg0: i32, %arg1: memref<1x48x4xf32, #tpu.memory_space<vmem>>, %arg2: memref<1x16x4xf32, #tpu.memory_space<vmem>>, %arg3: memref<1x1x1xf32, #tpu.memory_space<vmem>>, %arg4: memref<1x16x32xf32, #tpu.memory_space<vmem>>, %arg5: memref<4x32xf32, #tpu.memory_space<vmem>>, %arg6: memref<1x32xf32, #tpu.memory_space<vmem>>, %arg7: memref<48x32xf32, #tpu.memory_space<vmem>>, %arg8: memref<16x32xf32, #tpu.memory_space<vmem>>, %arg9: memref<2x32xf32, #tpu.memory_space<vmem>>, %arg10: memref<32x32xf32, #tpu.memory_space<vmem>>, %arg11: memref<1x32xf32, #tpu.memory_space<vmem>>, %arg12: memref<16x32xf32, #tpu.memory_space<vmem>>, %arg13: memref<2x32xf32, #tpu.memory_space<vmem>>, %arg14: memref<32x4xf32, #tpu.memory_space<vmem>>, %arg15: memref<1x4xf32, #tpu.memory_space<vmem>>, %arg16: memref<1x4xf32, #tpu.memory_space<vmem>>, %arg17: memref<1x4xf32, #tpu.memory_space<vmem>>, %arg18: memref<2x2x32xf32, #tpu.memory_space<vmem>>, %arg19: memref<2x32x96xf32, #tpu.memory_space<vmem>>, %arg20: memref<2x1x96xf32, #tpu.memory_space<vmem>>, %arg21: memref<2x32x32xf32, #tpu.memory_space<vmem>>, %arg22: memref<2x1x32xf32, #tpu.memory_space<vmem>>, %arg23: memref<2x2x32xf32, #tpu.memory_space<vmem>>, %arg24: memref<2x32x128xf32, #tpu.memory_space<vmem>>, %arg25: memref<2x1x128xf32, #tpu.memory_space<vmem>>, %arg26: memref<2x128x32xf32, #tpu.memory_space<vmem>>, %arg27: memref<2x1x32xf32, #tpu.memory_space<vmem>>, %arg28: memref<2x2x32xf32, #tpu.memory_space<vmem>>, %arg29: memref<2x32x96xf32, #tpu.memory_space<vmem>>, %arg30: memref<2x1x96xf32, #tpu.memory_space<vmem>>, %arg31: memref<2x32x32xf32, #tpu.memory_space<vmem>>, %arg32: memref<2x1x32xf32, #tpu.memory_space<vmem>>, %arg33: memref<2x2x32xf32, #tpu.memory_space<vmem>>, %arg34: memref<2x32x32xf32, #tpu.memory_space<vmem>>, %arg35: memref<2x1x32xf32, #tpu.memory_space<vmem>>, %arg36: memref<2x32x64xf32, #tpu.memory_space<vmem>>, %arg37: memref<2x1x64xf32, #tpu.memory_space<vmem>>, %arg38: memref<2x32x32xf32, #tpu.memory_space<vmem>>, %arg39: memref<2x1x32xf32, #tpu.memory_space<vmem>>, %arg40: memref<2x2x32xf32, #tpu.memory_space<vmem>>, %arg41: memref<2x32x128xf32, #tpu.memory_space<vmem>>, %arg42: memref<2x1x128xf32, #tpu.memory_space<vmem>>, %arg43: memref<2x128x32xf32, #tpu.memory_space<vmem>>, %arg44: memref<2x1x32xf32, #tpu.memory_space<vmem>>, %arg45: memref<1x16x4xf32, #tpu.memory_space<vmem>>, %arg46: memref<1x1x1xf32, #tpu.memory_space<vmem>>) attributes {dimension_semantics = [#tpu.dimension_semantics<parallel>], iteration_bounds = array<i64: 2>, scalar_prefetch = 0 : i64, scratch_operands = 0 : i64, tpu.core_type = #tpu.core_type<tc>, window_params = [{transform_indices = @transform_0, window_bounds = array<i64: 1, 48, 4>}, {transform_indices = @transform_1, window_bounds = array<i64: 1, 16, 4>}, {transform_indices = @transform_2, window_bounds = array<i64: 1, 1, 1>}, {transform_indices = @transform_3, window_bounds = array<i64: 1, 16, 32>}, {pipeline_mode = #tpu.pipeline_mode<synchronous>, transform_indices = @transform_4, window_bounds = array<i64: 4, 32>}, {pipeline_mode = #tpu.pipeline_mode<synchronous>, transform_indices = @transform_5, window_bounds = array<i64: 1, 32>}, {pipeline_mode = #tpu.pipeline_mode<synchronous>, transform_indices = @transform_6, window_bounds = array<i64: 48, 32>}, {pipeline_mode = #tpu.pipeline_mode<synchronous>, transform_indices = @transform_7, window_bounds = array<i64: 16, 32>}, {pipeline_mode = #tpu.pipeline_mode<synchronous>, transform_indices = @transform_8, window_bounds = array<i64: 2, 32>}, {pipeline_mode = #tpu.pipeline_mode<synchronous>, transform_indices = @transform_9, window_bounds = array<i64: 32, 32>}, {pipeline_mode = #tpu.pipeline_mode<synchronous>, transform_indices = @transform_10, window_bounds = array<i64: 1, 32>}, {pipeline_mode = #tpu.pipeline_mode<synchronous>, transform_indices = @transform_11, window_bounds = array<i64: 16, 32>}, {pipeline_mode = #tpu.pipeline_mode<synchronous>, transform_indices = @transform_12, window_bounds = array<i64: 2, 32>}, {pipeline_mode = #tpu.pipeline_mode<synchronous>, transform_indices = @transform_13, window_bounds = array<i64: 32, 4>}, {pipeline_mode = #tpu.pipeline_mode<synchronous>, transform_indices = @transform_14, window_bounds = array<i64: 1, 4>}, {pipeline_mode = #tpu.pipeline_mode<synchronous>, transform_indices = @transform_15, window_bounds = array<i64: 1, 4>}, {pipeline_mode = #tpu.pipeline_mode<synchronous>, transform_indices = @transform_16, window_bounds = array<i64: 1, 4>}, {pipeline_mode = #tpu.pipeline_mode<synchronous>, transform_indices = @transform_17, window_bounds = array<i64: 2, 2, 32>}, {pipeline_mode = #tpu.pipeline_mode<synchronous>, transform_indices = @transform_18, window_bounds = array<i64: 2, 32, 96>}, {pipeline_mode = #tpu.pipeline_mode<synchronous>, transform_indices = @transform_19, window_bounds = array<i64: 2, 1, 96>}, {pipeline_mode = #tpu.pipeline_mode<synchronous>, transform_indices = @transform_20, window_bounds = array<i64: 2, 32, 32>}, {pipeline_mode = #tpu.pipeline_mode<synchronous>, transform_indices = @transform_21, window_bounds = array<i64: 2, 1, 32>}, {pipeline_mode = #tpu.pipeline_mode<synchronous>, transform_indices = @transform_22, window_bounds = array<i64: 2, 2, 32>}, {pipeline_mode = #tpu.pipeline_mode<synchronous>, transform_indices = @transform_23, window_bounds = array<i64: 2, 32, 128>}, {pipeline_mode = #tpu.pipeline_mode<synchronous>, transform_indices = @transform_24, window_bounds = array<i64: 2, 1, 128>}, {pipeline_mode = #tpu.pipeline_mode<synchronous>, transform_indices = @transform_25, window_bounds = array<i64: 2, 128, 32>}, {pipeline_mode = #tpu.pipeline_mode<synchronous>, transform_indices = @transform_26, window_bounds = array<i64: 2, 1, 32>}, {pipeline_mode = #tpu.pipeline_mode<synchronous>, transform_indices = @transform_27, window_bounds = array<i64: 2, 2, 32>}, {pipeline_mode = #tpu.pipeline_mode<synchronous>, transform_indices = @transform_28, window_bounds = array<i64: 2, 32, 96>}, {pipeline_mode = #tpu.pipeline_mode<synchronous>, transform_indices = @transform_29, window_bounds = array<i64: 2, 1, 96>}, {pipeline_mode = #tpu.pipeline_mode<synchronous>, transform_indices = @transform_30, window_bounds = array<i64: 2, 32, 32>}, {pipeline_mode = #tpu.pipeline_mode<synchronous>, transform_indices = @transform_31, window_bounds = array<i64: 2, 1, 32>}, {pipeline_mode = #tpu.pipeline_mode<synchronous>, transform_indices = @transform_32, window_bounds = array<i64: 2, 2, 32>}, {pipeline_mode = #tpu.pipeline_mode<synchronous>, transform_indices = @transform_33, window_bounds = array<i64: 2, 32, 32>}, {pipeline_mode = #tpu.pipeline_mode<synchronous>, transform_indices = @transform_34, window_bounds = array<i64: 2, 1, 32>}, {pipeline_mode = #tpu.pipeline_mode<synchronous>, transform_indices = @transform_35, window_bounds = array<i64: 2, 32, 64>}, {pipeline_mode = #tpu.pipeline_mode<synchronous>, transform_indices = @transform_36, window_bounds = array<i64: 2, 1, 64>}, {pipeline_mode = #tpu.pipeline_mode<synchronous>, transform_indices = @transform_37, window_bounds = array<i64: 2, 32, 32>}, {pipeline_mode = #tpu.pipeline_mode<synchronous>, transform_indices = @transform_38, window_bounds = array<i64: 2, 1, 32>}, {pipeline_mode = #tpu.pipeline_mode<synchronous>, transform_indices = @transform_39, window_bounds = array<i64: 2, 2, 32>}, {pipeline_mode = #tpu.pipeline_mode<synchronous>, transform_indices = @transform_40, window_bounds = array<i64: 2, 32, 128>}, {pipeline_mode = #tpu.pipeline_mode<synchronous>, transform_indices = @transform_41, window_bounds = array<i64: 2, 1, 128>}, {pipeline_mode = #tpu.pipeline_mode<synchronous>, transform_indices = @transform_42, window_bounds = array<i64: 2, 128, 32>}, {pipeline_mode = #tpu.pipeline_mode<synchronous>, transform_indices = @transform_43, window_bounds = array<i64: 2, 1, 32>}, {transform_indices = @transform_44, window_bounds = array<i64: 1, 16, 4>}, {transform_indices = @transform_45, window_bounds = array<i64: 1, 1, 1>}]} {
    %c0 = arith.constant 0 : index
    %c0_0 = arith.constant 0 : index
    %c0_1 = arith.constant 0 : index
    %0 = vector.load %arg1[%c0, %c0_0, %c0_1] : memref<1x48x4xf32, #tpu.memory_space<vmem>>, vector<1x48x4xf32>
    %1 = vector.shape_cast %0 : vector<1x48x4xf32> to vector<48x4xf32>
    %c0_2 = arith.constant 0 : index
    %c0_3 = arith.constant 0 : index
    %c0_4 = arith.constant 0 : index
    %2 = vector.load %arg2[%c0_2, %c0_3, %c0_4] : memref<1x16x4xf32, #tpu.memory_space<vmem>>, vector<1x16x4xf32>
    %3 = vector.shape_cast %2 : vector<1x16x4xf32> to vector<16x4xf32>
    %c0_5 = arith.constant 0 : index
    %c0_6 = arith.constant 0 : index
    %4 = vector.load %arg5[%c0_5, %c0_6] : memref<4x32xf32, #tpu.memory_space<vmem>>, vector<4x32xf32>
    %c0_7 = arith.constant 0 : index
    %c0_8 = arith.constant 0 : index
    %5 = vector.load %arg6[%c0_7, %c0_8] : memref<1x32xf32, #tpu.memory_space<vmem>>, vector<1x32xf32>
    %cst = arith.constant dense<0.000000e+00> : vector<48x32xf32>
    %6 = tpu.matmul %1, %4, %cst {dimension_numbers = #tpu.dot_dimension_numbers<[1], [0], [0], [1], [0, 0, 1, 1], [], []>} : vector<48x4xf32>, vector<4x32xf32>, vector<48x32xf32> -> vector<48x32xf32>
    %7 = vector.broadcast %5 : vector<1x32xf32> to vector<48x32xf32>
    %8 = arith.addf %6, %7 : vector<48x32xf32>
    %c0_9 = arith.constant 0 : index
    %c0_10 = arith.constant 0 : index
    %9 = vector.load %arg7[%c0_9, %c0_10] : memref<48x32xf32, #tpu.memory_space<vmem>>, vector<48x32xf32>
    %10 = arith.addf %8, %9 : vector<48x32xf32>
    %cst_11 = arith.constant dense<0.000000e+00> : vector<16x32xf32>
    %11 = tpu.matmul %3, %4, %cst_11 {dimension_numbers = #tpu.dot_dimension_numbers<[1], [0], [0], [1], [0, 0, 1, 1], [], []>} : vector<16x4xf32>, vector<4x32xf32>, vector<16x32xf32> -> vector<16x32xf32>
    %12 = vector.broadcast %5 : vector<1x32xf32> to vector<16x32xf32>
    %13 = arith.addf %11, %12 : vector<16x32xf32>
    %c0_12 = arith.constant 0 : index
    %c0_13 = arith.constant 0 : index
    %14 = vector.load %arg8[%c0_12, %c0_13] : memref<16x32xf32, #tpu.memory_space<vmem>>, vector<16x32xf32>
    %15 = arith.addf %13, %14 : vector<16x32xf32>
    %c0_14 = arith.constant 0 : index
    %c0_15 = arith.constant 0 : index
    %c0_16 = arith.constant 0 : index
    %16 = vector.load %arg3[%c0_14, %c0_15, %c0_16] : memref<1x1x1xf32, #tpu.memory_space<vmem>>, vector<1x1x1xf32>
    %17 = vector.shape_cast %16 : vector<1x1x1xf32> to vector<1x1xf32>
    %18 = vector.broadcast %17 : vector<1x1xf32> to vector<16x32xf32>
    %19 = arith.mulf %18, %15 : vector<16x32xf32>
    %c0_17 = arith.constant 0 : index
    %c0_18 = arith.constant 0 : index
    %c0_19 = arith.constant 0 : index
    %20 = vector.load %arg4[%c0_17, %c0_18, %c0_19] : memref<1x16x32xf32, #tpu.memory_space<vmem>>, vector<1x16x32xf32>
    %21 = vector.shape_cast %20 : vector<1x16x32xf32> to vector<16x32xf32>
    %22 = arith.addf %19, %21 : vector<16x32xf32>
    %c0_20 = arith.constant 0 : index
    %c0_21 = arith.constant 0 : index
    %c0_22 = arith.constant 0 : index
    %23 = vector.load %arg18[%c0_20, %c0_21, %c0_22] : memref<2x2x32xf32, #tpu.memory_space<vmem>>, vector<1x2x32xf32>
    %24 = vector.shape_cast %23 : vector<1x2x32xf32> to vector<2x32xf32>
    %25 = vector.extract_strided_slice %24 {offsets = [0, 0], sizes = [1, 32], strides = [1, 1]} : vector<2x32xf32> to vector<1x32xf32>
    %26 = vector.extract_strided_slice %24 {offsets = [1, 0], sizes = [1, 32], strides = [1, 1]} : vector<2x32xf32> to vector<1x32xf32>
    %cst_23 = arith.constant dense<0.000000e+00> : vector<48xf32>
    %27 = vector.multi_reduction <add>, %10, %cst_23 [1] : vector<48x32xf32> to vector<48xf32>
    %28 = vector.shape_cast %27 : vector<48xf32> to vector<48x1xf32>
    %cst_24 = arith.constant 3.200000e+01 : f32
    %29 = vector.broadcast %cst_24 : f32 to vector<48x1xf32>
    %30 = arith.divf %28, %29 : vector<48x1xf32>
    %31 = vector.broadcast %30 : vector<48x1xf32> to vector<48x32xf32>
    %32 = arith.subf %10, %31 : vector<48x32xf32>
    %33 = arith.mulf %32, %32 : vector<48x32xf32>
    %cst_25 = arith.constant dense<0.000000e+00> : vector<48xf32>
    %34 = vector.multi_reduction <add>, %33, %cst_25 [1] : vector<48x32xf32> to vector<48xf32>
    %35 = vector.shape_cast %34 : vector<48xf32> to vector<48x1xf32>
    %cst_26 = arith.constant 3.200000e+01 : f32
    %36 = vector.broadcast %cst_26 : f32 to vector<48x1xf32>
    %37 = arith.divf %35, %36 : vector<48x1xf32>
    %38 = vector.broadcast %30 : vector<48x1xf32> to vector<48x32xf32>
    %39 = arith.subf %10, %38 : vector<48x32xf32>
    %cst_27 = arith.constant 9.99999997E-7 : f32
    %40 = vector.broadcast %cst_27 : f32 to vector<48x1xf32>
    %41 = arith.addf %37, %40 : vector<48x1xf32>
    %42 = math.rsqrt %41 : vector<48x1xf32>
    %43 = vector.broadcast %42 : vector<48x1xf32> to vector<48x32xf32>
    %44 = arith.mulf %39, %43 : vector<48x32xf32>
    %45 = vector.broadcast %25 : vector<1x32xf32> to vector<48x32xf32>
    %46 = arith.mulf %44, %45 : vector<48x32xf32>
    %47 = vector.broadcast %26 : vector<1x32xf32> to vector<48x32xf32>
    %48 = arith.addf %46, %47 : vector<48x32xf32>
    %c0_28 = arith.constant 0 : index
    %c0_29 = arith.constant 0 : index
    %c0_30 = arith.constant 0 : index
    %49 = vector.load %arg19[%c0_28, %c0_29, %c0_30] : memref<2x32x96xf32, #tpu.memory_space<vmem>>, vector<1x32x96xf32>
    %50 = vector.shape_cast %49 : vector<1x32x96xf32> to vector<32x96xf32>
    %c0_31 = arith.constant 0 : index
    %c0_32 = arith.constant 0 : index
    %c0_33 = arith.constant 0 : index
    %51 = vector.load %arg20[%c0_31, %c0_32, %c0_33] : memref<2x1x96xf32, #tpu.memory_space<vmem>>, vector<1x1x96xf32>
    %52 = vector.shape_cast %51 : vector<1x1x96xf32> to vector<1x96xf32>
    %cst_34 = arith.constant dense<0.000000e+00> : vector<48x96xf32>
    %53 = tpu.matmul %48, %50, %cst_34 {dimension_numbers = #tpu.dot_dimension_numbers<[1], [0], [0], [1], [0, 0, 1, 1], [], []>} : vector<48x32xf32>, vector<32x96xf32>, vector<48x96xf32> -> vector<48x96xf32>
    %54 = vector.broadcast %52 : vector<1x96xf32> to vector<48x96xf32>
    %55 = arith.addf %53, %54 : vector<48x96xf32>
    %56 = vector.extract_strided_slice %55 {offsets = [0, 0], sizes = [48, 32], strides = [1, 1]} : vector<48x96xf32> to vector<48x32xf32>
    %57 = vector.extract_strided_slice %55 {offsets = [0, 32], sizes = [48, 32], strides = [1, 1]} : vector<48x96xf32> to vector<48x32xf32>
    %58 = vector.extract_strided_slice %55 {offsets = [0, 64], sizes = [48, 32], strides = [1, 1]} : vector<48x96xf32> to vector<48x32xf32>
    %c0_35 = arith.constant 0 : index
    %c0_36 = arith.constant 0 : index
    %c0_37 = arith.constant 0 : index
    %59 = vector.load %arg21[%c0_35, %c0_36, %c0_37] : memref<2x32x32xf32, #tpu.memory_space<vmem>>, vector<1x32x32xf32>
    %60 = vector.shape_cast %59 : vector<1x32x32xf32> to vector<32x32xf32>
    %c0_38 = arith.constant 0 : index
    %c0_39 = arith.constant 0 : index
    %c0_40 = arith.constant 0 : index
    %61 = vector.load %arg22[%c0_38, %c0_39, %c0_40] : memref<2x1x32xf32, #tpu.memory_space<vmem>>, vector<1x1x32xf32>
    %62 = vector.shape_cast %61 : vector<1x1x32xf32> to vector<1x32xf32>
    %63 = vector.extract_strided_slice %56 {offsets = [0, 0], sizes = [48, 16], strides = [1, 1]} : vector<48x32xf32> to vector<48x16xf32>
    %64 = vector.extract_strided_slice %57 {offsets = [0, 0], sizes = [48, 16], strides = [1, 1]} : vector<48x32xf32> to vector<48x16xf32>
    %65 = vector.extract_strided_slice %58 {offsets = [0, 0], sizes = [48, 16], strides = [1, 1]} : vector<48x32xf32> to vector<48x16xf32>
    %cst_41 = arith.constant dense<0.000000e+00> : vector<48x48xf32>
    %66 = tpu.matmul %63, %64, %cst_41 {dimension_numbers = #tpu.dot_dimension_numbers<[1], [1], [0], [0], [0, 0, 1, 0], [], []>} : vector<48x16xf32>, vector<48x16xf32>, vector<48x48xf32> -> vector<48x48xf32>
    %cst_42 = arith.constant 2.500000e-01 : f32
    %67 = vector.broadcast %cst_42 : f32 to vector<48x48xf32>
    %68 = arith.mulf %66, %67 : vector<48x48xf32>
    %cst_43 = arith.constant dense<0xFF800000> : vector<48xf32>
    %69 = vector.multi_reduction <maximumf>, %68, %cst_43 [1] : vector<48x48xf32> to vector<48xf32>
    %70 = vector.shape_cast %69 : vector<48xf32> to vector<48x1xf32>
    %71 = vector.broadcast %70 : vector<48x1xf32> to vector<48x48xf32>
    %72 = arith.subf %68, %71 : vector<48x48xf32>
    %73 = math.exp %72 : vector<48x48xf32>
    %cst_44 = arith.constant dense<0.000000e+00> : vector<48xf32>
    %74 = vector.multi_reduction <add>, %73, %cst_44 [1] : vector<48x48xf32> to vector<48xf32>
    %75 = vector.shape_cast %74 : vector<48xf32> to vector<48x1xf32>
    %76 = tpu.reciprocal %75 {approx = true} : vector<48x1xf32> -> vector<48x1xf32>
    %77 = vector.broadcast %76 : vector<48x1xf32> to vector<48x48xf32>
    %78 = arith.mulf %73, %77 : vector<48x48xf32>
    %cst_45 = arith.constant dense<0.000000e+00> : vector<48x16xf32>
    %79 = tpu.matmul %78, %65, %cst_45 {dimension_numbers = #tpu.dot_dimension_numbers<[1], [0], [0], [1], [0, 0, 1, 1], [], []>} : vector<48x48xf32>, vector<48x16xf32>, vector<48x16xf32> -> vector<48x16xf32>
    %80 = vector.extract_strided_slice %60 {offsets = [0, 0], sizes = [16, 32], strides = [1, 1]} : vector<32x32xf32> to vector<16x32xf32>
    %cst_46 = arith.constant dense<0.000000e+00> : vector<48x32xf32>
    %81 = tpu.matmul %79, %80, %cst_46 {dimension_numbers = #tpu.dot_dimension_numbers<[1], [0], [0], [1], [0, 0, 1, 1], [], []>} : vector<48x16xf32>, vector<16x32xf32>, vector<48x32xf32> -> vector<48x32xf32>
    %82 = vector.extract_strided_slice %56 {offsets = [0, 16], sizes = [48, 16], strides = [1, 1]} : vector<48x32xf32> to vector<48x16xf32>
    %83 = vector.extract_strided_slice %57 {offsets = [0, 16], sizes = [48, 16], strides = [1, 1]} : vector<48x32xf32> to vector<48x16xf32>
    %84 = vector.extract_strided_slice %58 {offsets = [0, 16], sizes = [48, 16], strides = [1, 1]} : vector<48x32xf32> to vector<48x16xf32>
    %cst_47 = arith.constant dense<0.000000e+00> : vector<48x48xf32>
    %85 = tpu.matmul %82, %83, %cst_47 {dimension_numbers = #tpu.dot_dimension_numbers<[1], [1], [0], [0], [0, 0, 1, 0], [], []>} : vector<48x16xf32>, vector<48x16xf32>, vector<48x48xf32> -> vector<48x48xf32>
    %cst_48 = arith.constant 2.500000e-01 : f32
    %86 = vector.broadcast %cst_48 : f32 to vector<48x48xf32>
    %87 = arith.mulf %85, %86 : vector<48x48xf32>
    %cst_49 = arith.constant dense<0xFF800000> : vector<48xf32>
    %88 = vector.multi_reduction <maximumf>, %87, %cst_49 [1] : vector<48x48xf32> to vector<48xf32>
    %89 = vector.shape_cast %88 : vector<48xf32> to vector<48x1xf32>
    %90 = vector.broadcast %89 : vector<48x1xf32> to vector<48x48xf32>
    %91 = arith.subf %87, %90 : vector<48x48xf32>
    %92 = math.exp %91 : vector<48x48xf32>
    %cst_50 = arith.constant dense<0.000000e+00> : vector<48xf32>
    %93 = vector.multi_reduction <add>, %92, %cst_50 [1] : vector<48x48xf32> to vector<48xf32>
    %94 = vector.shape_cast %93 : vector<48xf32> to vector<48x1xf32>
    %95 = tpu.reciprocal %94 {approx = true} : vector<48x1xf32> -> vector<48x1xf32>
    %96 = vector.broadcast %95 : vector<48x1xf32> to vector<48x48xf32>
    %97 = arith.mulf %92, %96 : vector<48x48xf32>
    %cst_51 = arith.constant dense<0.000000e+00> : vector<48x16xf32>
    %98 = tpu.matmul %97, %84, %cst_51 {dimension_numbers = #tpu.dot_dimension_numbers<[1], [0], [0], [1], [0, 0, 1, 1], [], []>} : vector<48x48xf32>, vector<48x16xf32>, vector<48x16xf32> -> vector<48x16xf32>
    %99 = vector.extract_strided_slice %60 {offsets = [16, 0], sizes = [16, 32], strides = [1, 1]} : vector<32x32xf32> to vector<16x32xf32>
    %cst_52 = arith.constant dense<0.000000e+00> : vector<48x32xf32>
    %100 = tpu.matmul %98, %99, %cst_52 {dimension_numbers = #tpu.dot_dimension_numbers<[1], [0], [0], [1], [0, 0, 1, 1], [], []>} : vector<48x16xf32>, vector<16x32xf32>, vector<48x32xf32> -> vector<48x32xf32>
    %101 = arith.addf %81, %100 : vector<48x32xf32>
    %102 = vector.broadcast %62 : vector<1x32xf32> to vector<48x32xf32>
    %103 = arith.addf %101, %102 : vector<48x32xf32>
    %104 = arith.addf %10, %103 : vector<48x32xf32>
    %c0_53 = arith.constant 0 : index
    %c0_54 = arith.constant 0 : index
    %c0_55 = arith.constant 0 : index
    %105 = vector.load %arg23[%c0_53, %c0_54, %c0_55] : memref<2x2x32xf32, #tpu.memory_space<vmem>>, vector<1x2x32xf32>
    %106 = vector.shape_cast %105 : vector<1x2x32xf32> to vector<2x32xf32>
    %107 = vector.extract_strided_slice %106 {offsets = [0, 0], sizes = [1, 32], strides = [1, 1]} : vector<2x32xf32> to vector<1x32xf32>
    %108 = vector.extract_strided_slice %106 {offsets = [1, 0], sizes = [1, 32], strides = [1, 1]} : vector<2x32xf32> to vector<1x32xf32>
    %cst_56 = arith.constant dense<0.000000e+00> : vector<48xf32>
    %109 = vector.multi_reduction <add>, %104, %cst_56 [1] : vector<48x32xf32> to vector<48xf32>
    %110 = vector.shape_cast %109 : vector<48xf32> to vector<48x1xf32>
    %cst_57 = arith.constant 3.200000e+01 : f32
    %111 = vector.broadcast %cst_57 : f32 to vector<48x1xf32>
    %112 = arith.divf %110, %111 : vector<48x1xf32>
    %113 = vector.broadcast %112 : vector<48x1xf32> to vector<48x32xf32>
    %114 = arith.subf %104, %113 : vector<48x32xf32>
    %115 = arith.mulf %114, %114 : vector<48x32xf32>
    %cst_58 = arith.constant dense<0.000000e+00> : vector<48xf32>
    %116 = vector.multi_reduction <add>, %115, %cst_58 [1] : vector<48x32xf32> to vector<48xf32>
    %117 = vector.shape_cast %116 : vector<48xf32> to vector<48x1xf32>
    %cst_59 = arith.constant 3.200000e+01 : f32
    %118 = vector.broadcast %cst_59 : f32 to vector<48x1xf32>
    %119 = arith.divf %117, %118 : vector<48x1xf32>
    %120 = vector.broadcast %112 : vector<48x1xf32> to vector<48x32xf32>
    %121 = arith.subf %104, %120 : vector<48x32xf32>
    %cst_60 = arith.constant 9.99999997E-7 : f32
    %122 = vector.broadcast %cst_60 : f32 to vector<48x1xf32>
    %123 = arith.addf %119, %122 : vector<48x1xf32>
    %124 = math.rsqrt %123 : vector<48x1xf32>
    %125 = vector.broadcast %124 : vector<48x1xf32> to vector<48x32xf32>
    %126 = arith.mulf %121, %125 : vector<48x32xf32>
    %127 = vector.broadcast %107 : vector<1x32xf32> to vector<48x32xf32>
    %128 = arith.mulf %126, %127 : vector<48x32xf32>
    %129 = vector.broadcast %108 : vector<1x32xf32> to vector<48x32xf32>
    %130 = arith.addf %128, %129 : vector<48x32xf32>
    %c0_61 = arith.constant 0 : index
    %c0_62 = arith.constant 0 : index
    %c0_63 = arith.constant 0 : index
    %131 = vector.load %arg24[%c0_61, %c0_62, %c0_63] : memref<2x32x128xf32, #tpu.memory_space<vmem>>, vector<1x32x128xf32>
    %132 = vector.shape_cast %131 : vector<1x32x128xf32> to vector<32x128xf32>
    %c0_64 = arith.constant 0 : index
    %c0_65 = arith.constant 0 : index
    %c0_66 = arith.constant 0 : index
    %133 = vector.load %arg25[%c0_64, %c0_65, %c0_66] : memref<2x1x128xf32, #tpu.memory_space<vmem>>, vector<1x1x128xf32>
    %134 = vector.shape_cast %133 : vector<1x1x128xf32> to vector<1x128xf32>
    %cst_67 = arith.constant dense<0.000000e+00> : vector<48x128xf32>
    %135 = tpu.matmul %130, %132, %cst_67 {dimension_numbers = #tpu.dot_dimension_numbers<[1], [0], [0], [1], [0, 0, 1, 1], [], []>} : vector<48x32xf32>, vector<32x128xf32>, vector<48x128xf32> -> vector<48x128xf32>
    %136 = vector.broadcast %134 : vector<1x128xf32> to vector<48x128xf32>
    %137 = arith.addf %135, %136 : vector<48x128xf32>
    %cst_68 = arith.constant 5.000000e-01 : f32
    %138 = vector.broadcast %cst_68 : f32 to vector<48x128xf32>
    %139 = arith.mulf %138, %137 : vector<48x128xf32>
    %cst_69 = arith.constant 4.471500e-02 : f32
    %140 = vector.broadcast %cst_69 : f32 to vector<48x128xf32>
    %141 = arith.mulf %140, %137 : vector<48x128xf32>
    %142 = arith.mulf %141, %137 : vector<48x128xf32>
    %143 = arith.mulf %142, %137 : vector<48x128xf32>
    %144 = arith.addf %137, %143 : vector<48x128xf32>
    %cst_70 = arith.constant 0.797884583 : f32
    %145 = vector.broadcast %cst_70 : f32 to vector<48x128xf32>
    %146 = arith.mulf %145, %144 : vector<48x128xf32>
    %147 = math.tanh %146 : vector<48x128xf32>
    %cst_71 = arith.constant 1.000000e+00 : f32
    %148 = vector.broadcast %cst_71 : f32 to vector<48x128xf32>
    %149 = arith.addf %148, %147 : vector<48x128xf32>
    %150 = arith.mulf %139, %149 : vector<48x128xf32>
    %c0_72 = arith.constant 0 : index
    %c0_73 = arith.constant 0 : index
    %c0_74 = arith.constant 0 : index
    %151 = vector.load %arg26[%c0_72, %c0_73, %c0_74] : memref<2x128x32xf32, #tpu.memory_space<vmem>>, vector<1x128x32xf32>
    %152 = vector.shape_cast %151 : vector<1x128x32xf32> to vector<128x32xf32>
    %c0_75 = arith.constant 0 : index
    %c0_76 = arith.constant 0 : index
    %c0_77 = arith.constant 0 : index
    %153 = vector.load %arg27[%c0_75, %c0_76, %c0_77] : memref<2x1x32xf32, #tpu.memory_space<vmem>>, vector<1x1x32xf32>
    %154 = vector.shape_cast %153 : vector<1x1x32xf32> to vector<1x32xf32>
    %cst_78 = arith.constant dense<0.000000e+00> : vector<48x32xf32>
    %155 = tpu.matmul %150, %152, %cst_78 {dimension_numbers = #tpu.dot_dimension_numbers<[1], [0], [0], [1], [0, 0, 1, 1], [], []>} : vector<48x128xf32>, vector<128x32xf32>, vector<48x32xf32> -> vector<48x32xf32>
    %156 = vector.broadcast %154 : vector<1x32xf32> to vector<48x32xf32>
    %157 = arith.addf %155, %156 : vector<48x32xf32>
    %158 = arith.addf %104, %157 : vector<48x32xf32>
    %c1 = arith.constant 1 : index
    %c0_79 = arith.constant 0 : index
    %c0_80 = arith.constant 0 : index
    %159 = vector.load %arg18[%c1, %c0_79, %c0_80] : memref<2x2x32xf32, #tpu.memory_space<vmem>>, vector<1x2x32xf32>
    %160 = vector.shape_cast %159 : vector<1x2x32xf32> to vector<2x32xf32>
    %161 = vector.extract_strided_slice %160 {offsets = [0, 0], sizes = [1, 32], strides = [1, 1]} : vector<2x32xf32> to vector<1x32xf32>
    %162 = vector.extract_strided_slice %160 {offsets = [1, 0], sizes = [1, 32], strides = [1, 1]} : vector<2x32xf32> to vector<1x32xf32>
    %cst_81 = arith.constant dense<0.000000e+00> : vector<48xf32>
    %163 = vector.multi_reduction <add>, %158, %cst_81 [1] : vector<48x32xf32> to vector<48xf32>
    %164 = vector.shape_cast %163 : vector<48xf32> to vector<48x1xf32>
    %cst_82 = arith.constant 3.200000e+01 : f32
    %165 = vector.broadcast %cst_82 : f32 to vector<48x1xf32>
    %166 = arith.divf %164, %165 : vector<48x1xf32>
    %167 = vector.broadcast %166 : vector<48x1xf32> to vector<48x32xf32>
    %168 = arith.subf %158, %167 : vector<48x32xf32>
    %169 = arith.mulf %168, %168 : vector<48x32xf32>
    %cst_83 = arith.constant dense<0.000000e+00> : vector<48xf32>
    %170 = vector.multi_reduction <add>, %169, %cst_83 [1] : vector<48x32xf32> to vector<48xf32>
    %171 = vector.shape_cast %170 : vector<48xf32> to vector<48x1xf32>
    %cst_84 = arith.constant 3.200000e+01 : f32
    %172 = vector.broadcast %cst_84 : f32 to vector<48x1xf32>
    %173 = arith.divf %171, %172 : vector<48x1xf32>
    %174 = vector.broadcast %166 : vector<48x1xf32> to vector<48x32xf32>
    %175 = arith.subf %158, %174 : vector<48x32xf32>
    %cst_85 = arith.constant 9.99999997E-7 : f32
    %176 = vector.broadcast %cst_85 : f32 to vector<48x1xf32>
    %177 = arith.addf %173, %176 : vector<48x1xf32>
    %178 = math.rsqrt %177 : vector<48x1xf32>
    %179 = vector.broadcast %178 : vector<48x1xf32> to vector<48x32xf32>
    %180 = arith.mulf %175, %179 : vector<48x32xf32>
    %181 = vector.broadcast %161 : vector<1x32xf32> to vector<48x32xf32>
    %182 = arith.mulf %180, %181 : vector<48x32xf32>
    %183 = vector.broadcast %162 : vector<1x32xf32> to vector<48x32xf32>
    %184 = arith.addf %182, %183 : vector<48x32xf32>
    %c1_86 = arith.constant 1 : index
    %c0_87 = arith.constant 0 : index
    %c0_88 = arith.constant 0 : index
    %185 = vector.load %arg19[%c1_86, %c0_87, %c0_88] : memref<2x32x96xf32, #tpu.memory_space<vmem>>, vector<1x32x96xf32>
    %186 = vector.shape_cast %185 : vector<1x32x96xf32> to vector<32x96xf32>
    %c1_89 = arith.constant 1 : index
    %c0_90 = arith.constant 0 : index
    %c0_91 = arith.constant 0 : index
    %187 = vector.load %arg20[%c1_89, %c0_90, %c0_91] : memref<2x1x96xf32, #tpu.memory_space<vmem>>, vector<1x1x96xf32>
    %188 = vector.shape_cast %187 : vector<1x1x96xf32> to vector<1x96xf32>
    %cst_92 = arith.constant dense<0.000000e+00> : vector<48x96xf32>
    %189 = tpu.matmul %184, %186, %cst_92 {dimension_numbers = #tpu.dot_dimension_numbers<[1], [0], [0], [1], [0, 0, 1, 1], [], []>} : vector<48x32xf32>, vector<32x96xf32>, vector<48x96xf32> -> vector<48x96xf32>
    %190 = vector.broadcast %188 : vector<1x96xf32> to vector<48x96xf32>
    %191 = arith.addf %189, %190 : vector<48x96xf32>
    %192 = vector.extract_strided_slice %191 {offsets = [0, 0], sizes = [48, 32], strides = [1, 1]} : vector<48x96xf32> to vector<48x32xf32>
    %193 = vector.extract_strided_slice %191 {offsets = [0, 32], sizes = [48, 32], strides = [1, 1]} : vector<48x96xf32> to vector<48x32xf32>
    %194 = vector.extract_strided_slice %191 {offsets = [0, 64], sizes = [48, 32], strides = [1, 1]} : vector<48x96xf32> to vector<48x32xf32>
    %c1_93 = arith.constant 1 : index
    %c0_94 = arith.constant 0 : index
    %c0_95 = arith.constant 0 : index
    %195 = vector.load %arg21[%c1_93, %c0_94, %c0_95] : memref<2x32x32xf32, #tpu.memory_space<vmem>>, vector<1x32x32xf32>
    %196 = vector.shape_cast %195 : vector<1x32x32xf32> to vector<32x32xf32>
    %c1_96 = arith.constant 1 : index
    %c0_97 = arith.constant 0 : index
    %c0_98 = arith.constant 0 : index
    %197 = vector.load %arg22[%c1_96, %c0_97, %c0_98] : memref<2x1x32xf32, #tpu.memory_space<vmem>>, vector<1x1x32xf32>
    %198 = vector.shape_cast %197 : vector<1x1x32xf32> to vector<1x32xf32>
    %199 = vector.extract_strided_slice %192 {offsets = [0, 0], sizes = [48, 16], strides = [1, 1]} : vector<48x32xf32> to vector<48x16xf32>
    %200 = vector.extract_strided_slice %193 {offsets = [0, 0], sizes = [48, 16], strides = [1, 1]} : vector<48x32xf32> to vector<48x16xf32>
    %201 = vector.extract_strided_slice %194 {offsets = [0, 0], sizes = [48, 16], strides = [1, 1]} : vector<48x32xf32> to vector<48x16xf32>
    %cst_99 = arith.constant dense<0.000000e+00> : vector<48x48xf32>
    %202 = tpu.matmul %199, %200, %cst_99 {dimension_numbers = #tpu.dot_dimension_numbers<[1], [1], [0], [0], [0, 0, 1, 0], [], []>} : vector<48x16xf32>, vector<48x16xf32>, vector<48x48xf32> -> vector<48x48xf32>
    %cst_100 = arith.constant 2.500000e-01 : f32
    %203 = vector.broadcast %cst_100 : f32 to vector<48x48xf32>
    %204 = arith.mulf %202, %203 : vector<48x48xf32>
    %cst_101 = arith.constant dense<0xFF800000> : vector<48xf32>
    %205 = vector.multi_reduction <maximumf>, %204, %cst_101 [1] : vector<48x48xf32> to vector<48xf32>
    %206 = vector.shape_cast %205 : vector<48xf32> to vector<48x1xf32>
    %207 = vector.broadcast %206 : vector<48x1xf32> to vector<48x48xf32>
    %208 = arith.subf %204, %207 : vector<48x48xf32>
    %209 = math.exp %208 : vector<48x48xf32>
    %cst_102 = arith.constant dense<0.000000e+00> : vector<48xf32>
    %210 = vector.multi_reduction <add>, %209, %cst_102 [1] : vector<48x48xf32> to vector<48xf32>
    %211 = vector.shape_cast %210 : vector<48xf32> to vector<48x1xf32>
    %212 = tpu.reciprocal %211 {approx = true} : vector<48x1xf32> -> vector<48x1xf32>
    %213 = vector.broadcast %212 : vector<48x1xf32> to vector<48x48xf32>
    %214 = arith.mulf %209, %213 : vector<48x48xf32>
    %cst_103 = arith.constant dense<0.000000e+00> : vector<48x16xf32>
    %215 = tpu.matmul %214, %201, %cst_103 {dimension_numbers = #tpu.dot_dimension_numbers<[1], [0], [0], [1], [0, 0, 1, 1], [], []>} : vector<48x48xf32>, vector<48x16xf32>, vector<48x16xf32> -> vector<48x16xf32>
    %216 = vector.extract_strided_slice %196 {offsets = [0, 0], sizes = [16, 32], strides = [1, 1]} : vector<32x32xf32> to vector<16x32xf32>
    %cst_104 = arith.constant dense<0.000000e+00> : vector<48x32xf32>
    %217 = tpu.matmul %215, %216, %cst_104 {dimension_numbers = #tpu.dot_dimension_numbers<[1], [0], [0], [1], [0, 0, 1, 1], [], []>} : vector<48x16xf32>, vector<16x32xf32>, vector<48x32xf32> -> vector<48x32xf32>
    %218 = vector.extract_strided_slice %192 {offsets = [0, 16], sizes = [48, 16], strides = [1, 1]} : vector<48x32xf32> to vector<48x16xf32>
    %219 = vector.extract_strided_slice %193 {offsets = [0, 16], sizes = [48, 16], strides = [1, 1]} : vector<48x32xf32> to vector<48x16xf32>
    %220 = vector.extract_strided_slice %194 {offsets = [0, 16], sizes = [48, 16], strides = [1, 1]} : vector<48x32xf32> to vector<48x16xf32>
    %cst_105 = arith.constant dense<0.000000e+00> : vector<48x48xf32>
    %221 = tpu.matmul %218, %219, %cst_105 {dimension_numbers = #tpu.dot_dimension_numbers<[1], [1], [0], [0], [0, 0, 1, 0], [], []>} : vector<48x16xf32>, vector<48x16xf32>, vector<48x48xf32> -> vector<48x48xf32>
    %cst_106 = arith.constant 2.500000e-01 : f32
    %222 = vector.broadcast %cst_106 : f32 to vector<48x48xf32>
    %223 = arith.mulf %221, %222 : vector<48x48xf32>
    %cst_107 = arith.constant dense<0xFF800000> : vector<48xf32>
    %224 = vector.multi_reduction <maximumf>, %223, %cst_107 [1] : vector<48x48xf32> to vector<48xf32>
    %225 = vector.shape_cast %224 : vector<48xf32> to vector<48x1xf32>
    %226 = vector.broadcast %225 : vector<48x1xf32> to vector<48x48xf32>
    %227 = arith.subf %223, %226 : vector<48x48xf32>
    %228 = math.exp %227 : vector<48x48xf32>
    %cst_108 = arith.constant dense<0.000000e+00> : vector<48xf32>
    %229 = vector.multi_reduction <add>, %228, %cst_108 [1] : vector<48x48xf32> to vector<48xf32>
    %230 = vector.shape_cast %229 : vector<48xf32> to vector<48x1xf32>
    %231 = tpu.reciprocal %230 {approx = true} : vector<48x1xf32> -> vector<48x1xf32>
    %232 = vector.broadcast %231 : vector<48x1xf32> to vector<48x48xf32>
    %233 = arith.mulf %228, %232 : vector<48x48xf32>
    %cst_109 = arith.constant dense<0.000000e+00> : vector<48x16xf32>
    %234 = tpu.matmul %233, %220, %cst_109 {dimension_numbers = #tpu.dot_dimension_numbers<[1], [0], [0], [1], [0, 0, 1, 1], [], []>} : vector<48x48xf32>, vector<48x16xf32>, vector<48x16xf32> -> vector<48x16xf32>
    %235 = vector.extract_strided_slice %196 {offsets = [16, 0], sizes = [16, 32], strides = [1, 1]} : vector<32x32xf32> to vector<16x32xf32>
    %cst_110 = arith.constant dense<0.000000e+00> : vector<48x32xf32>
    %236 = tpu.matmul %234, %235, %cst_110 {dimension_numbers = #tpu.dot_dimension_numbers<[1], [0], [0], [1], [0, 0, 1, 1], [], []>} : vector<48x16xf32>, vector<16x32xf32>, vector<48x32xf32> -> vector<48x32xf32>
    %237 = arith.addf %217, %236 : vector<48x32xf32>
    %238 = vector.broadcast %198 : vector<1x32xf32> to vector<48x32xf32>
    %239 = arith.addf %237, %238 : vector<48x32xf32>
    %240 = arith.addf %158, %239 : vector<48x32xf32>
    %c1_111 = arith.constant 1 : index
    %c0_112 = arith.constant 0 : index
    %c0_113 = arith.constant 0 : index
    %241 = vector.load %arg23[%c1_111, %c0_112, %c0_113] : memref<2x2x32xf32, #tpu.memory_space<vmem>>, vector<1x2x32xf32>
    %242 = vector.shape_cast %241 : vector<1x2x32xf32> to vector<2x32xf32>
    %243 = vector.extract_strided_slice %242 {offsets = [0, 0], sizes = [1, 32], strides = [1, 1]} : vector<2x32xf32> to vector<1x32xf32>
    %244 = vector.extract_strided_slice %242 {offsets = [1, 0], sizes = [1, 32], strides = [1, 1]} : vector<2x32xf32> to vector<1x32xf32>
    %cst_114 = arith.constant dense<0.000000e+00> : vector<48xf32>
    %245 = vector.multi_reduction <add>, %240, %cst_114 [1] : vector<48x32xf32> to vector<48xf32>
    %246 = vector.shape_cast %245 : vector<48xf32> to vector<48x1xf32>
    %cst_115 = arith.constant 3.200000e+01 : f32
    %247 = vector.broadcast %cst_115 : f32 to vector<48x1xf32>
    %248 = arith.divf %246, %247 : vector<48x1xf32>
    %249 = vector.broadcast %248 : vector<48x1xf32> to vector<48x32xf32>
    %250 = arith.subf %240, %249 : vector<48x32xf32>
    %251 = arith.mulf %250, %250 : vector<48x32xf32>
    %cst_116 = arith.constant dense<0.000000e+00> : vector<48xf32>
    %252 = vector.multi_reduction <add>, %251, %cst_116 [1] : vector<48x32xf32> to vector<48xf32>
    %253 = vector.shape_cast %252 : vector<48xf32> to vector<48x1xf32>
    %cst_117 = arith.constant 3.200000e+01 : f32
    %254 = vector.broadcast %cst_117 : f32 to vector<48x1xf32>
    %255 = arith.divf %253, %254 : vector<48x1xf32>
    %256 = vector.broadcast %248 : vector<48x1xf32> to vector<48x32xf32>
    %257 = arith.subf %240, %256 : vector<48x32xf32>
    %cst_118 = arith.constant 9.99999997E-7 : f32
    %258 = vector.broadcast %cst_118 : f32 to vector<48x1xf32>
    %259 = arith.addf %255, %258 : vector<48x1xf32>
    %260 = math.rsqrt %259 : vector<48x1xf32>
    %261 = vector.broadcast %260 : vector<48x1xf32> to vector<48x32xf32>
    %262 = arith.mulf %257, %261 : vector<48x32xf32>
    %263 = vector.broadcast %243 : vector<1x32xf32> to vector<48x32xf32>
    %264 = arith.mulf %262, %263 : vector<48x32xf32>
    %265 = vector.broadcast %244 : vector<1x32xf32> to vector<48x32xf32>
    %266 = arith.addf %264, %265 : vector<48x32xf32>
    %c1_119 = arith.constant 1 : index
    %c0_120 = arith.constant 0 : index
    %c0_121 = arith.constant 0 : index
    %267 = vector.load %arg24[%c1_119, %c0_120, %c0_121] : memref<2x32x128xf32, #tpu.memory_space<vmem>>, vector<1x32x128xf32>
    %268 = vector.shape_cast %267 : vector<1x32x128xf32> to vector<32x128xf32>
    %c1_122 = arith.constant 1 : index
    %c0_123 = arith.constant 0 : index
    %c0_124 = arith.constant 0 : index
    %269 = vector.load %arg25[%c1_122, %c0_123, %c0_124] : memref<2x1x128xf32, #tpu.memory_space<vmem>>, vector<1x1x128xf32>
    %270 = vector.shape_cast %269 : vector<1x1x128xf32> to vector<1x128xf32>
    %cst_125 = arith.constant dense<0.000000e+00> : vector<48x128xf32>
    %271 = tpu.matmul %266, %268, %cst_125 {dimension_numbers = #tpu.dot_dimension_numbers<[1], [0], [0], [1], [0, 0, 1, 1], [], []>} : vector<48x32xf32>, vector<32x128xf32>, vector<48x128xf32> -> vector<48x128xf32>
    %272 = vector.broadcast %270 : vector<1x128xf32> to vector<48x128xf32>
    %273 = arith.addf %271, %272 : vector<48x128xf32>
    %cst_126 = arith.constant 5.000000e-01 : f32
    %274 = vector.broadcast %cst_126 : f32 to vector<48x128xf32>
    %275 = arith.mulf %274, %273 : vector<48x128xf32>
    %cst_127 = arith.constant 4.471500e-02 : f32
    %276 = vector.broadcast %cst_127 : f32 to vector<48x128xf32>
    %277 = arith.mulf %276, %273 : vector<48x128xf32>
    %278 = arith.mulf %277, %273 : vector<48x128xf32>
    %279 = arith.mulf %278, %273 : vector<48x128xf32>
    %280 = arith.addf %273, %279 : vector<48x128xf32>
    %cst_128 = arith.constant 0.797884583 : f32
    %281 = vector.broadcast %cst_128 : f32 to vector<48x128xf32>
    %282 = arith.mulf %281, %280 : vector<48x128xf32>
    %283 = math.tanh %282 : vector<48x128xf32>
    %cst_129 = arith.constant 1.000000e+00 : f32
    %284 = vector.broadcast %cst_129 : f32 to vector<48x128xf32>
    %285 = arith.addf %284, %283 : vector<48x128xf32>
    %286 = arith.mulf %275, %285 : vector<48x128xf32>
    %c1_130 = arith.constant 1 : index
    %c0_131 = arith.constant 0 : index
    %c0_132 = arith.constant 0 : index
    %287 = vector.load %arg26[%c1_130, %c0_131, %c0_132] : memref<2x128x32xf32, #tpu.memory_space<vmem>>, vector<1x128x32xf32>
    %288 = vector.shape_cast %287 : vector<1x128x32xf32> to vector<128x32xf32>
    %c1_133 = arith.constant 1 : index
    %c0_134 = arith.constant 0 : index
    %c0_135 = arith.constant 0 : index
    %289 = vector.load %arg27[%c1_133, %c0_134, %c0_135] : memref<2x1x32xf32, #tpu.memory_space<vmem>>, vector<1x1x32xf32>
    %290 = vector.shape_cast %289 : vector<1x1x32xf32> to vector<1x32xf32>
    %cst_136 = arith.constant dense<0.000000e+00> : vector<48x32xf32>
    %291 = tpu.matmul %286, %288, %cst_136 {dimension_numbers = #tpu.dot_dimension_numbers<[1], [0], [0], [1], [0, 0, 1, 1], [], []>} : vector<48x128xf32>, vector<128x32xf32>, vector<48x32xf32> -> vector<48x32xf32>
    %292 = vector.broadcast %290 : vector<1x32xf32> to vector<48x32xf32>
    %293 = arith.addf %291, %292 : vector<48x32xf32>
    %294 = arith.addf %240, %293 : vector<48x32xf32>
    %c0_137 = arith.constant 0 : index
    %c0_138 = arith.constant 0 : index
    %295 = vector.load %arg9[%c0_137, %c0_138] : memref<2x32xf32, #tpu.memory_space<vmem>>, vector<2x32xf32>
    %296 = vector.extract_strided_slice %295 {offsets = [0, 0], sizes = [1, 32], strides = [1, 1]} : vector<2x32xf32> to vector<1x32xf32>
    %297 = vector.extract_strided_slice %295 {offsets = [1, 0], sizes = [1, 32], strides = [1, 1]} : vector<2x32xf32> to vector<1x32xf32>
    %cst_139 = arith.constant dense<0.000000e+00> : vector<48xf32>
    %298 = vector.multi_reduction <add>, %294, %cst_139 [1] : vector<48x32xf32> to vector<48xf32>
    %299 = vector.shape_cast %298 : vector<48xf32> to vector<48x1xf32>
    %cst_140 = arith.constant 3.200000e+01 : f32
    %300 = vector.broadcast %cst_140 : f32 to vector<48x1xf32>
    %301 = arith.divf %299, %300 : vector<48x1xf32>
    %302 = vector.broadcast %301 : vector<48x1xf32> to vector<48x32xf32>
    %303 = arith.subf %294, %302 : vector<48x32xf32>
    %304 = arith.mulf %303, %303 : vector<48x32xf32>
    %cst_141 = arith.constant dense<0.000000e+00> : vector<48xf32>
    %305 = vector.multi_reduction <add>, %304, %cst_141 [1] : vector<48x32xf32> to vector<48xf32>
    %306 = vector.shape_cast %305 : vector<48xf32> to vector<48x1xf32>
    %cst_142 = arith.constant 3.200000e+01 : f32
    %307 = vector.broadcast %cst_142 : f32 to vector<48x1xf32>
    %308 = arith.divf %306, %307 : vector<48x1xf32>
    %309 = vector.broadcast %301 : vector<48x1xf32> to vector<48x32xf32>
    %310 = arith.subf %294, %309 : vector<48x32xf32>
    %cst_143 = arith.constant 9.99999997E-7 : f32
    %311 = vector.broadcast %cst_143 : f32 to vector<48x1xf32>
    %312 = arith.addf %308, %311 : vector<48x1xf32>
    %313 = math.rsqrt %312 : vector<48x1xf32>
    %314 = vector.broadcast %313 : vector<48x1xf32> to vector<48x32xf32>
    %315 = arith.mulf %310, %314 : vector<48x32xf32>
    %316 = vector.broadcast %296 : vector<1x32xf32> to vector<48x32xf32>
    %317 = arith.mulf %315, %316 : vector<48x32xf32>
    %318 = vector.broadcast %297 : vector<1x32xf32> to vector<48x32xf32>
    %319 = arith.addf %317, %318 : vector<48x32xf32>
    %c0_144 = arith.constant 0 : index
    %c0_145 = arith.constant 0 : index
    %320 = vector.load %arg10[%c0_144, %c0_145] : memref<32x32xf32, #tpu.memory_space<vmem>>, vector<32x32xf32>
    %c0_146 = arith.constant 0 : index
    %c0_147 = arith.constant 0 : index
    %321 = vector.load %arg11[%c0_146, %c0_147] : memref<1x32xf32, #tpu.memory_space<vmem>>, vector<1x32xf32>
    %cst_148 = arith.constant dense<0.000000e+00> : vector<16x32xf32>
    %322 = tpu.matmul %22, %320, %cst_148 {dimension_numbers = #tpu.dot_dimension_numbers<[1], [0], [0], [1], [0, 0, 1, 1], [], []>} : vector<16x32xf32>, vector<32x32xf32>, vector<16x32xf32> -> vector<16x32xf32>
    %323 = vector.broadcast %321 : vector<1x32xf32> to vector<16x32xf32>
    %324 = arith.addf %322, %323 : vector<16x32xf32>
    %c0_149 = arith.constant 0 : index
    %c0_150 = arith.constant 0 : index
    %325 = vector.load %arg12[%c0_149, %c0_150] : memref<16x32xf32, #tpu.memory_space<vmem>>, vector<16x32xf32>
    %326 = arith.addf %324, %325 : vector<16x32xf32>
    %c0_151 = arith.constant 0 : index
    %c0_152 = arith.constant 0 : index
    %c0_153 = arith.constant 0 : index
    %327 = vector.load %arg28[%c0_151, %c0_152, %c0_153] : memref<2x2x32xf32, #tpu.memory_space<vmem>>, vector<1x2x32xf32>
    %328 = vector.shape_cast %327 : vector<1x2x32xf32> to vector<2x32xf32>
    %329 = vector.extract_strided_slice %328 {offsets = [0, 0], sizes = [1, 32], strides = [1, 1]} : vector<2x32xf32> to vector<1x32xf32>
    %330 = vector.extract_strided_slice %328 {offsets = [1, 0], sizes = [1, 32], strides = [1, 1]} : vector<2x32xf32> to vector<1x32xf32>
    %cst_154 = arith.constant dense<0.000000e+00> : vector<16xf32>
    %331 = vector.multi_reduction <add>, %326, %cst_154 [1] : vector<16x32xf32> to vector<16xf32>
    %332 = vector.shape_cast %331 : vector<16xf32> to vector<16x1xf32>
    %cst_155 = arith.constant 3.200000e+01 : f32
    %333 = vector.broadcast %cst_155 : f32 to vector<16x1xf32>
    %334 = arith.divf %332, %333 : vector<16x1xf32>
    %335 = vector.broadcast %334 : vector<16x1xf32> to vector<16x32xf32>
    %336 = arith.subf %326, %335 : vector<16x32xf32>
    %337 = arith.mulf %336, %336 : vector<16x32xf32>
    %cst_156 = arith.constant dense<0.000000e+00> : vector<16xf32>
    %338 = vector.multi_reduction <add>, %337, %cst_156 [1] : vector<16x32xf32> to vector<16xf32>
    %339 = vector.shape_cast %338 : vector<16xf32> to vector<16x1xf32>
    %cst_157 = arith.constant 3.200000e+01 : f32
    %340 = vector.broadcast %cst_157 : f32 to vector<16x1xf32>
    %341 = arith.divf %339, %340 : vector<16x1xf32>
    %342 = vector.broadcast %334 : vector<16x1xf32> to vector<16x32xf32>
    %343 = arith.subf %326, %342 : vector<16x32xf32>
    %cst_158 = arith.constant 9.99999997E-7 : f32
    %344 = vector.broadcast %cst_158 : f32 to vector<16x1xf32>
    %345 = arith.addf %341, %344 : vector<16x1xf32>
    %346 = math.rsqrt %345 : vector<16x1xf32>
    %347 = vector.broadcast %346 : vector<16x1xf32> to vector<16x32xf32>
    %348 = arith.mulf %343, %347 : vector<16x32xf32>
    %349 = vector.broadcast %329 : vector<1x32xf32> to vector<16x32xf32>
    %350 = arith.mulf %348, %349 : vector<16x32xf32>
    %351 = vector.broadcast %330 : vector<1x32xf32> to vector<16x32xf32>
    %352 = arith.addf %350, %351 : vector<16x32xf32>
    %c0_159 = arith.constant 0 : index
    %c0_160 = arith.constant 0 : index
    %c0_161 = arith.constant 0 : index
    %353 = vector.load %arg29[%c0_159, %c0_160, %c0_161] : memref<2x32x96xf32, #tpu.memory_space<vmem>>, vector<1x32x96xf32>
    %354 = vector.shape_cast %353 : vector<1x32x96xf32> to vector<32x96xf32>
    %c0_162 = arith.constant 0 : index
    %c0_163 = arith.constant 0 : index
    %c0_164 = arith.constant 0 : index
    %355 = vector.load %arg30[%c0_162, %c0_163, %c0_164] : memref<2x1x96xf32, #tpu.memory_space<vmem>>, vector<1x1x96xf32>
    %356 = vector.shape_cast %355 : vector<1x1x96xf32> to vector<1x96xf32>
    %cst_165 = arith.constant dense<0.000000e+00> : vector<16x96xf32>
    %357 = tpu.matmul %352, %354, %cst_165 {dimension_numbers = #tpu.dot_dimension_numbers<[1], [0], [0], [1], [0, 0, 1, 1], [], []>} : vector<16x32xf32>, vector<32x96xf32>, vector<16x96xf32> -> vector<16x96xf32>
    %358 = vector.broadcast %356 : vector<1x96xf32> to vector<16x96xf32>
    %359 = arith.addf %357, %358 : vector<16x96xf32>
    %360 = vector.extract_strided_slice %359 {offsets = [0, 0], sizes = [16, 32], strides = [1, 1]} : vector<16x96xf32> to vector<16x32xf32>
    %361 = vector.extract_strided_slice %359 {offsets = [0, 32], sizes = [16, 32], strides = [1, 1]} : vector<16x96xf32> to vector<16x32xf32>
    %362 = vector.extract_strided_slice %359 {offsets = [0, 64], sizes = [16, 32], strides = [1, 1]} : vector<16x96xf32> to vector<16x32xf32>
    %c0_166 = arith.constant 0 : index
    %c0_167 = arith.constant 0 : index
    %c0_168 = arith.constant 0 : index
    %363 = vector.load %arg31[%c0_166, %c0_167, %c0_168] : memref<2x32x32xf32, #tpu.memory_space<vmem>>, vector<1x32x32xf32>
    %364 = vector.shape_cast %363 : vector<1x32x32xf32> to vector<32x32xf32>
    %c0_169 = arith.constant 0 : index
    %c0_170 = arith.constant 0 : index
    %c0_171 = arith.constant 0 : index
    %365 = vector.load %arg32[%c0_169, %c0_170, %c0_171] : memref<2x1x32xf32, #tpu.memory_space<vmem>>, vector<1x1x32xf32>
    %366 = vector.shape_cast %365 : vector<1x1x32xf32> to vector<1x32xf32>
    %367 = vector.extract_strided_slice %360 {offsets = [0, 0], sizes = [16, 16], strides = [1, 1]} : vector<16x32xf32> to vector<16x16xf32>
    %368 = vector.extract_strided_slice %361 {offsets = [0, 0], sizes = [16, 16], strides = [1, 1]} : vector<16x32xf32> to vector<16x16xf32>
    %369 = vector.extract_strided_slice %362 {offsets = [0, 0], sizes = [16, 16], strides = [1, 1]} : vector<16x32xf32> to vector<16x16xf32>
    %cst_172 = arith.constant dense<0.000000e+00> : vector<16x16xf32>
    %370 = tpu.matmul %367, %368, %cst_172 {dimension_numbers = #tpu.dot_dimension_numbers<[1], [1], [0], [0], [0, 0, 1, 0], [], []>} : vector<16x16xf32>, vector<16x16xf32>, vector<16x16xf32> -> vector<16x16xf32>
    %cst_173 = arith.constant 2.500000e-01 : f32
    %371 = vector.broadcast %cst_173 : f32 to vector<16x16xf32>
    %372 = arith.mulf %370, %371 : vector<16x16xf32>
    %cst_174 = arith.constant dense<0xFF800000> : vector<16xf32>
    %373 = vector.multi_reduction <maximumf>, %372, %cst_174 [1] : vector<16x16xf32> to vector<16xf32>
    %374 = vector.shape_cast %373 : vector<16xf32> to vector<16x1xf32>
    %375 = vector.broadcast %374 : vector<16x1xf32> to vector<16x16xf32>
    %376 = arith.subf %372, %375 : vector<16x16xf32>
    %377 = math.exp %376 : vector<16x16xf32>
    %cst_175 = arith.constant dense<0.000000e+00> : vector<16xf32>
    %378 = vector.multi_reduction <add>, %377, %cst_175 [1] : vector<16x16xf32> to vector<16xf32>
    %379 = vector.shape_cast %378 : vector<16xf32> to vector<16x1xf32>
    %380 = tpu.reciprocal %379 {approx = true} : vector<16x1xf32> -> vector<16x1xf32>
    %381 = vector.broadcast %380 : vector<16x1xf32> to vector<16x16xf32>
    %382 = arith.mulf %377, %381 : vector<16x16xf32>
    %cst_176 = arith.constant dense<0.000000e+00> : vector<16x16xf32>
    %383 = tpu.matmul %382, %369, %cst_176 {dimension_numbers = #tpu.dot_dimension_numbers<[1], [0], [0], [1], [0, 0, 1, 1], [], []>} : vector<16x16xf32>, vector<16x16xf32>, vector<16x16xf32> -> vector<16x16xf32>
    %384 = vector.extract_strided_slice %364 {offsets = [0, 0], sizes = [16, 32], strides = [1, 1]} : vector<32x32xf32> to vector<16x32xf32>
    %cst_177 = arith.constant dense<0.000000e+00> : vector<16x32xf32>
    %385 = tpu.matmul %383, %384, %cst_177 {dimension_numbers = #tpu.dot_dimension_numbers<[1], [0], [0], [1], [0, 0, 1, 1], [], []>} : vector<16x16xf32>, vector<16x32xf32>, vector<16x32xf32> -> vector<16x32xf32>
    %386 = vector.extract_strided_slice %360 {offsets = [0, 16], sizes = [16, 16], strides = [1, 1]} : vector<16x32xf32> to vector<16x16xf32>
    %387 = vector.extract_strided_slice %361 {offsets = [0, 16], sizes = [16, 16], strides = [1, 1]} : vector<16x32xf32> to vector<16x16xf32>
    %388 = vector.extract_strided_slice %362 {offsets = [0, 16], sizes = [16, 16], strides = [1, 1]} : vector<16x32xf32> to vector<16x16xf32>
    %cst_178 = arith.constant dense<0.000000e+00> : vector<16x16xf32>
    %389 = tpu.matmul %386, %387, %cst_178 {dimension_numbers = #tpu.dot_dimension_numbers<[1], [1], [0], [0], [0, 0, 1, 0], [], []>} : vector<16x16xf32>, vector<16x16xf32>, vector<16x16xf32> -> vector<16x16xf32>
    %cst_179 = arith.constant 2.500000e-01 : f32
    %390 = vector.broadcast %cst_179 : f32 to vector<16x16xf32>
    %391 = arith.mulf %389, %390 : vector<16x16xf32>
    %cst_180 = arith.constant dense<0xFF800000> : vector<16xf32>
    %392 = vector.multi_reduction <maximumf>, %391, %cst_180 [1] : vector<16x16xf32> to vector<16xf32>
    %393 = vector.shape_cast %392 : vector<16xf32> to vector<16x1xf32>
    %394 = vector.broadcast %393 : vector<16x1xf32> to vector<16x16xf32>
    %395 = arith.subf %391, %394 : vector<16x16xf32>
    %396 = math.exp %395 : vector<16x16xf32>
    %cst_181 = arith.constant dense<0.000000e+00> : vector<16xf32>
    %397 = vector.multi_reduction <add>, %396, %cst_181 [1] : vector<16x16xf32> to vector<16xf32>
    %398 = vector.shape_cast %397 : vector<16xf32> to vector<16x1xf32>
    %399 = tpu.reciprocal %398 {approx = true} : vector<16x1xf32> -> vector<16x1xf32>
    %400 = vector.broadcast %399 : vector<16x1xf32> to vector<16x16xf32>
    %401 = arith.mulf %396, %400 : vector<16x16xf32>
    %cst_182 = arith.constant dense<0.000000e+00> : vector<16x16xf32>
    %402 = tpu.matmul %401, %388, %cst_182 {dimension_numbers = #tpu.dot_dimension_numbers<[1], [0], [0], [1], [0, 0, 1, 1], [], []>} : vector<16x16xf32>, vector<16x16xf32>, vector<16x16xf32> -> vector<16x16xf32>
    %403 = vector.extract_strided_slice %364 {offsets = [16, 0], sizes = [16, 32], strides = [1, 1]} : vector<32x32xf32> to vector<16x32xf32>
    %cst_183 = arith.constant dense<0.000000e+00> : vector<16x32xf32>
    %404 = tpu.matmul %402, %403, %cst_183 {dimension_numbers = #tpu.dot_dimension_numbers<[1], [0], [0], [1], [0, 0, 1, 1], [], []>} : vector<16x16xf32>, vector<16x32xf32>, vector<16x32xf32> -> vector<16x32xf32>
    %405 = arith.addf %385, %404 : vector<16x32xf32>
    %406 = vector.broadcast %366 : vector<1x32xf32> to vector<16x32xf32>
    %407 = arith.addf %405, %406 : vector<16x32xf32>
    %408 = arith.addf %326, %407 : vector<16x32xf32>
    %c0_184 = arith.constant 0 : index
    %c0_185 = arith.constant 0 : index
    %c0_186 = arith.constant 0 : index
    %409 = vector.load %arg33[%c0_184, %c0_185, %c0_186] : memref<2x2x32xf32, #tpu.memory_space<vmem>>, vector<1x2x32xf32>
    %410 = vector.shape_cast %409 : vector<1x2x32xf32> to vector<2x32xf32>
    %411 = vector.extract_strided_slice %410 {offsets = [0, 0], sizes = [1, 32], strides = [1, 1]} : vector<2x32xf32> to vector<1x32xf32>
    %412 = vector.extract_strided_slice %410 {offsets = [1, 0], sizes = [1, 32], strides = [1, 1]} : vector<2x32xf32> to vector<1x32xf32>
    %cst_187 = arith.constant dense<0.000000e+00> : vector<16xf32>
    %413 = vector.multi_reduction <add>, %408, %cst_187 [1] : vector<16x32xf32> to vector<16xf32>
    %414 = vector.shape_cast %413 : vector<16xf32> to vector<16x1xf32>
    %cst_188 = arith.constant 3.200000e+01 : f32
    %415 = vector.broadcast %cst_188 : f32 to vector<16x1xf32>
    %416 = arith.divf %414, %415 : vector<16x1xf32>
    %417 = vector.broadcast %416 : vector<16x1xf32> to vector<16x32xf32>
    %418 = arith.subf %408, %417 : vector<16x32xf32>
    %419 = arith.mulf %418, %418 : vector<16x32xf32>
    %cst_189 = arith.constant dense<0.000000e+00> : vector<16xf32>
    %420 = vector.multi_reduction <add>, %419, %cst_189 [1] : vector<16x32xf32> to vector<16xf32>
    %421 = vector.shape_cast %420 : vector<16xf32> to vector<16x1xf32>
    %cst_190 = arith.constant 3.200000e+01 : f32
    %422 = vector.broadcast %cst_190 : f32 to vector<16x1xf32>
    %423 = arith.divf %421, %422 : vector<16x1xf32>
    %424 = vector.broadcast %416 : vector<16x1xf32> to vector<16x32xf32>
    %425 = arith.subf %408, %424 : vector<16x32xf32>
    %cst_191 = arith.constant 9.99999997E-7 : f32
    %426 = vector.broadcast %cst_191 : f32 to vector<16x1xf32>
    %427 = arith.addf %423, %426 : vector<16x1xf32>
    %428 = math.rsqrt %427 : vector<16x1xf32>
    %429 = vector.broadcast %428 : vector<16x1xf32> to vector<16x32xf32>
    %430 = arith.mulf %425, %429 : vector<16x32xf32>
    %431 = vector.broadcast %411 : vector<1x32xf32> to vector<16x32xf32>
    %432 = arith.mulf %430, %431 : vector<16x32xf32>
    %433 = vector.broadcast %412 : vector<1x32xf32> to vector<16x32xf32>
    %434 = arith.addf %432, %433 : vector<16x32xf32>
    %c0_192 = arith.constant 0 : index
    %c0_193 = arith.constant 0 : index
    %c0_194 = arith.constant 0 : index
    %435 = vector.load %arg34[%c0_192, %c0_193, %c0_194] : memref<2x32x32xf32, #tpu.memory_space<vmem>>, vector<1x32x32xf32>
    %436 = vector.shape_cast %435 : vector<1x32x32xf32> to vector<32x32xf32>
    %c0_195 = arith.constant 0 : index
    %c0_196 = arith.constant 0 : index
    %c0_197 = arith.constant 0 : index
    %437 = vector.load %arg35[%c0_195, %c0_196, %c0_197] : memref<2x1x32xf32, #tpu.memory_space<vmem>>, vector<1x1x32xf32>
    %438 = vector.shape_cast %437 : vector<1x1x32xf32> to vector<1x32xf32>
    %cst_198 = arith.constant dense<0.000000e+00> : vector<16x32xf32>
    %439 = tpu.matmul %434, %436, %cst_198 {dimension_numbers = #tpu.dot_dimension_numbers<[1], [0], [0], [1], [0, 0, 1, 1], [], []>} : vector<16x32xf32>, vector<32x32xf32>, vector<16x32xf32> -> vector<16x32xf32>
    %440 = vector.broadcast %438 : vector<1x32xf32> to vector<16x32xf32>
    %441 = arith.addf %439, %440 : vector<16x32xf32>
    %c0_199 = arith.constant 0 : index
    %c0_200 = arith.constant 0 : index
    %c0_201 = arith.constant 0 : index
    %442 = vector.load %arg36[%c0_199, %c0_200, %c0_201] : memref<2x32x64xf32, #tpu.memory_space<vmem>>, vector<1x32x64xf32>
    %443 = vector.shape_cast %442 : vector<1x32x64xf32> to vector<32x64xf32>
    %c0_202 = arith.constant 0 : index
    %c0_203 = arith.constant 0 : index
    %c0_204 = arith.constant 0 : index
    %444 = vector.load %arg37[%c0_202, %c0_203, %c0_204] : memref<2x1x64xf32, #tpu.memory_space<vmem>>, vector<1x1x64xf32>
    %445 = vector.shape_cast %444 : vector<1x1x64xf32> to vector<1x64xf32>
    %cst_205 = arith.constant dense<0.000000e+00> : vector<48x64xf32>
    %446 = tpu.matmul %319, %443, %cst_205 {dimension_numbers = #tpu.dot_dimension_numbers<[1], [0], [0], [1], [0, 0, 1, 1], [], []>} : vector<48x32xf32>, vector<32x64xf32>, vector<48x64xf32> -> vector<48x64xf32>
    %447 = vector.broadcast %445 : vector<1x64xf32> to vector<48x64xf32>
    %448 = arith.addf %446, %447 : vector<48x64xf32>
    %449 = vector.extract_strided_slice %448 {offsets = [0, 0], sizes = [48, 32], strides = [1, 1]} : vector<48x64xf32> to vector<48x32xf32>
    %450 = vector.extract_strided_slice %448 {offsets = [0, 32], sizes = [48, 32], strides = [1, 1]} : vector<48x64xf32> to vector<48x32xf32>
    %c0_206 = arith.constant 0 : index
    %c0_207 = arith.constant 0 : index
    %c0_208 = arith.constant 0 : index
    %451 = vector.load %arg38[%c0_206, %c0_207, %c0_208] : memref<2x32x32xf32, #tpu.memory_space<vmem>>, vector<1x32x32xf32>
    %452 = vector.shape_cast %451 : vector<1x32x32xf32> to vector<32x32xf32>
    %c0_209 = arith.constant 0 : index
    %c0_210 = arith.constant 0 : index
    %c0_211 = arith.constant 0 : index
    %453 = vector.load %arg39[%c0_209, %c0_210, %c0_211] : memref<2x1x32xf32, #tpu.memory_space<vmem>>, vector<1x1x32xf32>
    %454 = vector.shape_cast %453 : vector<1x1x32xf32> to vector<1x32xf32>
    %455 = vector.extract_strided_slice %441 {offsets = [0, 0], sizes = [16, 16], strides = [1, 1]} : vector<16x32xf32> to vector<16x16xf32>
    %456 = vector.extract_strided_slice %449 {offsets = [0, 0], sizes = [48, 16], strides = [1, 1]} : vector<48x32xf32> to vector<48x16xf32>
    %457 = vector.extract_strided_slice %450 {offsets = [0, 0], sizes = [48, 16], strides = [1, 1]} : vector<48x32xf32> to vector<48x16xf32>
    %cst_212 = arith.constant dense<0.000000e+00> : vector<16x48xf32>
    %458 = tpu.matmul %455, %456, %cst_212 {dimension_numbers = #tpu.dot_dimension_numbers<[1], [1], [0], [0], [0, 0, 1, 0], [], []>} : vector<16x16xf32>, vector<48x16xf32>, vector<16x48xf32> -> vector<16x48xf32>
    %cst_213 = arith.constant 2.500000e-01 : f32
    %459 = vector.broadcast %cst_213 : f32 to vector<16x48xf32>
    %460 = arith.mulf %458, %459 : vector<16x48xf32>
    %cst_214 = arith.constant dense<0xFF800000> : vector<16xf32>
    %461 = vector.multi_reduction <maximumf>, %460, %cst_214 [1] : vector<16x48xf32> to vector<16xf32>
    %462 = vector.shape_cast %461 : vector<16xf32> to vector<16x1xf32>
    %463 = vector.broadcast %462 : vector<16x1xf32> to vector<16x48xf32>
    %464 = arith.subf %460, %463 : vector<16x48xf32>
    %465 = math.exp %464 : vector<16x48xf32>
    %cst_215 = arith.constant dense<0.000000e+00> : vector<16xf32>
    %466 = vector.multi_reduction <add>, %465, %cst_215 [1] : vector<16x48xf32> to vector<16xf32>
    %467 = vector.shape_cast %466 : vector<16xf32> to vector<16x1xf32>
    %468 = tpu.reciprocal %467 {approx = true} : vector<16x1xf32> -> vector<16x1xf32>
    %469 = vector.broadcast %468 : vector<16x1xf32> to vector<16x48xf32>
    %470 = arith.mulf %465, %469 : vector<16x48xf32>
    %cst_216 = arith.constant dense<0.000000e+00> : vector<16x16xf32>
    %471 = tpu.matmul %470, %457, %cst_216 {dimension_numbers = #tpu.dot_dimension_numbers<[1], [0], [0], [1], [0, 0, 1, 1], [], []>} : vector<16x48xf32>, vector<48x16xf32>, vector<16x16xf32> -> vector<16x16xf32>
    %472 = vector.extract_strided_slice %452 {offsets = [0, 0], sizes = [16, 32], strides = [1, 1]} : vector<32x32xf32> to vector<16x32xf32>
    %cst_217 = arith.constant dense<0.000000e+00> : vector<16x32xf32>
    %473 = tpu.matmul %471, %472, %cst_217 {dimension_numbers = #tpu.dot_dimension_numbers<[1], [0], [0], [1], [0, 0, 1, 1], [], []>} : vector<16x16xf32>, vector<16x32xf32>, vector<16x32xf32> -> vector<16x32xf32>
    %474 = vector.extract_strided_slice %441 {offsets = [0, 16], sizes = [16, 16], strides = [1, 1]} : vector<16x32xf32> to vector<16x16xf32>
    %475 = vector.extract_strided_slice %449 {offsets = [0, 16], sizes = [48, 16], strides = [1, 1]} : vector<48x32xf32> to vector<48x16xf32>
    %476 = vector.extract_strided_slice %450 {offsets = [0, 16], sizes = [48, 16], strides = [1, 1]} : vector<48x32xf32> to vector<48x16xf32>
    %cst_218 = arith.constant dense<0.000000e+00> : vector<16x48xf32>
    %477 = tpu.matmul %474, %475, %cst_218 {dimension_numbers = #tpu.dot_dimension_numbers<[1], [1], [0], [0], [0, 0, 1, 0], [], []>} : vector<16x16xf32>, vector<48x16xf32>, vector<16x48xf32> -> vector<16x48xf32>
    %cst_219 = arith.constant 2.500000e-01 : f32
    %478 = vector.broadcast %cst_219 : f32 to vector<16x48xf32>
    %479 = arith.mulf %477, %478 : vector<16x48xf32>
    %cst_220 = arith.constant dense<0xFF800000> : vector<16xf32>
    %480 = vector.multi_reduction <maximumf>, %479, %cst_220 [1] : vector<16x48xf32> to vector<16xf32>
    %481 = vector.shape_cast %480 : vector<16xf32> to vector<16x1xf32>
    %482 = vector.broadcast %481 : vector<16x1xf32> to vector<16x48xf32>
    %483 = arith.subf %479, %482 : vector<16x48xf32>
    %484 = math.exp %483 : vector<16x48xf32>
    %cst_221 = arith.constant dense<0.000000e+00> : vector<16xf32>
    %485 = vector.multi_reduction <add>, %484, %cst_221 [1] : vector<16x48xf32> to vector<16xf32>
    %486 = vector.shape_cast %485 : vector<16xf32> to vector<16x1xf32>
    %487 = tpu.reciprocal %486 {approx = true} : vector<16x1xf32> -> vector<16x1xf32>
    %488 = vector.broadcast %487 : vector<16x1xf32> to vector<16x48xf32>
    %489 = arith.mulf %484, %488 : vector<16x48xf32>
    %cst_222 = arith.constant dense<0.000000e+00> : vector<16x16xf32>
    %490 = tpu.matmul %489, %476, %cst_222 {dimension_numbers = #tpu.dot_dimension_numbers<[1], [0], [0], [1], [0, 0, 1, 1], [], []>} : vector<16x48xf32>, vector<48x16xf32>, vector<16x16xf32> -> vector<16x16xf32>
    %491 = vector.extract_strided_slice %452 {offsets = [16, 0], sizes = [16, 32], strides = [1, 1]} : vector<32x32xf32> to vector<16x32xf32>
    %cst_223 = arith.constant dense<0.000000e+00> : vector<16x32xf32>
    %492 = tpu.matmul %490, %491, %cst_223 {dimension_numbers = #tpu.dot_dimension_numbers<[1], [0], [0], [1], [0, 0, 1, 1], [], []>} : vector<16x16xf32>, vector<16x32xf32>, vector<16x32xf32> -> vector<16x32xf32>
    %493 = arith.addf %473, %492 : vector<16x32xf32>
    %494 = vector.broadcast %454 : vector<1x32xf32> to vector<16x32xf32>
    %495 = arith.addf %493, %494 : vector<16x32xf32>
    %496 = arith.addf %408, %495 : vector<16x32xf32>
    %c0_224 = arith.constant 0 : index
    %c0_225 = arith.constant 0 : index
    %c0_226 = arith.constant 0 : index
    %497 = vector.load %arg40[%c0_224, %c0_225, %c0_226] : memref<2x2x32xf32, #tpu.memory_space<vmem>>, vector<1x2x32xf32>
    %498 = vector.shape_cast %497 : vector<1x2x32xf32> to vector<2x32xf32>
    %499 = vector.extract_strided_slice %498 {offsets = [0, 0], sizes = [1, 32], strides = [1, 1]} : vector<2x32xf32> to vector<1x32xf32>
    %500 = vector.extract_strided_slice %498 {offsets = [1, 0], sizes = [1, 32], strides = [1, 1]} : vector<2x32xf32> to vector<1x32xf32>
    %cst_227 = arith.constant dense<0.000000e+00> : vector<16xf32>
    %501 = vector.multi_reduction <add>, %496, %cst_227 [1] : vector<16x32xf32> to vector<16xf32>
    %502 = vector.shape_cast %501 : vector<16xf32> to vector<16x1xf32>
    %cst_228 = arith.constant 3.200000e+01 : f32
    %503 = vector.broadcast %cst_228 : f32 to vector<16x1xf32>
    %504 = arith.divf %502, %503 : vector<16x1xf32>
    %505 = vector.broadcast %504 : vector<16x1xf32> to vector<16x32xf32>
    %506 = arith.subf %496, %505 : vector<16x32xf32>
    %507 = arith.mulf %506, %506 : vector<16x32xf32>
    %cst_229 = arith.constant dense<0.000000e+00> : vector<16xf32>
    %508 = vector.multi_reduction <add>, %507, %cst_229 [1] : vector<16x32xf32> to vector<16xf32>
    %509 = vector.shape_cast %508 : vector<16xf32> to vector<16x1xf32>
    %cst_230 = arith.constant 3.200000e+01 : f32
    %510 = vector.broadcast %cst_230 : f32 to vector<16x1xf32>
    %511 = arith.divf %509, %510 : vector<16x1xf32>
    %512 = vector.broadcast %504 : vector<16x1xf32> to vector<16x32xf32>
    %513 = arith.subf %496, %512 : vector<16x32xf32>
    %cst_231 = arith.constant 9.99999997E-7 : f32
    %514 = vector.broadcast %cst_231 : f32 to vector<16x1xf32>
    %515 = arith.addf %511, %514 : vector<16x1xf32>
    %516 = math.rsqrt %515 : vector<16x1xf32>
    %517 = vector.broadcast %516 : vector<16x1xf32> to vector<16x32xf32>
    %518 = arith.mulf %513, %517 : vector<16x32xf32>
    %519 = vector.broadcast %499 : vector<1x32xf32> to vector<16x32xf32>
    %520 = arith.mulf %518, %519 : vector<16x32xf32>
    %521 = vector.broadcast %500 : vector<1x32xf32> to vector<16x32xf32>
    %522 = arith.addf %520, %521 : vector<16x32xf32>
    %c0_232 = arith.constant 0 : index
    %c0_233 = arith.constant 0 : index
    %c0_234 = arith.constant 0 : index
    %523 = vector.load %arg41[%c0_232, %c0_233, %c0_234] : memref<2x32x128xf32, #tpu.memory_space<vmem>>, vector<1x32x128xf32>
    %524 = vector.shape_cast %523 : vector<1x32x128xf32> to vector<32x128xf32>
    %c0_235 = arith.constant 0 : index
    %c0_236 = arith.constant 0 : index
    %c0_237 = arith.constant 0 : index
    %525 = vector.load %arg42[%c0_235, %c0_236, %c0_237] : memref<2x1x128xf32, #tpu.memory_space<vmem>>, vector<1x1x128xf32>
    %526 = vector.shape_cast %525 : vector<1x1x128xf32> to vector<1x128xf32>
    %cst_238 = arith.constant dense<0.000000e+00> : vector<16x128xf32>
    %527 = tpu.matmul %522, %524, %cst_238 {dimension_numbers = #tpu.dot_dimension_numbers<[1], [0], [0], [1], [0, 0, 1, 1], [], []>} : vector<16x32xf32>, vector<32x128xf32>, vector<16x128xf32> -> vector<16x128xf32>
    %528 = vector.broadcast %526 : vector<1x128xf32> to vector<16x128xf32>
    %529 = arith.addf %527, %528 : vector<16x128xf32>
    %cst_239 = arith.constant 5.000000e-01 : f32
    %530 = vector.broadcast %cst_239 : f32 to vector<16x128xf32>
    %531 = arith.mulf %530, %529 : vector<16x128xf32>
    %cst_240 = arith.constant 4.471500e-02 : f32
    %532 = vector.broadcast %cst_240 : f32 to vector<16x128xf32>
    %533 = arith.mulf %532, %529 : vector<16x128xf32>
    %534 = arith.mulf %533, %529 : vector<16x128xf32>
    %535 = arith.mulf %534, %529 : vector<16x128xf32>
    %536 = arith.addf %529, %535 : vector<16x128xf32>
    %cst_241 = arith.constant 0.797884583 : f32
    %537 = vector.broadcast %cst_241 : f32 to vector<16x128xf32>
    %538 = arith.mulf %537, %536 : vector<16x128xf32>
    %539 = math.tanh %538 : vector<16x128xf32>
    %cst_242 = arith.constant 1.000000e+00 : f32
    %540 = vector.broadcast %cst_242 : f32 to vector<16x128xf32>
    %541 = arith.addf %540, %539 : vector<16x128xf32>
    %542 = arith.mulf %531, %541 : vector<16x128xf32>
    %c0_243 = arith.constant 0 : index
    %c0_244 = arith.constant 0 : index
    %c0_245 = arith.constant 0 : index
    %543 = vector.load %arg43[%c0_243, %c0_244, %c0_245] : memref<2x128x32xf32, #tpu.memory_space<vmem>>, vector<1x128x32xf32>
    %544 = vector.shape_cast %543 : vector<1x128x32xf32> to vector<128x32xf32>
    %c0_246 = arith.constant 0 : index
    %c0_247 = arith.constant 0 : index
    %c0_248 = arith.constant 0 : index
    %545 = vector.load %arg44[%c0_246, %c0_247, %c0_248] : memref<2x1x32xf32, #tpu.memory_space<vmem>>, vector<1x1x32xf32>
    %546 = vector.shape_cast %545 : vector<1x1x32xf32> to vector<1x32xf32>
    %cst_249 = arith.constant dense<0.000000e+00> : vector<16x32xf32>
    %547 = tpu.matmul %542, %544, %cst_249 {dimension_numbers = #tpu.dot_dimension_numbers<[1], [0], [0], [1], [0, 0, 1, 1], [], []>} : vector<16x128xf32>, vector<128x32xf32>, vector<16x32xf32> -> vector<16x32xf32>
    %548 = vector.broadcast %546 : vector<1x32xf32> to vector<16x32xf32>
    %549 = arith.addf %547, %548 : vector<16x32xf32>
    %550 = arith.addf %496, %549 : vector<16x32xf32>
    %c1_250 = arith.constant 1 : index
    %c0_251 = arith.constant 0 : index
    %c0_252 = arith.constant 0 : index
    %551 = vector.load %arg28[%c1_250, %c0_251, %c0_252] : memref<2x2x32xf32, #tpu.memory_space<vmem>>, vector<1x2x32xf32>
    %552 = vector.shape_cast %551 : vector<1x2x32xf32> to vector<2x32xf32>
    %553 = vector.extract_strided_slice %552 {offsets = [0, 0], sizes = [1, 32], strides = [1, 1]} : vector<2x32xf32> to vector<1x32xf32>
    %554 = vector.extract_strided_slice %552 {offsets = [1, 0], sizes = [1, 32], strides = [1, 1]} : vector<2x32xf32> to vector<1x32xf32>
    %cst_253 = arith.constant dense<0.000000e+00> : vector<16xf32>
    %555 = vector.multi_reduction <add>, %550, %cst_253 [1] : vector<16x32xf32> to vector<16xf32>
    %556 = vector.shape_cast %555 : vector<16xf32> to vector<16x1xf32>
    %cst_254 = arith.constant 3.200000e+01 : f32
    %557 = vector.broadcast %cst_254 : f32 to vector<16x1xf32>
    %558 = arith.divf %556, %557 : vector<16x1xf32>
    %559 = vector.broadcast %558 : vector<16x1xf32> to vector<16x32xf32>
    %560 = arith.subf %550, %559 : vector<16x32xf32>
    %561 = arith.mulf %560, %560 : vector<16x32xf32>
    %cst_255 = arith.constant dense<0.000000e+00> : vector<16xf32>
    %562 = vector.multi_reduction <add>, %561, %cst_255 [1] : vector<16x32xf32> to vector<16xf32>
    %563 = vector.shape_cast %562 : vector<16xf32> to vector<16x1xf32>
    %cst_256 = arith.constant 3.200000e+01 : f32
    %564 = vector.broadcast %cst_256 : f32 to vector<16x1xf32>
    %565 = arith.divf %563, %564 : vector<16x1xf32>
    %566 = vector.broadcast %558 : vector<16x1xf32> to vector<16x32xf32>
    %567 = arith.subf %550, %566 : vector<16x32xf32>
    %cst_257 = arith.constant 9.99999997E-7 : f32
    %568 = vector.broadcast %cst_257 : f32 to vector<16x1xf32>
    %569 = arith.addf %565, %568 : vector<16x1xf32>
    %570 = math.rsqrt %569 : vector<16x1xf32>
    %571 = vector.broadcast %570 : vector<16x1xf32> to vector<16x32xf32>
    %572 = arith.mulf %567, %571 : vector<16x32xf32>
    %573 = vector.broadcast %553 : vector<1x32xf32> to vector<16x32xf32>
    %574 = arith.mulf %572, %573 : vector<16x32xf32>
    %575 = vector.broadcast %554 : vector<1x32xf32> to vector<16x32xf32>
    %576 = arith.addf %574, %575 : vector<16x32xf32>
    %c1_258 = arith.constant 1 : index
    %c0_259 = arith.constant 0 : index
    %c0_260 = arith.constant 0 : index
    %577 = vector.load %arg29[%c1_258, %c0_259, %c0_260] : memref<2x32x96xf32, #tpu.memory_space<vmem>>, vector<1x32x96xf32>
    %578 = vector.shape_cast %577 : vector<1x32x96xf32> to vector<32x96xf32>
    %c1_261 = arith.constant 1 : index
    %c0_262 = arith.constant 0 : index
    %c0_263 = arith.constant 0 : index
    %579 = vector.load %arg30[%c1_261, %c0_262, %c0_263] : memref<2x1x96xf32, #tpu.memory_space<vmem>>, vector<1x1x96xf32>
    %580 = vector.shape_cast %579 : vector<1x1x96xf32> to vector<1x96xf32>
    %cst_264 = arith.constant dense<0.000000e+00> : vector<16x96xf32>
    %581 = tpu.matmul %576, %578, %cst_264 {dimension_numbers = #tpu.dot_dimension_numbers<[1], [0], [0], [1], [0, 0, 1, 1], [], []>} : vector<16x32xf32>, vector<32x96xf32>, vector<16x96xf32> -> vector<16x96xf32>
    %582 = vector.broadcast %580 : vector<1x96xf32> to vector<16x96xf32>
    %583 = arith.addf %581, %582 : vector<16x96xf32>
    %584 = vector.extract_strided_slice %583 {offsets = [0, 0], sizes = [16, 32], strides = [1, 1]} : vector<16x96xf32> to vector<16x32xf32>
    %585 = vector.extract_strided_slice %583 {offsets = [0, 32], sizes = [16, 32], strides = [1, 1]} : vector<16x96xf32> to vector<16x32xf32>
    %586 = vector.extract_strided_slice %583 {offsets = [0, 64], sizes = [16, 32], strides = [1, 1]} : vector<16x96xf32> to vector<16x32xf32>
    %c1_265 = arith.constant 1 : index
    %c0_266 = arith.constant 0 : index
    %c0_267 = arith.constant 0 : index
    %587 = vector.load %arg31[%c1_265, %c0_266, %c0_267] : memref<2x32x32xf32, #tpu.memory_space<vmem>>, vector<1x32x32xf32>
    %588 = vector.shape_cast %587 : vector<1x32x32xf32> to vector<32x32xf32>
    %c1_268 = arith.constant 1 : index
    %c0_269 = arith.constant 0 : index
    %c0_270 = arith.constant 0 : index
    %589 = vector.load %arg32[%c1_268, %c0_269, %c0_270] : memref<2x1x32xf32, #tpu.memory_space<vmem>>, vector<1x1x32xf32>
    %590 = vector.shape_cast %589 : vector<1x1x32xf32> to vector<1x32xf32>
    %591 = vector.extract_strided_slice %584 {offsets = [0, 0], sizes = [16, 16], strides = [1, 1]} : vector<16x32xf32> to vector<16x16xf32>
    %592 = vector.extract_strided_slice %585 {offsets = [0, 0], sizes = [16, 16], strides = [1, 1]} : vector<16x32xf32> to vector<16x16xf32>
    %593 = vector.extract_strided_slice %586 {offsets = [0, 0], sizes = [16, 16], strides = [1, 1]} : vector<16x32xf32> to vector<16x16xf32>
    %cst_271 = arith.constant dense<0.000000e+00> : vector<16x16xf32>
    %594 = tpu.matmul %591, %592, %cst_271 {dimension_numbers = #tpu.dot_dimension_numbers<[1], [1], [0], [0], [0, 0, 1, 0], [], []>} : vector<16x16xf32>, vector<16x16xf32>, vector<16x16xf32> -> vector<16x16xf32>
    %cst_272 = arith.constant 2.500000e-01 : f32
    %595 = vector.broadcast %cst_272 : f32 to vector<16x16xf32>
    %596 = arith.mulf %594, %595 : vector<16x16xf32>
    %cst_273 = arith.constant dense<0xFF800000> : vector<16xf32>
    %597 = vector.multi_reduction <maximumf>, %596, %cst_273 [1] : vector<16x16xf32> to vector<16xf32>
    %598 = vector.shape_cast %597 : vector<16xf32> to vector<16x1xf32>
    %599 = vector.broadcast %598 : vector<16x1xf32> to vector<16x16xf32>
    %600 = arith.subf %596, %599 : vector<16x16xf32>
    %601 = math.exp %600 : vector<16x16xf32>
    %cst_274 = arith.constant dense<0.000000e+00> : vector<16xf32>
    %602 = vector.multi_reduction <add>, %601, %cst_274 [1] : vector<16x16xf32> to vector<16xf32>
    %603 = vector.shape_cast %602 : vector<16xf32> to vector<16x1xf32>
    %604 = tpu.reciprocal %603 {approx = true} : vector<16x1xf32> -> vector<16x1xf32>
    %605 = vector.broadcast %604 : vector<16x1xf32> to vector<16x16xf32>
    %606 = arith.mulf %601, %605 : vector<16x16xf32>
    %cst_275 = arith.constant dense<0.000000e+00> : vector<16x16xf32>
    %607 = tpu.matmul %606, %593, %cst_275 {dimension_numbers = #tpu.dot_dimension_numbers<[1], [0], [0], [1], [0, 0, 1, 1], [], []>} : vector<16x16xf32>, vector<16x16xf32>, vector<16x16xf32> -> vector<16x16xf32>
    %608 = vector.extract_strided_slice %588 {offsets = [0, 0], sizes = [16, 32], strides = [1, 1]} : vector<32x32xf32> to vector<16x32xf32>
    %cst_276 = arith.constant dense<0.000000e+00> : vector<16x32xf32>
    %609 = tpu.matmul %607, %608, %cst_276 {dimension_numbers = #tpu.dot_dimension_numbers<[1], [0], [0], [1], [0, 0, 1, 1], [], []>} : vector<16x16xf32>, vector<16x32xf32>, vector<16x32xf32> -> vector<16x32xf32>
    %610 = vector.extract_strided_slice %584 {offsets = [0, 16], sizes = [16, 16], strides = [1, 1]} : vector<16x32xf32> to vector<16x16xf32>
    %611 = vector.extract_strided_slice %585 {offsets = [0, 16], sizes = [16, 16], strides = [1, 1]} : vector<16x32xf32> to vector<16x16xf32>
    %612 = vector.extract_strided_slice %586 {offsets = [0, 16], sizes = [16, 16], strides = [1, 1]} : vector<16x32xf32> to vector<16x16xf32>
    %cst_277 = arith.constant dense<0.000000e+00> : vector<16x16xf32>
    %613 = tpu.matmul %610, %611, %cst_277 {dimension_numbers = #tpu.dot_dimension_numbers<[1], [1], [0], [0], [0, 0, 1, 0], [], []>} : vector<16x16xf32>, vector<16x16xf32>, vector<16x16xf32> -> vector<16x16xf32>
    %cst_278 = arith.constant 2.500000e-01 : f32
    %614 = vector.broadcast %cst_278 : f32 to vector<16x16xf32>
    %615 = arith.mulf %613, %614 : vector<16x16xf32>
    %cst_279 = arith.constant dense<0xFF800000> : vector<16xf32>
    %616 = vector.multi_reduction <maximumf>, %615, %cst_279 [1] : vector<16x16xf32> to vector<16xf32>
    %617 = vector.shape_cast %616 : vector<16xf32> to vector<16x1xf32>
    %618 = vector.broadcast %617 : vector<16x1xf32> to vector<16x16xf32>
    %619 = arith.subf %615, %618 : vector<16x16xf32>
    %620 = math.exp %619 : vector<16x16xf32>
    %cst_280 = arith.constant dense<0.000000e+00> : vector<16xf32>
    %621 = vector.multi_reduction <add>, %620, %cst_280 [1] : vector<16x16xf32> to vector<16xf32>
    %622 = vector.shape_cast %621 : vector<16xf32> to vector<16x1xf32>
    %623 = tpu.reciprocal %622 {approx = true} : vector<16x1xf32> -> vector<16x1xf32>
    %624 = vector.broadcast %623 : vector<16x1xf32> to vector<16x16xf32>
    %625 = arith.mulf %620, %624 : vector<16x16xf32>
    %cst_281 = arith.constant dense<0.000000e+00> : vector<16x16xf32>
    %626 = tpu.matmul %625, %612, %cst_281 {dimension_numbers = #tpu.dot_dimension_numbers<[1], [0], [0], [1], [0, 0, 1, 1], [], []>} : vector<16x16xf32>, vector<16x16xf32>, vector<16x16xf32> -> vector<16x16xf32>
    %627 = vector.extract_strided_slice %588 {offsets = [16, 0], sizes = [16, 32], strides = [1, 1]} : vector<32x32xf32> to vector<16x32xf32>
    %cst_282 = arith.constant dense<0.000000e+00> : vector<16x32xf32>
    %628 = tpu.matmul %626, %627, %cst_282 {dimension_numbers = #tpu.dot_dimension_numbers<[1], [0], [0], [1], [0, 0, 1, 1], [], []>} : vector<16x16xf32>, vector<16x32xf32>, vector<16x32xf32> -> vector<16x32xf32>
    %629 = arith.addf %609, %628 : vector<16x32xf32>
    %630 = vector.broadcast %590 : vector<1x32xf32> to vector<16x32xf32>
    %631 = arith.addf %629, %630 : vector<16x32xf32>
    %632 = arith.addf %550, %631 : vector<16x32xf32>
    %c1_283 = arith.constant 1 : index
    %c0_284 = arith.constant 0 : index
    %c0_285 = arith.constant 0 : index
    %633 = vector.load %arg33[%c1_283, %c0_284, %c0_285] : memref<2x2x32xf32, #tpu.memory_space<vmem>>, vector<1x2x32xf32>
    %634 = vector.shape_cast %633 : vector<1x2x32xf32> to vector<2x32xf32>
    %635 = vector.extract_strided_slice %634 {offsets = [0, 0], sizes = [1, 32], strides = [1, 1]} : vector<2x32xf32> to vector<1x32xf32>
    %636 = vector.extract_strided_slice %634 {offsets = [1, 0], sizes = [1, 32], strides = [1, 1]} : vector<2x32xf32> to vector<1x32xf32>
    %cst_286 = arith.constant dense<0.000000e+00> : vector<16xf32>
    %637 = vector.multi_reduction <add>, %632, %cst_286 [1] : vector<16x32xf32> to vector<16xf32>
    %638 = vector.shape_cast %637 : vector<16xf32> to vector<16x1xf32>
    %cst_287 = arith.constant 3.200000e+01 : f32
    %639 = vector.broadcast %cst_287 : f32 to vector<16x1xf32>
    %640 = arith.divf %638, %639 : vector<16x1xf32>
    %641 = vector.broadcast %640 : vector<16x1xf32> to vector<16x32xf32>
    %642 = arith.subf %632, %641 : vector<16x32xf32>
    %643 = arith.mulf %642, %642 : vector<16x32xf32>
    %cst_288 = arith.constant dense<0.000000e+00> : vector<16xf32>
    %644 = vector.multi_reduction <add>, %643, %cst_288 [1] : vector<16x32xf32> to vector<16xf32>
    %645 = vector.shape_cast %644 : vector<16xf32> to vector<16x1xf32>
    %cst_289 = arith.constant 3.200000e+01 : f32
    %646 = vector.broadcast %cst_289 : f32 to vector<16x1xf32>
    %647 = arith.divf %645, %646 : vector<16x1xf32>
    %648 = vector.broadcast %640 : vector<16x1xf32> to vector<16x32xf32>
    %649 = arith.subf %632, %648 : vector<16x32xf32>
    %cst_290 = arith.constant 9.99999997E-7 : f32
    %650 = vector.broadcast %cst_290 : f32 to vector<16x1xf32>
    %651 = arith.addf %647, %650 : vector<16x1xf32>
    %652 = math.rsqrt %651 : vector<16x1xf32>
    %653 = vector.broadcast %652 : vector<16x1xf32> to vector<16x32xf32>
    %654 = arith.mulf %649, %653 : vector<16x32xf32>
    %655 = vector.broadcast %635 : vector<1x32xf32> to vector<16x32xf32>
    %656 = arith.mulf %654, %655 : vector<16x32xf32>
    %657 = vector.broadcast %636 : vector<1x32xf32> to vector<16x32xf32>
    %658 = arith.addf %656, %657 : vector<16x32xf32>
    %c1_291 = arith.constant 1 : index
    %c0_292 = arith.constant 0 : index
    %c0_293 = arith.constant 0 : index
    %659 = vector.load %arg34[%c1_291, %c0_292, %c0_293] : memref<2x32x32xf32, #tpu.memory_space<vmem>>, vector<1x32x32xf32>
    %660 = vector.shape_cast %659 : vector<1x32x32xf32> to vector<32x32xf32>
    %c1_294 = arith.constant 1 : index
    %c0_295 = arith.constant 0 : index
    %c0_296 = arith.constant 0 : index
    %661 = vector.load %arg35[%c1_294, %c0_295, %c0_296] : memref<2x1x32xf32, #tpu.memory_space<vmem>>, vector<1x1x32xf32>
    %662 = vector.shape_cast %661 : vector<1x1x32xf32> to vector<1x32xf32>
    %cst_297 = arith.constant dense<0.000000e+00> : vector<16x32xf32>
    %663 = tpu.matmul %658, %660, %cst_297 {dimension_numbers = #tpu.dot_dimension_numbers<[1], [0], [0], [1], [0, 0, 1, 1], [], []>} : vector<16x32xf32>, vector<32x32xf32>, vector<16x32xf32> -> vector<16x32xf32>
    %664 = vector.broadcast %662 : vector<1x32xf32> to vector<16x32xf32>
    %665 = arith.addf %663, %664 : vector<16x32xf32>
    %c1_298 = arith.constant 1 : index
    %c0_299 = arith.constant 0 : index
    %c0_300 = arith.constant 0 : index
    %666 = vector.load %arg36[%c1_298, %c0_299, %c0_300] : memref<2x32x64xf32, #tpu.memory_space<vmem>>, vector<1x32x64xf32>
    %667 = vector.shape_cast %666 : vector<1x32x64xf32> to vector<32x64xf32>
    %c1_301 = arith.constant 1 : index
    %c0_302 = arith.constant 0 : index
    %c0_303 = arith.constant 0 : index
    %668 = vector.load %arg37[%c1_301, %c0_302, %c0_303] : memref<2x1x64xf32, #tpu.memory_space<vmem>>, vector<1x1x64xf32>
    %669 = vector.shape_cast %668 : vector<1x1x64xf32> to vector<1x64xf32>
    %cst_304 = arith.constant dense<0.000000e+00> : vector<48x64xf32>
    %670 = tpu.matmul %158, %667, %cst_304 {dimension_numbers = #tpu.dot_dimension_numbers<[1], [0], [0], [1], [0, 0, 1, 1], [], []>} : vector<48x32xf32>, vector<32x64xf32>, vector<48x64xf32> -> vector<48x64xf32>
    %671 = vector.broadcast %669 : vector<1x64xf32> to vector<48x64xf32>
    %672 = arith.addf %670, %671 : vector<48x64xf32>
    %673 = vector.extract_strided_slice %672 {offsets = [0, 0], sizes = [48, 32], strides = [1, 1]} : vector<48x64xf32> to vector<48x32xf32>
    %674 = vector.extract_strided_slice %672 {offsets = [0, 32], sizes = [48, 32], strides = [1, 1]} : vector<48x64xf32> to vector<48x32xf32>
    %c1_305 = arith.constant 1 : index
    %c0_306 = arith.constant 0 : index
    %c0_307 = arith.constant 0 : index
    %675 = vector.load %arg38[%c1_305, %c0_306, %c0_307] : memref<2x32x32xf32, #tpu.memory_space<vmem>>, vector<1x32x32xf32>
    %676 = vector.shape_cast %675 : vector<1x32x32xf32> to vector<32x32xf32>
    %c1_308 = arith.constant 1 : index
    %c0_309 = arith.constant 0 : index
    %c0_310 = arith.constant 0 : index
    %677 = vector.load %arg39[%c1_308, %c0_309, %c0_310] : memref<2x1x32xf32, #tpu.memory_space<vmem>>, vector<1x1x32xf32>
    %678 = vector.shape_cast %677 : vector<1x1x32xf32> to vector<1x32xf32>
    %679 = vector.extract_strided_slice %665 {offsets = [0, 0], sizes = [16, 16], strides = [1, 1]} : vector<16x32xf32> to vector<16x16xf32>
    %680 = vector.extract_strided_slice %673 {offsets = [0, 0], sizes = [48, 16], strides = [1, 1]} : vector<48x32xf32> to vector<48x16xf32>
    %681 = vector.extract_strided_slice %674 {offsets = [0, 0], sizes = [48, 16], strides = [1, 1]} : vector<48x32xf32> to vector<48x16xf32>
    %cst_311 = arith.constant dense<0.000000e+00> : vector<16x48xf32>
    %682 = tpu.matmul %679, %680, %cst_311 {dimension_numbers = #tpu.dot_dimension_numbers<[1], [1], [0], [0], [0, 0, 1, 0], [], []>} : vector<16x16xf32>, vector<48x16xf32>, vector<16x48xf32> -> vector<16x48xf32>
    %cst_312 = arith.constant 2.500000e-01 : f32
    %683 = vector.broadcast %cst_312 : f32 to vector<16x48xf32>
    %684 = arith.mulf %682, %683 : vector<16x48xf32>
    %cst_313 = arith.constant dense<0xFF800000> : vector<16xf32>
    %685 = vector.multi_reduction <maximumf>, %684, %cst_313 [1] : vector<16x48xf32> to vector<16xf32>
    %686 = vector.shape_cast %685 : vector<16xf32> to vector<16x1xf32>
    %687 = vector.broadcast %686 : vector<16x1xf32> to vector<16x48xf32>
    %688 = arith.subf %684, %687 : vector<16x48xf32>
    %689 = math.exp %688 : vector<16x48xf32>
    %cst_314 = arith.constant dense<0.000000e+00> : vector<16xf32>
    %690 = vector.multi_reduction <add>, %689, %cst_314 [1] : vector<16x48xf32> to vector<16xf32>
    %691 = vector.shape_cast %690 : vector<16xf32> to vector<16x1xf32>
    %692 = tpu.reciprocal %691 {approx = true} : vector<16x1xf32> -> vector<16x1xf32>
    %693 = vector.broadcast %692 : vector<16x1xf32> to vector<16x48xf32>
    %694 = arith.mulf %689, %693 : vector<16x48xf32>
    %cst_315 = arith.constant dense<0.000000e+00> : vector<16x16xf32>
    %695 = tpu.matmul %694, %681, %cst_315 {dimension_numbers = #tpu.dot_dimension_numbers<[1], [0], [0], [1], [0, 0, 1, 1], [], []>} : vector<16x48xf32>, vector<48x16xf32>, vector<16x16xf32> -> vector<16x16xf32>
    %696 = vector.extract_strided_slice %676 {offsets = [0, 0], sizes = [16, 32], strides = [1, 1]} : vector<32x32xf32> to vector<16x32xf32>
    %cst_316 = arith.constant dense<0.000000e+00> : vector<16x32xf32>
    %697 = tpu.matmul %695, %696, %cst_316 {dimension_numbers = #tpu.dot_dimension_numbers<[1], [0], [0], [1], [0, 0, 1, 1], [], []>} : vector<16x16xf32>, vector<16x32xf32>, vector<16x32xf32> -> vector<16x32xf32>
    %698 = vector.extract_strided_slice %665 {offsets = [0, 16], sizes = [16, 16], strides = [1, 1]} : vector<16x32xf32> to vector<16x16xf32>
    %699 = vector.extract_strided_slice %673 {offsets = [0, 16], sizes = [48, 16], strides = [1, 1]} : vector<48x32xf32> to vector<48x16xf32>
    %700 = vector.extract_strided_slice %674 {offsets = [0, 16], sizes = [48, 16], strides = [1, 1]} : vector<48x32xf32> to vector<48x16xf32>
    %cst_317 = arith.constant dense<0.000000e+00> : vector<16x48xf32>
    %701 = tpu.matmul %698, %699, %cst_317 {dimension_numbers = #tpu.dot_dimension_numbers<[1], [1], [0], [0], [0, 0, 1, 0], [], []>} : vector<16x16xf32>, vector<48x16xf32>, vector<16x48xf32> -> vector<16x48xf32>
    %cst_318 = arith.constant 2.500000e-01 : f32
    %702 = vector.broadcast %cst_318 : f32 to vector<16x48xf32>
    %703 = arith.mulf %701, %702 : vector<16x48xf32>
    %cst_319 = arith.constant dense<0xFF800000> : vector<16xf32>
    %704 = vector.multi_reduction <maximumf>, %703, %cst_319 [1] : vector<16x48xf32> to vector<16xf32>
    %705 = vector.shape_cast %704 : vector<16xf32> to vector<16x1xf32>
    %706 = vector.broadcast %705 : vector<16x1xf32> to vector<16x48xf32>
    %707 = arith.subf %703, %706 : vector<16x48xf32>
    %708 = math.exp %707 : vector<16x48xf32>
    %cst_320 = arith.constant dense<0.000000e+00> : vector<16xf32>
    %709 = vector.multi_reduction <add>, %708, %cst_320 [1] : vector<16x48xf32> to vector<16xf32>
    %710 = vector.shape_cast %709 : vector<16xf32> to vector<16x1xf32>
    %711 = tpu.reciprocal %710 {approx = true} : vector<16x1xf32> -> vector<16x1xf32>
    %712 = vector.broadcast %711 : vector<16x1xf32> to vector<16x48xf32>
    %713 = arith.mulf %708, %712 : vector<16x48xf32>
    %cst_321 = arith.constant dense<0.000000e+00> : vector<16x16xf32>
    %714 = tpu.matmul %713, %700, %cst_321 {dimension_numbers = #tpu.dot_dimension_numbers<[1], [0], [0], [1], [0, 0, 1, 1], [], []>} : vector<16x48xf32>, vector<48x16xf32>, vector<16x16xf32> -> vector<16x16xf32>
    %715 = vector.extract_strided_slice %676 {offsets = [16, 0], sizes = [16, 32], strides = [1, 1]} : vector<32x32xf32> to vector<16x32xf32>
    %cst_322 = arith.constant dense<0.000000e+00> : vector<16x32xf32>
    %716 = tpu.matmul %714, %715, %cst_322 {dimension_numbers = #tpu.dot_dimension_numbers<[1], [0], [0], [1], [0, 0, 1, 1], [], []>} : vector<16x16xf32>, vector<16x32xf32>, vector<16x32xf32> -> vector<16x32xf32>
    %717 = arith.addf %697, %716 : vector<16x32xf32>
    %718 = vector.broadcast %678 : vector<1x32xf32> to vector<16x32xf32>
    %719 = arith.addf %717, %718 : vector<16x32xf32>
    %720 = arith.addf %632, %719 : vector<16x32xf32>
    %c1_323 = arith.constant 1 : index
    %c0_324 = arith.constant 0 : index
    %c0_325 = arith.constant 0 : index
    %721 = vector.load %arg40[%c1_323, %c0_324, %c0_325] : memref<2x2x32xf32, #tpu.memory_space<vmem>>, vector<1x2x32xf32>
    %722 = vector.shape_cast %721 : vector<1x2x32xf32> to vector<2x32xf32>
    %723 = vector.extract_strided_slice %722 {offsets = [0, 0], sizes = [1, 32], strides = [1, 1]} : vector<2x32xf32> to vector<1x32xf32>
    %724 = vector.extract_strided_slice %722 {offsets = [1, 0], sizes = [1, 32], strides = [1, 1]} : vector<2x32xf32> to vector<1x32xf32>
    %cst_326 = arith.constant dense<0.000000e+00> : vector<16xf32>
    %725 = vector.multi_reduction <add>, %720, %cst_326 [1] : vector<16x32xf32> to vector<16xf32>
    %726 = vector.shape_cast %725 : vector<16xf32> to vector<16x1xf32>
    %cst_327 = arith.constant 3.200000e+01 : f32
    %727 = vector.broadcast %cst_327 : f32 to vector<16x1xf32>
    %728 = arith.divf %726, %727 : vector<16x1xf32>
    %729 = vector.broadcast %728 : vector<16x1xf32> to vector<16x32xf32>
    %730 = arith.subf %720, %729 : vector<16x32xf32>
    %731 = arith.mulf %730, %730 : vector<16x32xf32>
    %cst_328 = arith.constant dense<0.000000e+00> : vector<16xf32>
    %732 = vector.multi_reduction <add>, %731, %cst_328 [1] : vector<16x32xf32> to vector<16xf32>
    %733 = vector.shape_cast %732 : vector<16xf32> to vector<16x1xf32>
    %cst_329 = arith.constant 3.200000e+01 : f32
    %734 = vector.broadcast %cst_329 : f32 to vector<16x1xf32>
    %735 = arith.divf %733, %734 : vector<16x1xf32>
    %736 = vector.broadcast %728 : vector<16x1xf32> to vector<16x32xf32>
    %737 = arith.subf %720, %736 : vector<16x32xf32>
    %cst_330 = arith.constant 9.99999997E-7 : f32
    %738 = vector.broadcast %cst_330 : f32 to vector<16x1xf32>
    %739 = arith.addf %735, %738 : vector<16x1xf32>
    %740 = math.rsqrt %739 : vector<16x1xf32>
    %741 = vector.broadcast %740 : vector<16x1xf32> to vector<16x32xf32>
    %742 = arith.mulf %737, %741 : vector<16x32xf32>
    %743 = vector.broadcast %723 : vector<1x32xf32> to vector<16x32xf32>
    %744 = arith.mulf %742, %743 : vector<16x32xf32>
    %745 = vector.broadcast %724 : vector<1x32xf32> to vector<16x32xf32>
    %746 = arith.addf %744, %745 : vector<16x32xf32>
    %c1_331 = arith.constant 1 : index
    %c0_332 = arith.constant 0 : index
    %c0_333 = arith.constant 0 : index
    %747 = vector.load %arg41[%c1_331, %c0_332, %c0_333] : memref<2x32x128xf32, #tpu.memory_space<vmem>>, vector<1x32x128xf32>
    %748 = vector.shape_cast %747 : vector<1x32x128xf32> to vector<32x128xf32>
    %c1_334 = arith.constant 1 : index
    %c0_335 = arith.constant 0 : index
    %c0_336 = arith.constant 0 : index
    %749 = vector.load %arg42[%c1_334, %c0_335, %c0_336] : memref<2x1x128xf32, #tpu.memory_space<vmem>>, vector<1x1x128xf32>
    %750 = vector.shape_cast %749 : vector<1x1x128xf32> to vector<1x128xf32>
    %cst_337 = arith.constant dense<0.000000e+00> : vector<16x128xf32>
    %751 = tpu.matmul %746, %748, %cst_337 {dimension_numbers = #tpu.dot_dimension_numbers<[1], [0], [0], [1], [0, 0, 1, 1], [], []>} : vector<16x32xf32>, vector<32x128xf32>, vector<16x128xf32> -> vector<16x128xf32>
    %752 = vector.broadcast %750 : vector<1x128xf32> to vector<16x128xf32>
    %753 = arith.addf %751, %752 : vector<16x128xf32>
    %cst_338 = arith.constant 5.000000e-01 : f32
    %754 = vector.broadcast %cst_338 : f32 to vector<16x128xf32>
    %755 = arith.mulf %754, %753 : vector<16x128xf32>
    %cst_339 = arith.constant 4.471500e-02 : f32
    %756 = vector.broadcast %cst_339 : f32 to vector<16x128xf32>
    %757 = arith.mulf %756, %753 : vector<16x128xf32>
    %758 = arith.mulf %757, %753 : vector<16x128xf32>
    %759 = arith.mulf %758, %753 : vector<16x128xf32>
    %760 = arith.addf %753, %759 : vector<16x128xf32>
    %cst_340 = arith.constant 0.797884583 : f32
    %761 = vector.broadcast %cst_340 : f32 to vector<16x128xf32>
    %762 = arith.mulf %761, %760 : vector<16x128xf32>
    %763 = math.tanh %762 : vector<16x128xf32>
    %cst_341 = arith.constant 1.000000e+00 : f32
    %764 = vector.broadcast %cst_341 : f32 to vector<16x128xf32>
    %765 = arith.addf %764, %763 : vector<16x128xf32>
    %766 = arith.mulf %755, %765 : vector<16x128xf32>
    %c1_342 = arith.constant 1 : index
    %c0_343 = arith.constant 0 : index
    %c0_344 = arith.constant 0 : index
    %767 = vector.load %arg43[%c1_342, %c0_343, %c0_344] : memref<2x128x32xf32, #tpu.memory_space<vmem>>, vector<1x128x32xf32>
    %768 = vector.shape_cast %767 : vector<1x128x32xf32> to vector<128x32xf32>
    %c1_345 = arith.constant 1 : index
    %c0_346 = arith.constant 0 : index
    %c0_347 = arith.constant 0 : index
    %769 = vector.load %arg44[%c1_345, %c0_346, %c0_347] : memref<2x1x32xf32, #tpu.memory_space<vmem>>, vector<1x1x32xf32>
    %770 = vector.shape_cast %769 : vector<1x1x32xf32> to vector<1x32xf32>
    %cst_348 = arith.constant dense<0.000000e+00> : vector<16x32xf32>
    %771 = tpu.matmul %766, %768, %cst_348 {dimension_numbers = #tpu.dot_dimension_numbers<[1], [0], [0], [1], [0, 0, 1, 1], [], []>} : vector<16x128xf32>, vector<128x32xf32>, vector<16x32xf32> -> vector<16x32xf32>
    %772 = vector.broadcast %770 : vector<1x32xf32> to vector<16x32xf32>
    %773 = arith.addf %771, %772 : vector<16x32xf32>
    %774 = arith.addf %720, %773 : vector<16x32xf32>
    %c0_349 = arith.constant 0 : index
    %c0_350 = arith.constant 0 : index
    %775 = vector.load %arg13[%c0_349, %c0_350] : memref<2x32xf32, #tpu.memory_space<vmem>>, vector<2x32xf32>
    %776 = vector.extract_strided_slice %775 {offsets = [0, 0], sizes = [1, 32], strides = [1, 1]} : vector<2x32xf32> to vector<1x32xf32>
    %777 = vector.extract_strided_slice %775 {offsets = [1, 0], sizes = [1, 32], strides = [1, 1]} : vector<2x32xf32> to vector<1x32xf32>
    %cst_351 = arith.constant dense<0.000000e+00> : vector<16xf32>
    %778 = vector.multi_reduction <add>, %774, %cst_351 [1] : vector<16x32xf32> to vector<16xf32>
    %779 = vector.shape_cast %778 : vector<16xf32> to vector<16x1xf32>
    %cst_352 = arith.constant 3.200000e+01 : f32
    %780 = vector.broadcast %cst_352 : f32 to vector<16x1xf32>
    %781 = arith.divf %779, %780 : vector<16x1xf32>
    %782 = vector.broadcast %781 : vector<16x1xf32> to vector<16x32xf32>
    %783 = arith.subf %774, %782 : vector<16x32xf32>
    %784 = arith.mulf %783, %783 : vector<16x32xf32>
    %cst_353 = arith.constant dense<0.000000e+00> : vector<16xf32>
    %785 = vector.multi_reduction <add>, %784, %cst_353 [1] : vector<16x32xf32> to vector<16xf32>
    %786 = vector.shape_cast %785 : vector<16xf32> to vector<16x1xf32>
    %cst_354 = arith.constant 3.200000e+01 : f32
    %787 = vector.broadcast %cst_354 : f32 to vector<16x1xf32>
    %788 = arith.divf %786, %787 : vector<16x1xf32>
    %789 = vector.broadcast %781 : vector<16x1xf32> to vector<16x32xf32>
    %790 = arith.subf %774, %789 : vector<16x32xf32>
    %cst_355 = arith.constant 9.99999997E-7 : f32
    %791 = vector.broadcast %cst_355 : f32 to vector<16x1xf32>
    %792 = arith.addf %788, %791 : vector<16x1xf32>
    %793 = math.rsqrt %792 : vector<16x1xf32>
    %794 = vector.broadcast %793 : vector<16x1xf32> to vector<16x32xf32>
    %795 = arith.mulf %790, %794 : vector<16x32xf32>
    %796 = vector.broadcast %776 : vector<1x32xf32> to vector<16x32xf32>
    %797 = arith.mulf %795, %796 : vector<16x32xf32>
    %798 = vector.broadcast %777 : vector<1x32xf32> to vector<16x32xf32>
    %799 = arith.addf %797, %798 : vector<16x32xf32>
    %c0_356 = arith.constant 0 : index
    %c0_357 = arith.constant 0 : index
    %800 = vector.load %arg14[%c0_356, %c0_357] : memref<32x4xf32, #tpu.memory_space<vmem>>, vector<32x4xf32>
    %c0_358 = arith.constant 0 : index
    %c0_359 = arith.constant 0 : index
    %801 = vector.load %arg15[%c0_358, %c0_359] : memref<1x4xf32, #tpu.memory_space<vmem>>, vector<1x4xf32>
    %cst_360 = arith.constant dense<0.000000e+00> : vector<16x4xf32>
    %802 = tpu.matmul %799, %800, %cst_360 {dimension_numbers = #tpu.dot_dimension_numbers<[1], [0], [0], [1], [0, 0, 1, 1], [], []>} : vector<16x32xf32>, vector<32x4xf32>, vector<16x4xf32> -> vector<16x4xf32>
    %803 = vector.broadcast %801 : vector<1x4xf32> to vector<16x4xf32>
    %804 = arith.addf %802, %803 : vector<16x4xf32>
    %c0_361 = arith.constant 0 : index
    %c0_362 = arith.constant 0 : index
    %c0_363 = arith.constant 0 : index
    %805 = vector.load %arg45[%c0_361, %c0_362, %c0_363] : memref<1x16x4xf32, #tpu.memory_space<vmem>>, vector<1x16x4xf32>
    %806 = vector.shape_cast %805 : vector<1x16x4xf32> to vector<16x4xf32>
    %807 = vector.shape_cast %804 : vector<16x4xf32> to vector<1x16x4xf32>
    tpu.vector_store %arg45[%c0_361, %c0_362, %c0_363], %807 {strides = array<i32>} : memref<1x16x4xf32, #tpu.memory_space<vmem>>, vector<1x16x4xf32>,
    %808 = arith.subf %804, %3 : vector<16x4xf32>
    %cst_364 = arith.constant 1.000000e+01 : f32
    %809 = vector.broadcast %cst_364 : f32 to vector<16x4xf32>
    %810 = arith.mulf %809, %808 : vector<16x4xf32>
    %811 = arith.mulf %810, %808 : vector<16x4xf32>
    %c0_365 = arith.constant 0 : index
    %c0_366 = arith.constant 0 : index
    %812 = vector.load %arg17[%c0_365, %c0_366] : memref<1x4xf32, #tpu.memory_space<vmem>>, vector<1x4xf32>
    %813 = vector.broadcast %812 : vector<1x4xf32> to vector<16x4xf32>
    %814 = arith.mulf %811, %813 : vector<16x4xf32>
    %c0_367 = arith.constant 0 : index
    %c0_368 = arith.constant 0 : index
    %815 = vector.load %arg16[%c0_367, %c0_368] : memref<1x4xf32, #tpu.memory_space<vmem>>, vector<1x4xf32>
    %816 = vector.broadcast %815 : vector<1x4xf32> to vector<16x4xf32>
    %817 = arith.addf %814, %816 : vector<16x4xf32>
    %818 = vector.shape_cast %817 : vector<16x4xf32> to vector<1x16x4xf32>
    %cst_369 = arith.constant dense<0.000000e+00> : vector<1xf32>
    %819 = vector.multi_reduction <add>, %818, %cst_369 [1, 2] : vector<1x16x4xf32> to vector<1xf32>
    %820 = vector.shape_cast %819 : vector<1xf32> to vector<1x1x1xf32>
    %821 = vector.extract %820[0, 0, 0] : f32 from vector<1x1x1xf32>
    %822 = vector.broadcast %821 : f32 to vector<1x1xf32>
    %cst_370 = arith.constant 2.500000e-01 : f32
    %823 = vector.broadcast %cst_370 : f32 to vector<1x1xf32>
    %824 = arith.mulf %822, %823 : vector<1x1xf32>
    %c0_371 = arith.constant 0 : index
    %c0_372 = arith.constant 0 : index
    %c0_373 = arith.constant 0 : index
    %825 = vector.load %arg46[%c0_371, %c0_372, %c0_373] : memref<1x1x1xf32, #tpu.memory_space<vmem>>, vector<1x1x1xf32>
    %826 = vector.shape_cast %825 : vector<1x1x1xf32> to vector<1x1xf32>
    %827 = vector.shape_cast %824 : vector<1x1xf32> to vector<1x1x1xf32>
    tpu.vector_store %arg46[%c0_371, %c0_372, %c0_373], %827 {strides = array<i32>} : memref<1x1x1xf32, #tpu.memory_space<vmem>>, vector<1x1x1xf32>,
    return
  }
  func.func @transform_0(%arg0: i32) -> (i32, i32, i32) {
    %c0_i32 = arith.constant 0 : i32
    %c0_i32_0 = arith.constant 0 : i32
    %c0_i32_1 = arith.constant 0 : i32
    return %arg0, %c0_i32, %c0_i32_0 : i32, i32, i32
  }
  func.func @transform_1(%arg0: i32) -> (i32, i32, i32) {
    %c0_i32 = arith.constant 0 : i32
    %c0_i32_0 = arith.constant 0 : i32
    %c0_i32_1 = arith.constant 0 : i32
    return %arg0, %c0_i32, %c0_i32_0 : i32, i32, i32
  }
  func.func @transform_2(%arg0: i32) -> (i32, i32, i32) {
    %c0_i32 = arith.constant 0 : i32
    %c0_i32_0 = arith.constant 0 : i32
    %c0_i32_1 = arith.constant 0 : i32
    return %arg0, %c0_i32, %c0_i32_0 : i32, i32, i32
  }
  func.func @transform_3(%arg0: i32) -> (i32, i32, i32) {
    %c0_i32 = arith.constant 0 : i32
    %c0_i32_0 = arith.constant 0 : i32
    %c0_i32_1 = arith.constant 0 : i32
    return %arg0, %c0_i32, %c0_i32_0 : i32, i32, i32
  }
  func.func @transform_4(%arg0: i32) -> (i32, i32) {
    %c0_i32 = arith.constant 0 : i32
    %c0_i32_0 = arith.constant 0 : i32
    %c0_i32_1 = arith.constant 0 : i32
    return %c0_i32, %c0_i32_0 : i32, i32
  }
  func.func @transform_5(%arg0: i32) -> (i32, i32) {
    %c0_i32 = arith.constant 0 : i32
    %c0_i32_0 = arith.constant 0 : i32
    %c0_i32_1 = arith.constant 0 : i32
    return %c0_i32, %c0_i32_0 : i32, i32
  }
  func.func @transform_6(%arg0: i32) -> (i32, i32) {
    %c0_i32 = arith.constant 0 : i32
    %c0_i32_0 = arith.constant 0 : i32
    %c0_i32_1 = arith.constant 0 : i32
    return %c0_i32, %c0_i32_0 : i32, i32
  }
  func.func @transform_7(%arg0: i32) -> (i32, i32) {
    %c0_i32 = arith.constant 0 : i32
    %c0_i32_0 = arith.constant 0 : i32
    %c0_i32_1 = arith.constant 0 : i32
    return %c0_i32, %c0_i32_0 : i32, i32
  }
  func.func @transform_8(%arg0: i32) -> (i32, i32) {
    %c0_i32 = arith.constant 0 : i32
    %c0_i32_0 = arith.constant 0 : i32
    %c0_i32_1 = arith.constant 0 : i32
    return %c0_i32, %c0_i32_0 : i32, i32
  }
  func.func @transform_9(%arg0: i32) -> (i32, i32) {
    %c0_i32 = arith.constant 0 : i32
    %c0_i32_0 = arith.constant 0 : i32
    %c0_i32_1 = arith.constant 0 : i32
    return %c0_i32, %c0_i32_0 : i32, i32
  }
  func.func @transform_10(%arg0: i32) -> (i32, i32) {
    %c0_i32 = arith.constant 0 : i32
    %c0_i32_0 = arith.constant 0 : i32
    %c0_i32_1 = arith.constant 0 : i32
    return %c0_i32, %c0_i32_0 : i32, i32
  }
  func.func @transform_11(%arg0: i32) -> (i32, i32) {
    %c0_i32 = arith.constant 0 : i32
    %c0_i32_0 = arith.constant 0 : i32
    %c0_i32_1 = arith.constant 0 : i32
    return %c0_i32, %c0_i32_0 : i32, i32
  }
  func.func @transform_12(%arg0: i32) -> (i32, i32) {
    %c0_i32 = arith.constant 0 : i32
    %c0_i32_0 = arith.constant 0 : i32
    %c0_i32_1 = arith.constant 0 : i32
    return %c0_i32, %c0_i32_0 : i32, i32
  }
  func.func @transform_13(%arg0: i32) -> (i32, i32) {
    %c0_i32 = arith.constant 0 : i32
    %c0_i32_0 = arith.constant 0 : i32
    %c0_i32_1 = arith.constant 0 : i32
    return %c0_i32, %c0_i32_0 : i32, i32
  }
  func.func @transform_14(%arg0: i32) -> (i32, i32) {
    %c0_i32 = arith.constant 0 : i32
    %c0_i32_0 = arith.constant 0 : i32
    %c0_i32_1 = arith.constant 0 : i32
    return %c0_i32, %c0_i32_0 : i32, i32
  }
  func.func @transform_15(%arg0: i32) -> (i32, i32) {
    %c0_i32 = arith.constant 0 : i32
    %c0_i32_0 = arith.constant 0 : i32
    %c0_i32_1 = arith.constant 0 : i32
    return %c0_i32, %c0_i32_0 : i32, i32
  }
  func.func @transform_16(%arg0: i32) -> (i32, i32) {
    %c0_i32 = arith.constant 0 : i32
    %c0_i32_0 = arith.constant 0 : i32
    %c0_i32_1 = arith.constant 0 : i32
    return %c0_i32, %c0_i32_0 : i32, i32
  }
  func.func @transform_17(%arg0: i32) -> (i32, i32, i32) {
    %c0_i32 = arith.constant 0 : i32
    %c0_i32_0 = arith.constant 0 : i32
    %c0_i32_1 = arith.constant 0 : i32
    %c0_i32_2 = arith.constant 0 : i32
    return %c0_i32, %c0_i32_0, %c0_i32_1 : i32, i32, i32
  }
  func.func @transform_18(%arg0: i32) -> (i32, i32, i32) {
    %c0_i32 = arith.constant 0 : i32
    %c0_i32_0 = arith.constant 0 : i32
    %c0_i32_1 = arith.constant 0 : i32
    %c0_i32_2 = arith.constant 0 : i32
    return %c0_i32, %c0_i32_0, %c0_i32_1 : i32, i32, i32
  }
  func.func @transform_19(%arg0: i32) -> (i32, i32, i32) {
    %c0_i32 = arith.constant 0 : i32
    %c0_i32_0 = arith.constant 0 : i32
    %c0_i32_1 = arith.constant 0 : i32
    %c0_i32_2 = arith.constant 0 : i32
    return %c0_i32, %c0_i32_0, %c0_i32_1 : i32, i32, i32
  }
  func.func @transform_20(%arg0: i32) -> (i32, i32, i32) {
    %c0_i32 = arith.constant 0 : i32
    %c0_i32_0 = arith.constant 0 : i32
    %c0_i32_1 = arith.constant 0 : i32
    %c0_i32_2 = arith.constant 0 : i32
    return %c0_i32, %c0_i32_0, %c0_i32_1 : i32, i32, i32
  }
  func.func @transform_21(%arg0: i32) -> (i32, i32, i32) {
    %c0_i32 = arith.constant 0 : i32
    %c0_i32_0 = arith.constant 0 : i32
    %c0_i32_1 = arith.constant 0 : i32
    %c0_i32_2 = arith.constant 0 : i32
    return %c0_i32, %c0_i32_0, %c0_i32_1 : i32, i32, i32
  }
  func.func @transform_22(%arg0: i32) -> (i32, i32, i32) {
    %c0_i32 = arith.constant 0 : i32
    %c0_i32_0 = arith.constant 0 : i32
    %c0_i32_1 = arith.constant 0 : i32
    %c0_i32_2 = arith.constant 0 : i32
    return %c0_i32, %c0_i32_0, %c0_i32_1 : i32, i32, i32
  }
  func.func @transform_23(%arg0: i32) -> (i32, i32, i32) {
    %c0_i32 = arith.constant 0 : i32
    %c0_i32_0 = arith.constant 0 : i32
    %c0_i32_1 = arith.constant 0 : i32
    %c0_i32_2 = arith.constant 0 : i32
    return %c0_i32, %c0_i32_0, %c0_i32_1 : i32, i32, i32
  }
  func.func @transform_24(%arg0: i32) -> (i32, i32, i32) {
    %c0_i32 = arith.constant 0 : i32
    %c0_i32_0 = arith.constant 0 : i32
    %c0_i32_1 = arith.constant 0 : i32
    %c0_i32_2 = arith.constant 0 : i32
    return %c0_i32, %c0_i32_0, %c0_i32_1 : i32, i32, i32
  }
  func.func @transform_25(%arg0: i32) -> (i32, i32, i32) {
    %c0_i32 = arith.constant 0 : i32
    %c0_i32_0 = arith.constant 0 : i32
    %c0_i32_1 = arith.constant 0 : i32
    %c0_i32_2 = arith.constant 0 : i32
    return %c0_i32, %c0_i32_0, %c0_i32_1 : i32, i32, i32
  }
  func.func @transform_26(%arg0: i32) -> (i32, i32, i32) {
    %c0_i32 = arith.constant 0 : i32
    %c0_i32_0 = arith.constant 0 : i32
    %c0_i32_1 = arith.constant 0 : i32
    %c0_i32_2 = arith.constant 0 : i32
    return %c0_i32, %c0_i32_0, %c0_i32_1 : i32, i32, i32
  }
  func.func @transform_27(%arg0: i32) -> (i32, i32, i32) {
    %c0_i32 = arith.constant 0 : i32
    %c0_i32_0 = arith.constant 0 : i32
    %c0_i32_1 = arith.constant 0 : i32
    %c0_i32_2 = arith.constant 0 : i32
    return %c0_i32, %c0_i32_0, %c0_i32_1 : i32, i32, i32
  }
  func.func @transform_28(%arg0: i32) -> (i32, i32, i32) {
    %c0_i32 = arith.constant 0 : i32
    %c0_i32_0 = arith.constant 0 : i32
    %c0_i32_1 = arith.constant 0 : i32
    %c0_i32_2 = arith.constant 0 : i32
    return %c0_i32, %c0_i32_0, %c0_i32_1 : i32, i32, i32
  }
  func.func @transform_29(%arg0: i32) -> (i32, i32, i32) {
    %c0_i32 = arith.constant 0 : i32
    %c0_i32_0 = arith.constant 0 : i32
    %c0_i32_1 = arith.constant 0 : i32
    %c0_i32_2 = arith.constant 0 : i32
    return %c0_i32, %c0_i32_0, %c0_i32_1 : i32, i32, i32
  }
  func.func @transform_30(%arg0: i32) -> (i32, i32, i32) {
    %c0_i32 = arith.constant 0 : i32
    %c0_i32_0 = arith.constant 0 : i32
    %c0_i32_1 = arith.constant 0 : i32
    %c0_i32_2 = arith.constant 0 : i32
    return %c0_i32, %c0_i32_0, %c0_i32_1 : i32, i32, i32
  }
  func.func @transform_31(%arg0: i32) -> (i32, i32, i32) {
    %c0_i32 = arith.constant 0 : i32
    %c0_i32_0 = arith.constant 0 : i32
    %c0_i32_1 = arith.constant 0 : i32
    %c0_i32_2 = arith.constant 0 : i32
    return %c0_i32, %c0_i32_0, %c0_i32_1 : i32, i32, i32
  }
  func.func @transform_32(%arg0: i32) -> (i32, i32, i32) {
    %c0_i32 = arith.constant 0 : i32
    %c0_i32_0 = arith.constant 0 : i32
    %c0_i32_1 = arith.constant 0 : i32
    %c0_i32_2 = arith.constant 0 : i32
    return %c0_i32, %c0_i32_0, %c0_i32_1 : i32, i32, i32
  }
  func.func @transform_33(%arg0: i32) -> (i32, i32, i32) {
    %c0_i32 = arith.constant 0 : i32
    %c0_i32_0 = arith.constant 0 : i32
    %c0_i32_1 = arith.constant 0 : i32
    %c0_i32_2 = arith.constant 0 : i32
    return %c0_i32, %c0_i32_0, %c0_i32_1 : i32, i32, i32
  }
  func.func @transform_34(%arg0: i32) -> (i32, i32, i32) {
    %c0_i32 = arith.constant 0 : i32
    %c0_i32_0 = arith.constant 0 : i32
    %c0_i32_1 = arith.constant 0 : i32
    %c0_i32_2 = arith.constant 0 : i32
    return %c0_i32, %c0_i32_0, %c0_i32_1 : i32, i32, i32
  }
  func.func @transform_35(%arg0: i32) -> (i32, i32, i32) {
    %c0_i32 = arith.constant 0 : i32
    %c0_i32_0 = arith.constant 0 : i32
    %c0_i32_1 = arith.constant 0 : i32
    %c0_i32_2 = arith.constant 0 : i32
    return %c0_i32, %c0_i32_0, %c0_i32_1 : i32, i32, i32
  }
  func.func @transform_36(%arg0: i32) -> (i32, i32, i32) {
    %c0_i32 = arith.constant 0 : i32
    %c0_i32_0 = arith.constant 0 : i32
    %c0_i32_1 = arith.constant 0 : i32
    %c0_i32_2 = arith.constant 0 : i32
    return %c0_i32, %c0_i32_0, %c0_i32_1 : i32, i32, i32
  }
  func.func @transform_37(%arg0: i32) -> (i32, i32, i32) {
    %c0_i32 = arith.constant 0 : i32
    %c0_i32_0 = arith.constant 0 : i32
    %c0_i32_1 = arith.constant 0 : i32
    %c0_i32_2 = arith.constant 0 : i32
    return %c0_i32, %c0_i32_0, %c0_i32_1 : i32, i32, i32
  }
  func.func @transform_38(%arg0: i32) -> (i32, i32, i32) {
    %c0_i32 = arith.constant 0 : i32
    %c0_i32_0 = arith.constant 0 : i32
    %c0_i32_1 = arith.constant 0 : i32
    %c0_i32_2 = arith.constant 0 : i32
    return %c0_i32, %c0_i32_0, %c0_i32_1 : i32, i32, i32
  }
  func.func @transform_39(%arg0: i32) -> (i32, i32, i32) {
    %c0_i32 = arith.constant 0 : i32
    %c0_i32_0 = arith.constant 0 : i32
    %c0_i32_1 = arith.constant 0 : i32
    %c0_i32_2 = arith.constant 0 : i32
    return %c0_i32, %c0_i32_0, %c0_i32_1 : i32, i32, i32
  }
  func.func @transform_40(%arg0: i32) -> (i32, i32, i32) {
    %c0_i32 = arith.constant 0 : i32
    %c0_i32_0 = arith.constant 0 : i32
    %c0_i32_1 = arith.constant 0 : i32
    %c0_i32_2 = arith.constant 0 : i32
    return %c0_i32, %c0_i32_0, %c0_i32_1 : i32, i32, i32
  }
  func.func @transform_41(%arg0: i32) -> (i32, i32, i32) {
    %c0_i32 = arith.constant 0 : i32
    %c0_i32_0 = arith.constant 0 : i32
    %c0_i32_1 = arith.constant 0 : i32
    %c0_i32_2 = arith.constant 0 : i32
    return %c0_i32, %c0_i32_0, %c0_i32_1 : i32, i32, i32
  }
  func.func @transform_42(%arg0: i32) -> (i32, i32, i32) {
    %c0_i32 = arith.constant 0 : i32
    %c0_i32_0 = arith.constant 0 : i32
    %c0_i32_1 = arith.constant 0 : i32
    %c0_i32_2 = arith.constant 0 : i32
    return %c0_i32, %c0_i32_0, %c0_i32_1 : i32, i32, i32
  }
  func.func @transform_43(%arg0: i32) -> (i32, i32, i32) {
    %c0_i32 = arith.constant 0 : i32
    %c0_i32_0 = arith.constant 0 : i32
    %c0_i32_1 = arith.constant 0 : i32
    %c0_i32_2 = arith.constant 0 : i32
    return %c0_i32, %c0_i32_0, %c0_i32_1 : i32, i32, i32
  }
  func.func @transform_44(%arg0: i32) -> (i32, i32, i32) {
    %c0_i32 = arith.constant 0 : i32
    %c0_i32_0 = arith.constant 0 : i32
    %c0_i32_1 = arith.constant 0 : i32
    return %arg0, %c0_i32, %c0_i32_0 : i32, i32, i32
  }
  func.func @transform_45(%arg0: i32) -> (i32, i32, i32) {
    %c0_i32 = arith.constant 0 : i32
    %c0_i32_0 = arith.constant 0 : i32
    %c0_i32_1 = arith.constant 0 : i32
    return %arg0, %c0_i32, %c0_i32_0 : i32, i32, i32
  }
}

</mosaic_0001>

<llo_original>
// kernel: diffmae_forward.21
$region0: #{diffmae_forward.21}
  #allocation0 [shape = 'u32[]', space=smem, size = 0x4, offset = 0x4, fixed_abs, tag = 'smem constant byte address 0x4 - core index']
  #allocation1 [shape = 'u32[144,128]{1,0:T(1,128)}', space=vmem, size = 0x12000, scoped, tag = 'internal scratch']
  %s0 = inlined_call_operand.smem [shape: u32[46], index: -1, kind: input, shape index: {}]
  %s1 = sld [smem:[%s0]]
  %s2 = scalar_lea.smem %s0, 1
  %s3 = sld [smem:[%s2]]
  %s4 = scalar_lea.smem %s0, 2
  %s5 = sld [smem:[%s4]]
  %s6 = scalar_lea.smem %s0, 3
  %s7 = sld [smem:[%s6]]
  %s8 = scalar_lea.smem %s0, 4
  %s9 = sld [smem:[%s8]]
  %s10 = scalar_lea.smem %s0, 5
  %s11 = sld [smem:[%s10]]
  %s12 = scalar_lea.smem %s0, 6
  %s13 = sld [smem:[%s12]]
  %s14 = scalar_lea.smem %s0, 7
  %s15 = sld [smem:[%s14]]
  %s16 = scalar_lea.smem %s0, 8
  %s17 = sld [smem:[%s16]]
  %s18 = scalar_lea.smem %s0, 9
  %s19 = sld [smem:[%s18]]
  %s20 = scalar_lea.smem %s0, 10
  %s21 = sld [smem:[%s20]]
  %s22 = scalar_lea.smem %s0, 11
  %s23 = sld [smem:[%s22]]
  %s24 = scalar_lea.smem %s0, 12
  %s25 = sld [smem:[%s24]]
  %s26 = scalar_lea.smem %s0, 13
  %s27 = sld [smem:[%s26]]
  %s28 = scalar_lea.smem %s0, 14
  %s29 = sld [smem:[%s28]]
  %s30 = scalar_lea.smem %s0, 15
  %s31 = sld [smem:[%s30]]
  %s32 = scalar_lea.smem %s0, 16
  %s33 = sld [smem:[%s32]]
  %s34 = scalar_lea.smem %s0, 17
  %s35 = sld [smem:[%s34]]
  %s36 = scalar_lea.smem %s0, 18
  %s37 = sld [smem:[%s36]]
  %s38 = scalar_lea.smem %s0, 19
  %s39 = sld [smem:[%s38]]
  %s40 = scalar_lea.smem %s0, 20
  %s41 = sld [smem:[%s40]]
  %s42 = scalar_lea.smem %s0, 21
  %s43 = sld [smem:[%s42]]
  %s44 = scalar_lea.smem %s0, 22
  %s45 = sld [smem:[%s44]]
  %s46 = scalar_lea.smem %s0, 23
  %s47 = sld [smem:[%s46]]
  %s48 = scalar_lea.smem %s0, 24
  %s49 = sld [smem:[%s48]]
  %s50 = scalar_lea.smem %s0, 25
  %s51 = sld [smem:[%s50]]
  %s52 = scalar_lea.smem %s0, 26
  %s53 = sld [smem:[%s52]]
  %s54 = scalar_lea.smem %s0, 27
  %s55 = sld [smem:[%s54]]
  %s56 = scalar_lea.smem %s0, 28
  %s57 = sld [smem:[%s56]]
  %s58 = scalar_lea.smem %s0, 29
  %s59 = sld [smem:[%s58]]
  %s60 = scalar_lea.smem %s0, 30
  %s61 = sld [smem:[%s60]]
  %s62 = scalar_lea.smem %s0, 31
  %s63 = sld [smem:[%s62]]
  %s64 = scalar_lea.smem %s0, 32
  %s65 = sld [smem:[%s64]]
  %s66 = scalar_lea.smem %s0, 33
  %s67 = sld [smem:[%s66]]
  %s68 = scalar_lea.smem %s0, 34
  %s69 = sld [smem:[%s68]]
  %s70 = scalar_lea.smem %s0, 35
  %s71 = sld [smem:[%s70]]
  %s72 = scalar_lea.smem %s0, 36
  %s73 = sld [smem:[%s72]]
  %s74 = scalar_lea.smem %s0, 37
  %s75 = sld [smem:[%s74]]
  %s76 = scalar_lea.smem %s0, 38
  %s77 = sld [smem:[%s76]]
  %s78 = scalar_lea.smem %s0, 39
  %s79 = sld [smem:[%s78]]
  %s80 = scalar_lea.smem %s0, 40
  %s81 = sld [smem:[%s80]]
  %s82 = scalar_lea.smem %s0, 41
  %s83 = sld [smem:[%s82]]
  %s84 = scalar_lea.smem %s0, 42
  %s85 = sld [smem:[%s84]]
  %s86 = scalar_lea.smem %s0, 43
  %s87 = sld [smem:[%s86]]
  %s88 = scalar_lea.smem %s0, 44
  %s89 = sld [smem:[%s88]]
  %s90 = scalar_lea.smem %s0, 45
  %s91 = sld [smem:[%s90]]
  %92 = xla_tuple %s89, %s91
  %s93 = sld [smem:[#allocation0]]
  $region217: #{diffmae_forward.21} parent=0
    _
  %s95 = ssub.s32 1, %s93
  %s96 = scalar_select 0, %s95, %s93
  loop: start=0, step=1, limit=4
  $region2: #{diffmae_forward.21} parent=0 // loop_pre_header
    _
  $region3: #{diffmae_forward.21} parent=0 // loop_header
    %s98 = sphi 0, %s102
    %p99 = scmp.ge.s32.totalorder %s98, 4
    %s108 = sphi 0, %s110
    %s111 = sphi 0, %s108
    %s112 = sphi 0, %s111
    %s128 = sphi 0, %s112
    %s134 = sphi 0, %s136
    %s137 = sphi 0, %s134
    %s138 = sphi 0, %s137
    %s154 = sphi 0, %s138
    %s160 = sphi 0, %s162
    %s163 = sphi 0, %s160
    %s164 = sphi 0, %s163
    %s180 = sphi 0, %s164
    %s186 = sphi 0, %s188
    %s189 = sphi 0, %s186
    %s190 = sphi 0, %s189
    %s206 = sphi 0, %s190
    %s210 = sphi 0, %s210
    %s212 = sphi 0, %s210
    %s213 = sphi 0, %s212
    %s227 = sphi 0, %s213
    %s231 = sphi 0, %s231
    %s233 = sphi 0, %s231
    %s234 = sphi 0, %s233
    %s248 = sphi 0, %s234
    %s252 = sphi 0, %s252
    %s254 = sphi 0, %s252
    %s255 = sphi 0, %s254
    %s269 = sphi 0, %s255
    %s273 = sphi 0, %s273
    %s275 = sphi 0, %s273
    %s276 = sphi 0, %s275
    %s290 = sphi 0, %s276
    %s294 = sphi 0, %s294
    %s296 = sphi 0, %s294
    %s297 = sphi 0, %s296
    %s311 = sphi 0, %s297
    %s315 = sphi 0, %s315
    %s317 = sphi 0, %s315
    %s318 = sphi 0, %s317
    %s332 = sphi 0, %s318
    %s336 = sphi 0, %s336
    %s338 = sphi 0, %s336
    %s339 = sphi 0, %s338
    %s353 = sphi 0, %s339
    %s357 = sphi 0, %s357
    %s359 = sphi 0, %s357
    %s360 = sphi 0, %s359
    %s374 = sphi 0, %s360
    %s378 = sphi 0, %s378
    %s380 = sphi 0, %s378
    %s381 = sphi 0, %s380
    %s395 = sphi 0, %s381
    %s399 = sphi 0, %s399
    %s401 = sphi 0, %s399
    %s402 = sphi 0, %s401
    %s416 = sphi 0, %s402
    %s420 = sphi 0, %s420
    %s422 = sphi 0, %s420
    %s423 = sphi 0, %s422
    %s437 = sphi 0, %s423
    %s441 = sphi 0, %s441
    %s443 = sphi 0, %s441
    %s444 = sphi 0, %s443
    %s458 = sphi 0, %s444
    %s462 = sphi 0, %s462
    %s464 = sphi 0, %s462
    %s465 = sphi 0, %s464
    %s479 = sphi 0, %s465
    %s483 = sphi 0, %s483
    %s485 = sphi 0, %s483
    %s486 = sphi 0, %s485
    %s500 = sphi 0, %s486
    %s504 = sphi 0, %s504
    %s506 = sphi 0, %s504
    %s507 = sphi 0, %s506
    %s521 = sphi 0, %s507
    %s525 = sphi 0, %s525
    %s527 = sphi 0, %s525
    %s528 = sphi 0, %s527
    %s542 = sphi 0, %s528
    %s546 = sphi 0, %s546
    %s548 = sphi 0, %s546
    %s549 = sphi 0, %s548
    %s563 = sphi 0, %s549
    %s567 = sphi 0, %s567
    %s569 = sphi 0, %s567
    %s570 = sphi 0, %s569
    %s584 = sphi 0, %s570
    %s588 = sphi 0, %s588
    %s590 = sphi 0, %s588
    %s591 = sphi 0, %s590
    %s605 = sphi 0, %s591
    %s609 = sphi 0, %s609
    %s611 = sphi 0, %s609
    %s612 = sphi 0, %s611
    %s626 = sphi 0, %s612
    %s630 = sphi 0, %s630
    %s632 = sphi 0, %s630
    %s633 = sphi 0, %s632
    %s647 = sphi 0, %s633
    %s651 = sphi 0, %s651
    %s653 = sphi 0, %s651
    %s654 = sphi 0, %s653
    %s668 = sphi 0, %s654
    %s672 = sphi 0, %s672
    %s674 = sphi 0, %s672
    %s675 = sphi 0, %s674
    %s689 = sphi 0, %s675
    %s693 = sphi 0, %s693
    %s695 = sphi 0, %s693
    %s696 = sphi 0, %s695
    %s710 = sphi 0, %s696
    %s714 = sphi 0, %s714
    %s716 = sphi 0, %s714
    %s717 = sphi 0, %s716
    %s731 = sphi 0, %s717
    %s735 = sphi 0, %s735
    %s737 = sphi 0, %s735
    %s738 = sphi 0, %s737
    %s752 = sphi 0, %s738
    %s756 = sphi 0, %s756
    %s758 = sphi 0, %s756
    %s759 = sphi 0, %s758
    %s773 = sphi 0, %s759
    %s777 = sphi 0, %s777
    %s779 = sphi 0, %s777
    %s780 = sphi 0, %s779
    %s794 = sphi 0, %s780
    %s798 = sphi 0, %s798
    %s800 = sphi 0, %s798
    %s801 = sphi 0, %s800
    %s815 = sphi 0, %s801
    %s819 = sphi 0, %s819
    %s821 = sphi 0, %s819
    %s822 = sphi 0, %s821
    %s836 = sphi 0, %s822
    %s840 = sphi 0, %s840
    %s842 = sphi 0, %s840
    %s843 = sphi 0, %s842
    %s857 = sphi 0, %s843
    %s861 = sphi 0, %s861
    %s863 = sphi 0, %s861
    %s864 = sphi 0, %s863
    %s878 = sphi 0, %s864
    %s882 = sphi 0, %s882
    %s884 = sphi 0, %s882
    %s885 = sphi 0, %s884
    %s899 = sphi 0, %s885
    %s903 = sphi 0, %s903
    %s905 = sphi 0, %s903
    %s906 = sphi 0, %s905
    %s920 = sphi 0, %s906
    %s924 = sphi 0, %s924
    %s926 = sphi 0, %s924
    %s927 = sphi 0, %s926
    %s941 = sphi 0, %s927
    %s945 = sphi 0, %s945
    %s947 = sphi 0, %s945
    %s948 = sphi 0, %s947
    %s962 = sphi 0, %s948
    %s966 = sphi 0, %s966
    %s968 = sphi 0, %s966
    %s969 = sphi 0, %s968
    %s983 = sphi 0, %s969
    %s987 = sphi 0, %s987
    %s989 = sphi 0, %s987
    %s990 = sphi 0, %s989
    %s1004 = sphi 0, %s990
    %s1008 = sphi 0, %s1008
    %s1010 = sphi 0, %s1008
    %s1011 = sphi 0, %s1010
    %s1025 = sphi 0, %s1011
    %s1029 = sphi 0, %s1029
    %s1031 = sphi 0, %s1029
    %s1032 = sphi 0, %s1031
    %s1046 = sphi 0, %s1032
    %s1052 = sphi 0, %s1054
    %s1055 = sphi 0, %s1052
    %s1056 = sphi 0, %s1055
    %s1072 = sphi 0, %s1056
    %s1078 = sphi 0, %s1080
    %s1081 = sphi 0, %s1078
    %s1082 = sphi 0, %s1081
    %s1098 = sphi 0, %s1082
  $region4: #{diffmae_forward.21} parent=0 // loop_header_branch
    %101 = sbr.rel (%p99) target = $region8
  $region5: #{diffmae_forward.21} parent=0 // loop_body
    %s103 = ssub.s32 %s98, 1
    %s104 = ssub.s32 %s98, 2
    %s105 = sadd.s32 %s98, 1
    %s106 = ssub.s32 %s98, %s105
    %p107 = scmp.eq.s32.totalorder %s106, 0
    %s109 = sadd.s32 %s108, 1
    %s110 = scalar_select %p107, %s108, %s109
    %p113 = pneg %p107
    %p114 = scmp.eq.s32.totalorder %s98, 1
    %p115 = por %p113, %p114
    %p116 = scmp.ne.s32.totalorder %s108, %s111
    %p117 = scmp.eq.s32.totalorder %s98, 0
    %p118 = por %p116, %p117
    %p119 = scmp.ne.s32.totalorder %s108, %s111
    %p120 = scmp.eq.s32.totalorder %s103, 1
    %p121 = por %p119, %p120
    %p122 = scmp.ne.s32.totalorder %s111, %s112
    %p123 = scmp.eq.s32.totalorder %s103, 0
    %p124 = por %p122, %p123
    %p125 = scmp.ne.s32.totalorder %s111, %s112
    %p126 = scmp.eq.s32.totalorder %s104, 1
    %p127 = por %p125, %p126
    %p129 = scmp.ne.s32.totalorder %s112, %s128
    %p130 = scmp.eq.s32.totalorder %s104, 0
    %p131 = por %p129, %p130
    %s132 = ssub.s32 %s98, %s105
    %p133 = scmp.eq.s32.totalorder %s132, 0
    %s135 = sadd.s32 %s134, 1
    %s136 = scalar_select %p133, %s134, %s135
    %p139 = pneg %p133
    %p140 = scmp.eq.s32.totalorder %s98, 1
    %p141 = por %p139, %p140
    %p142 = scmp.ne.s32.totalorder %s134, %s137
    %p143 = scmp.eq.s32.totalorder %s98, 0
    %p144 = por %p142, %p143
    %p145 = scmp.ne.s32.totalorder %s134, %s137
    %p146 = scmp.eq.s32.totalorder %s103, 1
    %p147 = por %p145, %p146
    %p148 = scmp.ne.s32.totalorder %s137, %s138
    %p149 = scmp.eq.s32.totalorder %s103, 0
    %p150 = por %p148, %p149
    %p151 = scmp.ne.s32.totalorder %s137, %s138
    %p152 = scmp.eq.s32.totalorder %s104, 1
    %p153 = por %p151, %p152
    %p155 = scmp.ne.s32.totalorder %s138, %s154
    %p156 = scmp.eq.s32.totalorder %s104, 0
    %p157 = por %p155, %p156
    %s158 = ssub.s32 %s98, %s105
    %p159 = scmp.eq.s32.totalorder %s158, 0
    %s161 = sadd.s32 %s160, 1
    %s162 = scalar_select %p159, %s160, %s161
    %p165 = pneg %p159
    %p166 = scmp.eq.s32.totalorder %s98, 1
    %p167 = por %p165, %p166
    %p168 = scmp.ne.s32.totalorder %s160, %s163
    %p169 = scmp.eq.s32.totalorder %s98, 0
    %p170 = por %p168, %p169
    %p171 = scmp.ne.s32.totalorder %s160, %s163
    %p172 = scmp.eq.s32.totalorder %s103, 1
    %p173 = por %p171, %p172
    %p174 = scmp.ne.s32.totalorder %s163, %s164
    %p175 = scmp.eq.s32.totalorder %s103, 0
    %p176 = por %p174, %p175
    %p177 = scmp.ne.s32.totalorder %s163, %s164
    %p178 = scmp.eq.s32.totalorder %s104, 1
    %p179 = por %p177, %p178
    %p181 = scmp.ne.s32.totalorder %s164, %s180
    %p182 = scmp.eq.s32.totalorder %s104, 0
    %p183 = por %p181, %p182
    %s184 = ssub.s32 %s98, %s105
    %p185 = scmp.eq.s32.totalorder %s184, 0
    %s187 = sadd.s32 %s186, 1
    %s188 = scalar_select %p185, %s186, %s187
    %p191 = pneg %p185
    %p192 = scmp.eq.s32.totalorder %s98, 1
    %p193 = por %p191, %p192
    %p194 = scmp.ne.s32.totalorder %s186, %s189
    %p195 = scmp.eq.s32.totalorder %s98, 0
    %p196 = por %p194, %p195
    %p197 = scmp.ne.s32.totalorder %s186, %s189
    %p198 = scmp.eq.s32.totalorder %s103, 1
    %p199 = por %p197, %p198
    %p200 = scmp.ne.s32.totalorder %s189, %s190
    %p201 = scmp.eq.s32.totalorder %s103, 0
    %p202 = por %p200, %p201
    %p203 = scmp.ne.s32.totalorder %s189, %s190
    %p204 = scmp.eq.s32.totalorder %s104, 1
    %p205 = por %p203, %p204
    %p207 = scmp.ne.s32.totalorder %s190, %s206
    %p208 = scmp.eq.s32.totalorder %s104, 0
    %p209 = por %p207, %p208
    %s211 = sadd.s32 %s210, 1
    %p214 = scmp.eq.s32.totalorder %s98, 1
    %p215 = scmp.ne.s32.totalorder %s210, %s212
    %p216 = scmp.eq.s32.totalorder %s98, 0
    %p217 = por %p215, %p216
    %p218 = scmp.ne.s32.totalorder %s210, %s212
    %p219 = scmp.eq.s32.totalorder %s103, 1
    %p220 = por %p218, %p219
    %p221 = scmp.ne.s32.totalorder %s212, %s213
    %p222 = scmp.eq.s32.totalorder %s103, 0
    %p223 = por %p221, %p222
    %p224 = scmp.ne.s32.totalorder %s212, %s213
    %p225 = scmp.eq.s32.totalorder %s104, 1
    %p226 = por %p224, %p225
    %p228 = scmp.ne.s32.totalorder %s213, %s227
    %p229 = scmp.eq.s32.totalorder %s104, 0
    %p230 = por %p228, %p229
    %s232 = sadd.s32 %s231, 1
    %p235 = scmp.eq.s32.totalorder %s98, 1
    %p236 = scmp.ne.s32.totalorder %s231, %s233
    %p237 = scmp.eq.s32.totalorder %s98, 0
    %p238 = por %p236, %p237
    %p239 = scmp.ne.s32.totalorder %s231, %s233
    %p240 = scmp.eq.s32.totalorder %s103, 1
    %p241 = por %p239, %p240
    %p242 = scmp.ne.s32.totalorder %s233, %s234
    %p243 = scmp.eq.s32.totalorder %s103, 0
    %p244 = por %p242, %p243
    %p245 = scmp.ne.s32.totalorder %s233, %s234
    %p246 = scmp.eq.s32.totalorder %s104, 1
    %p247 = por %p245, %p246
    %p249 = scmp.ne.s32.totalorder %s234, %s248
    %p250 = scmp.eq.s32.totalorder %s104, 0
    %p251 = por %p249, %p250
    %s253 = sadd.s32 %s252, 1
    %p256 = scmp.eq.s32.totalorder %s98, 1
    %p257 = scmp.ne.s32.totalorder %s252, %s254
    %p258 = scmp.eq.s32.totalorder %s98, 0
    %p259 = por %p257, %p258
    %p260 = scmp.ne.s32.totalorder %s252, %s254
    %p261 = scmp.eq.s32.totalorder %s103, 1
    %p262 = por %p260, %p261
    %p263 = scmp.ne.s32.totalorder %s254, %s255
    %p264 = scmp.eq.s32.totalorder %s103, 0
    %p265 = por %p263, %p264
    %p266 = scmp.ne.s32.totalorder %s254, %s255
    %p267 = scmp.eq.s32.totalorder %s104, 1
    %p268 = por %p266, %p267
    %p270 = scmp.ne.s32.totalorder %s255, %s269
    %p271 = scmp.eq.s32.totalorder %s104, 0
    %p272 = por %p270, %p271
    %s274 = sadd.s32 %s273, 1
    %p277 = scmp.eq.s32.totalorder %s98, 1
    %p278 = scmp.ne.s32.totalorder %s273, %s275
    %p279 = scmp.eq.s32.totalorder %s98, 0
    %p280 = por %p278, %p279
    %p281 = scmp.ne.s32.totalorder %s273, %s275
    %p282 = scmp.eq.s32.totalorder %s103, 1
    %p283 = por %p281, %p282
    %p284 = scmp.ne.s32.totalorder %s275, %s276
    %p285 = scmp.eq.s32.totalorder %s103, 0
    %p286 = por %p284, %p285
    %p287 = scmp.ne.s32.totalorder %s275, %s276
    %p288 = scmp.eq.s32.totalorder %s104, 1
    %p289 = por %p287, %p288
    %p291 = scmp.ne.s32.totalorder %s276, %s290
    %p292 = scmp.eq.s32.totalorder %s104, 0
    %p293 = por %p291, %p292
    %s295 = sadd.s32 %s294, 1
    %p298 = scmp.eq.s32.totalorder %s98, 1
    %p299 = scmp.ne.s32.totalorder %s294, %s296
    %p300 = scmp.eq.s32.totalorder %s98, 0
    %p301 = por %p299, %p300
    %p302 = scmp.ne.s32.totalorder %s294, %s296
    %p303 = scmp.eq.s32.totalorder %s103, 1
    %p304 = por %p302, %p303
    %p305 = scmp.ne.s32.totalorder %s296, %s297
    %p306 = scmp.eq.s32.totalorder %s103, 0
    %p307 = por %p305, %p306
    %p308 = scmp.ne.s32.totalorder %s296, %s297
    %p309 = scmp.eq.s32.totalorder %s104, 1
    %p310 = por %p308, %p309
    %p312 = scmp.ne.s32.totalorder %s297, %s311
    %p313 = scmp.eq.s32.totalorder %s104, 0
    %p314 = por %p312, %p313
    %s316 = sadd.s32 %s315, 1
    %p319 = scmp.eq.s32.totalorder %s98, 1
    %p320 = scmp.ne.s32.totalorder %s315, %s317
    %p321 = scmp.eq.s32.totalorder %s98, 0
    %p322 = por %p320, %p321
    %p323 = scmp.ne.s32.totalorder %s315, %s317
    %p324 = scmp.eq.s32.totalorder %s103, 1
    %p325 = por %p323, %p324
    %p326 = scmp.ne.s32.totalorder %s317, %s318
    %p327 = scmp.eq.s32.totalorder %s103, 0
    %p328 = por %p326, %p327
    %p329 = scmp.ne.s32.totalorder %s317, %s318
    %p330 = scmp.eq.s32.totalorder %s104, 1
    %p331 = por %p329, %p330
    %p333 = scmp.ne.s32.totalorder %s318, %s332
    %p334 = scmp.eq.s32.totalorder %s104, 0
    %p335 = por %p333, %p334
    %s337 = sadd.s32 %s336, 1
    %p340 = scmp.eq.s32.totalorder %s98, 1
    %p341 = scmp.ne.s32.totalorder %s336, %s338
    %p342 = scmp.eq.s32.totalorder %s98, 0
    %p343 = por %p341, %p342
    %p344 = scmp.ne.s32.totalorder %s336, %s338
    %p345 = scmp.eq.s32.totalorder %s103, 1
    %p346 = por %p344, %p345
    %p347 = scmp.ne.s32.totalorder %s338, %s339
    %p348 = scmp.eq.s32.totalorder %s103, 0
    %p349 = por %p347, %p348
    %p350 = scmp.ne.s32.totalorder %s338, %s339
    %p351 = scmp.eq.s32.totalorder %s104, 1
    %p352 = por %p350, %p351
    %p354 = scmp.ne.s32.totalorder %s339, %s353
    %p355 = scmp.eq.s32.totalorder %s104, 0
    %p356 = por %p354, %p355
    %s358 = sadd.s32 %s357, 1
    %p361 = scmp.eq.s32.totalorder %s98, 1
    %p362 = scmp.ne.s32.totalorder %s357, %s359
    %p363 = scmp.eq.s32.totalorder %s98, 0
    %p364 = por %p362, %p363
    %p365 = scmp.ne.s32.totalorder %s357, %s359
    %p366 = scmp.eq.s32.totalorder %s103, 1
    %p367 = por %p365, %p366
    %p368 = scmp.ne.s32.totalorder %s359, %s360
    %p369 = scmp.eq.s32.totalorder %s103, 0
    %p370 = por %p368, %p369
    %p371 = scmp.ne.s32.totalorder %s359, %s360
    %p372 = scmp.eq.s32.totalorder %s104, 1
    %p373 = por %p371, %p372
    %p375 = scmp.ne.s32.totalorder %s360, %s374
    %p376 = scmp.eq.s32.totalorder %s104, 0
    %p377 = por %p375, %p376
    %s379 = sadd.s32 %s378, 1
    %p382 = scmp.eq.s32.totalorder %s98, 1
    %p383 = scmp.ne.s32.totalorder %s378, %s380
    %p384 = scmp.eq.s32.totalorder %s98, 0
    %p385 = por %p383, %p384
    %p386 = scmp.ne.s32.totalorder %s378, %s380
    %p387 = scmp.eq.s32.totalorder %s103, 1
    %p388 = por %p386, %p387
    %p389 = scmp.ne.s32.totalorder %s380, %s381
    %p390 = scmp.eq.s32.totalorder %s103, 0
    %p391 = por %p389, %p390
    %p392 = scmp.ne.s32.totalorder %s380, %s381
    %p393 = scmp.eq.s32.totalorder %s104, 1
    %p394 = por %p392, %p393
    %p396 = scmp.ne.s32.totalorder %s381, %s395
    %p397 = scmp.eq.s32.totalorder %s104, 0
    %p398 = por %p396, %p397
    %s400 = sadd.s32 %s399, 1
    %p403 = scmp.eq.s32.totalorder %s98, 1
    %p404 = scmp.ne.s32.totalorder %s399, %s401
    %p405 = scmp.eq.s32.totalorder %s98, 0
    %p406 = por %p404, %p405
    %p407 = scmp.ne.s32.totalorder %s399, %s401
    %p408 = scmp.eq.s32.totalorder %s103, 1
    %p409 = por %p407, %p408
    %p410 = scmp.ne.s32.totalorder %s401, %s402
    %p411 = scmp.eq.s32.totalorder %s103, 0
    %p412 = por %p410, %p411
    %p413 = scmp.ne.s32.totalorder %s401, %s402
    %p414 = scmp.eq.s32.totalorder %s104, 1
    %p415 = por %p413, %p414
    %p417 = scmp.ne.s32.totalorder %s402, %s416
    %p418 = scmp.eq.s32.totalorder %s104, 0
    %p419 = por %p417, %p418
    %s421 = sadd.s32 %s420, 1
    %p424 = scmp.eq.s32.totalorder %s98, 1
    %p425 = scmp.ne.s32.totalorder %s420, %s422
    %p426 = scmp.eq.s32.totalorder %s98, 0
    %p427 = por %p425, %p426
    %p428 = scmp.ne.s32.totalorder %s420, %s422
    %p429 = scmp.eq.s32.totalorder %s103, 1
    %p430 = por %p428, %p429
    %p431 = scmp.ne.s32.totalorder %s422, %s423
    %p432 = scmp.eq.s32.totalorder %s103, 0
    %p433 = por %p431, %p432
    %p434 = scmp.ne.s32.totalorder %s422, %s423
    %p435 = scmp.eq.s32.totalorder %s104, 1
    %p436 = por %p434, %p435
    %p438 = scmp.ne.s32.totalorder %s423, %s437
    %p439 = scmp.eq.s32.totalorder %s104, 0
    %p440 = por %p438, %p439
    %s442 = sadd.s32 %s441, 1
    %p445 = scmp.eq.s32.totalorder %s98, 1
    %p446 = scmp.ne.s32.totalorder %s441, %s443
    %p447 = scmp.eq.s32.totalorder %s98, 0
    %p448 = por %p446, %p447
    %p449 = scmp.ne.s32.totalorder %s441, %s443
    %p450 = scmp.eq.s32.totalorder %s103, 1
    %p451 = por %p449, %p450
    %p452 = scmp.ne.s32.totalorder %s443, %s444
    %p453 = scmp.eq.s32.totalorder %s103, 0
    %p454 = por %p452, %p453
    %p455 = scmp.ne.s32.totalorder %s443, %s444
    %p456 = scmp.eq.s32.totalorder %s104, 1
    %p457 = por %p455, %p456
    %p459 = scmp.ne.s32.totalorder %s444, %s458
    %p460 = scmp.eq.s32.totalorder %s104, 0
    %p461 = por %p459, %p460
    %s463 = sadd.s32 %s462, 1
    %p466 = scmp.eq.s32.totalorder %s98, 1
    %p467 = scmp.ne.s32.totalorder %s462, %s464
    %p468 = scmp.eq.s32.totalorder %s98, 0
    %p469 = por %p467, %p468
    %p470 = scmp.ne.s32.totalorder %s462, %s464
    %p471 = scmp.eq.s32.totalorder %s103, 1
    %p472 = por %p470, %p471
    %p473 = scmp.ne.s32.totalorder %s464, %s465
    %p474 = scmp.eq.s32.totalorder %s103, 0
    %p475 = por %p473, %p474
    %p476 = scmp.ne.s32.totalorder %s464, %s465
    %p477 = scmp.eq.s32.totalorder %s104, 1
    %p478 = por %p476, %p477
    %p480 = scmp.ne.s32.totalorder %s465, %s479
    %p481 = scmp.eq.s32.totalorder %s104, 0
    %p482 = por %p480, %p481
    %s484 = sadd.s32 %s483, 1
    %p487 = scmp.eq.s32.totalorder %s98, 1
    %p488 = scmp.ne.s32.totalorder %s483, %s485
    %p489 = scmp.eq.s32.totalorder %s98, 0
    %p490 = por %p488, %p489
    %p491 = scmp.ne.s32.totalorder %s483, %s485
    %p492 = scmp.eq.s32.totalorder %s103, 1
    %p493 = por %p491, %p492
    %p494 = scmp.ne.s32.totalorder %s485, %s486
    %p495 = scmp.eq.s32.totalorder %s103, 0
    %p496 = por %p494, %p495
    %p497 = scmp.ne.s32.totalorder %s485, %s486
    %p498 = scmp.eq.s32.totalorder %s104, 1
    %p499 = por %p497, %p498
    %p501 = scmp.ne.s32.totalorder %s486, %s500
    %p502 = scmp.eq.s32.totalorder %s104, 0
    %p503 = por %p501, %p502
    %s505 = sadd.s32 %s504, 1
    %p508 = scmp.eq.s32.totalorder %s98, 1
    %p509 = scmp.ne.s32.totalorder %s504, %s506
    %p510 = scmp.eq.s32.totalorder %s98, 0
    %p511 = por %p509, %p510
    %p512 = scmp.ne.s32.totalorder %s504, %s506
    %p513 = scmp.eq.s32.totalorder %s103, 1
    %p514 = por %p512, %p513
    %p515 = scmp.ne.s32.totalorder %s506, %s507
    %p516 = scmp.eq.s32.totalorder %s103, 0
    %p517 = por %p515, %p516
    %p518 = scmp.ne.s32.totalorder %s506, %s507
    %p519 = scmp.eq.s32.totalorder %s104, 1
    %p520 = por %p518, %p519
    %p522 = scmp.ne.s32.totalorder %s507, %s521
    %p523 = scmp.eq.s32.totalorder %s104, 0
    %p524 = por %p522, %p523
    %s526 = sadd.s32 %s525, 1
    %p529 = scmp.eq.s32.totalorder %s98, 1
    %p530 = scmp.ne.s32.totalorder %s525, %s527
    %p531 = scmp.eq.s32.totalorder %s98, 0
    %p532 = por %p530, %p531
    %p533 = scmp.ne.s32.totalorder %s525, %s527
    %p534 = scmp.eq.s32.totalorder %s103, 1
    %p535 = por %p533, %p534
    %p536 = scmp.ne.s32.totalorder %s527, %s528
    %p537 = scmp.eq.s32.totalorder %s103, 0
    %p538 = por %p536, %p537
    %p539 = scmp.ne.s32.totalorder %s527, %s528
    %p540 = scmp.eq.s32.totalorder %s104, 1
    %p541 = por %p539, %p540
    %p543 = scmp.ne.s32.totalorder %s528, %s542
    %p544 = scmp.eq.s32.totalorder %s104, 0
    %p545 = por %p543, %p544
    %s547 = sadd.s32 %s546, 1
    %p550 = scmp.eq.s32.totalorder %s98, 1
    %p551 = scmp.ne.s32.totalorder %s546, %s548
    %p552 = scmp.eq.s32.totalorder %s98, 0
    %p553 = por %p551, %p552
    %p554 = scmp.ne.s32.totalorder %s546, %s548
    %p555 = scmp.eq.s32.totalorder %s103, 1
    %p556 = por %p554, %p555
    %p557 = scmp.ne.s32.totalorder %s548, %s549
    %p558 = scmp.eq.s32.totalorder %s103, 0
    %p559 = por %p557, %p558
    %p560 = scmp.ne.s32.totalorder %s548, %s549
    %p561 = scmp.eq.s32.totalorder %s104, 1
    %p562 = por %p560, %p561
    %p564 = scmp.ne.s32.totalorder %s549, %s563
    %p565 = scmp.eq.s32.totalorder %s104, 0
    %p566 = por %p564, %p565
    %s568 = sadd.s32 %s567, 1
    %p571 = scmp.eq.s32.totalorder %s98, 1
    %p572 = scmp.ne.s32.totalorder %s567, %s569
    %p573 = scmp.eq.s32.totalorder %s98, 0
    %p574 = por %p572, %p573
    %p575 = scmp.ne.s32.totalorder %s567, %s569
    %p576 = scmp.eq.s32.totalorder %s103, 1
    %p577 = por %p575, %p576
    %p578 = scmp.ne.s32.totalorder %s569, %s570
    %p579 = scmp.eq.s32.totalorder %s103, 0
    %p580 = por %p578, %p579
    %p581 = scmp.ne.s32.totalorder %s569, %s570
    %p582 = scmp.eq.s32.totalorder %s104, 1
    %p583 = por %p581, %p582
    %p585 = scmp.ne.s32.totalorder %s570, %s584
    %p586 = scmp.eq.s32.totalorder %s104, 0
    %p587 = por %p585, %p586
    %s589 = sadd.s32 %s588, 1
    %p592 = scmp.eq.s32.totalorder %s98, 1
    %p593 = scmp.ne.s32.totalorder %s588, %s590
    %p594 = scmp.eq.s32.totalorder %s98, 0
    %p595 = por %p593, %p594
    %p596 = scmp.ne.s32.totalorder %s588, %s590
    %p597 = scmp.eq.s32.totalorder %s103, 1
    %p598 = por %p596, %p597
    %p599 = scmp.ne.s32.totalorder %s590, %s591
    %p600 = scmp.eq.s32.totalorder %s103, 0
    %p601 = por %p599, %p600
    %p602 = scmp.ne.s32.totalorder %s590, %s591
    %p603 = scmp.eq.s32.totalorder %s104, 1
    %p604 = por %p602, %p603
    %p606 = scmp.ne.s32.totalorder %s591, %s605
    %p607 = scmp.eq.s32.totalorder %s104, 0
    %p608 = por %p606, %p607
    %s610 = sadd.s32 %s609, 1
    %p613 = scmp.eq.s32.totalorder %s98, 1
    %p614 = scmp.ne.s32.totalorder %s609, %s611
    %p615 = scmp.eq.s32.totalorder %s98, 0
    %p616 = por %p614, %p615
    %p617 = scmp.ne.s32.totalorder %s609, %s611
    %p618 = scmp.eq.s32.totalorder %s103, 1
    %p619 = por %p617, %p618
    %p620 = scmp.ne.s32.totalorder %s611, %s612
    %p621 = scmp.eq.s32.totalorder %s103, 0
    %p622 = por %p620, %p621
    %p623 = scmp.ne.s32.totalorder %s611, %s612
    %p624 = scmp.eq.s32.totalorder %s104, 1
    %p625 = por %p623, %p624
    %p627 = scmp.ne.s32.totalorder %s612, %s626
    %p628 = scmp.eq.s32.totalorder %s104, 0
    %p629 = por %p627, %p628
    %s631 = sadd.s32 %s630, 1
    %p634 = scmp.eq.s32.totalorder %s98, 1
    %p635 = scmp.ne.s32.totalorder %s630, %s632
    %p636 = scmp.eq.s32.totalorder %s98, 0
    %p637 = por %p635, %p636
    %p638 = scmp.ne.s32.totalorder %s630, %s632
    %p639 = scmp.eq.s32.totalorder %s103, 1
    %p640 = por %p638, %p639
    %p641 = scmp.ne.s32.totalorder %s632, %s633
    %p642 = scmp.eq.s32.totalorder %s103, 0
    %p643 = por %p641, %p642
    %p644 = scmp.ne.s32.totalorder %s632, %s633
    %p645 = scmp.eq.s32.totalorder %s104, 1
    %p646 = por %p644, %p645
    %p648 = scmp.ne.s32.totalorder %s633, %s647
    %p649 = scmp.eq.s32.totalorder %s104, 0
    %p650 = por %p648, %p649
    %s652 = sadd.s32 %s651, 1
    %p655 = scmp.eq.s32.totalorder %s98, 1
    %p656 = scmp.ne.s32.totalorder %s651, %s653
    %p657 = scmp.eq.s32.totalorder %s98, 0
    %p658 = por %p656, %p657
    %p659 = scmp.ne.s32.totalorder %s651, %s653
    %p660 = scmp.eq.s32.totalorder %s103, 1
    %p661 = por %p659, %p660
    %p662 = scmp.ne.s32.totalorder %s653, %s654
    %p663 = scmp.eq.s32.totalorder %s103, 0
    %p664 = por %p662, %p663
    %p665 = scmp.ne.s32.totalorder %s653, %s654
    %p666 = scmp.eq.s32.totalorder %s104, 1
    %p667 = por %p665, %p666
    %p669 = scmp.ne.s32.totalorder %s654, %s668
    %p670 = scmp.eq.s32.totalorder %s104, 0
    %p671 = por %p669, %p670
    %s673 = sadd.s32 %s672, 1
    %p676 = scmp.eq.s32.totalorder %s98, 1
    %p677 = scmp.ne.s32.totalorder %s672, %s674
    %p678 = scmp.eq.s32.totalorder %s98, 0
    %p679 = por %p677, %p678
    %p680 = scmp.ne.s32.totalorder %s672, %s674
    %p681 = scmp.eq.s32.totalorder %s103, 1
    %p682 = por %p680, %p681
    %p683 = scmp.ne.s32.totalorder %s674, %s675
    %p684 = scmp.eq.s32.totalorder %s103, 0
    %p685 = por %p683, %p684
    %p686 = scmp.ne.s32.totalorder %s674, %s675
    %p687 = scmp.eq.s32.totalorder %s104, 1
    %p688 = por %p686, %p687
    %p690 = scmp.ne.s32.totalorder %s675, %s689
    %p691 = scmp.eq.s32.totalorder %s104, 0
    %p692 = por %p690, %p691
    %s694 = sadd.s32 %s693, 1
    %p697 = scmp.eq.s32.totalorder %s98, 1
    %p698 = scmp.ne.s32.totalorder %s693, %s695
    %p699 = scmp.eq.s32.totalorder %s98, 0
    %p700 = por %p698, %p699
    %p701 = scmp.ne.s32.totalorder %s693, %s695
    %p702 = scmp.eq.s32.totalorder %s103, 1
    %p703 = por %p701, %p702
    %p704 = scmp.ne.s32.totalorder %s695, %s696
    %p705 = scmp.eq.s32.totalorder %s103, 0
    %p706 = por %p704, %p705
    %p707 = scmp.ne.s32.totalorder %s695, %s696
    %p708 = scmp.eq.s32.totalorder %s104, 1
    %p709 = por %p707, %p708
    %p711 = scmp.ne.s32.totalorder %s696, %s710
    %p712 = scmp.eq.s32.totalorder %s104, 0
    %p713 = por %p711, %p712
    %s715 = sadd.s32 %s714, 1
    %p718 = scmp.eq.s32.totalorder %s98, 1
    %p719 = scmp.ne.s32.totalorder %s714, %s716
    %p720 = scmp.eq.s32.totalorder %s98, 0
    %p721 = por %p719, %p720
    %p722 = scmp.ne.s32.totalorder %s714, %s716
    %p723 = scmp.eq.s32.totalorder %s103, 1
    %p724 = por %p722, %p723
    %p725 = scmp.ne.s32.totalorder %s716, %s717
    %p726 = scmp.eq.s32.totalorder %s103, 0
    %p727 = por %p725, %p726
    %p728 = scmp.ne.s32.totalorder %s716, %s717
    %p729 = scmp.eq.s32.totalorder %s104, 1
    %p730 = por %p728, %p729
    %p732 = scmp.ne.s32.totalorder %s717, %s731
    %p733 = scmp.eq.s32.totalorder %s104, 0
    %p734 = por %p732, %p733
    %s736 = sadd.s32 %s735, 1
    %p739 = scmp.eq.s32.totalorder %s98, 1
    %p740 = scmp.ne.s32.totalorder %s735, %s737
    %p741 = scmp.eq.s32.totalorder %s98, 0
    %p742 = por %p740, %p741
    %p743 = scmp.ne.s32.totalorder %s735, %s737
    %p744 = scmp.eq.s32.totalorder %s103, 1
    %p745 = por %p743, %p744
    %p746 = scmp.ne.s32.totalorder %s737, %s738
    %p747 = scmp.eq.s32.totalorder %s103, 0
    %p748 = por %p746, %p747
    %p749 = scmp.ne.s32.totalorder %s737, %s738
    %p750 = scmp.eq.s32.totalorder %s104, 1
    %p751 = por %p749, %p750
    %p753 = scmp.ne.s32.totalorder %s738, %s752
    %p754 = scmp.eq.s32.totalorder %s104, 0
    %p755 = por %p753, %p754
    %s757 = sadd.s32 %s756, 1
    %p760 = scmp.eq.s32.totalorder %s98, 1
    %p761 = scmp.ne.s32.totalorder %s756, %s758
    %p762 = scmp.eq.s32.totalorder %s98, 0
    %p763 = por %p761, %p762
    %p764 = scmp.ne.s32.totalorder %s756, %s758
    %p765 = scmp.eq.s32.totalorder %s103, 1
    %p766 = por %p764, %p765
    %p767 = scmp.ne.s32.totalorder %s758, %s759
    %p768 = scmp.eq.s32.totalorder %s103, 0
    %p769 = por %p767, %p768
    %p770 = scmp.ne.s32.totalorder %s758, %s759
    %p771 = scmp.eq.s32.totalorder %s104, 1
    %p772 = por %p770, %p771
    %p774 = scmp.ne.s32.totalorder %s759, %s773
    %p775 = scmp.eq.s32.totalorder %s104, 0
    %p776 = por %p774, %p775
    %s778 = sadd.s32 %s777, 1
    %p781 = scmp.eq.s32.totalorder %s98, 1
    %p782 = scmp.ne.s32.totalorder %s777, %s779
    %p783 = scmp.eq.s32.totalorder %s98, 0
    %p784 = por %p782, %p783
    %p785 = scmp.ne.s32.totalorder %s777, %s779
    %p786 = scmp.eq.s32.totalorder %s103, 1
    %p787 = por %p785, %p786
    %p788 = scmp.ne.s32.totalorder %s779, %s780
    %p789 = scmp.eq.s32.totalorder %s103, 0
    %p790 = por %p788, %p789
    %p791 = scmp.ne.s32.totalorder %s779, %s780
    %p792 = scmp.eq.s32.totalorder %s104, 1
    %p793 = por %p791, %p792
    %p795 = scmp.ne.s32.totalorder %s780, %s794
    %p796 = scmp.eq.s32.totalorder %s104, 0
    %p797 = por %p795, %p796
    %s799 = sadd.s32 %s798, 1
    %p802 = scmp.eq.s32.totalorder %s98, 1
    %p803 = scmp.ne.s32.totalorder %s798, %s800
    %p804 = scmp.eq.s32.totalorder %s98, 0
    %p805 = por %p803, %p804
    %p806 = scmp.ne.s32.totalorder %s798, %s800
    %p807 = scmp.eq.s32.totalorder %s103, 1
    %p808 = por %p806, %p807
    %p809 = scmp.ne.s32.totalorder %s800, %s801
    %p810 = scmp.eq.s32.totalorder %s103, 0
    %p811 = por %p809, %p810
    %p812 = scmp.ne.s32.totalorder %s800, %s801
    %p813 = scmp.eq.s32.totalorder %s104, 1
    %p814 = por %p812, %p813
    %p816 = scmp.ne.s32.totalorder %s801, %s815
    %p817 = scmp.eq.s32.totalorder %s104, 0
    %p818 = por %p816, %p817
    %s820 = sadd.s32 %s819, 1
    %p823 = scmp.eq.s32.totalorder %s98, 1
    %p824 = scmp.ne.s32.totalorder %s819, %s821
    %p825 = scmp.eq.s32.totalorder %s98, 0
    %p826 = por %p824, %p825
    %p827 = scmp.ne.s32.totalorder %s819, %s821
    %p828 = scmp.eq.s32.totalorder %s103, 1
    %p829 = por %p827, %p828
    %p830 = scmp.ne.s32.totalorder %s821, %s822
    %p831 = scmp.eq.s32.totalorder %s103, 0
    %p832 = por %p830, %p831
    %p833 = scmp.ne.s32.totalorder %s821, %s822
    %p834 = scmp.eq.s32.totalorder %s104, 1
    %p835 = por %p833, %p834
    %p837 = scmp.ne.s32.totalorder %s822, %s836
    %p838 = scmp.eq.s32.totalorder %s104, 0
    %p839 = por %p837, %p838
    %s841 = sadd.s32 %s840, 1
    %p844 = scmp.eq.s32.totalorder %s98, 1
    %p845 = scmp.ne.s32.totalorder %s840, %s842
    %p846 = scmp.eq.s32.totalorder %s98, 0
    %p847 = por %p845, %p846
    %p848 = scmp.ne.s32.totalorder %s840, %s842
    %p849 = scmp.eq.s32.totalorder %s103, 1
    %p850 = por %p848, %p849
    %p851 = scmp.ne.s32.totalorder %s842, %s843
    %p852 = scmp.eq.s32.totalorder %s103, 0
    %p853 = por %p851, %p852
    %p854 = scmp.ne.s32.totalorder %s842, %s843
    %p855 = scmp.eq.s32.totalorder %s104, 1
    %p856 = por %p854, %p855
    %p858 = scmp.ne.s32.totalorder %s843, %s857
    %p859 = scmp.eq.s32.totalorder %s104, 0
    %p860 = por %p858, %p859
    %s862 = sadd.s32 %s861, 1
    %p865 = scmp.eq.s32.totalorder %s98, 1
    %p866 = scmp.ne.s32.totalorder %s861, %s863
    %p867 = scmp.eq.s32.totalorder %s98, 0
    %p868 = por %p866, %p867
    %p869 = scmp.ne.s32.totalorder %s861, %s863
    %p870 = scmp.eq.s32.totalorder %s103, 1
    %p871 = por %p869, %p870
    %p872 = scmp.ne.s32.totalorder %s863, %s864
    %p873 = scmp.eq.s32.totalorder %s103, 0
    %p874 = por %p872, %p873
    %p875 = scmp.ne.s32.totalorder %s863, %s864
    %p876 = scmp.eq.s32.totalorder %s104, 1
    %p877 = por %p875, %p876
    %p879 = scmp.ne.s32.totalorder %s864, %s878
    %p880 = scmp.eq.s32.totalorder %s104, 0
    %p881 = por %p879, %p880
    %s883 = sadd.s32 %s882, 1
    %p886 = scmp.eq.s32.totalorder %s98, 1
    %p887 = scmp.ne.s32.totalorder %s882, %s884
    %p888 = scmp.eq.s32.totalorder %s98, 0
    %p889 = por %p887, %p888
    %p890 = scmp.ne.s32.totalorder %s882, %s884
    %p891 = scmp.eq.s32.totalorder %s103, 1
    %p892 = por %p890, %p891
    %p893 = scmp.ne.s32.totalorder %s884, %s885
    %p894 = scmp.eq.s32.totalorder %s103, 0
    %p895 = por %p893, %p894
    %p896 = scmp.ne.s32.totalorder %s884, %s885
    %p897 = scmp.eq.s32.totalorder %s104, 1
    %p898 = por %p896, %p897
    %p900 = scmp.ne.s32.totalorder %s885, %s899
    %p901 = scmp.eq.s32.totalorder %s104, 0
    %p902 = por %p900, %p901
    %s904 = sadd.s32 %s903, 1
    %p907 = scmp.eq.s32.totalorder %s98, 1
    %p908 = scmp.ne.s32.totalorder %s903, %s905
    %p909 = scmp.eq.s32.totalorder %s98, 0
    %p910 = por %p908, %p909
    %p911 = scmp.ne.s32.totalorder %s903, %s905
    %p912 = scmp.eq.s32.totalorder %s103, 1
    %p913 = por %p911, %p912
    %p914 = scmp.ne.s32.totalorder %s905, %s906
    %p915 = scmp.eq.s32.totalorder %s103, 0
    %p916 = por %p914, %p915
    %p917 = scmp.ne.s32.totalorder %s905, %s906
    %p918 = scmp.eq.s32.totalorder %s104, 1
    %p919 = por %p917, %p918
    %p921 = scmp.ne.s32.totalorder %s906, %s920
    %p922 = scmp.eq.s32.totalorder %s104, 0
    %p923 = por %p921, %p922
    %s925 = sadd.s32 %s924, 1
    %p928 = scmp.eq.s32.totalorder %s98, 1
    %p929 = scmp.ne.s32.totalorder %s924, %s926
    %p930 = scmp.eq.s32.totalorder %s98, 0
    %p931 = por %p929, %p930
    %p932 = scmp.ne.s32.totalorder %s924, %s926
    %p933 = scmp.eq.s32.totalorder %s103, 1
    %p934 = por %p932, %p933
    %p935 = scmp.ne.s32.totalorder %s926, %s927
    %p936 = scmp.eq.s32.totalorder %s103, 0
    %p937 = por %p935, %p936
    %p938 = scmp.ne.s32.totalorder %s926, %s927
    %p939 = scmp.eq.s32.totalorder %s104, 1
    %p940 = por %p938, %p939
    %p942 = scmp.ne.s32.totalorder %s927, %s941
    %p943 = scmp.eq.s32.totalorder %s104, 0
    %p944 = por %p942, %p943
    %s946 = sadd.s32 %s945, 1
    %p949 = scmp.eq.s32.totalorder %s98, 1
    %p950 = scmp.ne.s32.totalorder %s945, %s947
    %p951 = scmp.eq.s32.totalorder %s98, 0
    %p952 = por %p950, %p951
    %p953 = scmp.ne.s32.totalorder %s945, %s947
    %p954 = scmp.eq.s32.totalorder %s103, 1
    %p955 = por %p953, %p954
    %p956 = scmp.ne.s32.totalorder %s947, %s948
    %p957 = scmp.eq.s32.totalorder %s103, 0
    %p958 = por %p956, %p957
    %p959 = scmp.ne.s32.totalorder %s947, %s948
    %p960 = scmp.eq.s32.totalorder %s104, 1
    %p961 = por %p959, %p960
    %p963 = scmp.ne.s32.totalorder %s948, %s962
    %p964 = scmp.eq.s32.totalorder %s104, 0
    %p965 = por %p963, %p964
    %s967 = sadd.s32 %s966, 1
    %p970 = scmp.eq.s32.totalorder %s98, 1
    %p971 = scmp.ne.s32.totalorder %s966, %s968
    %p972 = scmp.eq.s32.totalorder %s98, 0
    %p973 = por %p971, %p972
    %p974 = scmp.ne.s32.totalorder %s966, %s968
    %p975 = scmp.eq.s32.totalorder %s103, 1
    %p976 = por %p974, %p975
    %p977 = scmp.ne.s32.totalorder %s968, %s969
    %p978 = scmp.eq.s32.totalorder %s103, 0
    %p979 = por %p977, %p978
    %p980 = scmp.ne.s32.totalorder %s968, %s969
    %p981 = scmp.eq.s32.totalorder %s104, 1
    %p982 = por %p980, %p981
    %p984 = scmp.ne.s32.totalorder %s969, %s983
    %p985 = scmp.eq.s32.totalorder %s104, 0
    %p986 = por %p984, %p985
    %s988 = sadd.s32 %s987, 1
    %p991 = scmp.eq.s32.totalorder %s98, 1
    %p992 = scmp.ne.s32.totalorder %s987, %s989
    %p993 = scmp.eq.s32.totalorder %s98, 0
    %p994 = por %p992, %p993
    %p995 = scmp.ne.s32.totalorder %s987, %s989
    %p996 = scmp.eq.s32.totalorder %s103, 1
    %p997 = por %p995, %p996
    %p998 = scmp.ne.s32.totalorder %s989, %s990
    %p999 = scmp.eq.s32.totalorder %s103, 0
    %p1000 = por %p998, %p999
    %p1001 = scmp.ne.s32.totalorder %s989, %s990
    %p1002 = scmp.eq.s32.totalorder %s104, 1
    %p1003 = por %p1001, %p1002
    %p1005 = scmp.ne.s32.totalorder %s990, %s1004
    %p1006 = scmp.eq.s32.totalorder %s104, 0
    %p1007 = por %p1005, %p1006
    %s1009 = sadd.s32 %s1008, 1
    %p1012 = scmp.eq.s32.totalorder %s98, 1
    %p1013 = scmp.ne.s32.totalorder %s1008, %s1010
    %p1014 = scmp.eq.s32.totalorder %s98, 0
    %p1015 = por %p1013, %p1014
    %p1016 = scmp.ne.s32.totalorder %s1008, %s1010
    %p1017 = scmp.eq.s32.totalorder %s103, 1
    %p1018 = por %p1016, %p1017
    %p1019 = scmp.ne.s32.totalorder %s1010, %s1011
    %p1020 = scmp.eq.s32.totalorder %s103, 0
    %p1021 = por %p1019, %p1020
    %p1022 = scmp.ne.s32.totalorder %s1010, %s1011
    %p1023 = scmp.eq.s32.totalorder %s104, 1
    %p1024 = por %p1022, %p1023
    %p1026 = scmp.ne.s32.totalorder %s1011, %s1025
    %p1027 = scmp.eq.s32.totalorder %s104, 0
    %p1028 = por %p1026, %p1027
    %s1030 = sadd.s32 %s1029, 1
    %p1033 = scmp.eq.s32.totalorder %s98, 1
    %p1034 = scmp.ne.s32.totalorder %s1029, %s1031
    %p1035 = scmp.eq.s32.totalorder %s98, 0
    %p1036 = por %p1034, %p1035
    %p1037 = scmp.ne.s32.totalorder %s1029, %s1031
    %p1038 = scmp.eq.s32.totalorder %s103, 1
    %p1039 = por %p1037, %p1038
    %p1040 = scmp.ne.s32.totalorder %s1031, %s1032
    %p1041 = scmp.eq.s32.totalorder %s103, 0
    %p1042 = por %p1040, %p1041
    %p1043 = scmp.ne.s32.totalorder %s1031, %s1032
    %p1044 = scmp.eq.s32.totalorder %s104, 1
    %p1045 = por %p1043, %p1044
    %p1047 = scmp.ne.s32.totalorder %s1032, %s1046
    %p1048 = scmp.eq.s32.totalorder %s104, 0
    %p1049 = por %p1047, %p1048
    %s1050 = ssub.s32 %s98, %s105
    %p1051 = scmp.eq.s32.totalorder %s1050, 0
    %s1053 = sadd.s32 %s1052, 1
    %s1054 = scalar_select %p1051, %s1052, %s1053
    %p1057 = pneg %p1051
    %p1058 = scmp.eq.s32.totalorder %s98, 1
    %p1059 = por %p1057, %p1058
    %p1060 = scmp.ne.s32.totalorder %s1052, %s1055
    %p1061 = scmp.eq.s32.totalorder %s98, 0
    %p1062 = por %p1060, %p1061
    %p1063 = scmp.ne.s32.totalorder %s1052, %s1055
    %p1064 = scmp.eq.s32.totalorder %s103, 1
    %p1065 = por %p1063, %p1064
    %p1066 = scmp.ne.s32.totalorder %s1055, %s1056
    %p1067 = scmp.eq.s32.totalorder %s103, 0
    %p1068 = por %p1066, %p1067
    %p1069 = scmp.ne.s32.totalorder %s1055, %s1056
    %p1070 = scmp.eq.s32.totalorder %s104, 1
    %p1071 = por %p1069, %p1070
    %p1073 = scmp.ne.s32.totalorder %s1056, %s1072
    %p1074 = scmp.eq.s32.totalorder %s104, 0
    %p1075 = por %p1073, %p1074
    %s1076 = ssub.s32 %s98, %s105
    %p1077 = scmp.eq.s32.totalorder %s1076, 0
    %s1079 = sadd.s32 %s1078, 1
    %s1080 = scalar_select %p1077, %s1078, %s1079
    %p1083 = pneg %p1077
    %p1084 = scmp.eq.s32.totalorder %s98, 1
    %p1085 = por %p1083, %p1084
    %p1086 = scmp.ne.s32.totalorder %s1078, %s1081
    %p1087 = scmp.eq.s32.totalorder %s98, 0
    %p1088 = por %p1086, %p1087
    %p1089 = scmp.ne.s32.totalorder %s1078, %s1081
    %p1090 = scmp.eq.s32.totalorder %s103, 1
    %p1091 = por %p1089, %p1090
    %p1092 = scmp.ne.s32.totalorder %s1081, %s1082
    %p1093 = scmp.eq.s32.totalorder %s103, 0
    %p1094 = por %p1092, %p1093
    %p1095 = scmp.ne.s32.totalorder %s1081, %s1082
    %p1096 = scmp.eq.s32.totalorder %s104, 1
    %p1097 = por %p1095, %p1096
    %p1099 = scmp.ne.s32.totalorder %s1082, %s1098
    %p1100 = scmp.eq.s32.totalorder %s104, 0
    %p1101 = por %p1099, %p1100
    %p1102 = scmp.le.s32.totalorder 1, %s98
    %p1103 = scmp.lt.s32.totalorder %s98, 3
    %p1104 = pnand %p1102, %p1103
    %p1105 = pneg %p1104
    // Predicated region
    $region9: #{diffmae_forward.21} parent=5 // pred_check
      _
    $region10: #{diffmae_forward.21} parent=5 // pred_check_branch
      %1107 = sbr.rel (%p1104) target = $region12
    $region11: #{diffmae_forward.21} parent=5 // pred_region
      %s1108 = ssub.s32 %s98, 1
      // Predicated region
      $region13: #{diffmae_forward.21} parent=11 // pred_check
        %p1109 = pneg %p223
      $region14: #{diffmae_forward.21} parent=11 // pred_check_branch
        %1111 = sbr.rel (%p1109) target = $region16
      $region15: #{diffmae_forward.21} parent=11 // pred_region
        _
      $region16: #{diffmae_forward.21} parent=11 // pred_fallthru
        _
      // Predicated region
      $region17: #{diffmae_forward.21} parent=11 // pred_check
        %p1112 = pneg %p244
      $region18: #{diffmae_forward.21} parent=11 // pred_check_branch
        %1114 = sbr.rel (%p1112) target = $region20
      $region19: #{diffmae_forward.21} parent=11 // pred_region
        _
      $region20: #{diffmae_forward.21} parent=11 // pred_fallthru
        _
      // Predicated region
      $region21: #{diffmae_forward.21} parent=11 // pred_check
        %p1115 = pneg %p265
      $region22: #{diffmae_forward.21} parent=11 // pred_check_branch
        %1117 = sbr.rel (%p1115) target = $region24
      $region23: #{diffmae_forward.21} parent=11 // pred_region
        _
      $region24: #{diffmae_forward.21} parent=11 // pred_fallthru
        _
      // Predicated region
      $region25: #{diffmae_forward.21} parent=11 // pred_check
        %p1118 = pneg %p286
      $region26: #{diffmae_forward.21} parent=11 // pred_check_branch
        %1120 = sbr.rel (%p1118) target = $region28
      $region27: #{diffmae_forward.21} parent=11 // pred_region
        _
      $region28: #{diffmae_forward.21} parent=11 // pred_fallthru
        _
      // Predicated region
      $region29: #{diffmae_forward.21} parent=11 // pred_check
        %p1121 = pneg %p307
      $region30: #{diffmae_forward.21} parent=11 // pred_check_branch
        %1123 = sbr.rel (%p1121) target = $region32
      $region31: #{diffmae_forward.21} parent=11 // pred_region
        _
      $region32: #{diffmae_forward.21} parent=11 // pred_fallthru
        _
      // Predicated region
      $region33: #{diffmae_forward.21} parent=11 // pred_check
        %p1124 = pneg %p328
      $region34: #{diffmae_forward.21} parent=11 // pred_check_branch
        %1126 = sbr.rel (%p1124) target = $region36
      $region35: #{diffmae_forward.21} parent=11 // pred_region
        _
      $region36: #{diffmae_forward.21} parent=11 // pred_fallthru
        _
      // Predicated region
      $region37: #{diffmae_forward.21} parent=11 // pred_check
        %p1127 = pneg %p349
      $region38: #{diffmae_forward.21} parent=11 // pred_check_branch
        %1129 = sbr.rel (%p1127) target = $region40
      $region39: #{diffmae_forward.21} parent=11 // pred_region
        _
      $region40: #{diffmae_forward.21} parent=11 // pred_fallthru
        _
      // Predicated region
      $region41: #{diffmae_forward.21} parent=11 // pred_check
        %p1130 = pneg %p370
      $region42: #{diffmae_forward.21} parent=11 // pred_check_branch
        %1132 = sbr.rel (%p1130) target = $region44
      $region43: #{diffmae_forward.21} parent=11 // pred_region
        _
      $region44: #{diffmae_forward.21} parent=11 // pred_fallthru
        _
      // Predicated region
      $region45: #{diffmae_forward.21} parent=11 // pred_check
        %p1133 = pneg %p391
      $region46: #{diffmae_forward.21} parent=11 // pred_check_branch
        %1135 = sbr.rel (%p1133) target = $region48
      $region47: #{diffmae_forward.21} parent=11 // pred_region
        _
      $region48: #{diffmae_forward.21} parent=11 // pred_fallthru
        _
      // Predicated region
      $region49: #{diffmae_forward.21} parent=11 // pred_check
        %p1136 = pneg %p412
      $region50: #{diffmae_forward.21} parent=11 // pred_check_branch
        %1138 = sbr.rel (%p1136) target = $region52
      $region51: #{diffmae_forward.21} parent=11 // pred_region
        _
      $region52: #{diffmae_forward.21} parent=11 // pred_fallthru
        _
      // Predicated region
      $region53: #{diffmae_forward.21} parent=11 // pred_check
        %p1139 = pneg %p433
      $region54: #{diffmae_forward.21} parent=11 // pred_check_branch
        %1141 = sbr.rel (%p1139) target = $region56
      $region55: #{diffmae_forward.21} parent=11 // pred_region
        _
      $region56: #{diffmae_forward.21} parent=11 // pred_fallthru
        _
      // Predicated region
      $region57: #{diffmae_forward.21} parent=11 // pred_check
        %p1142 = pneg %p454
      $region58: #{diffmae_forward.21} parent=11 // pred_check_branch
        %1144 = sbr.rel (%p1142) target = $region60
      $region59: #{diffmae_forward.21} parent=11 // pred_region
        _
      $region60: #{diffmae_forward.21} parent=11 // pred_fallthru
        _
      // Predicated region
      $region61: #{diffmae_forward.21} parent=11 // pred_check
        %p1145 = pneg %p475
      $region62: #{diffmae_forward.21} parent=11 // pred_check_branch
        %1147 = sbr.rel (%p1145) target = $region64
      $region63: #{diffmae_forward.21} parent=11 // pred_region
        _
      $region64: #{diffmae_forward.21} parent=11 // pred_fallthru
        _
      // Predicated region
      $region65: #{diffmae_forward.21} parent=11 // pred_check
        %p1148 = pneg %p496
      $region66: #{diffmae_forward.21} parent=11 // pred_check_branch
        %1150 = sbr.rel (%p1148) target = $region68
      $region67: #{diffmae_forward.21} parent=11 // pred_region
        _
      $region68: #{diffmae_forward.21} parent=11 // pred_fallthru
        _
      // Predicated region
      $region69: #{diffmae_forward.21} parent=11 // pred_check
        %p1151 = pneg %p517
      $region70: #{diffmae_forward.21} parent=11 // pred_check_branch
        %1153 = sbr.rel (%p1151) target = $region72
      $region71: #{diffmae_forward.21} parent=11 // pred_region
        _
      $region72: #{diffmae_forward.21} parent=11 // pred_fallthru
        _
      // Predicated region
      $region73: #{diffmae_forward.21} parent=11 // pred_check
        %p1154 = pneg %p538
      $region74: #{diffmae_forward.21} parent=11 // pred_check_branch
        %1156 = sbr.rel (%p1154) target = $region76
      $region75: #{diffmae_forward.21} parent=11 // pred_region
        _
      $region76: #{diffmae_forward.21} parent=11 // pred_fallthru
        _
      // Predicated region
      $region77: #{diffmae_forward.21} parent=11 // pred_check
        %p1157 = pneg %p559
      $region78: #{diffmae_forward.21} parent=11 // pred_check_branch
        %1159 = sbr.rel (%p1157) target = $region80
      $region79: #{diffmae_forward.21} parent=11 // pred_region
        _
      $region80: #{diffmae_forward.21} parent=11 // pred_fallthru
        _
      // Predicated region
      $region81: #{diffmae_forward.21} parent=11 // pred_check
        %p1160 = pneg %p580
      $region82: #{diffmae_forward.21} parent=11 // pred_check_branch
        %1162 = sbr.rel (%p1160) target = $region84
      $region83: #{diffmae_forward.21} parent=11 // pred_region
        _
      $region84: #{diffmae_forward.21} parent=11 // pred_fallthru
        _
      // Predicated region
      $region85: #{diffmae_forward.21} parent=11 // pred_check
        %p1163 = pneg %p601
      $region86: #{diffmae_forward.21} parent=11 // pred_check_branch
        %1165 = sbr.rel (%p1163) target = $region88
      $region87: #{diffmae_forward.21} parent=11 // pred_region
        _
      $region88: #{diffmae_forward.21} parent=11 // pred_fallthru
        _
      // Predicated region
      $region89: #{diffmae_forward.21} parent=11 // pred_check
        %p1166 = pneg %p622
      $region90: #{diffmae_forward.21} parent=11 // pred_check_branch
        %1168 = sbr.rel (%p1166) target = $region92
      $region91: #{diffmae_forward.21} parent=11 // pred_region
        _
      $region92: #{diffmae_forward.21} parent=11 // pred_fallthru
        _
      // Predicated region
      $region93: #{diffmae_forward.21} parent=11 // pred_check
        %p1169 = pneg %p643
      $region94: #{diffmae_forward.21} parent=11 // pred_check_branch
        %1171 = sbr.rel (%p1169) target = $region96
      $region95: #{diffmae_forward.21} parent=11 // pred_region
        _
      $region96: #{diffmae_forward.21} parent=11 // pred_fallthru
        _
      // Predicated region
      $region97: #{diffmae_forward.21} parent=11 // pred_check
        %p1172 = pneg %p664
      $region98: #{diffmae_forward.21} parent=11 // pred_check_branch
        %1174 = sbr.rel (%p1172) target = $region100
      $region99: #{diffmae_forward.21} parent=11 // pred_region
        _
      $region100: #{diffmae_forward.21} parent=11 // pred_fallthru
        _
      // Predicated region
      $region101: #{diffmae_forward.21} parent=11 // pred_check
        %p1175 = pneg %p685
      $region102: #{diffmae_forward.21} parent=11 // pred_check_branch
        %1177 = sbr.rel (%p1175) target = $region104
      $region103: #{diffmae_forward.21} parent=11 // pred_region
        _
      $region104: #{diffmae_forward.21} parent=11 // pred_fallthru
        _
      // Predicated region
      $region105: #{diffmae_forward.21} parent=11 // pred_check
        %p1178 = pneg %p706
      $region106: #{diffmae_forward.21} parent=11 // pred_check_branch
        %1180 = sbr.rel (%p1178) target = $region108
      $region107: #{diffmae_forward.21} parent=11 // pred_region
        _
      $region108: #{diffmae_forward.21} parent=11 // pred_fallthru
        _
      // Predicated region
      $region109: #{diffmae_forward.21} parent=11 // pred_check
        %p1181 = pneg %p727
      $region110: #{diffmae_forward.21} parent=11 // pred_check_branch
        %1183 = sbr.rel (%p1181) target = $region112
      $region111: #{diffmae_forward.21} parent=11 // pred_region
        _
      $region112: #{diffmae_forward.21} parent=11 // pred_fallthru
        _
      // Predicated region
      $region113: #{diffmae_forward.21} parent=11 // pred_check
        %p1184 = pneg %p748
      $region114: #{diffmae_forward.21} parent=11 // pred_check_branch
        %1186 = sbr.rel (%p1184) target = $region116
      $region115: #{diffmae_forward.21} parent=11 // pred_region
        _
      $region116: #{diffmae_forward.21} parent=11 // pred_fallthru
        _
      // Predicated region
      $region117: #{diffmae_forward.21} parent=11 // pred_check
        %p1187 = pneg %p769
      $region118: #{diffmae_forward.21} parent=11 // pred_check_branch
        %1189 = sbr.rel (%p1187) target = $region120
      $region119: #{diffmae_forward.21} parent=11 // pred_region
        _
      $region120: #{diffmae_forward.21} parent=11 // pred_fallthru
        _
      // Predicated region
      $region121: #{diffmae_forward.21} parent=11 // pred_check
        %p1190 = pneg %p790
      $region122: #{diffmae_forward.21} parent=11 // pred_check_branch
        %1192 = sbr.rel (%p1190) target = $region124
      $region123: #{diffmae_forward.21} parent=11 // pred_region
        _
      $region124: #{diffmae_forward.21} parent=11 // pred_fallthru
        _
      // Predicated region
      $region125: #{diffmae_forward.21} parent=11 // pred_check
        %p1193 = pneg %p811
      $region126: #{diffmae_forward.21} parent=11 // pred_check_branch
        %1195 = sbr.rel (%p1193) target = $region128
      $region127: #{diffmae_forward.21} parent=11 // pred_region
        _
      $region128: #{diffmae_forward.21} parent=11 // pred_fallthru
        _
      // Predicated region
      $region129: #{diffmae_forward.21} parent=11 // pred_check
        %p1196 = pneg %p832
      $region130: #{diffmae_forward.21} parent=11 // pred_check_branch
        %1198 = sbr.rel (%p1196) target = $region132
      $region131: #{diffmae_forward.21} parent=11 // pred_region
        _
      $region132: #{diffmae_forward.21} parent=11 // pred_fallthru
        _
      // Predicated region
      $region133: #{diffmae_forward.21} parent=11 // pred_check
        %p1199 = pneg %p853
      $region134: #{diffmae_forward.21} parent=11 // pred_check_branch
        %1201 = sbr.rel (%p1199) target = $region136
      $region135: #{diffmae_forward.21} parent=11 // pred_region
        _
      $region136: #{diffmae_forward.21} parent=11 // pred_fallthru
        _
      // Predicated region
      $region137: #{diffmae_forward.21} parent=11 // pred_check
        %p1202 = pneg %p874
      $region138: #{diffmae_forward.21} parent=11 // pred_check_branch
        %1204 = sbr.rel (%p1202) target = $region140
      $region139: #{diffmae_forward.21} parent=11 // pred_region
        _
      $region140: #{diffmae_forward.21} parent=11 // pred_fallthru
        _
      // Predicated region
      $region141: #{diffmae_forward.21} parent=11 // pred_check
        %p1205 = pneg %p895
      $region142: #{diffmae_forward.21} parent=11 // pred_check_branch
        %1207 = sbr.rel (%p1205) target = $region144
      $region143: #{diffmae_forward.21} parent=11 // pred_region
        _
      $region144: #{diffmae_forward.21} parent=11 // pred_fallthru
        _
      // Predicated region
      $region145: #{diffmae_forward.21} parent=11 // pred_check
        %p1208 = pneg %p916
      $region146: #{diffmae_forward.21} parent=11 // pred_check_branch
        %1210 = sbr.rel (%p1208) target = $region148
      $region147: #{diffmae_forward.21} parent=11 // pred_region
        _
      $region148: #{diffmae_forward.21} parent=11 // pred_fallthru
        _
      // Predicated region
      $region149: #{diffmae_forward.21} parent=11 // pred_check
        %p1211 = pneg %p937
      $region150: #{diffmae_forward.21} parent=11 // pred_check_branch
        %1213 = sbr.rel (%p1211) target = $region152
      $region151: #{diffmae_forward.21} parent=11 // pred_region
        _
      $region152: #{diffmae_forward.21} parent=11 // pred_fallthru
        _
      // Predicated region
      $region153: #{diffmae_forward.21} parent=11 // pred_check
        %p1214 = pneg %p958
      $region154: #{diffmae_forward.21} parent=11 // pred_check_branch
        %1216 = sbr.rel (%p1214) target = $region156
      $region155: #{diffmae_forward.21} parent=11 // pred_region
        _
      $region156: #{diffmae_forward.21} parent=11 // pred_fallthru
        _
      // Predicated region
      $region157: #{diffmae_forward.21} parent=11 // pred_check
        %p1217 = pneg %p979
      $region158: #{diffmae_forward.21} parent=11 // pred_check_branch
        %1219 = sbr.rel (%p1217) target = $region160
      $region159: #{diffmae_forward.21} parent=11 // pred_region
        _
      $region160: #{diffmae_forward.21} parent=11 // pred_fallthru
        _
      // Predicated region
      $region161: #{diffmae_forward.21} parent=11 // pred_check
        %p1220 = pneg %p1000
      $region162: #{diffmae_forward.21} parent=11 // pred_check_branch
        %1222 = sbr.rel (%p1220) target = $region164
      $region163: #{diffmae_forward.21} parent=11 // pred_region
        _
      $region164: #{diffmae_forward.21} parent=11 // pred_fallthru
        _
      // Predicated region
      $region165: #{diffmae_forward.21} parent=11 // pred_check
        %p1223 = pneg %p1021
      $region166: #{diffmae_forward.21} parent=11 // pred_check_branch
        %1225 = sbr.rel (%p1223) target = $region168
      $region167: #{diffmae_forward.21} parent=11 // pred_region
        _
      $region168: #{diffmae_forward.21} parent=11 // pred_fallthru
        _
      // Predicated region
      $region169: #{diffmae_forward.21} parent=11 // pred_check
        %p1226 = pneg %p1042
      $region170: #{diffmae_forward.21} parent=11 // pred_check_branch
        %1228 = sbr.rel (%p1226) target = $region172
      $region171: #{diffmae_forward.21} parent=11 // pred_region
        _
      $region172: #{diffmae_forward.21} parent=11 // pred_fallthru
        _
    $region12: #{diffmae_forward.21} parent=5 // pred_fallthru
      _
    %p1229 = scmp.lt.s32.totalorder %s98, 2
    // Predicated region
    $region173: #{diffmae_forward.21} parent=5 // pred_check
      %p1230 = pneg %p1229
    $region174: #{diffmae_forward.21} parent=5 // pred_check_branch
      %1232 = sbr.rel (%p1230) target = $region176
    $region175: #{diffmae_forward.21} parent=5 // pred_region
      // Predicated region
      $region177: #{diffmae_forward.21} parent=175 // pred_check
        %p1233 = pneg %p118
      $region178: #{diffmae_forward.21} parent=175 // pred_check_branch
        %1235 = sbr.rel (%p1233) target = $region180
      $region179: #{diffmae_forward.21} parent=175 // pred_region
        %p1236 = scmp.lt.s32.totalorder %s98, 1
        %s1237 = scalar_select %p1236, %s98, 1
        %s1238 = smul.addr %s1237, 6
        %s1239 = smul.addr %s1238, 8
        %s1240 = scalar_lea.vmem %s1, %s1239
      $region180: #{diffmae_forward.21} parent=175 // pred_fallthru
        _
      // Predicated region
      $region181: #{diffmae_forward.21} parent=175 // pred_check
        %p1241 = pneg %p144
      $region182: #{diffmae_forward.21} parent=175 // pred_check_branch
        %1243 = sbr.rel (%p1241) target = $region184
      $region183: #{diffmae_forward.21} parent=175 // pred_region
        %p1244 = scmp.lt.s32.totalorder %s98, 1
        %s1245 = scalar_select %p1244, %s98, 1
        %s1246 = smul.addr %s1245, 2
        %s1247 = smul.addr %s1246, 8
        %s1248 = scalar_lea.vmem %s3, %s1247
      $region184: #{diffmae_forward.21} parent=175 // pred_fallthru
        _
      // Predicated region
      $region185: #{diffmae_forward.21} parent=175 // pred_check
        %p1249 = pneg %p170
      $region186: #{diffmae_forward.21} parent=175 // pred_check_branch
        %1251 = sbr.rel (%p1249) target = $region188
      $region187: #{diffmae_forward.21} parent=175 // pred_region
        %p1252 = scmp.lt.s32.totalorder %s98, 1
        %s1253 = scalar_select %p1252, %s98, 1
        %s1254 = scalar_lea.vmem %s5, %s1253
      $region188: #{diffmae_forward.21} parent=175 // pred_fallthru
        _
      // Predicated region
      $region189: #{diffmae_forward.21} parent=175 // pred_check
        %p1255 = pneg %p196
      $region190: #{diffmae_forward.21} parent=175 // pred_check_branch
        %1257 = sbr.rel (%p1255) target = $region192
      $region191: #{diffmae_forward.21} parent=175 // pred_region
        %p1258 = scmp.lt.s32.totalorder %s98, 1
        %s1259 = scalar_select %p1258, %s98, 1
        %s1260 = smul.addr %s1259, 2
        %s1261 = smul.addr %s1260, 8
        %s1262 = scalar_lea.vmem %s7, %s1261
      $region192: #{diffmae_forward.21} parent=175 // pred_fallthru
        _
    $region176: #{diffmae_forward.21} parent=5 // pred_fallthru
      _
    %p1263 = scmp.le.s32.totalorder 1, %s98
    %p1264 = scmp.lt.s32.totalorder %s98, 3
    %p1265 = pnand %p1263, %p1264
    %p1266 = pneg %p1265
    // Predicated region
    $region193: #{diffmae_forward.21} parent=5 // pred_check
      _
    $region194: #{diffmae_forward.21} parent=5 // pred_check_branch
      %1268 = sbr.rel (%p1265) target = $region196
    $region195: #{diffmae_forward.21} parent=5 // pred_region
      %s1269 = ssub.s32 %s98, 1
      %p1270 = scmp.lt.s32.totalorder %s103, 1
      %s1271 = scalar_select %p1270, %s103, 1
      %s1272 = smul.addr %s1271, 6
      %s1273 = smul.addr %s1272, 8
      %s1274 = scalar_lea.vmem %s1, %s1273
      %p1275 = pneg %p124
      %p1276 = pneg %p121
      %p1277 = scmp.lt.s32.totalorder %s103, 1
      %s1278 = scalar_select %p1277, %s103, 1
      %s1279 = smul.addr %s1278, 2
      %s1280 = smul.addr %s1279, 8
      %s1281 = scalar_lea.vmem %s3, %s1280
      %p1282 = pneg %p150
      %p1283 = pneg %p147
      %p1284 = scmp.lt.s32.totalorder %s103, 1
      %s1285 = scalar_select %p1284, %s103, 1
      %s1286 = scalar_lea.vmem %s5, %s1285
      %p1287 = pneg %p176
      %p1288 = pneg %p173
      %p1289 = scmp.lt.s32.totalorder %s103, 1
      %s1290 = scalar_select %p1289, %s103, 1
      %s1291 = smul.addr %s1290, 2
      %s1292 = smul.addr %s1291, 8
      %s1293 = scalar_lea.vmem %s7, %s1292
      %p1294 = pneg %p202
      %p1295 = pneg %p199
      %p1296 = pneg %p223
      %p1297 = pneg %p220
      %p1298 = pneg %p244
      %p1299 = pneg %p241
      %p1300 = pneg %p265
      %p1301 = pneg %p262
      %p1302 = pneg %p286
      %p1303 = pneg %p283
      %p1304 = pneg %p307
      %p1305 = pneg %p304
      %p1306 = pneg %p328
      %p1307 = pneg %p325
      %p1308 = pneg %p349
      %p1309 = pneg %p346
      %p1310 = pneg %p370
      %p1311 = pneg %p367
      %p1312 = pneg %p391
      %p1313 = pneg %p388
      %p1314 = pneg %p412
      %p1315 = pneg %p409
      %p1316 = pneg %p433
      %p1317 = pneg %p430
      %p1318 = pneg %p454
      %p1319 = pneg %p451
      %p1320 = pneg %p475
      %p1321 = pneg %p472
      %p1322 = pneg %p496
      %p1323 = pneg %p493
      %p1324 = pneg %p517
      %p1325 = pneg %p514
      %p1326 = pneg %p538
      %p1327 = pneg %p535
      %p1328 = pneg %p559
      %p1329 = pneg %p556
      %p1330 = pneg %p580
      %p1331 = pneg %p577
      %p1332 = pneg %p601
      %p1333 = pneg %p598
      %p1334 = pneg %p622
      %p1335 = pneg %p619
      %p1336 = pneg %p643
      %p1337 = pneg %p640
      %p1338 = pneg %p664
      %p1339 = pneg %p661
      %p1340 = pneg %p685
      %p1341 = pneg %p682
      %p1342 = pneg %p706
      %p1343 = pneg %p703
      %p1344 = pneg %p727
      %p1345 = pneg %p724
      %p1346 = pneg %p748
      %p1347 = pneg %p745
      %p1348 = pneg %p769
      %p1349 = pneg %p766
      %p1350 = pneg %p790
      %p1351 = pneg %p787
      %p1352 = pneg %p811
      %p1353 = pneg %p808
      %p1354 = pneg %p832
      %p1355 = pneg %p829
      %p1356 = pneg %p853
      %p1357 = pneg %p850
      %p1358 = pneg %p874
      %p1359 = pneg %p871
      %p1360 = pneg %p895
      %p1361 = pneg %p892
      %p1362 = pneg %p916
      %p1363 = pneg %p913
      %p1364 = pneg %p937
      %p1365 = pneg %p934
      %p1366 = pneg %p958
      %p1367 = pneg %p955
      %p1368 = pneg %p979
      %p1369 = pneg %p976
      %p1370 = pneg %p1000
      %p1371 = pneg %p997
      %p1372 = pneg %p1021
      %p1373 = pneg %p1018
      %p1374 = pneg %p1042
      %p1375 = pneg %p1039
      %p1376 = pneg %p1068
      %p1377 = pneg %p1065
      %p1378 = scmp.lt.s32.totalorder %s103, 1
      %s1379 = scalar_select %p1378, %s103, 1
      %s1380 = smul.addr %s1379, 2
      %s1381 = smul.addr %s1380, 8
      %s1382 = scalar_lea.vmem %s89, %s1381
      %p1383 = pneg %p1094
      %p1384 = pneg %p1091
      %p1385 = scmp.lt.s32.totalorder %s103, 1
      %s1386 = scalar_select %p1385, %s103, 1
      %s1387 = scalar_lea.vmem %s91, %s1386
      %p1388 = scmp.lt.s32.totalorder %s103, 1
      %s1389 = scalar_select %p1388, %s103, 1
      %s1390 = smul.addr %s1389, 6
      %s1391 = smul.addr %s1390, 8
      %s1392 = scalar_lea.vmem %s1, %s1391
      %p1393 = scmp.lt.s32.totalorder %s103, 1
      %s1394 = scalar_select %p1393, %s103, 1
      %s1395 = smul.addr %s1394, 2
      %s1396 = smul.addr %s1395, 8
      %s1397 = scalar_lea.vmem %s3, %s1396
      %p1398 = scmp.lt.s32.totalorder %s103, 1
      %s1399 = scalar_select %p1398, %s103, 1
      %s1400 = scalar_lea.vmem %s5, %s1399
      %p1401 = scmp.lt.s32.totalorder %s103, 1
      %s1402 = scalar_select %p1401, %s103, 1
      %s1403 = smul.addr %s1402, 2
      %s1404 = smul.addr %s1403, 8
      %s1405 = scalar_lea.vmem %s7, %s1404
      %p1406 = scmp.lt.s32.totalorder %s103, 1
      %s1407 = scalar_select %p1406, %s103, 1
      %s1408 = smul.addr %s1407, 2
      %s1409 = smul.addr %s1408, 8
      %s1410 = scalar_lea.vmem %s89, %s1409
      %p1411 = scmp.lt.s32.totalorder %s103, 1
      %s1412 = scalar_select %p1411, %s103, 1
      %s1413 = scalar_lea.vmem %s91, %s1412
      %v1414 = vld [vmem:[%s1392] sm:$0xff]
      %v1415 = vld [vmem:[%s1392 + $0x8] sm:$0xff]
      %v1416 = vld [vmem:[%s1392 + $0x10] sm:$0xff]
      %v1417 = vld [vmem:[%s1392 + $0x18] sm:$0xff]
      %v1418 = vld [vmem:[%s1392 + $0x20] sm:$0xff]
      %v1419 = vld [vmem:[%s1392 + $0x28] sm:$0xff]
      %v1420 = vld [vmem:[%s1397] sm:$0xff]
      %v1421 = vld [vmem:[%s1397 + $0x8] sm:$0xff]
      %v1422 = vld [vmem:[%s9] sm:$0xf]
      %v1423 = vld [vmem:[%s11] sm:$0x1]
      %v1425 = vlaneseq
      %v1426 = vshrl.u32 %v1425, 7
      %v1427 = vsub.s32 0, %v1426
      %v1428 = vrot.slane %v1423, %v1427
      %vm1430 = vcmask 31744
      %v1432 = vsel %vm1430, %v1414, 0
      %v1435 = vsel %vm1430, %v1415, 0
      %v1438 = vsel %vm1430, %v1416, 0
      %v1441 = vsel %vm1430, %v1417, 0
      %v1444 = vsel %vm1430, %v1418, 0
      %v1447 = vsel %vm1430, %v1419, 0
      %vm1449 = vcmask 1043456
      %v1451 = vsel %vm1449, %v1422, 0
      %1453 = vmatprep.subr.mxu0 0.0
      %1454 = vmatpush1.msra.mxu0 %v1451
      %1455 = vmatprep.subr.mxu0 0.0
      %1456 = vmatpush1.msra.mxu0 0.0
      %1457 = vmatprep.subr.mxu0 0.0
      %1458 = vmatpush1.msra.mxu0 0.0
      %1459 = vmatprep.subr.mxu0 0.0
      %1460 = vmatpush1.msra.mxu0 0.0
      %1461 = vmatprep.subr.mxu0 0.0
      %1462 = vmatpush1.msra.mxu0 0.0
      %1463 = vmatprep.subr.mxu0 0.0
      %1464 = vmatpush1.msra.mxu0 0.0
      %1465 = vmatprep.subr.mxu0 0.0
      %1466 = vmatpush1.msra.mxu0 0.0
      %1467 = vmatprep.subr.mxu0 0.0
      %1468 = vmatpush1.msra.mxu0 0.0
      %1469 = vmatprep.subr.mxu0 0.0
      %1470 = vmatpush1.msra.mxu0 0.0
      %1471 = vmatprep.subr.mxu0 0.0
      %1472 = vmatpush1.msra.mxu0 0.0
      %1473 = vmatprep.subr.mxu0 0.0
      %1474 = vmatpush1.msra.mxu0 0.0
      %1475 = vmatprep.subr.mxu0 0.0
      %1476 = vmatpush1.msra.mxu0 0.0
      %1477 = vmatprep.subr.mxu0 0.0
      %1478 = vmatpush1.msra.mxu0 0.0
      %1479 = vmatprep.subr.mxu0 0.0
      %1480 = vmatpush1.msra.mxu0 0.0
      %1481 = vmatprep.subr.mxu0 0.0
      %1482 = vmatpush1.msra.mxu0 0.0
      %1483 = vmatprep.subr.mxu0 0.0
      %1484 = vmatpush1.msra.mxu0 0.0
      %1485 = vmatprep.subr.mxu0 0.0
      %1486 = vmatpush1.msra.mxu0 0.0
      %1487 = vmatprep.subr.mxu0 0.0
      %1488 = vmatpush1.msra.mxu0 0.0
      %1489 = vmatprep.subr.mxu0 0.0
      %1490 = vmatpush1.msra.mxu0 0.0
      %1491 = vmatprep.subr.mxu0 0.0
      %1492 = vmatpush1.msra.mxu0 0.0
      %1493 = vmatprep.subr.mxu0 0.0
      %1494 = vmatpush1.msra.mxu0 0.0
      %1495 = vmatprep.subr.mxu0 0.0
      %1496 = vmatpush1.msra.mxu0 0.0
      %1497 = vmatprep.subr.mxu0 0.0
      %1498 = vmatpush1.msra.mxu0 0.0
      %1499 = vmatprep.subr.mxu0 0.0
      %1500 = vmatpush1.msra.mxu0 0.0
      %1501 = vmatprep.subr.mxu0 0.0
      %1502 = vmatpush1.msra.mxu0 0.0
      %1503 = vmatprep.subr.mxu0 0.0
      %1504 = vmatpush1.msra.mxu0 0.0
      %1505 = vmatprep.subr.mxu0 0.0
      %1506 = vmatpush1.msra.mxu0 0.0
      %1507 = vmatprep.subr.mxu0 0.0
      %1508 = vmatpush1.msra.mxu0 0.0
      %1509 = vmatprep.subr.mxu0 0.0
      %1510 = vmatpush1.msra.mxu0 0.0
      %1511 = vmatprep.subr.mxu0 0.0
      %1512 = vmatpush1.msra.mxu0 0.0
      %1513 = vmatprep.subr.mxu0 0.0
      %1514 = vmatpush1.msra.mxu0 0.0
      %1515 = vmatprep.subr.mxu0 0.0
      %1516 = vmatpush1.msra.mxu0 0.0
      %1517 = vmatprep.mubr.f32.mxu0 0.0
      %1518 = vmatmul.mubr.f32.gmra.mrb[0].mxu0 %v1432
      %v1519 = vpop.f32.mrb[0].mxu0
      %v1520 = vadd.f32 %v1428, %v1519
      %v1521 = vpop.f32.mrb[0].mxu0
      %1522 = vmatprep.mubr.f32.mxu0 0.0
      %1523 = vmatmul.mubr.f32.gmra.mrb[0].mxu0 %v1435
      %v1524 = vpop.f32.mrb[0].mxu0
      %v1525 = vadd.f32 %v1428, %v1524
      %v1526 = vpop.f32.mrb[0].mxu0
      %1527 = vmatprep.mubr.f32.mxu0 0.0
      %1528 = vmatmul.mubr.f32.gmra.mrb[0].mxu0 %v1438
      %v1529 = vpop.f32.mrb[0].mxu0
      %v1530 = vadd.f32 %v1428, %v1529
      %v1531 = vpop.f32.mrb[0].mxu0
      %1532 = vmatprep.mubr.f32.mxu0 0.0
      %1533 = vmatmul.mubr.f32.gmra.mrb[0].mxu0 %v1441
      %v1534 = vpop.f32.mrb[0].mxu0
      %v1535 = vadd.f32 %v1428, %v1534
      %v1536 = vpop.f32.mrb[0].mxu0
      %1537 = vmatprep.mubr.f32.mxu0 0.0
      %1538 = vmatmul.mubr.f32.gmra.mrb[0].mxu0 %v1444
      %v1539 = vpop.f32.mrb[0].mxu0
      %v1540 = vadd.f32 %v1428, %v1539
      %v1541 = vpop.f32.mrb[0].mxu0
      %1542 = vmatprep.mubr.f32.mxu0 0.0
      %1543 = vmatmul.mubr.f32.gmra.mrb[0].mxu0 %v1447
      %v1544 = vpop.f32.mrb[0].mxu0
      %v1545 = vadd.f32 %v1428, %v1544
      %v1546 = vpop.f32.mrb[0].mxu0
      %1547 = vdwg.mxu0
      %v1548 = vld [vmem:[%s13] sm:$0xff]
      %v1549 = vld [vmem:[%s13 + $0x8] sm:$0xff]
      %v1550 = vld [vmem:[%s13 + $0x10] sm:$0xff]
      %v1551 = vld [vmem:[%s13 + $0x18] sm:$0xff]
      %v1552 = vld [vmem:[%s13 + $0x20] sm:$0xff]
      %v1553 = vld [vmem:[%s13 + $0x28] sm:$0xff]
      %v1554 = vadd.f32 %v1520, %v1548
      %v1555 = vadd.f32 %v1525, %v1549
      %v1556 = vadd.f32 %v1530, %v1550
      %v1557 = vadd.f32 %v1535, %v1551
      %v1558 = vadd.f32 %v1540, %v1552
      %v1559 = vadd.f32 %v1545, %v1553
      %v1561 = vsel %vm1430, %v1420, 0
      %v1564 = vsel %vm1430, %v1421, 0
      %1566 = vmatprep.subr.mxu0 0.0
      %1567 = vmatpush1.msra.mxu0 %v1451
      %1568 = vmatprep.subr.mxu0 0.0
      %1569 = vmatpush1.msra.mxu0 0.0
      %1570 = vmatprep.subr.mxu0 0.0
      %1571 = vmatpush1.msra.mxu0 0.0
      %1572 = vmatprep.subr.mxu0 0.0
      %1573 = vmatpush1.msra.mxu0 0.0
      %1574 = vmatprep.subr.mxu0 0.0
      %1575 = vmatpush1.msra.mxu0 0.0
      %1576 = vmatprep.subr.mxu0 0.0
      %1577 = vmatpush1.msra.mxu0 0.0
      %1578 = vmatprep.subr.mxu0 0.0
      %1579 = vmatpush1.msra.mxu0 0.0
      %1580 = vmatprep.subr.mxu0 0.0
      %1581 = vmatpush1.msra.mxu0 0.0
      %1582 = vmatprep.subr.mxu0 0.0
      %1583 = vmatpush1.msra.mxu0 0.0
      %1584 = vmatprep.subr.mxu0 0.0
      %1585 = vmatpush1.msra.mxu0 0.0
      %1586 = vmatprep.subr.mxu0 0.0
      %1587 = vmatpush1.msra.mxu0 0.0
      %1588 = vmatprep.subr.mxu0 0.0
      %1589 = vmatpush1.msra.mxu0 0.0
      %1590 = vmatprep.subr.mxu0 0.0
      %1591 = vmatpush1.msra.mxu0 0.0
      %1592 = vmatprep.subr.mxu0 0.0
      %1593 = vmatpush1.msra.mxu0 0.0
      %1594 = vmatprep.subr.mxu0 0.0
      %1595 = vmatpush1.msra.mxu0 0.0
      %1596 = vmatprep.subr.mxu0 0.0
      %1597 = vmatpush1.msra.mxu0 0.0
      %1598 = vmatprep.subr.mxu0 0.0
      %1599 = vmatpush1.msra.mxu0 0.0
      %1600 = vmatprep.subr.mxu0 0.0
      %1601 = vmatpush1.msra.mxu0 0.0
      %1602 = vmatprep.subr.mxu0 0.0
      %1603 = vmatpush1.msra.mxu0 0.0
      %1604 = vmatprep.subr.mxu0 0.0
      %1605 = vmatpush1.msra.mxu0 0.0
      %1606 = vmatprep.subr.mxu0 0.0
      %1607 = vmatpush1.msra.mxu0 0.0
      %1608 = vmatprep.subr.mxu0 0.0
      %1609 = vmatpush1.msra.mxu0 0.0
      %1610 = vmatprep.subr.mxu0 0.0
      %1611 = vmatpush1.msra.mxu0 0.0
      %1612 = vmatprep.subr.mxu0 0.0
      %1613 = vmatpush1.msra.mxu0 0.0
      %1614 = vmatprep.subr.mxu0 0.0
      %1615 = vmatpush1.msra.mxu0 0.0
      %1616 = vmatprep.subr.mxu0 0.0
      %1617 = vmatpush1.msra.mxu0 0.0
      %1618 = vmatprep.subr.mxu0 0.0
      %1619 = vmatpush1.msra.mxu0 0.0
      %1620 = vmatprep.subr.mxu0 0.0
      %1621 = vmatpush1.msra.mxu0 0.0
      %1622 = vmatprep.subr.mxu0 0.0
      %1623 = vmatpush1.msra.mxu0 0.0
      %1624 = vmatprep.subr.mxu0 0.0
      %1625 = vmatpush1.msra.mxu0 0.0
      %1626 = vmatprep.subr.mxu0 0.0
      %1627 = vmatpush1.msra.mxu0 0.0
      %1628 = vmatprep.subr.mxu0 0.0
      %1629 = vmatpush1.msra.mxu0 0.0
      %1630 = vmatprep.mubr.f32.mxu0 0.0
      %1631 = vmatmul.mubr.f32.gmra.mrb[0].mxu0 %v1561
      %v1632 = vpop.f32.mrb[0].mxu0
      %v1633 = vadd.f32 %v1428, %v1632
      %v1634 = vpop.f32.mrb[0].mxu0
      %1635 = vmatprep.mubr.f32.mxu0 0.0
      %1636 = vmatmul.mubr.f32.gmra.mrb[0].mxu0 %v1564
      %v1637 = vpop.f32.mrb[0].mxu0
      %v1638 = vadd.f32 %v1428, %v1637
      %v1639 = vpop.f32.mrb[0].mxu0
      %1640 = vdwg.mxu0
      %v1641 = vld [vmem:[%s15] sm:$0xff]
      %v1642 = vld [vmem:[%s15 + $0x8] sm:$0xff]
      %v1643 = vadd.f32 %v1633, %v1641
      %v1644 = vadd.f32 %v1638, %v1642
      %v1645 = vld [vmem:[%s1400] sm:$0x1]
      %v1647 = vlaneseq
      %v1648 = vshrl.u32 %v1647, 7
      %v1649 = vsub.s32 0, %v1648
      %v1650 = vrot.slane %v1645, %v1649
      %1651 = vset.pattern.permute.xlu0 0
      %1652 = vperm.xlu0 %1651, %v1650
      %v1653 = vpop.permute.xlu0 %1652
      %v1655 = vmul.f32 %v1653, %v1643
      %v1656 = vmul.f32 %v1653, %v1644
      %v1657 = vld [vmem:[%s1405] sm:$0xff]
      %v1658 = vld [vmem:[%s1405 + $0x8] sm:$0xff]
      %v1659 = vadd.f32 %v1655, %v1657
      %v1660 = vadd.f32 %v1656, %v1658
      %v1661 = vld [vmem:[%s35] sm:$0x3]
      %vm1662 = vcmask 261120
      %v1663 = vsel %vm1662, %v1554, 0.0
      %1664 = vadd.xlane.f32.xlu0 %v1663
      %v1665 = vpop.xlane.xlu0 %1664
      %v1666 = vsel %vm1662, %v1555, 0.0
      %1667 = vadd.xlane.f32.xlu0 %v1666
      %v1668 = vpop.xlane.xlu0 %1667
      %v1669 = vsel %vm1662, %v1556, 0.0
      %1670 = vadd.xlane.f32.xlu0 %v1669
      %v1671 = vpop.xlane.xlu0 %1670
      %v1672 = vsel %vm1662, %v1557, 0.0
      %1673 = vadd.xlane.f32.xlu0 %v1672
      %v1674 = vpop.xlane.xlu0 %1673
      %v1675 = vsel %vm1662, %v1558, 0.0
      %1676 = vadd.xlane.f32.xlu0 %v1675
      %v1677 = vpop.xlane.xlu0 %1676
      %v1678 = vsel %vm1662, %v1559, 0.0
      %1679 = vadd.xlane.f32.xlu0 %v1678
      %v1680 = vpop.xlane.xlu0 %1679
      %v1681 = vrcp.pop 32.0
      %v1682 = vmul.f32 %v1665, %v1681
      %v1683 = vmul.f32 %v1668, %v1681
      %v1684 = vmul.f32 %v1671, %v1681
      %v1685 = vmul.f32 %v1674, %v1681
      %v1686 = vmul.f32 %v1677, %v1681
      %v1687 = vmul.f32 %v1680, %v1681
      %v1688 = vsub.f32 %v1554, %v1682
      %v1689 = vsub.f32 %v1555, %v1683
      %v1690 = vsub.f32 %v1556, %v1684
      %v1691 = vsub.f32 %v1557, %v1685
      %v1692 = vsub.f32 %v1558, %v1686
      %v1693 = vsub.f32 %v1559, %v1687
      %v1694 = vmul.f32 %v1688, %v1688
      %v1695 = vmul.f32 %v1689, %v1689
      %v1696 = vmul.f32 %v1690, %v1690
      %v1697 = vmul.f32 %v1691, %v1691
      %v1698 = vmul.f32 %v1692, %v1692
      %v1699 = vmul.f32 %v1693, %v1693
      %v1700 = vsel %vm1662, %v1694, 0.0
      %1701 = vadd.xlane.f32.xlu0 %v1700
      %v1702 = vpop.xlane.xlu0 %1701
      %v1703 = vsel %vm1662, %v1695, 0.0
      %1704 = vadd.xlane.f32.xlu0 %v1703
      %v1705 = vpop.xlane.xlu0 %1704
      %v1706 = vsel %vm1662, %v1696, 0.0
      %1707 = vadd.xlane.f32.xlu0 %v1706
      %v1708 = vpop.xlane.xlu0 %1707
      %v1709 = vsel %vm1662, %v1697, 0.0
      %1710 = vadd.xlane.f32.xlu0 %v1709
      %v1711 = vpop.xlane.xlu0 %1710
      %v1712 = vsel %vm1662, %v1698, 0.0
      %1713 = vadd.xlane.f32.xlu0 %v1712
      %v1714 = vpop.xlane.xlu0 %1713
      %v1715 = vsel %vm1662, %v1699, 0.0
      %1716 = vadd.xlane.f32.xlu0 %v1715
      %v1717 = vpop.xlane.xlu0 %1716
      %v1718 = vmul.f32 %v1702, %v1681
      %v1719 = vmul.f32 %v1705, %v1681
      %v1720 = vmul.f32 %v1708, %v1681
      %v1721 = vmul.f32 %v1711, %v1681
      %v1722 = vmul.f32 %v1714, %v1681
      %v1723 = vmul.f32 %v1717, %v1681
      %v1724 = vadd.f32 %v1718, 1e-06
      %v1725 = vadd.f32 %v1719, 1e-06
      %v1726 = vadd.f32 %v1720, 1e-06
      %v1727 = vadd.f32 %v1721, 1e-06
      %v1728 = vadd.f32 %v1722, 1e-06
      %v1729 = vadd.f32 %v1723, 1e-06
      %v1730 = vrsqrt.pop %v1724
      %v1731 = vrsqrt.pop %v1725
      %v1732 = vrsqrt.pop %v1726
      %v1733 = vrsqrt.pop %v1727
      %v1734 = vrsqrt.pop %v1728
      %v1735 = vrsqrt.pop %v1729
      %v1736 = vmul.f32 %v1688, %v1730
      %v1737 = vmul.f32 %v1689, %v1731
      %v1738 = vmul.f32 %v1690, %v1732
      %v1739 = vmul.f32 %v1691, %v1733
      %v1740 = vmul.f32 %v1692, %v1734
      %v1741 = vmul.f32 %v1693, %v1735
      %v1742 = vlaneseq
      %v1743 = vshrl.u32 %v1742, 7
      %v1744 = vsub.s32 0, %v1743
      %v1745 = vrot.slane %v1661, %v1744
      %v1746 = vmul.f32 %v1736, %v1745
      %v1747 = vmul.f32 %v1737, %v1745
      %v1748 = vmul.f32 %v1738, %v1745
      %v1749 = vmul.f32 %v1739, %v1745
      %v1750 = vmul.f32 %v1740, %v1745
      %v1751 = vmul.f32 %v1741, %v1745
      %v1752 = vlaneseq
      %v1753 = vshrl.u32 %v1752, 7
      %v1754 = vsub.s32 1, %v1753
      %v1755 = vrot.slane %v1661, %v1754
      %v1756 = vadd.f32 %v1746, %v1755
      %v1757 = vadd.f32 %v1747, %v1755
      %v1758 = vadd.f32 %v1748, %v1755
      %v1759 = vadd.f32 %v1749, %v1755
      %v1760 = vadd.f32 %v1750, %v1755
      %v1761 = vadd.f32 %v1751, %v1755
      %v1762 = vld [vmem:[%s37] sm:$0xff]
      %v1763 = vld [vmem:[%s37 + $0x8] sm:$0xff]
      %v1764 = vld [vmem:[%s37 + $0x10] sm:$0xff]
      %v1765 = vld [vmem:[%s37 + $0x18] sm:$0xff]
      %v1766 = vld [vmem:[%s39] sm:$0x1]
      %v1768 = vlaneseq
      %v1769 = vshrl.u32 %v1768, 7
      %v1770 = vsub.s32 0, %v1769
      %v1771 = vrot.slane %v1766, %v1770
      %v1774 = vsel %vm1662, %v1756, 0
      %v1777 = vsel %vm1662, %v1757, 0
      %v1780 = vsel %vm1662, %v1758, 0
      %v1783 = vsel %vm1662, %v1759, 0
      %v1786 = vsel %vm1662, %v1760, 0
      %v1789 = vsel %vm1662, %v1761, 0
      %1791 = vmatprep.subr.mxu0 0.0
      %1792 = vmatpush1.msra.mxu0 %v1762
      %1793 = vmatprep.subr.mxu0 0.0
      %1794 = vmatpush1.msra.mxu0 %v1763
      %1795 = vmatprep.subr.mxu0 0.0
      %1796 = vmatpush1.msra.mxu0 %v1764
      %1797 = vmatprep.subr.mxu0 0.0
      %1798 = vmatpush1.msra.mxu0 %v1765
      %1799 = vmatprep.subr.mxu0 0.0
      %1800 = vmatpush1.msra.mxu0 0.0
      %1801 = vmatprep.subr.mxu0 0.0
      %1802 = vmatpush1.msra.mxu0 0.0
      %1803 = vmatprep.subr.mxu0 0.0
      %1804 = vmatpush1.msra.mxu0 0.0
      %1805 = vmatprep.subr.mxu0 0.0
      %1806 = vmatpush1.msra.mxu0 0.0
      %1807 = vmatprep.subr.mxu0 0.0
      %1808 = vmatpush1.msra.mxu0 0.0
      %1809 = vmatprep.subr.mxu0 0.0
      %1810 = vmatpush1.msra.mxu0 0.0
      %1811 = vmatprep.subr.mxu0 0.0
      %1812 = vmatpush1.msra.mxu0 0.0
      %1813 = vmatprep.subr.mxu0 0.0
      %1814 = vmatpush1.msra.mxu0 0.0
      %1815 = vmatprep.subr.mxu0 0.0
      %1816 = vmatpush1.msra.mxu0 0.0
      %1817 = vmatprep.subr.mxu0 0.0
      %1818 = vmatpush1.msra.mxu0 0.0
      %1819 = vmatprep.subr.mxu0 0.0
      %1820 = vmatpush1.msra.mxu0 0.0
      %1821 = vmatprep.subr.mxu0 0.0
      %1822 = vmatpush1.msra.mxu0 0.0
      %1823 = vmatprep.subr.mxu0 0.0
      %1824 = vmatpush1.msra.mxu0 0.0
      %1825 = vmatprep.subr.mxu0 0.0
      %1826 = vmatpush1.msra.mxu0 0.0
      %1827 = vmatprep.subr.mxu0 0.0
      %1828 = vmatpush1.msra.mxu0 0.0
      %1829 = vmatprep.subr.mxu0 0.0
      %1830 = vmatpush1.msra.mxu0 0.0
      %1831 = vmatprep.subr.mxu0 0.0
      %1832 = vmatpush1.msra.mxu0 0.0
      %1833 = vmatprep.subr.mxu0 0.0
      %1834 = vmatpush1.msra.mxu0 0.0
      %1835 = vmatprep.subr.mxu0 0.0
      %1836 = vmatpush1.msra.mxu0 0.0
      %1837 = vmatprep.subr.mxu0 0.0
      %1838 = vmatpush1.msra.mxu0 0.0
      %1839 = vmatprep.subr.mxu0 0.0
      %1840 = vmatpush1.msra.mxu0 0.0
      %1841 = vmatprep.subr.mxu0 0.0
      %1842 = vmatpush1.msra.mxu0 0.0
      %1843 = vmatprep.subr.mxu0 0.0
      %1844 = vmatpush1.msra.mxu0 0.0
      %1845 = vmatprep.subr.mxu0 0.0
      %1846 = vmatpush1.msra.mxu0 0.0
      %1847 = vmatprep.subr.mxu0 0.0
      %1848 = vmatpush1.msra.mxu0 0.0
      %1849 = vmatprep.subr.mxu0 0.0
      %1850 = vmatpush1.msra.mxu0 0.0
      %1851 = vmatprep.subr.mxu0 0.0
      %1852 = vmatpush1.msra.mxu0 0.0
      %1853 = vmatprep.subr.mxu0 0.0
      %1854 = vmatpush1.msra.mxu0 0.0
      %1855 = vmatprep.mubr.f32.mxu0 0.0
      %1856 = vmatmul.mubr.f32.gmra.mrb[0].mxu0 %v1774
      %v1857 = vpop.f32.mrb[0].mxu0
      %v1858 = vadd.f32 %v1771, %v1857
      %v1859 = vpop.f32.mrb[0].mxu0
      %1860 = vmatprep.mubr.f32.mxu0 0.0
      %1861 = vmatmul.mubr.f32.gmra.mrb[0].mxu0 %v1777
      %v1862 = vpop.f32.mrb[0].mxu0
      %v1863 = vadd.f32 %v1771, %v1862
      %v1864 = vpop.f32.mrb[0].mxu0
      %1865 = vmatprep.mubr.f32.mxu0 0.0
      %1866 = vmatmul.mubr.f32.gmra.mrb[0].mxu0 %v1780
      %v1867 = vpop.f32.mrb[0].mxu0
      %v1868 = vadd.f32 %v1771, %v1867
      %v1869 = vpop.f32.mrb[0].mxu0
      %1870 = vmatprep.mubr.f32.mxu0 0.0
      %1871 = vmatmul.mubr.f32.gmra.mrb[0].mxu0 %v1783
      %v1872 = vpop.f32.mrb[0].mxu0
      %v1873 = vadd.f32 %v1771, %v1872
      %v1874 = vpop.f32.mrb[0].mxu0
      %1875 = vmatprep.mubr.f32.mxu0 0.0
      %1876 = vmatmul.mubr.f32.gmra.mrb[0].mxu0 %v1786
      %v1877 = vpop.f32.mrb[0].mxu0
      %v1878 = vadd.f32 %v1771, %v1877
      %v1879 = vpop.f32.mrb[0].mxu0
      %1880 = vmatprep.mubr.f32.mxu0 0.0
      %1881 = vmatmul.mubr.f32.gmra.mrb[0].mxu0 %v1789
      %v1882 = vpop.f32.mrb[0].mxu0
      %v1883 = vadd.f32 %v1771, %v1882
      %v1884 = vpop.f32.mrb[0].mxu0
      %1885 = vdwg.mxu0
      %v1886 = vld [vmem:[%s41] sm:$0xff]
      %v1887 = vld [vmem:[%s41 + $0x8] sm:$0xff]
      %v1888 = vld [vmem:[%s41 + $0x10] sm:$0xff]
      %v1889 = vld [vmem:[%s41 + $0x18] sm:$0xff]
      %v1890 = vld [vmem:[%s43] sm:$0x1]
      %1897 = vrot.lane.b32.xlu0 %v1858, 96
      %v1898 = vpop.permute.xlu0 %1897
      %1899 = vrot.lane.b32.xlu0 %v1863, 96
      %v1900 = vpop.permute.xlu0 %1899
      %1901 = vrot.lane.b32.xlu0 %v1868, 96
      %v1902 = vpop.permute.xlu0 %1901
      %1903 = vrot.lane.b32.xlu0 %v1873, 96
      %v1904 = vpop.permute.xlu0 %1903
      %1905 = vrot.lane.b32.xlu0 %v1878, 96
      %v1906 = vpop.permute.xlu0 %1905
      %1907 = vrot.lane.b32.xlu0 %v1883, 96
      %v1908 = vpop.permute.xlu0 %1907
      %vm1909 = vcmask 130048
      %v1910 = vsel %vm1909, %v1858, 0
      %v1912 = vsel %vm1909, %v1863, 0
      %v1914 = vsel %vm1909, %v1868, 0
      %v1916 = vsel %vm1909, %v1873, 0
      %v1918 = vsel %vm1909, %v1878, 0
      %v1920 = vsel %vm1909, %v1883, 0
      %v1922 = vsel %vm1909, %v1898, 0
      %v1924 = vsel %vm1909, %v1900, 0
      %v1926 = vsel %vm1909, %v1902, 0
      %v1928 = vsel %vm1909, %v1904, 0
      %v1930 = vsel %vm1909, %v1906, 0
      %v1932 = vsel %vm1909, %v1908, 0
      %1934 = vmatprep.subr.mxu0 0.0
      %1935 = vmatpush1.xpose.msra.mxu0 %v1922
      %1936 = vmatprep.subr.mxu0 0.0
      %1937 = vmatpush1.xpose.msra.mxu0 %v1924
      %1938 = vmatprep.subr.mxu0 0.0
      %1939 = vmatpush1.xpose.msra.mxu0 %v1926
      %1940 = vmatprep.subr.mxu0 0.0
      %1941 = vmatpush1.xpose.msra.mxu0 %v1928
      %1942 = vmatprep.subr.mxu0 0.0
      %1943 = vmatpush1.xpose.msra.mxu0 %v1930
      %1944 = vmatprep.subr.mxu0 0.0
      %1945 = vmatpush1.xpose.msra.mxu0 %v1932
      %1946 = vmatprep.subr.mxu0 0.0
      %1947 = vmatpush1.xpose.msra.mxu0 0.0
      %1948 = vmatprep.subr.mxu0 0.0
      %1949 = vmatpush1.xpose.msra.mxu0 0.0
      %1950 = vmatprep.subr.mxu0 0.0
      %1951 = vmatpush1.xpose.msra.mxu0 0.0
      %1952 = vmatprep.subr.mxu0 0.0
      %1953 = vmatpush1.xpose.msra.mxu0 0.0
      %1954 = vmatprep.subr.mxu0 0.0
      %1955 = vmatpush1.xpose.msra.mxu0 0.0
      %1956 = vmatprep.subr.mxu0 0.0
      %1957 = vmatpush1.xpose.msra.mxu0 0.0
      %1958 = vmatprep.subr.mxu0 0.0
      %1959 = vmatpush1.xpose.msra.mxu0 0.0
      %1960 = vmatprep.subr.mxu0 0.0
      %1961 = vmatpush1.xpose.msra.mxu0 0.0
      %1962 = vmatprep.subr.mxu0 0.0
      %1963 = vmatpush1.xpose.msra.mxu0 0.0
      %1964 = vmatprep.subr.mxu0 0.0
      %1965 = vmatpush1.xpose.msra.mxu0 0.0
      %1966 = vmatprep.subr.mxu0 0.0
      %1967 = vmatpush1.xpose.msra.mxu0 0.0
      %1968 = vmatprep.subr.mxu0 0.0
      %1969 = vmatpush1.xpose.msra.mxu0 0.0
      %1970 = vmatprep.subr.mxu0 0.0
      %1971 = vmatpush1.xpose.msra.mxu0 0.0
      %1972 = vmatprep.subr.mxu0 0.0
      %1973 = vmatpush1.xpose.msra.mxu0 0.0
      %1974 = vmatprep.subr.mxu0 0.0
      %1975 = vmatpush1.xpose.msra.mxu0 0.0
      %1976 = vmatprep.subr.mxu0 0.0
      %1977 = vmatpush1.xpose.msra.mxu0 0.0
      %1978 = vmatprep.subr.mxu0 0.0
      %1979 = vmatpush1.xpose.msra.mxu0 0.0
      %1980 = vmatprep.subr.mxu0 0.0
      %1981 = vmatpush1.xpose.msra.mxu0 0.0
      %1982 = vmatprep.subr.mxu0 0.0
      %1983 = vmatpush1.xpose.msra.mxu0 0.0
      %1984 = vmatprep.subr.mxu0 0.0
      %1985 = vmatpush1.xpose.msra.mxu0 0.0
      %1986 = vmatprep.subr.mxu0 0.0
      %1987 = vmatpush1.xpose.msra.mxu0 0.0
      %1988 = vmatprep.subr.mxu0 0.0
      %1989 = vmatpush1.xpose.msra.mxu0 0.0
      %1990 = vmatprep.subr.mxu0 0.0
      %1991 = vmatpush1.xpose.msra.mxu0 0.0
      %1992 = vmatprep.subr.mxu0 0.0
      %1993 = vmatpush1.xpose.msra.mxu0 0.0
      %1994 = vmatprep.subr.mxu0 0.0
      %1995 = vmatpush1.xpose.msra.mxu0 0.0
      %1996 = vmatprep.subr.mxu0 0.0
      %1997 = vmatpush1.xpose.msra.mxu0 0.0
      %1998 = vmatprep.mubr.f32.mxu0 0.0
      %1999 = vmatmul.mubr.f32.gmra.mrb[0].mxu0 %v1910
      %v2000 = vpop.f32.mrb[0].mxu0
      %v2001 = vadd.f32 0.0, %v2000
      %v2002 = vpop.f32.mrb[0].mxu0
      %2003 = vmatprep.mubr.f32.mxu0 0.0
      %2004 = vmatmul.mubr.f32.gmra.mrb[0].mxu0 %v1912
      %v2005 = vpop.f32.mrb[0].mxu0
      %v2006 = vadd.f32 0.0, %v2005
      %v2007 = vpop.f32.mrb[0].mxu0
      %2008 = vmatprep.mubr.f32.mxu0 0.0
      %2009 = vmatmul.mubr.f32.gmra.mrb[0].mxu0 %v1914
      %v2010 = vpop.f32.mrb[0].mxu0
      %v2011 = vadd.f32 0.0, %v2010
      %v2012 = vpop.f32.mrb[0].mxu0
      %2013 = vmatprep.mubr.f32.mxu0 0.0
      %2014 = vmatmul.mubr.f32.gmra.mrb[0].mxu0 %v1916
      %v2015 = vpop.f32.mrb[0].mxu0
      %v2016 = vadd.f32 0.0, %v2015
      %v2017 = vpop.f32.mrb[0].mxu0
      %2018 = vmatprep.mubr.f32.mxu0 0.0
      %2019 = vmatmul.mubr.f32.gmra.mrb[0].mxu0 %v1918
      %v2020 = vpop.f32.mrb[0].mxu0
      %v2021 = vadd.f32 0.0, %v2020
      %v2022 = vpop.f32.mrb[0].mxu0
      %2023 = vmatprep.mubr.f32.mxu0 0.0
      %2024 = vmatmul.mubr.f32.gmra.mrb[0].mxu0 %v1920
      %v2025 = vpop.f32.mrb[0].mxu0
      %v2026 = vadd.f32 0.0, %v2025
      %v2027 = vpop.f32.mrb[0].mxu0
      %2028 = vdwg.mxu0
      %v2029 = vmul.f32 %v2001, 0.25
      %v2030 = vmul.f32 %v2006, 0.25
      %v2031 = vmul.f32 %v2011, 0.25
      %v2032 = vmul.f32 %v2016, 0.25
      %v2033 = vmul.f32 %v2021, 0.25
      %v2034 = vmul.f32 %v2026, 0.25
      %vm2035 = vcmask 392192
      %v2036 = vsel %vm2035, %v2029, -inf
      %2037 = vmax.xlane.f32.xlu0 %v2036
      %v2038 = vpop.xlane.xlu0 %2037
      %v2039 = vsel %vm2035, %v2030, -inf
      %2040 = vmax.xlane.f32.xlu0 %v2039
      %v2041 = vpop.xlane.xlu0 %2040
      %v2042 = vsel %vm2035, %v2031, -inf
      %2043 = vmax.xlane.f32.xlu0 %v2042
      %v2044 = vpop.xlane.xlu0 %2043
      %v2045 = vsel %vm2035, %v2032, -inf
      %2046 = vmax.xlane.f32.xlu0 %v2045
      %v2047 = vpop.xlane.xlu0 %2046
      %v2048 = vsel %vm2035, %v2033, -inf
      %2049 = vmax.xlane.f32.xlu0 %v2048
      %v2050 = vpop.xlane.xlu0 %2049
      %v2051 = vsel %vm2035, %v2034, -inf
      %2052 = vmax.xlane.f32.xlu0 %v2051
      %v2053 = vpop.xlane.xlu0 %2052
      %v2054 = vsub.f32 %v2029, %v2038
      %v2055 = vsub.f32 %v2030, %v2041
      %v2056 = vsub.f32 %v2031, %v2044
      %v2057 = vsub.f32 %v2032, %v2047
      %v2058 = vsub.f32 %v2033, %v2050
      %v2059 = vsub.f32 %v2034, %v2053
      %v2060 = vmul.f32 %v2054, 1.442695
      %v2061 = vpow.pop %v2060
      %v2062 = vmul.f32 %v2055, 1.442695
      %v2063 = vpow.pop %v2062
      %v2064 = vmul.f32 %v2056, 1.442695
      %v2065 = vpow.pop %v2064
      %v2066 = vmul.f32 %v2057, 1.442695
      %v2067 = vpow.pop %v2066
      %v2068 = vmul.f32 %v2058, 1.442695
      %v2069 = vpow.pop %v2068
      %v2070 = vmul.f32 %v2059, 1.442695
      %v2071 = vpow.pop %v2070
      %v2072 = vsel %vm2035, %v2061, 0.0
      %2073 = vadd.xlane.f32.xlu0 %v2072
      %v2074 = vpop.xlane.xlu0 %2073
      %v2075 = vsel %vm2035, %v2063, 0.0
      %2076 = vadd.xlane.f32.xlu0 %v2075
      %v2077 = vpop.xlane.xlu0 %2076
      %v2078 = vsel %vm2035, %v2065, 0.0
      %2079 = vadd.xlane.f32.xlu0 %v2078
      %v2080 = vpop.xlane.xlu0 %2079
      %v2081 = vsel %vm2035, %v2067, 0.0
      %2082 = vadd.xlane.f32.xlu0 %v2081
      %v2083 = vpop.xlane.xlu0 %2082
      %v2084 = vsel %vm2035, %v2069, 0.0
      %2085 = vadd.xlane.f32.xlu0 %v2084
      %v2086 = vpop.xlane.xlu0 %2085
      %v2087 = vsel %vm2035, %v2071, 0.0
      %2088 = vadd.xlane.f32.xlu0 %v2087
      %v2089 = vpop.xlane.xlu0 %2088
      %v2090 = vrcp.pop %v2074
      %v2091 = vrcp.pop %v2077
      %v2092 = vrcp.pop %v2080
      %v2093 = vrcp.pop %v2083
      %v2094 = vrcp.pop %v2086
      %v2095 = vrcp.pop %v2089
      %v2096 = vmul.f32 %v2061, %v2090
      %v2097 = vmul.f32 %v2063, %v2091
      %v2098 = vmul.f32 %v2065, %v2092
      %v2099 = vmul.f32 %v2067, %v2093
      %v2100 = vmul.f32 %v2069, %v2094
      %v2101 = vmul.f32 %v2071, %v2095
      %2102 = vrot.lane.b32.xlu0 %v1858, 64
      %v2103 = vpop.permute.xlu0 %2102
      %2104 = vrot.lane.b32.xlu0 %v1863, 64
      %v2105 = vpop.permute.xlu0 %2104
      %2106 = vrot.lane.b32.xlu0 %v1868, 64
      %v2107 = vpop.permute.xlu0 %2106
      %2108 = vrot.lane.b32.xlu0 %v1873, 64
      %v2109 = vpop.permute.xlu0 %2108
      %2110 = vrot.lane.b32.xlu0 %v1878, 64
      %v2111 = vpop.permute.xlu0 %2110
      %2112 = vrot.lane.b32.xlu0 %v1883, 64
      %v2113 = vpop.permute.xlu0 %2112
      %v2121 = vsel %vm2035, %v2096, 0
      %v2124 = vsel %vm2035, %v2097, 0
      %v2127 = vsel %vm2035, %v2098, 0
      %v2130 = vsel %vm2035, %v2099, 0
      %v2133 = vsel %vm2035, %v2100, 0
      %v2136 = vsel %vm2035, %v2101, 0
      %2138 = vmatprep.subr.mxu0 0.0
      %2139 = vmatpush1.msra.mxu0 %v2103
      %2140 = vmatprep.subr.mxu0 0.0
      %2141 = vmatpush1.msra.mxu0 %v2105
      %2142 = vmatprep.subr.mxu0 0.0
      %2143 = vmatpush1.msra.mxu0 %v2107
      %2144 = vmatprep.subr.mxu0 0.0
      %2145 = vmatpush1.msra.mxu0 %v2109
      %2146 = vmatprep.subr.mxu0 0.0
      %2147 = vmatpush1.msra.mxu0 %v2111
      %2148 = vmatprep.subr.mxu0 0.0
      %2149 = vmatpush1.msra.mxu0 %v2113
      %2150 = vmatprep.subr.mxu0 0.0
      %2151 = vmatpush1.msra.mxu0 0.0
      %2152 = vmatprep.subr.mxu0 0.0
      %2153 = vmatpush1.msra.mxu0 0.0
      %2154 = vmatprep.subr.mxu0 0.0
      %2155 = vmatpush1.msra.mxu0 0.0
      %2156 = vmatprep.subr.mxu0 0.0
      %2157 = vmatpush1.msra.mxu0 0.0
      %2158 = vmatprep.subr.mxu0 0.0
      %2159 = vmatpush1.msra.mxu0 0.0
      %2160 = vmatprep.subr.mxu0 0.0
      %2161 = vmatpush1.msra.mxu0 0.0
      %2162 = vmatprep.subr.mxu0 0.0
      %2163 = vmatpush1.msra.mxu0 0.0
      %2164 = vmatprep.subr.mxu0 0.0
      %2165 = vmatpush1.msra.mxu0 0.0
      %2166 = vmatprep.subr.mxu0 0.0
      %2167 = vmatpush1.msra.mxu0 0.0
      %2168 = vmatprep.subr.mxu0 0.0
      %2169 = vmatpush1.msra.mxu0 0.0
      %2170 = vmatprep.subr.mxu0 0.0
      %2171 = vmatpush1.msra.mxu0 0.0
      %2172 = vmatprep.subr.mxu0 0.0
      %2173 = vmatpush1.msra.mxu0 0.0
      %2174 = vmatprep.subr.mxu0 0.0
      %2175 = vmatpush1.msra.mxu0 0.0
      %2176 = vmatprep.subr.mxu0 0.0
      %2177 = vmatpush1.msra.mxu0 0.0
      %2178 = vmatprep.subr.mxu0 0.0
      %2179 = vmatpush1.msra.mxu0 0.0
      %2180 = vmatprep.subr.mxu0 0.0
      %2181 = vmatpush1.msra.mxu0 0.0
      %2182 = vmatprep.subr.mxu0 0.0
      %2183 = vmatpush1.msra.mxu0 0.0
      %2184 = vmatprep.subr.mxu0 0.0
      %2185 = vmatpush1.msra.mxu0 0.0
      %2186 = vmatprep.subr.mxu0 0.0
      %2187 = vmatpush1.msra.mxu0 0.0
      %2188 = vmatprep.subr.mxu0 0.0
      %2189 = vmatpush1.msra.mxu0 0.0
      %2190 = vmatprep.subr.mxu0 0.0
      %2191 = vmatpush1.msra.mxu0 0.0
      %2192 = vmatprep.subr.mxu0 0.0
      %2193 = vmatpush1.msra.mxu0 0.0
      %2194 = vmatprep.subr.mxu0 0.0
      %2195 = vmatpush1.msra.mxu0 0.0
      %2196 = vmatprep.subr.mxu0 0.0
      %2197 = vmatpush1.msra.mxu0 0.0
      %2198 = vmatprep.subr.mxu0 0.0
      %2199 = vmatpush1.msra.mxu0 0.0
      %2200 = vmatprep.subr.mxu0 0.0
      %2201 = vmatpush1.msra.mxu0 0.0
      %2202 = vmatprep.mubr.f32.mxu0 0.0
      %2203 = vmatmul.mubr.f32.gmra.mrb[0].mxu0 %v2121
      %v2204 = vpop.f32.mrb[0].mxu0
      %v2205 = vadd.f32 0.0, %v2204
      %v2206 = vpop.f32.mrb[0].mxu0
      %2207 = vmatprep.mubr.f32.mxu0 0.0
      %2208 = vmatmul.mubr.f32.gmra.mrb[0].mxu0 %v2124
      %v2209 = vpop.f32.mrb[0].mxu0
      %v2210 = vadd.f32 0.0, %v2209
      %v2211 = vpop.f32.mrb[0].mxu0
      %2212 = vmatprep.mubr.f32.mxu0 0.0
      %2213 = vmatmul.mubr.f32.gmra.mrb[0].mxu0 %v2127
      %v2214 = vpop.f32.mrb[0].mxu0
      %v2215 = vadd.f32 0.0, %v2214
      %v2216 = vpop.f32.mrb[0].mxu0
      %2217 = vmatprep.mubr.f32.mxu0 0.0
      %2218 = vmatmul.mubr.f32.gmra.mrb[0].mxu0 %v2130
      %v2219 = vpop.f32.mrb[0].mxu0
      %v2220 = vadd.f32 0.0, %v2219
      %v2221 = vpop.f32.mrb[0].mxu0
      %2222 = vmatprep.mubr.f32.mxu0 0.0
      %2223 = vmatmul.mubr.f32.gmra.mrb[0].mxu0 %v2133
      %v2224 = vpop.f32.mrb[0].mxu0
      %v2225 = vadd.f32 0.0, %v2224
      %v2226 = vpop.f32.mrb[0].mxu0
      %2227 = vmatprep.mubr.f32.mxu0 0.0
      %2228 = vmatmul.mubr.f32.gmra.mrb[0].mxu0 %v2136
      %v2229 = vpop.f32.mrb[0].mxu0
      %v2230 = vadd.f32 0.0, %v2229
      %v2231 = vpop.f32.mrb[0].mxu0
      %2232 = vdwg.mxu0
      %2233 = vrot.lane.b32.xlu0 %v1858, 112
      %v2234 = vpop.permute.xlu0 %2233
      %2235 = vrot.lane.b32.xlu0 %v1863, 112
      %v2236 = vpop.permute.xlu0 %2235
      %2237 = vrot.lane.b32.xlu0 %v1868, 112
      %v2238 = vpop.permute.xlu0 %2237
      %2239 = vrot.lane.b32.xlu0 %v1873, 112
      %v2240 = vpop.permute.xlu0 %2239
      %2241 = vrot.lane.b32.xlu0 %v1878, 112
      %v2242 = vpop.permute.xlu0 %2241
      %2243 = vrot.lane.b32.xlu0 %v1883, 112
      %v2244 = vpop.permute.xlu0 %2243
      %2245 = vrot.lane.b32.xlu0 %v1858, 80
      %v2246 = vpop.permute.xlu0 %2245
      %2247 = vrot.lane.b32.xlu0 %v1863, 80
      %v2248 = vpop.permute.xlu0 %2247
      %2249 = vrot.lane.b32.xlu0 %v1868, 80
      %v2250 = vpop.permute.xlu0 %2249
      %2251 = vrot.lane.b32.xlu0 %v1873, 80
      %v2252 = vpop.permute.xlu0 %2251
      %2253 = vrot.lane.b32.xlu0 %v1878, 80
      %v2254 = vpop.permute.xlu0 %2253
      %2255 = vrot.lane.b32.xlu0 %v1883, 80
      %v2256 = vpop.permute.xlu0 %2255
      %v2257 = vsel %vm1909, %v2234, 0
      %v2259 = vsel %vm1909, %v2236, 0
      %v2261 = vsel %vm1909, %v2238, 0
      %v2263 = vsel %vm1909, %v2240, 0
      %v2265 = vsel %vm1909, %v2242, 0
      %v2267 = vsel %vm1909, %v2244, 0
      %v2269 = vsel %vm1909, %v2246, 0
      %v2271 = vsel %vm1909, %v2248, 0
      %v2273 = vsel %vm1909, %v2250, 0
      %v2275 = vsel %vm1909, %v2252, 0
      %v2277 = vsel %vm1909, %v2254, 0
      %v2279 = vsel %vm1909, %v2256, 0
      %2281 = vmatprep.subr.mxu0 0.0
      %2282 = vmatpush1.xpose.msra.mxu0 %v2269
      %2283 = vmatprep.subr.mxu0 0.0
      %2284 = vmatpush1.xpose.msra.mxu0 %v2271
      %2285 = vmatprep.subr.mxu0 0.0
      %2286 = vmatpush1.xpose.msra.mxu0 %v2273
      %2287 = vmatprep.subr.mxu0 0.0
      %2288 = vmatpush1.xpose.msra.mxu0 %v2275
      %2289 = vmatprep.subr.mxu0 0.0
      %2290 = vmatpush1.xpose.msra.mxu0 %v2277
      %2291 = vmatprep.subr.mxu0 0.0
      %2292 = vmatpush1.xpose.msra.mxu0 %v2279
      %2293 = vmatprep.subr.mxu0 0.0
      %2294 = vmatpush1.xpose.msra.mxu0 0.0
      %2295 = vmatprep.subr.mxu0 0.0
      %2296 = vmatpush1.xpose.msra.mxu0 0.0
      %2297 = vmatprep.subr.mxu0 0.0
      %2298 = vmatpush1.xpose.msra.mxu0 0.0
      %2299 = vmatprep.subr.mxu0 0.0
      %2300 = vmatpush1.xpose.msra.mxu0 0.0
      %2301 = vmatprep.subr.mxu0 0.0
      %2302 = vmatpush1.xpose.msra.mxu0 0.0
      %2303 = vmatprep.subr.mxu0 0.0
      %2304 = vmatpush1.xpose.msra.mxu0 0.0
      %2305 = vmatprep.subr.mxu0 0.0
      %2306 = vmatpush1.xpose.msra.mxu0 0.0
      %2307 = vmatprep.subr.mxu0 0.0
      %2308 = vmatpush1.xpose.msra.mxu0 0.0
      %2309 = vmatprep.subr.mxu0 0.0
      %2310 = vmatpush1.xpose.msra.mxu0 0.0
      %2311 = vmatprep.subr.mxu0 0.0
      %2312 = vmatpush1.xpose.msra.mxu0 0.0
      %2313 = vmatprep.subr.mxu0 0.0
      %2314 = vmatpush1.xpose.msra.mxu0 0.0
      %2315 = vmatprep.subr.mxu0 0.0
      %2316 = vmatpush1.xpose.msra.mxu0 0.0
      %2317 = vmatprep.subr.mxu0 0.0
      %2318 = vmatpush1.xpose.msra.mxu0 0.0
      %2319 = vmatprep.subr.mxu0 0.0
      %2320 = vmatpush1.xpose.msra.mxu0 0.0
      %2321 = vmatprep.subr.mxu0 0.0
      %2322 = vmatpush1.xpose.msra.mxu0 0.0
      %2323 = vmatprep.subr.mxu0 0.0
      %2324 = vmatpush1.xpose.msra.mxu0 0.0
      %2325 = vmatprep.subr.mxu0 0.0
      %2326 = vmatpush1.xpose.msra.mxu0 0.0
      %2327 = vmatprep.subr.mxu0 0.0
      %2328 = vmatpush1.xpose.msra.mxu0 0.0
      %2329 = vmatprep.subr.mxu0 0.0
      %2330 = vmatpush1.xpose.msra.mxu0 0.0
      %2331 = vmatprep.subr.mxu0 0.0
      %2332 = vmatpush1.xpose.msra.mxu0 0.0
      %2333 = vmatprep.subr.mxu0 0.0
      %2334 = vmatpush1.xpose.msra.mxu0 0.0
      %2335 = vmatprep.subr.mxu0 0.0
      %2336 = vmatpush1.xpose.msra.mxu0 0.0
      %2337 = vmatprep.subr.mxu0 0.0
      %2338 = vmatpush1.xpose.msra.mxu0 0.0
      %2339 = vmatprep.subr.mxu0 0.0
      %2340 = vmatpush1.xpose.msra.mxu0 0.0
      %2341 = vmatprep.subr.mxu0 0.0
      %2342 = vmatpush1.xpose.msra.mxu0 0.0
      %2343 = vmatprep.subr.mxu0 0.0
      %2344 = vmatpush1.xpose.msra.mxu0 0.0
      %2345 = vmatprep.mubr.f32.mxu0 0.0
      %2346 = vmatmul.mubr.f32.gmra.mrb[0].mxu0 %v2257
      %v2347 = vpop.f32.mrb[0].mxu0
      %v2348 = vadd.f32 0.0, %v2347
      %v2349 = vpop.f32.mrb[0].mxu0
      %2350 = vmatprep.mubr.f32.mxu0 0.0
      %2351 = vmatmul.mubr.f32.gmra.mrb[0].mxu0 %v2259
      %v2352 = vpop.f32.mrb[0].mxu0
      %v2353 = vadd.f32 0.0, %v2352
      %v2354 = vpop.f32.mrb[0].mxu0
      %2355 = vmatprep.mubr.f32.mxu0 0.0
      %2356 = vmatmul.mubr.f32.gmra.mrb[0].mxu0 %v2261
      %v2357 = vpop.f32.mrb[0].mxu0
      %v2358 = vadd.f32 0.0, %v2357
      %v2359 = vpop.f32.mrb[0].mxu0
      %2360 = vmatprep.mubr.f32.mxu0 0.0
      %2361 = vmatmul.mubr.f32.gmra.mrb[0].mxu0 %v2263
      %v2362 = vpop.f32.mrb[0].mxu0
      %v2363 = vadd.f32 0.0, %v2362
      %v2364 = vpop.f32.mrb[0].mxu0
      %2365 = vmatprep.mubr.f32.mxu0 0.0
      %2366 = vmatmul.mubr.f32.gmra.mrb[0].mxu0 %v2265
      %v2367 = vpop.f32.mrb[0].mxu0
      %v2368 = vadd.f32 0.0, %v2367
      %v2369 = vpop.f32.mrb[0].mxu0
      %2370 = vmatprep.mubr.f32.mxu0 0.0
      %2371 = vmatmul.mubr.f32.gmra.mrb[0].mxu0 %v2267
      %v2372 = vpop.f32.mrb[0].mxu0
      %v2373 = vadd.f32 0.0, %v2372
      %v2374 = vpop.f32.mrb[0].mxu0
      %2375 = vdwg.mxu0
      %v2376 = vmul.f32 %v2348, 0.25
      %v2377 = vmul.f32 %v2353, 0.25
      %v2378 = vmul.f32 %v2358, 0.25
      %v2379 = vmul.f32 %v2363, 0.25
      %v2380 = vmul.f32 %v2368, 0.25
      %v2381 = vmul.f32 %v2373, 0.25
      %v2382 = vsel %vm2035, %v2376, -inf
      %2383 = vmax.xlane.f32.xlu0 %v2382
      %v2384 = vpop.xlane.xlu0 %2383
      %v2385 = vsel %vm2035, %v2377, -inf
      %2386 = vmax.xlane.f32.xlu0 %v2385
      %v2387 = vpop.xlane.xlu0 %2386
      %v2388 = vsel %vm2035, %v2378, -inf
      %2389 = vmax.xlane.f32.xlu0 %v2388
      %v2390 = vpop.xlane.xlu0 %2389
      %v2391 = vsel %vm2035, %v2379, -inf
      %2392 = vmax.xlane.f32.xlu0 %v2391
      %v2393 = vpop.xlane.xlu0 %2392
      %v2394 = vsel %vm2035, %v2380, -inf
      %2395 = vmax.xlane.f32.xlu0 %v2394
      %v2396 = vpop.xlane.xlu0 %2395
      %v2397 = vsel %vm2035, %v2381, -inf
      %2398 = vmax.xlane.f32.xlu0 %v2397
      %v2399 = vpop.xlane.xlu0 %2398
      %v2400 = vsub.f32 %v2376, %v2384
      %v2401 = vsub.f32 %v2377, %v2387
      %v2402 = vsub.f32 %v2378, %v2390
      %v2403 = vsub.f32 %v2379, %v2393
      %v2404 = vsub.f32 %v2380, %v2396
      %v2405 = vsub.f32 %v2381, %v2399
      %v2406 = vmul.f32 %v2400, 1.442695
      %v2407 = vpow.pop %v2406
      %v2408 = vmul.f32 %v2401, 1.442695
      %v2409 = vpow.pop %v2408
      %v2410 = vmul.f32 %v2402, 1.442695
      %v2411 = vpow.pop %v2410
      %v2412 = vmul.f32 %v2403, 1.442695
      %v2413 = vpow.pop %v2412
      %v2414 = vmul.f32 %v2404, 1.442695
      %v2415 = vpow.pop %v2414
      %v2416 = vmul.f32 %v2405, 1.442695
      %v2417 = vpow.pop %v2416
      %v2418 = vsel %vm2035, %v2407, 0.0
      %2419 = vadd.xlane.f32.xlu0 %v2418
      %v2420 = vpop.xlane.xlu0 %2419
      %v2421 = vsel %vm2035, %v2409, 0.0
      %2422 = vadd.xlane.f32.xlu0 %v2421
      %v2423 = vpop.xlane.xlu0 %2422
      %v2424 = vsel %vm2035, %v2411, 0.0
      %2425 = vadd.xlane.f32.xlu0 %v2424
      %v2426 = vpop.xlane.xlu0 %2425
      %v2427 = vsel %vm2035, %v2413, 0.0
      %2428 = vadd.xlane.f32.xlu0 %v2427
      %v2429 = vpop.xlane.xlu0 %2428
      %v2430 = vsel %vm2035, %v2415, 0.0
      %2431 = vadd.xlane.f32.xlu0 %v2430
      %v2432 = vpop.xlane.xlu0 %2431
      %v2433 = vsel %vm2035, %v2417, 0.0
      %2434 = vadd.xlane.f32.xlu0 %v2433
      %v2435 = vpop.xlane.xlu0 %2434
      %v2436 = vrcp.pop %v2420
      %v2437 = vrcp.pop %v2423
      %v2438 = vrcp.pop %v2426
      %v2439 = vrcp.pop %v2429
      %v2440 = vrcp.pop %v2432
      %v2441 = vrcp.pop %v2435
      %v2442 = vmul.f32 %v2407, %v2436
      %v2443 = vmul.f32 %v2409, %v2437
      %v2444 = vmul.f32 %v2411, %v2438
      %v2445 = vmul.f32 %v2413, %v2439
      %v2446 = vmul.f32 %v2415, %v2440
      %v2447 = vmul.f32 %v2417, %v2441
      %2448 = vrot.lane.b32.xlu0 %v1858, 48
      %v2449 = vpop.permute.xlu0 %2448
      %2450 = vrot.lane.b32.xlu0 %v1863, 48
      %v2451 = vpop.permute.xlu0 %2450
      %2452 = vrot.lane.b32.xlu0 %v1868, 48
      %v2453 = vpop.permute.xlu0 %2452
      %2454 = vrot.lane.b32.xlu0 %v1873, 48
      %v2455 = vpop.permute.xlu0 %2454
      %2456 = vrot.lane.b32.xlu0 %v1878, 48
      %v2457 = vpop.permute.xlu0 %2456
      %2458 = vrot.lane.b32.xlu0 %v1883, 48
      %v2459 = vpop.permute.xlu0 %2458
      %v2467 = vsel %vm2035, %v2442, 0
      %v2470 = vsel %vm2035, %v2443, 0
      %v2473 = vsel %vm2035, %v2444, 0
      %v2476 = vsel %vm2035, %v2445, 0
      %v2479 = vsel %vm2035, %v2446, 0
      %v2482 = vsel %vm2035, %v2447, 0
      %2484 = vmatprep.subr.mxu0 0.0
      %2485 = vmatpush1.msra.mxu0 %v2449
      %2486 = vmatprep.subr.mxu0 0.0
      %2487 = vmatpush1.msra.mxu0 %v2451
      %2488 = vmatprep.subr.mxu0 0.0
      %2489 = vmatpush1.msra.mxu0 %v2453
      %2490 = vmatprep.subr.mxu0 0.0
      %2491 = vmatpush1.msra.mxu0 %v2455
      %2492 = vmatprep.subr.mxu0 0.0
      %2493 = vmatpush1.msra.mxu0 %v2457
      %2494 = vmatprep.subr.mxu0 0.0
      %2495 = vmatpush1.msra.mxu0 %v2459
      %2496 = vmatprep.subr.mxu0 0.0
      %2497 = vmatpush1.msra.mxu0 0.0
      %2498 = vmatprep.subr.mxu0 0.0
      %2499 = vmatpush1.msra.mxu0 0.0
      %2500 = vmatprep.subr.mxu0 0.0
      %2501 = vmatpush1.msra.mxu0 0.0
      %2502 = vmatprep.subr.mxu0 0.0
      %2503 = vmatpush1.msra.mxu0 0.0
      %2504 = vmatprep.subr.mxu0 0.0
      %2505 = vmatpush1.msra.mxu0 0.0
      %2506 = vmatprep.subr.mxu0 0.0
      %2507 = vmatpush1.msra.mxu0 0.0
      %2508 = vmatprep.subr.mxu0 0.0
      %2509 = vmatpush1.msra.mxu0 0.0
      %2510 = vmatprep.subr.mxu0 0.0
      %2511 = vmatpush1.msra.mxu0 0.0
      %2512 = vmatprep.subr.mxu0 0.0
      %2513 = vmatpush1.msra.mxu0 0.0
      %2514 = vmatprep.subr.mxu0 0.0
      %2515 = vmatpush1.msra.mxu0 0.0
      %2516 = vmatprep.subr.mxu0 0.0
      %2517 = vmatpush1.msra.mxu0 0.0
      %2518 = vmatprep.subr.mxu0 0.0
      %2519 = vmatpush1.msra.mxu0 0.0
      %2520 = vmatprep.subr.mxu0 0.0
      %2521 = vmatpush1.msra.mxu0 0.0
      %2522 = vmatprep.subr.mxu0 0.0
      %2523 = vmatpush1.msra.mxu0 0.0
      %2524 = vmatprep.subr.mxu0 0.0
      %2525 = vmatpush1.msra.mxu0 0.0
      %2526 = vmatprep.subr.mxu0 0.0
      %2527 = vmatpush1.msra.mxu0 0.0
      %2528 = vmatprep.subr.mxu0 0.0
      %2529 = vmatpush1.msra.mxu0 0.0
      %2530 = vmatprep.subr.mxu0 0.0
      %2531 = vmatpush1.msra.mxu0 0.0
      %2532 = vmatprep.subr.mxu0 0.0
      %2533 = vmatpush1.msra.mxu0 0.0
      %2534 = vmatprep.subr.mxu0 0.0
      %2535 = vmatpush1.msra.mxu0 0.0
      %2536 = vmatprep.subr.mxu0 0.0
      %2537 = vmatpush1.msra.mxu0 0.0
      %2538 = vmatprep.subr.mxu0 0.0
      %2539 = vmatpush1.msra.mxu0 0.0
      %2540 = vmatprep.subr.mxu0 0.0
      %2541 = vmatpush1.msra.mxu0 0.0
      %2542 = vmatprep.subr.mxu0 0.0
      %2543 = vmatpush1.msra.mxu0 0.0
      %2544 = vmatprep.subr.mxu0 0.0
      %2545 = vmatpush1.msra.mxu0 0.0
      %2546 = vmatprep.subr.mxu0 0.0
      %2547 = vmatpush1.msra.mxu0 0.0
      %2548 = vmatprep.mubr.f32.mxu0 0.0
      %2549 = vmatmul.mubr.f32.gmra.mrb[0].mxu0 %v2467
      %v2550 = vpop.f32.mrb[0].mxu0
      %v2551 = vadd.f32 0.0, %v2550
      %v2552 = vpop.f32.mrb[0].mxu0
      %2553 = vmatprep.mubr.f32.mxu0 0.0
      %2554 = vmatmul.mubr.f32.gmra.mrb[0].mxu0 %v2470
      %v2555 = vpop.f32.mrb[0].mxu0
      %v2556 = vadd.f32 0.0, %v2555
      %v2557 = vpop.f32.mrb[0].mxu0
      %2558 = vmatprep.mubr.f32.mxu0 0.0
      %2559 = vmatmul.mubr.f32.gmra.mrb[0].mxu0 %v2473
      %v2560 = vpop.f32.mrb[0].mxu0
      %v2561 = vadd.f32 0.0, %v2560
      %v2562 = vpop.f32.mrb[0].mxu0
      %2563 = vmatprep.mubr.f32.mxu0 0.0
      %2564 = vmatmul.mubr.f32.gmra.mrb[0].mxu0 %v2476
      %v2565 = vpop.f32.mrb[0].mxu0
      %v2566 = vadd.f32 0.0, %v2565
      %v2567 = vpop.f32.mrb[0].mxu0
      %2568 = vmatprep.mubr.f32.mxu0 0.0
      %2569 = vmatmul.mubr.f32.gmra.mrb[0].mxu0 %v2479
      %v2570 = vpop.f32.mrb[0].mxu0
      %v2571 = vadd.f32 0.0, %v2570
      %v2572 = vpop.f32.mrb[0].mxu0
      %2573 = vmatprep.mubr.f32.mxu0 0.0
      %2574 = vmatmul.mubr.f32.gmra.mrb[0].mxu0 %v2482
      %v2575 = vpop.f32.mrb[0].mxu0
      %v2576 = vadd.f32 0.0, %v2575
      %v2577 = vpop.f32.mrb[0].mxu0
      %2578 = vdwg.mxu0
      %v2580 = vsel %vm1909, %v2551, 0
      %v2583 = vsel %vm1909, %v2556, 0
      %v2586 = vsel %vm1909, %v2561, 0
      %v2589 = vsel %vm1909, %v2566, 0
      %v2592 = vsel %vm1909, %v2571, 0
      %v2595 = vsel %vm1909, %v2576, 0
      %2597 = vmatprep.subr.mxu0 0.0
      %2598 = vmatpush1.msra.mxu0 %v1888
      %2599 = vmatprep.subr.mxu0 0.0
      %2600 = vmatpush1.msra.mxu0 %v1889
      %2601 = vmatprep.subr.mxu0 0.0
      %2602 = vmatpush1.msra.mxu0 0.0
      %2603 = vmatprep.subr.mxu0 0.0
      %2604 = vmatpush1.msra.mxu0 0.0
      %2605 = vmatprep.subr.mxu0 0.0
      %2606 = vmatpush1.msra.mxu0 0.0
      %2607 = vmatprep.subr.mxu0 0.0
      %2608 = vmatpush1.msra.mxu0 0.0
      %2609 = vmatprep.subr.mxu0 0.0
      %2610 = vmatpush1.msra.mxu0 0.0
      %2611 = vmatprep.subr.mxu0 0.0
      %2612 = vmatpush1.msra.mxu0 0.0
      %2613 = vmatprep.subr.mxu0 0.0
      %2614 = vmatpush1.msra.mxu0 0.0
      %2615 = vmatprep.subr.mxu0 0.0
      %2616 = vmatpush1.msra.mxu0 0.0
      %2617 = vmatprep.subr.mxu0 0.0
      %2618 = vmatpush1.msra.mxu0 0.0
      %2619 = vmatprep.subr.mxu0 0.0
      %2620 = vmatpush1.msra.mxu0 0.0
      %2621 = vmatprep.subr.mxu0 0.0
      %2622 = vmatpush1.msra.mxu0 0.0
      %2623 = vmatprep.subr.mxu0 0.0
      %2624 = vmatpush1.msra.mxu0 0.0
      %2625 = vmatprep.subr.mxu0 0.0
      %2626 = vmatpush1.msra.mxu0 0.0
      %2627 = vmatprep.subr.mxu0 0.0
      %2628 = vmatpush1.msra.mxu0 0.0
      %2629 = vmatprep.subr.mxu0 0.0
      %2630 = vmatpush1.msra.mxu0 0.0
      %2631 = vmatprep.subr.mxu0 0.0
      %2632 = vmatpush1.msra.mxu0 0.0
      %2633 = vmatprep.subr.mxu0 0.0
      %2634 = vmatpush1.msra.mxu0 0.0
      %2635 = vmatprep.subr.mxu0 0.0
      %2636 = vmatpush1.msra.mxu0 0.0
      %2637 = vmatprep.subr.mxu0 0.0
      %2638 = vmatpush1.msra.mxu0 0.0
      %2639 = vmatprep.subr.mxu0 0.0
      %2640 = vmatpush1.msra.mxu0 0.0
      %2641 = vmatprep.subr.mxu0 0.0
      %2642 = vmatpush1.msra.mxu0 0.0
      %2643 = vmatprep.subr.mxu0 0.0
      %2644 = vmatpush1.msra.mxu0 0.0
      %2645 = vmatprep.subr.mxu0 0.0
      %2646 = vmatpush1.msra.mxu0 0.0
      %2647 = vmatprep.subr.mxu0 0.0
      %2648 = vmatpush1.msra.mxu0 0.0
      %2649 = vmatprep.subr.mxu0 0.0
      %2650 = vmatpush1.msra.mxu0 0.0
      %2651 = vmatprep.subr.mxu0 0.0
      %2652 = vmatpush1.msra.mxu0 0.0
      %2653 = vmatprep.subr.mxu0 0.0
      %2654 = vmatpush1.msra.mxu0 0.0
      %2655 = vmatprep.subr.mxu0 0.0
      %2656 = vmatpush1.msra.mxu0 0.0
      %2657 = vmatprep.subr.mxu0 0.0
      %2658 = vmatpush1.msra.mxu0 0.0
      %2659 = vmatprep.subr.mxu0 0.0
      %2660 = vmatpush1.msra.mxu0 0.0
      %2661 = vmatprep.mubr.f32.mxu0 0.0
      %2662 = vmatmul.mubr.f32.gmra.mrb[0].mxu0 %v2580
      %v2663 = vpop.f32.mrb[0].mxu0
      %v2664 = vadd.f32 0.0, %v2663
      %v2665 = vpop.f32.mrb[0].mxu0
      %2666 = vmatprep.mubr.f32.mxu0 0.0
      %2667 = vmatmul.mubr.f32.gmra.mrb[0].mxu0 %v2583
      %v2668 = vpop.f32.mrb[0].mxu0
      %v2669 = vadd.f32 0.0, %v2668
      %v2670 = vpop.f32.mrb[0].mxu0
      %2671 = vmatprep.mubr.f32.mxu0 0.0
      %2672 = vmatmul.mubr.f32.gmra.mrb[0].mxu0 %v2586
      %v2673 = vpop.f32.mrb[0].mxu0
      %v2674 = vadd.f32 0.0, %v2673
      %v2675 = vpop.f32.mrb[0].mxu0
      %2676 = vmatprep.mubr.f32.mxu0 0.0
      %2677 = vmatmul.mubr.f32.gmra.mrb[0].mxu0 %v2589
      %v2678 = vpop.f32.mrb[0].mxu0
      %v2679 = vadd.f32 0.0, %v2678
      %v2680 = vpop.f32.mrb[0].mxu0
      %2681 = vmatprep.mubr.f32.mxu0 0.0
      %2682 = vmatmul.mubr.f32.gmra.mrb[0].mxu0 %v2592
      %v2683 = vpop.f32.mrb[0].mxu0
      %v2684 = vadd.f32 0.0, %v2683
      %v2685 = vpop.f32.mrb[0].mxu0
      %2686 = vmatprep.mubr.f32.mxu0 0.0
      %2687 = vmatmul.mubr.f32.gmra.mrb[0].mxu0 %v2595
      %v2688 = vpop.f32.mrb[0].mxu0
      %v2689 = vadd.f32 0.0, %v2688
      %v2690 = vpop.f32.mrb[0].mxu0
      %2691 = vdwg.mxu0
      %v2693 = vsel %vm1909, %v2205, 0
      %v2696 = vsel %vm1909, %v2210, 0
      %v2699 = vsel %vm1909, %v2215, 0
      %v2702 = vsel %vm1909, %v2220, 0
      %v2705 = vsel %vm1909, %v2225, 0
      %v2708 = vsel %vm1909, %v2230, 0
      %2710 = vmatprep.subr.mxu0 0.0
      %2711 = vmatpush1.msra.mxu0 %v1886
      %2712 = vmatprep.subr.mxu0 0.0
      %2713 = vmatpush1.msra.mxu0 %v1887
      %2714 = vmatprep.subr.mxu0 0.0
      %2715 = vmatpush1.msra.mxu0 0.0
      %2716 = vmatprep.subr.mxu0 0.0
      %2717 = vmatpush1.msra.mxu0 0.0
      %2718 = vmatprep.subr.mxu0 0.0
      %2719 = vmatpush1.msra.mxu0 0.0
      %2720 = vmatprep.subr.mxu0 0.0
      %2721 = vmatpush1.msra.mxu0 0.0
      %2722 = vmatprep.subr.mxu0 0.0
      %2723 = vmatpush1.msra.mxu0 0.0
      %2724 = vmatprep.subr.mxu0 0.0
      %2725 = vmatpush1.msra.mxu0 0.0
      %2726 = vmatprep.subr.mxu0 0.0
      %2727 = vmatpush1.msra.mxu0 0.0
      %2728 = vmatprep.subr.mxu0 0.0
      %2729 = vmatpush1.msra.mxu0 0.0
      %2730 = vmatprep.subr.mxu0 0.0
      %2731 = vmatpush1.msra.mxu0 0.0
      %2732 = vmatprep.subr.mxu0 0.0
      %2733 = vmatpush1.msra.mxu0 0.0
      %2734 = vmatprep.subr.mxu0 0.0
      %2735 = vmatpush1.msra.mxu0 0.0
      %2736 = vmatprep.subr.mxu0 0.0
      %2737 = vmatpush1.msra.mxu0 0.0
      %2738 = vmatprep.subr.mxu0 0.0
      %2739 = vmatpush1.msra.mxu0 0.0
      %2740 = vmatprep.subr.mxu0 0.0
      %2741 = vmatpush1.msra.mxu0 0.0
      %2742 = vmatprep.subr.mxu0 0.0
      %2743 = vmatpush1.msra.mxu0 0.0
      %2744 = vmatprep.subr.mxu0 0.0
      %2745 = vmatpush1.msra.mxu0 0.0
      %2746 = vmatprep.subr.mxu0 0.0
      %2747 = vmatpush1.msra.mxu0 0.0
      %2748 = vmatprep.subr.mxu0 0.0
      %2749 = vmatpush1.msra.mxu0 0.0
      %2750 = vmatprep.subr.mxu0 0.0
      %2751 = vmatpush1.msra.mxu0 0.0
      %2752 = vmatprep.subr.mxu0 0.0
      %2753 = vmatpush1.msra.mxu0 0.0
      %2754 = vmatprep.subr.mxu0 0.0
      %2755 = vmatpush1.msra.mxu0 0.0
      %2756 = vmatprep.subr.mxu0 0.0
      %2757 = vmatpush1.msra.mxu0 0.0
      %2758 = vmatprep.subr.mxu0 0.0
      %2759 = vmatpush1.msra.mxu0 0.0
      %2760 = vmatprep.subr.mxu0 0.0
      %2761 = vmatpush1.msra.mxu0 0.0
      %2762 = vmatprep.subr.mxu0 0.0
      %2763 = vmatpush1.msra.mxu0 0.0
      %2764 = vmatprep.subr.mxu0 0.0
      %2765 = vmatpush1.msra.mxu0 0.0
      %2766 = vmatprep.subr.mxu0 0.0
      %2767 = vmatpush1.msra.mxu0 0.0
      %2768 = vmatprep.subr.mxu0 0.0
      %2769 = vmatpush1.msra.mxu0 0.0
      %2770 = vmatprep.subr.mxu0 0.0
      %2771 = vmatpush1.msra.mxu0 0.0
      %2772 = vmatprep.subr.mxu0 0.0
      %2773 = vmatpush1.msra.mxu0 0.0
      %2774 = vmatprep.mubr.f32.mxu0 0.0
      %2775 = vmatmul.mubr.f32.gmra.mrb[0].mxu0 %v2693
      %v2776 = vpop.f32.mrb[0].mxu0
      %v2777 = vadd.f32 %v2664, %v2776
      %v2778 = vpop.f32.mrb[0].mxu0
      %2779 = vmatprep.mubr.f32.mxu0 0.0
      %2780 = vmatmul.mubr.f32.gmra.mrb[0].mxu0 %v2696
      %v2781 = vpop.f32.mrb[0].mxu0
      %v2782 = vadd.f32 %v2669, %v2781
      %v2783 = vpop.f32.mrb[0].mxu0
      %2784 = vmatprep.mubr.f32.mxu0 0.0
      %2785 = vmatmul.mubr.f32.gmra.mrb[0].mxu0 %v2699
      %v2786 = vpop.f32.mrb[0].mxu0
      %v2787 = vadd.f32 %v2674, %v2786
      %v2788 = vpop.f32.mrb[0].mxu0
      %2789 = vmatprep.mubr.f32.mxu0 0.0
      %2790 = vmatmul.mubr.f32.gmra.mrb[0].mxu0 %v2702
      %v2791 = vpop.f32.mrb[0].mxu0
      %v2792 = vadd.f32 %v2679, %v2791
      %v2793 = vpop.f32.mrb[0].mxu0
      %2794 = vmatprep.mubr.f32.mxu0 0.0
      %2795 = vmatmul.mubr.f32.gmra.mrb[0].mxu0 %v2705
      %v2796 = vpop.f32.mrb[0].mxu0
      %v2797 = vadd.f32 %v2684, %v2796
      %v2798 = vpop.f32.mrb[0].mxu0
      %2799 = vmatprep.mubr.f32.mxu0 0.0
      %2800 = vmatmul.mubr.f32.gmra.mrb[0].mxu0 %v2708
      %v2801 = vpop.f32.mrb[0].mxu0
      %v2802 = vadd.f32 %v2689, %v2801
      %v2803 = vpop.f32.mrb[0].mxu0
      %2804 = vdwg.mxu0
      %v2806 = vlaneseq
      %v2807 = vshrl.u32 %v2806, 7
      %v2808 = vsub.s32 0, %v2807
      %v2809 = vrot.slane %v1890, %v2808
      %v2811 = vadd.f32 %v2777, %v2809
      %v2812 = vadd.f32 %v2782, %v2809
      %v2813 = vadd.f32 %v2787, %v2809
      %v2814 = vadd.f32 %v2792, %v2809
      %v2815 = vadd.f32 %v2797, %v2809
      %v2816 = vadd.f32 %v2802, %v2809
      %v2817 = vadd.f32 %v1554, %v2811
      %v2818 = vadd.f32 %v1555, %v2812
      %v2819 = vadd.f32 %v1556, %v2813
      %v2820 = vadd.f32 %v1557, %v2814
      %v2821 = vadd.f32 %v1558, %v2815
      %v2822 = vadd.f32 %v1559, %v2816
      %v2823 = vld [vmem:[%s45] sm:$0x3]
      %v2824 = vsel %vm1662, %v2817, 0.0
      %2825 = vadd.xlane.f32.xlu0 %v2824
      %v2826 = vpop.xlane.xlu0 %2825
      %v2827 = vsel %vm1662, %v2818, 0.0
      %2828 = vadd.xlane.f32.xlu0 %v2827
      %v2829 = vpop.xlane.xlu0 %2828
      %v2830 = vsel %vm1662, %v2819, 0.0
      %2831 = vadd.xlane.f32.xlu0 %v2830
      %v2832 = vpop.xlane.xlu0 %2831
      %v2833 = vsel %vm1662, %v2820, 0.0
      %2834 = vadd.xlane.f32.xlu0 %v2833
      %v2835 = vpop.xlane.xlu0 %2834
      %v2836 = vsel %vm1662, %v2821, 0.0
      %2837 = vadd.xlane.f32.xlu0 %v2836
      %v2838 = vpop.xlane.xlu0 %2837
      %v2839 = vsel %vm1662, %v2822, 0.0
      %2840 = vadd.xlane.f32.xlu0 %v2839
      %v2841 = vpop.xlane.xlu0 %2840
      %v2842 = vmul.f32 %v2826, %v1681
      %v2843 = vmul.f32 %v2829, %v1681
      %v2844 = vmul.f32 %v2832, %v1681
      %v2845 = vmul.f32 %v2835, %v1681
      %v2846 = vmul.f32 %v2838, %v1681
      %v2847 = vmul.f32 %v2841, %v1681
      %v2848 = vsub.f32 %v2817, %v2842
      %v2849 = vsub.f32 %v2818, %v2843
      %v2850 = vsub.f32 %v2819, %v2844
      %v2851 = vsub.f32 %v2820, %v2845
      %v2852 = vsub.f32 %v2821, %v2846
      %v2853 = vsub.f32 %v2822, %v2847
      %v2854 = vmul.f32 %v2848, %v2848
      %v2855 = vmul.f32 %v2849, %v2849
      %v2856 = vmul.f32 %v2850, %v2850
      %v2857 = vmul.f32 %v2851, %v2851
      %v2858 = vmul.f32 %v2852, %v2852
      %v2859 = vmul.f32 %v2853, %v2853
      %v2860 = vsel %vm1662, %v2854, 0.0
      %2861 = vadd.xlane.f32.xlu0 %v2860
      %v2862 = vpop.xlane.xlu0 %2861
      %v2863 = vsel %vm1662, %v2855, 0.0
      %2864 = vadd.xlane.f32.xlu0 %v2863
      %v2865 = vpop.xlane.xlu0 %2864
      %v2866 = vsel %vm1662, %v2856, 0.0
      %2867 = vadd.xlane.f32.xlu0 %v2866
      %v2868 = vpop.xlane.xlu0 %2867
      %v2869 = vsel %vm1662, %v2857, 0.0
      %2870 = vadd.xlane.f32.xlu0 %v2869
      %v2871 = vpop.xlane.xlu0 %2870
      %v2872 = vsel %vm1662, %v2858, 0.0
      %2873 = vadd.xlane.f32.xlu0 %v2872
      %v2874 = vpop.xlane.xlu0 %2873
      %v2875 = vsel %vm1662, %v2859, 0.0
      %2876 = vadd.xlane.f32.xlu0 %v2875
      %v2877 = vpop.xlane.xlu0 %2876
      %v2878 = vmul.f32 %v2862, %v1681
      %v2879 = vmul.f32 %v2865, %v1681
      %v2880 = vmul.f32 %v2868, %v1681
      %v2881 = vmul.f32 %v2871, %v1681
      %v2882 = vmul.f32 %v2874, %v1681
      %v2883 = vmul.f32 %v2877, %v1681
      %v2884 = vadd.f32 %v2878, 1e-06
      %v2885 = vadd.f32 %v2879, 1e-06
      %v2886 = vadd.f32 %v2880, 1e-06
      %v2887 = vadd.f32 %v2881, 1e-06
      %v2888 = vadd.f32 %v2882, 1e-06
      %v2889 = vadd.f32 %v2883, 1e-06
      %v2890 = vrsqrt.pop %v2884
      %v2891 = vrsqrt.pop %v2885
      %v2892 = vrsqrt.pop %v2886
      %v2893 = vrsqrt.pop %v2887
      %v2894 = vrsqrt.pop %v2888
      %v2895 = vrsqrt.pop %v2889
      %v2896 = vmul.f32 %v2848, %v2890
      %v2897 = vmul.f32 %v2849, %v2891
      %v2898 = vmul.f32 %v2850, %v2892
      %v2899 = vmul.f32 %v2851, %v2893
      %v2900 = vmul.f32 %v2852, %v2894
      %v2901 = vmul.f32 %v2853, %v2895
      %v2902 = vlaneseq
      %v2903 = vshrl.u32 %v2902, 7
      %v2904 = vsub.s32 0, %v2903
      %v2905 = vrot.slane %v2823, %v2904
      %v2906 = vmul.f32 %v2896, %v2905
      %v2907 = vmul.f32 %v2897, %v2905
      %v2908 = vmul.f32 %v2898, %v2905
      %v2909 = vmul.f32 %v2899, %v2905
      %v2910 = vmul.f32 %v2900, %v2905
      %v2911 = vmul.f32 %v2901, %v2905
      %v2912 = vlaneseq
      %v2913 = vshrl.u32 %v2912, 7
      %v2914 = vsub.s32 1, %v2913
      %v2915 = vrot.slane %v2823, %v2914
      %v2916 = vadd.f32 %v2906, %v2915
      %v2917 = vadd.f32 %v2907, %v2915
      %v2918 = vadd.f32 %v2908, %v2915
      %v2919 = vadd.f32 %v2909, %v2915
      %v2920 = vadd.f32 %v2910, %v2915
      %v2921 = vadd.f32 %v2911, %v2915
      %v2922 = vld [vmem:[%s47] sm:$0xff]
      %v2923 = vld [vmem:[%s47 + $0x8] sm:$0xff]
      %v2924 = vld [vmem:[%s47 + $0x10] sm:$0xff]
      %v2925 = vld [vmem:[%s47 + $0x18] sm:$0xff]
      %v2926 = vld [vmem:[%s49] sm:$0x1]
      %v2928 = vlaneseq
      %v2929 = vshrl.u32 %v2928, 7
      %v2930 = vsub.s32 0, %v2929
      %v2931 = vrot.slane %v2926, %v2930
      %v2934 = vsel %vm1662, %v2916, 0
      %v2937 = vsel %vm1662, %v2917, 0
      %v2940 = vsel %vm1662, %v2918, 0
      %v2943 = vsel %vm1662, %v2919, 0
      %v2946 = vsel %vm1662, %v2920, 0
      %v2949 = vsel %vm1662, %v2921, 0
      %2951 = vmatprep.subr.mxu0 0.0
      %2952 = vmatpush1.msra.mxu0 %v2922
      %2953 = vmatprep.subr.mxu0 0.0
      %2954 = vmatpush1.msra.mxu0 %v2923
      %2955 = vmatprep.subr.mxu0 0.0
      %2956 = vmatpush1.msra.mxu0 %v2924
      %2957 = vmatprep.subr.mxu0 0.0
      %2958 = vmatpush1.msra.mxu0 %v2925
      %2959 = vmatprep.subr.mxu0 0.0
      %2960 = vmatpush1.msra.mxu0 0.0
      %2961 = vmatprep.subr.mxu0 0.0
      %2962 = vmatpush1.msra.mxu0 0.0
      %2963 = vmatprep.subr.mxu0 0.0
      %2964 = vmatpush1.msra.mxu0 0.0
      %2965 = vmatprep.subr.mxu0 0.0
      %2966 = vmatpush1.msra.mxu0 0.0
      %2967 = vmatprep.subr.mxu0 0.0
      %2968 = vmatpush1.msra.mxu0 0.0
      %2969 = vmatprep.subr.mxu0 0.0
      %2970 = vmatpush1.msra.mxu0 0.0
      %2971 = vmatprep.subr.mxu0 0.0
      %2972 = vmatpush1.msra.mxu0 0.0
      %2973 = vmatprep.subr.mxu0 0.0
      %2974 = vmatpush1.msra.mxu0 0.0
      %2975 = vmatprep.subr.mxu0 0.0
      %2976 = vmatpush1.msra.mxu0 0.0
      %2977 = vmatprep.subr.mxu0 0.0
      %2978 = vmatpush1.msra.mxu0 0.0
      %2979 = vmatprep.subr.mxu0 0.0
      %2980 = vmatpush1.msra.mxu0 0.0
      %2981 = vmatprep.subr.mxu0 0.0
      %2982 = vmatpush1.msra.mxu0 0.0
      %2983 = vmatprep.subr.mxu0 0.0
      %2984 = vmatpush1.msra.mxu0 0.0
      %2985 = vmatprep.subr.mxu0 0.0
      %2986 = vmatpush1.msra.mxu0 0.0
      %2987 = vmatprep.subr.mxu0 0.0
      %2988 = vmatpush1.msra.mxu0 0.0
      %2989 = vmatprep.subr.mxu0 0.0
      %2990 = vmatpush1.msra.mxu0 0.0
      %2991 = vmatprep.subr.mxu0 0.0
      %2992 = vmatpush1.msra.mxu0 0.0
      %2993 = vmatprep.subr.mxu0 0.0
      %2994 = vmatpush1.msra.mxu0 0.0
      %2995 = vmatprep.subr.mxu0 0.0
      %2996 = vmatpush1.msra.mxu0 0.0
      %2997 = vmatprep.subr.mxu0 0.0
      %2998 = vmatpush1.msra.mxu0 0.0
      %2999 = vmatprep.subr.mxu0 0.0
      %3000 = vmatpush1.msra.mxu0 0.0
      %3001 = vmatprep.subr.mxu0 0.0
      %3002 = vmatpush1.msra.mxu0 0.0
      %3003 = vmatprep.subr.mxu0 0.0
      %3004 = vmatpush1.msra.mxu0 0.0
      %3005 = vmatprep.subr.mxu0 0.0
      %3006 = vmatpush1.msra.mxu0 0.0
      %3007 = vmatprep.subr.mxu0 0.0
      %3008 = vmatpush1.msra.mxu0 0.0
      %3009 = vmatprep.subr.mxu0 0.0
      %3010 = vmatpush1.msra.mxu0 0.0
      %3011 = vmatprep.subr.mxu0 0.0
      %3012 = vmatpush1.msra.mxu0 0.0
      %3013 = vmatprep.subr.mxu0 0.0
      %3014 = vmatpush1.msra.mxu0 0.0
      %3015 = vmatprep.mubr.f32.mxu0 0.0
      %3016 = vmatmul.mubr.f32.gmra.mrb[0].mxu0 %v2934
      %v3017 = vpop.f32.mrb[0].mxu0
      %v3018 = vadd.f32 %v2931, %v3017
      %v3019 = vpop.f32.mrb[0].mxu0
      %3020 = vmatprep.mubr.f32.mxu0 0.0
      %3021 = vmatmul.mubr.f32.gmra.mrb[0].mxu0 %v2937
      %v3022 = vpop.f32.mrb[0].mxu0
      %v3023 = vadd.f32 %v2931, %v3022
      %v3024 = vpop.f32.mrb[0].mxu0
      %3025 = vmatprep.mubr.f32.mxu0 0.0
      %3026 = vmatmul.mubr.f32.gmra.mrb[0].mxu0 %v2940
      %v3027 = vpop.f32.mrb[0].mxu0
      %v3028 = vadd.f32 %v2931, %v3027
      %v3029 = vpop.f32.mrb[0].mxu0
      %3030 = vmatprep.mubr.f32.mxu0 0.0
      %3031 = vmatmul.mubr.f32.gmra.mrb[0].mxu0 %v2943
      %v3032 = vpop.f32.mrb[0].mxu0
      %v3033 = vadd.f32 %v2931, %v3032
      %v3034 = vpop.f32.mrb[0].mxu0
      %3035 = vmatprep.mubr.f32.mxu0 0.0
      %3036 = vmatmul.mubr.f32.gmra.mrb[0].mxu0 %v2946
      %v3037 = vpop.f32.mrb[0].mxu0
      %v3038 = vadd.f32 %v2931, %v3037
      %v3039 = vpop.f32.mrb[0].mxu0
      %3040 = vmatprep.mubr.f32.mxu0 0.0
      %3041 = vmatmul.mubr.f32.gmra.mrb[0].mxu0 %v2949
      %v3042 = vpop.f32.mrb[0].mxu0
      %v3043 = vadd.f32 %v2931, %v3042
      %v3044 = vpop.f32.mrb[0].mxu0
      %3045 = vdwg.mxu0
      %v3046 = vmul.f32 %v3018, 0.5
      %v3047 = vmul.f32 %v3023, 0.5
      %v3048 = vmul.f32 %v3028, 0.5
      %v3049 = vmul.f32 %v3033, 0.5
      %v3050 = vmul.f32 %v3038, 0.5
      %v3051 = vmul.f32 %v3043, 0.5
      %v3052 = vmul.f32 %v3018, 0.044715
      %v3053 = vmul.f32 %v3023, 0.044715
      %v3054 = vmul.f32 %v3028, 0.044715
      %v3055 = vmul.f32 %v3033, 0.044715
      %v3056 = vmul.f32 %v3038, 0.044715
      %v3057 = vmul.f32 %v3043, 0.044715
      %v3058 = vmul.f32 %v3052, %v3018
      %v3059 = vmul.f32 %v3053, %v3023
      %v3060 = vmul.f32 %v3054, %v3028
      %v3061 = vmul.f32 %v3055, %v3033
      %v3062 = vmul.f32 %v3056, %v3038
      %v3063 = vmul.f32 %v3057, %v3043
      %v3064 = vmul.f32 %v3058, %v3018
      %v3065 = vmul.f32 %v3059, %v3023
      %v3066 = vmul.f32 %v3060, %v3028
      %v3067 = vmul.f32 %v3061, %v3033
      %v3068 = vmul.f32 %v3062, %v3038
      %v3069 = vmul.f32 %v3063, %v3043
      %v3070 = vadd.f32 %v3018, %v3064
      %v3071 = vadd.f32 %v3023, %v3065
      %v3072 = vadd.f32 %v3028, %v3066
      %v3073 = vadd.f32 %v3033, %v3067
      %v3074 = vadd.f32 %v3038, %v3068
      %v3075 = vadd.f32 %v3043, %v3069
      %v3076 = vmul.f32 %v3070, 0.7978846
      %v3077 = vmul.f32 %v3071, 0.7978846
      %v3078 = vmul.f32 %v3072, 0.7978846
      %v3079 = vmul.f32 %v3073, 0.7978846
      %v3080 = vmul.f32 %v3074, 0.7978846
      %v3081 = vmul.f32 %v3075, 0.7978846
      %v3082 = vtanh.pop %v3076
      %v3083 = vtanh.pop %v3077
      %v3084 = vtanh.pop %v3078
      %v3085 = vtanh.pop %v3079
      %v3086 = vtanh.pop %v3080
      %v3087 = vtanh.pop %v3081
      %v3088 = vadd.f32 %v3082, 1.0
      %v3089 = vadd.f32 %v3083, 1.0
      %v3090 = vadd.f32 %v3084, 1.0
      %v3091 = vadd.f32 %v3085, 1.0
      %v3092 = vadd.f32 %v3086, 1.0
      %v3093 = vadd.f32 %v3087, 1.0
      %v3094 = vmul.f32 %v3046, %v3088
      %v3095 = vmul.f32 %v3047, %v3089
      %v3096 = vmul.f32 %v3048, %v3090
      %v3097 = vmul.f32 %v3049, %v3091
      %v3098 = vmul.f32 %v3050, %v3092
      %v3099 = vmul.f32 %v3051, %v3093
      %v3100 = vld [vmem:[%s51] sm:$0xff]
      %v3101 = vld [vmem:[%s51 + $0x8] sm:$0xff]
      %v3102 = vld [vmem:[%s51 + $0x10] sm:$0xff]
      %v3103 = vld [vmem:[%s51 + $0x18] sm:$0xff]
      %v3104 = vld [vmem:[%s51 + $0x20] sm:$0xff]
      %v3105 = vld [vmem:[%s51 + $0x28] sm:$0xff]
      %v3106 = vld [vmem:[%s51 + $0x30] sm:$0xff]
      %v3107 = vld [vmem:[%s51 + $0x38] sm:$0xff]
      %v3108 = vld [vmem:[%s51 + $0x40] sm:$0xff]
      %v3109 = vld [vmem:[%s51 + $0x48] sm:$0xff]
      %v3110 = vld [vmem:[%s51 + $0x50] sm:$0xff]
      %v3111 = vld [vmem:[%s51 + $0x58] sm:$0xff]
      %v3112 = vld [vmem:[%s51 + $0x60] sm:$0xff]
      %v3113 = vld [vmem:[%s51 + $0x68] sm:$0xff]
      %v3114 = vld [vmem:[%s51 + $0x70] sm:$0xff]
      %v3115 = vld [vmem:[%s51 + $0x78] sm:$0xff]
      %v3116 = vld [vmem:[%s53] sm:$0x1]
      %v3118 = vlaneseq
      %v3119 = vshrl.u32 %v3118, 7
      %v3120 = vsub.s32 0, %v3119
      %v3121 = vrot.slane %v3116, %v3120
      %3123 = vmatprep.subr.mxu0 0.0
      %3124 = vmatpush1.msra.mxu0 %v3100
      %3125 = vmatprep.subr.mxu0 0.0
      %3126 = vmatpush1.msra.mxu0 %v3101
      %3127 = vmatprep.subr.mxu0 0.0
      %3128 = vmatpush1.msra.mxu0 %v3102
      %3129 = vmatprep.subr.mxu0 0.0
      %3130 = vmatpush1.msra.mxu0 %v3103
      %3131 = vmatprep.subr.mxu0 0.0
      %3132 = vmatpush1.msra.mxu0 %v3104
      %3133 = vmatprep.subr.mxu0 0.0
      %3134 = vmatpush1.msra.mxu0 %v3105
      %3135 = vmatprep.subr.mxu0 0.0
      %3136 = vmatpush1.msra.mxu0 %v3106
      %3137 = vmatprep.subr.mxu0 0.0
      %3138 = vmatpush1.msra.mxu0 %v3107
      %3139 = vmatprep.subr.mxu0 0.0
      %3140 = vmatpush1.msra.mxu0 %v3108
      %3141 = vmatprep.subr.mxu0 0.0
      %3142 = vmatpush1.msra.mxu0 %v3109
      %3143 = vmatprep.subr.mxu0 0.0
      %3144 = vmatpush1.msra.mxu0 %v3110
      %3145 = vmatprep.subr.mxu0 0.0
      %3146 = vmatpush1.msra.mxu0 %v3111
      %3147 = vmatprep.subr.mxu0 0.0
      %3148 = vmatpush1.msra.mxu0 %v3112
      %3149 = vmatprep.subr.mxu0 0.0
      %3150 = vmatpush1.msra.mxu0 %v3113
      %3151 = vmatprep.subr.mxu0 0.0
      %3152 = vmatpush1.msra.mxu0 %v3114
      %3153 = vmatprep.subr.mxu0 0.0
      %3154 = vmatpush1.msra.mxu0 %v3115
      %3155 = vmatprep.subr.mxu0 0.0
      %3156 = vmatpush1.msra.mxu0 0.0
      %3157 = vmatprep.subr.mxu0 0.0
      %3158 = vmatpush1.msra.mxu0 0.0
      %3159 = vmatprep.subr.mxu0 0.0
      %3160 = vmatpush1.msra.mxu0 0.0
      %3161 = vmatprep.subr.mxu0 0.0
      %3162 = vmatpush1.msra.mxu0 0.0
      %3163 = vmatprep.subr.mxu0 0.0
      %3164 = vmatpush1.msra.mxu0 0.0
      %3165 = vmatprep.subr.mxu0 0.0
      %3166 = vmatpush1.msra.mxu0 0.0
      %3167 = vmatprep.subr.mxu0 0.0
      %3168 = vmatpush1.msra.mxu0 0.0
      %3169 = vmatprep.subr.mxu0 0.0
      %3170 = vmatpush1.msra.mxu0 0.0
      %3171 = vmatprep.subr.mxu0 0.0
      %3172 = vmatpush1.msra.mxu0 0.0
      %3173 = vmatprep.subr.mxu0 0.0
      %3174 = vmatpush1.msra.mxu0 0.0
      %3175 = vmatprep.subr.mxu0 0.0
      %3176 = vmatpush1.msra.mxu0 0.0
      %3177 = vmatprep.subr.mxu0 0.0
      %3178 = vmatpush1.msra.mxu0 0.0
      %3179 = vmatprep.subr.mxu0 0.0
      %3180 = vmatpush1.msra.mxu0 0.0
      %3181 = vmatprep.subr.mxu0 0.0
      %3182 = vmatpush1.msra.mxu0 0.0
      %3183 = vmatprep.subr.mxu0 0.0
      %3184 = vmatpush1.msra.mxu0 0.0
      %3185 = vmatprep.subr.mxu0 0.0
      %3186 = vmatpush1.msra.mxu0 0.0
      %3187 = vmatprep.mubr.f32.mxu0 0.0
      %3188 = vmatmul.mubr.f32.gmra.mrb[0].mxu0 %v3094
      %v3189 = vpop.f32.mrb[0].mxu0
      %v3190 = vadd.f32 %v3121, %v3189
      %v3191 = vpop.f32.mrb[0].mxu0
      %3192 = vmatprep.mubr.f32.mxu0 0.0
      %3193 = vmatmul.mubr.f32.gmra.mrb[0].mxu0 %v3095
      %v3194 = vpop.f32.mrb[0].mxu0
      %v3195 = vadd.f32 %v3121, %v3194
      %v3196 = vpop.f32.mrb[0].mxu0
      %3197 = vmatprep.mubr.f32.mxu0 0.0
      %3198 = vmatmul.mubr.f32.gmra.mrb[0].mxu0 %v3096
      %v3199 = vpop.f32.mrb[0].mxu0
      %v3200 = vadd.f32 %v3121, %v3199
      %v3201 = vpop.f32.mrb[0].mxu0
      %3202 = vmatprep.mubr.f32.mxu0 0.0
      %3203 = vmatmul.mubr.f32.gmra.mrb[0].mxu0 %v3097
      %v3204 = vpop.f32.mrb[0].mxu0
      %v3205 = vadd.f32 %v3121, %v3204
      %v3206 = vpop.f32.mrb[0].mxu0
      %3207 = vmatprep.mubr.f32.mxu0 0.0
      %3208 = vmatmul.mubr.f32.gmra.mrb[0].mxu0 %v3098
      %v3209 = vpop.f32.mrb[0].mxu0
      %v3210 = vadd.f32 %v3121, %v3209
      %v3211 = vpop.f32.mrb[0].mxu0
      %3212 = vmatprep.mubr.f32.mxu0 0.0
      %3213 = vmatmul.mubr.f32.gmra.mrb[0].mxu0 %v3099
      %v3214 = vpop.f32.mrb[0].mxu0
      %v3215 = vadd.f32 %v3121, %v3214
      %v3216 = vpop.f32.mrb[0].mxu0
      %3217 = vdwg.mxu0
      %v3218 = vadd.f32 %v2817, %v3190
      %v3219 = vadd.f32 %v2818, %v3195
      %v3220 = vadd.f32 %v2819, %v3200
      %v3221 = vadd.f32 %v2820, %v3205
      %v3222 = vadd.f32 %v2821, %v3210
      %v3223 = vadd.f32 %v2822, %v3215
      %s3224 = scalar_lea.vmem %s35, 2
      %v3225 = vld [vmem:[%s3224] sm:$0x3]
      %v3226 = vsel %vm1662, %v3218, 0.0
      %3227 = vadd.xlane.f32.xlu0 %v3226
      %v3228 = vpop.xlane.xlu0 %3227
      %v3229 = vsel %vm1662, %v3219, 0.0
      %3230 = vadd.xlane.f32.xlu0 %v3229
      %v3231 = vpop.xlane.xlu0 %3230
      %v3232 = vsel %vm1662, %v3220, 0.0
      %3233 = vadd.xlane.f32.xlu0 %v3232
      %v3234 = vpop.xlane.xlu0 %3233
      %v3235 = vsel %vm1662, %v3221, 0.0
      %3236 = vadd.xlane.f32.xlu0 %v3235
      %v3237 = vpop.xlane.xlu0 %3236
      %v3238 = vsel %vm1662, %v3222, 0.0
      %3239 = vadd.xlane.f32.xlu0 %v3238
      %v3240 = vpop.xlane.xlu0 %3239
      %v3241 = vsel %vm1662, %v3223, 0.0
      %3242 = vadd.xlane.f32.xlu0 %v3241
      %v3243 = vpop.xlane.xlu0 %3242
      %v3244 = vmul.f32 %v3228, %v1681
      %v3245 = vmul.f32 %v3231, %v1681
      %v3246 = vmul.f32 %v3234, %v1681
      %v3247 = vmul.f32 %v3237, %v1681
      %v3248 = vmul.f32 %v3240, %v1681
      %v3249 = vmul.f32 %v3243, %v1681
      %v3250 = vsub.f32 %v3218, %v3244
      %v3251 = vsub.f32 %v3219, %v3245
      %v3252 = vsub.f32 %v3220, %v3246
      %v3253 = vsub.f32 %v3221, %v3247
      %v3254 = vsub.f32 %v3222, %v3248
      %v3255 = vsub.f32 %v3223, %v3249
      %v3256 = vmul.f32 %v3250, %v3250
      %v3257 = vmul.f32 %v3251, %v3251
      %v3258 = vmul.f32 %v3252, %v3252
      %v3259 = vmul.f32 %v3253, %v3253
      %v3260 = vmul.f32 %v3254, %v3254
      %v3261 = vmul.f32 %v3255, %v3255
      %v3262 = vsel %vm1662, %v3256, 0.0
      %3263 = vadd.xlane.f32.xlu0 %v3262
      %v3264 = vpop.xlane.xlu0 %3263
      %v3265 = vsel %vm1662, %v3257, 0.0
      %3266 = vadd.xlane.f32.xlu0 %v3265
      %v3267 = vpop.xlane.xlu0 %3266
      %v3268 = vsel %vm1662, %v3258, 0.0
      %3269 = vadd.xlane.f32.xlu0 %v3268
      %v3270 = vpop.xlane.xlu0 %3269
      %v3271 = vsel %vm1662, %v3259, 0.0
      %3272 = vadd.xlane.f32.xlu0 %v3271
      %v3273 = vpop.xlane.xlu0 %3272
      %v3274 = vsel %vm1662, %v3260, 0.0
      %3275 = vadd.xlane.f32.xlu0 %v3274
      %v3276 = vpop.xlane.xlu0 %3275
      %v3277 = vsel %vm1662, %v3261, 0.0
      %3278 = vadd.xlane.f32.xlu0 %v3277
      %v3279 = vpop.xlane.xlu0 %3278
      %v3280 = vmul.f32 %v3264, %v1681
      %v3281 = vmul.f32 %v3267, %v1681
      %v3282 = vmul.f32 %v3270, %v1681
      %v3283 = vmul.f32 %v3273, %v1681
      %v3284 = vmul.f32 %v3276, %v1681
      %v3285 = vmul.f32 %v3279, %v1681
      %v3286 = vadd.f32 %v3280, 1e-06
      %v3287 = vadd.f32 %v3281, 1e-06
      %v3288 = vadd.f32 %v3282, 1e-06
      %v3289 = vadd.f32 %v3283, 1e-06
      %v3290 = vadd.f32 %v3284, 1e-06
      %v3291 = vadd.f32 %v3285, 1e-06
      %v3292 = vrsqrt.pop %v3286
      %v3293 = vrsqrt.pop %v3287
      %v3294 = vrsqrt.pop %v3288
      %v3295 = vrsqrt.pop %v3289
      %v3296 = vrsqrt.pop %v3290
      %v3297 = vrsqrt.pop %v3291
      %v3298 = vmul.f32 %v3250, %v3292
      %v3299 = vmul.f32 %v3251, %v3293
      %v3300 = vmul.f32 %v3252, %v3294
      %v3301 = vmul.f32 %v3253, %v3295
      %v3302 = vmul.f32 %v3254, %v3296
      %v3303 = vmul.f32 %v3255, %v3297
      %v3304 = vlaneseq
      %v3305 = vshrl.u32 %v3304, 7
      %v3306 = vsub.s32 0, %v3305
      %v3307 = vrot.slane %v3225, %v3306
      %v3308 = vmul.f32 %v3298, %v3307
      %v3309 = vmul.f32 %v3299, %v3307
      %v3310 = vmul.f32 %v3300, %v3307
      %v3311 = vmul.f32 %v3301, %v3307
      %v3312 = vmul.f32 %v3302, %v3307
      %v3313 = vmul.f32 %v3303, %v3307
      %v3314 = vlaneseq
      %v3315 = vshrl.u32 %v3314, 7
      %v3316 = vsub.s32 1, %v3315
      %v3317 = vrot.slane %v3225, %v3316
      %v3318 = vadd.f32 %v3308, %v3317
      %v3319 = vadd.f32 %v3309, %v3317
      %v3320 = vadd.f32 %v3310, %v3317
      %v3321 = vadd.f32 %v3311, %v3317
      %v3322 = vadd.f32 %v3312, %v3317
      %v3323 = vadd.f32 %v3313, %v3317
      %s3324 = scalar_lea.vmem %s37, 32
      %v3325 = vld [vmem:[%s3324] sm:$0xff]
      %v3326 = vld [vmem:[%s3324 + $0x8] sm:$0xff]
      %v3327 = vld [vmem:[%s3324 + $0x10] sm:$0xff]
      %v3328 = vld [vmem:[%s3324 + $0x18] sm:$0xff]
      %s3329 = scalar_lea.vmem %s39, 1
      %v3330 = vld [vmem:[%s3329] sm:$0x1]
      %v3332 = vlaneseq
      %v3333 = vshrl.u32 %v3332, 7
      %v3334 = vsub.s32 0, %v3333
      %v3335 = vrot.slane %v3330, %v3334
      %v3338 = vsel %vm1662, %v3318, 0
      %v3341 = vsel %vm1662, %v3319, 0
      %v3344 = vsel %vm1662, %v3320, 0
      %v3347 = vsel %vm1662, %v3321, 0
      %v3350 = vsel %vm1662, %v3322, 0
      %v3353 = vsel %vm1662, %v3323, 0
      %3355 = vmatprep.subr.mxu0 0.0
      %3356 = vmatpush1.msra.mxu0 %v3325
      %3357 = vmatprep.subr.mxu0 0.0
      %3358 = vmatpush1.msra.mxu0 %v3326
      %3359 = vmatprep.subr.mxu0 0.0
      %3360 = vmatpush1.msra.mxu0 %v3327
      %3361 = vmatprep.subr.mxu0 0.0
      %3362 = vmatpush1.msra.mxu0 %v3328
      %3363 = vmatprep.subr.mxu0 0.0
      %3364 = vmatpush1.msra.mxu0 0.0
      %3365 = vmatprep.subr.mxu0 0.0
      %3366 = vmatpush1.msra.mxu0 0.0
      %3367 = vmatprep.subr.mxu0 0.0
      %3368 = vmatpush1.msra.mxu0 0.0
      %3369 = vmatprep.subr.mxu0 0.0
      %3370 = vmatpush1.msra.mxu0 0.0
      %3371 = vmatprep.subr.mxu0 0.0
      %3372 = vmatpush1.msra.mxu0 0.0
      %3373 = vmatprep.subr.mxu0 0.0
      %3374 = vmatpush1.msra.mxu0 0.0
      %3375 = vmatprep.subr.mxu0 0.0
      %3376 = vmatpush1.msra.mxu0 0.0
      %3377 = vmatprep.subr.mxu0 0.0
      %3378 = vmatpush1.msra.mxu0 0.0
      %3379 = vmatprep.subr.mxu0 0.0
      %3380 = vmatpush1.msra.mxu0 0.0
      %3381 = vmatprep.subr.mxu0 0.0
      %3382 = vmatpush1.msra.mxu0 0.0
      %3383 = vmatprep.subr.mxu0 0.0
      %3384 = vmatpush1.msra.mxu0 0.0
      %3385 = vmatprep.subr.mxu0 0.0
      %3386 = vmatpush1.msra.mxu0 0.0
      %3387 = vmatprep.subr.mxu0 0.0
      %3388 = vmatpush1.msra.mxu0 0.0
      %3389 = vmatprep.subr.mxu0 0.0
      %3390 = vmatpush1.msra.mxu0 0.0
      %3391 = vmatprep.subr.mxu0 0.0
      %3392 = vmatpush1.msra.mxu0 0.0
      %3393 = vmatprep.subr.mxu0 0.0
      %3394 = vmatpush1.msra.mxu0 0.0
      %3395 = vmatprep.subr.mxu0 0.0
      %3396 = vmatpush1.msra.mxu0 0.0
      %3397 = vmatprep.subr.mxu0 0.0
      %3398 = vmatpush1.msra.mxu0 0.0
      %3399 = vmatprep.subr.mxu0 0.0
      %3400 = vmatpush1.msra.mxu0 0.0
      %3401 = vmatprep.subr.mxu0 0.0
      %3402 = vmatpush1.msra.mxu0 0.0
      %3403 = vmatprep.subr.mxu0 0.0
      %3404 = vmatpush1.msra.mxu0 0.0
      %3405 = vmatprep.subr.mxu0 0.0
      %3406 = vmatpush1.msra.mxu0 0.0
      %3407 = vmatprep.subr.mxu0 0.0
      %3408 = vmatpush1.msra.mxu0 0.0
      %3409 = vmatprep.subr.mxu0 0.0
      %3410 = vmatpush1.msra.mxu0 0.0
      %3411 = vmatprep.subr.mxu0 0.0
      %3412 = vmatpush1.msra.mxu0 0.0
      %3413 = vmatprep.subr.mxu0 0.0
      %3414 = vmatpush1.msra.mxu0 0.0
      %3415 = vmatprep.subr.mxu0 0.0
      %3416 = vmatpush1.msra.mxu0 0.0
      %3417 = vmatprep.subr.mxu0 0.0
      %3418 = vmatpush1.msra.mxu0 0.0
      %3419 = vmatprep.mubr.f32.mxu0 0.0
      %3420 = vmatmul.mubr.f32.gmra.mrb[0].mxu0 %v3338
      %v3421 = vpop.f32.mrb[0].mxu0
      %v3422 = vadd.f32 %v3335, %v3421
      %v3423 = vpop.f32.mrb[0].mxu0
      %3424 = vmatprep.mubr.f32.mxu0 0.0
      %3425 = vmatmul.mubr.f32.gmra.mrb[0].mxu0 %v3341
      %v3426 = vpop.f32.mrb[0].mxu0
      %v3427 = vadd.f32 %v3335, %v3426
      %v3428 = vpop.f32.mrb[0].mxu0
      %3429 = vmatprep.mubr.f32.mxu0 0.0
      %3430 = vmatmul.mubr.f32.gmra.mrb[0].mxu0 %v3344
      %v3431 = vpop.f32.mrb[0].mxu0
      %v3432 = vadd.f32 %v3335, %v3431
      %v3433 = vpop.f32.mrb[0].mxu0
      %3434 = vmatprep.mubr.f32.mxu0 0.0
      %3435 = vmatmul.mubr.f32.gmra.mrb[0].mxu0 %v3347
      %v3436 = vpop.f32.mrb[0].mxu0
      %v3437 = vadd.f32 %v3335, %v3436
      %v3438 = vpop.f32.mrb[0].mxu0
      %3439 = vmatprep.mubr.f32.mxu0 0.0
      %3440 = vmatmul.mubr.f32.gmra.mrb[0].mxu0 %v3350
      %v3441 = vpop.f32.mrb[0].mxu0
      %v3442 = vadd.f32 %v3335, %v3441
      %v3443 = vpop.f32.mrb[0].mxu0
      %3444 = vmatprep.mubr.f32.mxu0 0.0
      %3445 = vmatmul.mubr.f32.gmra.mrb[0].mxu0 %v3353
      %v3446 = vpop.f32.mrb[0].mxu0
      %v3447 = vadd.f32 %v3335, %v3446
      %v3448 = vpop.f32.mrb[0].mxu0
      %3449 = vdwg.mxu0
      %s3450 = scalar_lea.vmem %s41, 32
      %v3451 = vld [vmem:[%s3450] sm:$0xff]
      %v3452 = vld [vmem:[%s3450 + $0x8] sm:$0xff]
      %v3453 = vld [vmem:[%s3450 + $0x10] sm:$0xff]
      %v3454 = vld [vmem:[%s3450 + $0x18] sm:$0xff]
      %s3455 = scalar_lea.vmem %s43, 1
      %v3456 = vld [vmem:[%s3455] sm:$0x1]
      %3463 = vrot.lane.b32.xlu0 %v3422, 96
      %v3464 = vpop.permute.xlu0 %3463
      %3465 = vrot.lane.b32.xlu0 %v3427, 96
      %v3466 = vpop.permute.xlu0 %3465
      %3467 = vrot.lane.b32.xlu0 %v3432, 96
      %v3468 = vpop.permute.xlu0 %3467
      %3469 = vrot.lane.b32.xlu0 %v3437, 96
      %v3470 = vpop.permute.xlu0 %3469
      %3471 = vrot.lane.b32.xlu0 %v3442, 96
      %v3472 = vpop.permute.xlu0 %3471
      %3473 = vrot.lane.b32.xlu0 %v3447, 96
      %v3474 = vpop.permute.xlu0 %3473
      %v3475 = vsel %vm1909, %v3422, 0
      %v3477 = vsel %vm1909, %v3427, 0
      %v3479 = vsel %vm1909, %v3432, 0
      %v3481 = vsel %vm1909, %v3437, 0
      %v3483 = vsel %vm1909, %v3442, 0
      %v3485 = vsel %vm1909, %v3447, 0
      %v3487 = vsel %vm1909, %v3464, 0
      %v3489 = vsel %vm1909, %v3466, 0
      %v3491 = vsel %vm1909, %v3468, 0
      %v3493 = vsel %vm1909, %v3470, 0
      %v3495 = vsel %vm1909, %v3472, 0
      %v3497 = vsel %vm1909, %v3474, 0
      %3499 = vmatprep.subr.mxu0 0.0
      %3500 = vmatpush1.xpose.msra.mxu0 %v3487
      %3501 = vmatprep.subr.mxu0 0.0
      %3502 = vmatpush1.xpose.msra.mxu0 %v3489
      %3503 = vmatprep.subr.mxu0 0.0
      %3504 = vmatpush1.xpose.msra.mxu0 %v3491
      %3505 = vmatprep.subr.mxu0 0.0
      %3506 = vmatpush1.xpose.msra.mxu0 %v3493
      %3507 = vmatprep.subr.mxu0 0.0
      %3508 = vmatpush1.xpose.msra.mxu0 %v3495
      %3509 = vmatprep.subr.mxu0 0.0
      %3510 = vmatpush1.xpose.msra.mxu0 %v3497
      %3511 = vmatprep.subr.mxu0 0.0
      %3512 = vmatpush1.xpose.msra.mxu0 0.0
      %3513 = vmatprep.subr.mxu0 0.0
      %3514 = vmatpush1.xpose.msra.mxu0 0.0
      %3515 = vmatprep.subr.mxu0 0.0
      %3516 = vmatpush1.xpose.msra.mxu0 0.0
      %3517 = vmatprep.subr.mxu0 0.0
      %3518 = vmatpush1.xpose.msra.mxu0 0.0
      %3519 = vmatprep.subr.mxu0 0.0
      %3520 = vmatpush1.xpose.msra.mxu0 0.0
      %3521 = vmatprep.subr.mxu0 0.0
      %3522 = vmatpush1.xpose.msra.mxu0 0.0
      %3523 = vmatprep.subr.mxu0 0.0
      %3524 = vmatpush1.xpose.msra.mxu0 0.0
      %3525 = vmatprep.subr.mxu0 0.0
      %3526 = vmatpush1.xpose.msra.mxu0 0.0
      %3527 = vmatprep.subr.mxu0 0.0
      %3528 = vmatpush1.xpose.msra.mxu0 0.0
      %3529 = vmatprep.subr.mxu0 0.0
      %3530 = vmatpush1.xpose.msra.mxu0 0.0
      %3531 = vmatprep.subr.mxu0 0.0
      %3532 = vmatpush1.xpose.msra.mxu0 0.0
      %3533 = vmatprep.subr.mxu0 0.0
      %3534 = vmatpush1.xpose.msra.mxu0 0.0
      %3535 = vmatprep.subr.mxu0 0.0
      %3536 = vmatpush1.xpose.msra.mxu0 0.0
      %3537 = vmatprep.subr.mxu0 0.0
      %3538 = vmatpush1.xpose.msra.mxu0 0.0
      %3539 = vmatprep.subr.mxu0 0.0
      %3540 = vmatpush1.xpose.msra.mxu0 0.0
      %3541 = vmatprep.subr.mxu0 0.0
      %3542 = vmatpush1.xpose.msra.mxu0 0.0
      %3543 = vmatprep.subr.mxu0 0.0
      %3544 = vmatpush1.xpose.msra.mxu0 0.0
      %3545 = vmatprep.subr.mxu0 0.0
      %3546 = vmatpush1.xpose.msra.mxu0 0.0
      %3547 = vmatprep.subr.mxu0 0.0
      %3548 = vmatpush1.xpose.msra.mxu0 0.0
      %3549 = vmatprep.subr.mxu0 0.0
      %3550 = vmatpush1.xpose.msra.mxu0 0.0
      %3551 = vmatprep.subr.mxu0 0.0
      %3552 = vmatpush1.xpose.msra.mxu0 0.0
      %3553 = vmatprep.subr.mxu0 0.0
      %3554 = vmatpush1.xpose.msra.mxu0 0.0
      %3555 = vmatprep.subr.mxu0 0.0
      %3556 = vmatpush1.xpose.msra.mxu0 0.0
      %3557 = vmatprep.subr.mxu0 0.0
      %3558 = vmatpush1.xpose.msra.mxu0 0.0
      %3559 = vmatprep.subr.mxu0 0.0
      %3560 = vmatpush1.xpose.msra.mxu0 0.0
      %3561 = vmatprep.subr.mxu0 0.0
      %3562 = vmatpush1.xpose.msra.mxu0 0.0
      %3563 = vmatprep.mubr.f32.mxu0 0.0
      %3564 = vmatmul.mubr.f32.gmra.mrb[0].mxu0 %v3475
      %v3565 = vpop.f32.mrb[0].mxu0
      %v3566 = vadd.f32 0.0, %v3565
      %v3567 = vpop.f32.mrb[0].mxu0
      %3568 = vmatprep.mubr.f32.mxu0 0.0
      %3569 = vmatmul.mubr.f32.gmra.mrb[0].mxu0 %v3477
      %v3570 = vpop.f32.mrb[0].mxu0
      %v3571 = vadd.f32 0.0, %v3570
      %v3572 = vpop.f32.mrb[0].mxu0
      %3573 = vmatprep.mubr.f32.mxu0 0.0
      %3574 = vmatmul.mubr.f32.gmra.mrb[0].mxu0 %v3479
      %v3575 = vpop.f32.mrb[0].mxu0
      %v3576 = vadd.f32 0.0, %v3575
      %v3577 = vpop.f32.mrb[0].mxu0
      %3578 = vmatprep.mubr.f32.mxu0 0.0
      %3579 = vmatmul.mubr.f32.gmra.mrb[0].mxu0 %v3481
      %v3580 = vpop.f32.mrb[0].mxu0
      %v3581 = vadd.f32 0.0, %v3580
      %v3582 = vpop.f32.mrb[0].mxu0
      %3583 = vmatprep.mubr.f32.mxu0 0.0
      %3584 = vmatmul.mubr.f32.gmra.mrb[0].mxu0 %v3483
      %v3585 = vpop.f32.mrb[0].mxu0
      %v3586 = vadd.f32 0.0, %v3585
      %v3587 = vpop.f32.mrb[0].mxu0
      %3588 = vmatprep.mubr.f32.mxu0 0.0
      %3589 = vmatmul.mubr.f32.gmra.mrb[0].mxu0 %v3485
      %v3590 = vpop.f32.mrb[0].mxu0
      %v3591 = vadd.f32 0.0, %v3590
      %v3592 = vpop.f32.mrb[0].mxu0
      %3593 = vdwg.mxu0
      %v3594 = vmul.f32 %v3566, 0.25
      %v3595 = vmul.f32 %v3571, 0.25
      %v3596 = vmul.f32 %v3576, 0.25
      %v3597 = vmul.f32 %v3581, 0.25
      %v3598 = vmul.f32 %v3586, 0.25
      %v3599 = vmul.f32 %v3591, 0.25
      %v3600 = vsel %vm2035, %v3594, -inf
      %3601 = vmax.xlane.f32.xlu0 %v3600
      %v3602 = vpop.xlane.xlu0 %3601
      %v3603 = vsel %vm2035, %v3595, -inf
      %3604 = vmax.xlane.f32.xlu0 %v3603
      %v3605 = vpop.xlane.xlu0 %3604
      %v3606 = vsel %vm2035, %v3596, -inf
      %3607 = vmax.xlane.f32.xlu0 %v3606
      %v3608 = vpop.xlane.xlu0 %3607
      %v3609 = vsel %vm2035, %v3597, -inf
      %3610 = vmax.xlane.f32.xlu0 %v3609
      %v3611 = vpop.xlane.xlu0 %3610
      %v3612 = vsel %vm2035, %v3598, -inf
      %3613 = vmax.xlane.f32.xlu0 %v3612
      %v3614 = vpop.xlane.xlu0 %3613
      %v3615 = vsel %vm2035, %v3599, -inf
      %3616 = vmax.xlane.f32.xlu0 %v3615
      %v3617 = vpop.xlane.xlu0 %3616
      %v3618 = vsub.f32 %v3594, %v3602
      %v3619 = vsub.f32 %v3595, %v3605
      %v3620 = vsub.f32 %v3596, %v3608
      %v3621 = vsub.f32 %v3597, %v3611
      %v3622 = vsub.f32 %v3598, %v3614
      %v3623 = vsub.f32 %v3599, %v3617
      %v3624 = vmul.f32 %v3618, 1.442695
      %v3625 = vpow.pop %v3624
      %v3626 = vmul.f32 %v3619, 1.442695
      %v3627 = vpow.pop %v3626
      %v3628 = vmul.f32 %v3620, 1.442695
      %v3629 = vpow.pop %v3628
      %v3630 = vmul.f32 %v3621, 1.442695
      %v3631 = vpow.pop %v3630
      %v3632 = vmul.f32 %v3622, 1.442695
      %v3633 = vpow.pop %v3632
      %v3634 = vmul.f32 %v3623, 1.442695
      %v3635 = vpow.pop %v3634
      %v3636 = vsel %vm2035, %v3625, 0.0
      %3637 = vadd.xlane.f32.xlu0 %v3636
      %v3638 = vpop.xlane.xlu0 %3637
      %v3639 = vsel %vm2035, %v3627, 0.0
      %3640 = vadd.xlane.f32.xlu0 %v3639
      %v3641 = vpop.xlane.xlu0 %3640
      %v3642 = vsel %vm2035, %v3629, 0.0
      %3643 = vadd.xlane.f32.xlu0 %v3642
      %v3644 = vpop.xlane.xlu0 %3643
      %v3645 = vsel %vm2035, %v3631, 0.0
      %3646 = vadd.xlane.f32.xlu0 %v3645
      %v3647 = vpop.xlane.xlu0 %3646
      %v3648 = vsel %vm2035, %v3633, 0.0
      %3649 = vadd.xlane.f32.xlu0 %v3648
      %v3650 = vpop.xlane.xlu0 %3649
      %v3651 = vsel %vm2035, %v3635, 0.0
      %3652 = vadd.xlane.f32.xlu0 %v3651
      %v3653 = vpop.xlane.xlu0 %3652
      %v3654 = vrcp.pop %v3638
      %v3655 = vrcp.pop %v3641
      %v3656 = vrcp.pop %v3644
      %v3657 = vrcp.pop %v3647
      %v3658 = vrcp.pop %v3650
      %v3659 = vrcp.pop %v3653
      %v3660 = vmul.f32 %v3625, %v3654
      %v3661 = vmul.f32 %v3627, %v3655
      %v3662 = vmul.f32 %v3629, %v3656
      %v3663 = vmul.f32 %v3631, %v3657
      %v3664 = vmul.f32 %v3633, %v3658
      %v3665 = vmul.f32 %v3635, %v3659
      %3666 = vrot.lane.b32.xlu0 %v3422, 64
      %v3667 = vpop.permute.xlu0 %3666
      %3668 = vrot.lane.b32.xlu0 %v3427, 64
      %v3669 = vpop.permute.xlu0 %3668
      %3670 = vrot.lane.b32.xlu0 %v3432, 64
      %v3671 = vpop.permute.xlu0 %3670
      %3672 = vrot.lane.b32.xlu0 %v3437, 64
      %v3673 = vpop.permute.xlu0 %3672
      %3674 = vrot.lane.b32.xlu0 %v3442, 64
      %v3675 = vpop.permute.xlu0 %3674
      %3676 = vrot.lane.b32.xlu0 %v3447, 64
      %v3677 = vpop.permute.xlu0 %3676
      %v3685 = vsel %vm2035, %v3660, 0
      %v3688 = vsel %vm2035, %v3661, 0
      %v3691 = vsel %vm2035, %v3662, 0
      %v3694 = vsel %vm2035, %v3663, 0
      %v3697 = vsel %vm2035, %v3664, 0
      %v3700 = vsel %vm2035, %v3665, 0
      %3702 = vmatprep.subr.mxu0 0.0
      %3703 = vmatpush1.msra.mxu0 %v3667
      %3704 = vmatprep.subr.mxu0 0.0
      %3705 = vmatpush1.msra.mxu0 %v3669
      %3706 = vmatprep.subr.mxu0 0.0
      %3707 = vmatpush1.msra.mxu0 %v3671
      %3708 = vmatprep.subr.mxu0 0.0
      %3709 = vmatpush1.msra.mxu0 %v3673
      %3710 = vmatprep.subr.mxu0 0.0
      %3711 = vmatpush1.msra.mxu0 %v3675
      %3712 = vmatprep.subr.mxu0 0.0
      %3713 = vmatpush1.msra.mxu0 %v3677
      %3714 = vmatprep.subr.mxu0 0.0
      %3715 = vmatpush1.msra.mxu0 0.0
      %3716 = vmatprep.subr.mxu0 0.0
      %3717 = vmatpush1.msra.mxu0 0.0
      %3718 = vmatprep.subr.mxu0 0.0
      %3719 = vmatpush1.msra.mxu0 0.0
      %3720 = vmatprep.subr.mxu0 0.0
      %3721 = vmatpush1.msra.mxu0 0.0
      %3722 = vmatprep.subr.mxu0 0.0
      %3723 = vmatpush1.msra.mxu0 0.0
      %3724 = vmatprep.subr.mxu0 0.0
      %3725 = vmatpush1.msra.mxu0 0.0
      %3726 = vmatprep.subr.mxu0 0.0
      %3727 = vmatpush1.msra.mxu0 0.0
      %3728 = vmatprep.subr.mxu0 0.0
      %3729 = vmatpush1.msra.mxu0 0.0
      %3730 = vmatprep.subr.mxu0 0.0
      %3731 = vmatpush1.msra.mxu0 0.0
      %3732 = vmatprep.subr.mxu0 0.0
      %3733 = vmatpush1.msra.mxu0 0.0
      %3734 = vmatprep.subr.mxu0 0.0
      %3735 = vmatpush1.msra.mxu0 0.0
      %3736 = vmatprep.subr.mxu0 0.0
      %3737 = vmatpush1.msra.mxu0 0.0
      %3738 = vmatprep.subr.mxu0 0.0
      %3739 = vmatpush1.msra.mxu0 0.0
      %3740 = vmatprep.subr.mxu0 0.0
      %3741 = vmatpush1.msra.mxu0 0.0
      %3742 = vmatprep.subr.mxu0 0.0
      %3743 = vmatpush1.msra.mxu0 0.0
      %3744 = vmatprep.subr.mxu0 0.0
      %3745 = vmatpush1.msra.mxu0 0.0
      %3746 = vmatprep.subr.mxu0 0.0
      %3747 = vmatpush1.msra.mxu0 0.0
      %3748 = vmatprep.subr.mxu0 0.0
      %3749 = vmatpush1.msra.mxu0 0.0
      %3750 = vmatprep.subr.mxu0 0.0
      %3751 = vmatpush1.msra.mxu0 0.0
      %3752 = vmatprep.subr.mxu0 0.0
      %3753 = vmatpush1.msra.mxu0 0.0
      %3754 = vmatprep.subr.mxu0 0.0
      %3755 = vmatpush1.msra.mxu0 0.0
      %3756 = vmatprep.subr.mxu0 0.0
      %3757 = vmatpush1.msra.mxu0 0.0
      %3758 = vmatprep.subr.mxu0 0.0
      %3759 = vmatpush1.msra.mxu0 0.0
      %3760 = vmatprep.subr.mxu0 0.0
      %3761 = vmatpush1.msra.mxu0 0.0
      %3762 = vmatprep.subr.mxu0 0.0
      %3763 = vmatpush1.msra.mxu0 0.0
      %3764 = vmatprep.subr.mxu0 0.0
      %3765 = vmatpush1.msra.mxu0 0.0
      %3766 = vmatprep.mubr.f32.mxu0 0.0
      %3767 = vmatmul.mubr.f32.gmra.mrb[0].mxu0 %v3685
      %v3768 = vpop.f32.mrb[0].mxu0
      %v3769 = vadd.f32 0.0, %v3768
      %v3770 = vpop.f32.mrb[0].mxu0
      %3771 = vmatprep.mubr.f32.mxu0 0.0
      %3772 = vmatmul.mubr.f32.gmra.mrb[0].mxu0 %v3688
      %v3773 = vpop.f32.mrb[0].mxu0
      %v3774 = vadd.f32 0.0, %v3773
      %v3775 = vpop.f32.mrb[0].mxu0
      %3776 = vmatprep.mubr.f32.mxu0 0.0
      %3777 = vmatmul.mubr.f32.gmra.mrb[0].mxu0 %v3691
      %v3778 = vpop.f32.mrb[0].mxu0
      %v3779 = vadd.f32 0.0, %v3778
      %v3780 = vpop.f32.mrb[0].mxu0
      %3781 = vmatprep.mubr.f32.mxu0 0.0
      %3782 = vmatmul.mubr.f32.gmra.mrb[0].mxu0 %v3694
      %v3783 = vpop.f32.mrb[0].mxu0
      %v3784 = vadd.f32 0.0, %v3783
      %v3785 = vpop.f32.mrb[0].mxu0
      %3786 = vmatprep.mubr.f32.mxu0 0.0
      %3787 = vmatmul.mubr.f32.gmra.mrb[0].mxu0 %v3697
      %v3788 = vpop.f32.mrb[0].mxu0
      %v3789 = vadd.f32 0.0, %v3788
      %v3790 = vpop.f32.mrb[0].mxu0
      %3791 = vmatprep.mubr.f32.mxu0 0.0
      %3792 = vmatmul.mubr.f32.gmra.mrb[0].mxu0 %v3700
      %v3793 = vpop.f32.mrb[0].mxu0
      %v3794 = vadd.f32 0.0, %v3793
      %v3795 = vpop.f32.mrb[0].mxu0
      %3796 = vdwg.mxu0
      %3797 = vrot.lane.b32.xlu0 %v3422, 112
      %v3798 = vpop.permute.xlu0 %3797
      %3799 = vrot.lane.b32.xlu0 %v3427, 112
      %v3800 = vpop.permute.xlu0 %3799
      %3801 = vrot.lane.b32.xlu0 %v3432, 112
      %v3802 = vpop.permute.xlu0 %3801
      %3803 = vrot.lane.b32.xlu0 %v3437, 112
      %v3804 = vpop.permute.xlu0 %3803
      %3805 = vrot.lane.b32.xlu0 %v3442, 112
      %v3806 = vpop.permute.xlu0 %3805
      %3807 = vrot.lane.b32.xlu0 %v3447, 112
      %v3808 = vpop.permute.xlu0 %3807
      %3809 = vrot.lane.b32.xlu0 %v3422, 80
      %v3810 = vpop.permute.xlu0 %3809
      %3811 = vrot.lane.b32.xlu0 %v3427, 80
      %v3812 = vpop.permute.xlu0 %3811
      %3813 = vrot.lane.b32.xlu0 %v3432, 80
      %v3814 = vpop.permute.xlu0 %3813
      %3815 = vrot.lane.b32.xlu0 %v3437, 80
      %v3816 = vpop.permute.xlu0 %3815
      %3817 = vrot.lane.b32.xlu0 %v3442, 80
      %v3818 = vpop.permute.xlu0 %3817
      %3819 = vrot.lane.b32.xlu0 %v3447, 80
      %v3820 = vpop.permute.xlu0 %3819
      %v3821 = vsel %vm1909, %v3798, 0
      %v3823 = vsel %vm1909, %v3800, 0
      %v3825 = vsel %vm1909, %v3802, 0
      %v3827 = vsel %vm1909, %v3804, 0
      %v3829 = vsel %vm1909, %v3806, 0
      %v3831 = vsel %vm1909, %v3808, 0
      %v3833 = vsel %vm1909, %v3810, 0
      %v3835 = vsel %vm1909, %v3812, 0
      %v3837 = vsel %vm1909, %v3814, 0
      %v3839 = vsel %vm1909, %v3816, 0
      %v3841 = vsel %vm1909, %v3818, 0
      %v3843 = vsel %vm1909, %v3820, 0
      %3845 = vmatprep.subr.mxu0 0.0
      %3846 = vmatpush1.xpose.msra.mxu0 %v3833
      %3847 = vmatprep.subr.mxu0 0.0
      %3848 = vmatpush1.xpose.msra.mxu0 %v3835
      %3849 = vmatprep.subr.mxu0 0.0
      %3850 = vmatpush1.xpose.msra.mxu0 %v3837
      %3851 = vmatprep.subr.mxu0 0.0
      %3852 = vmatpush1.xpose.msra.mxu0 %v3839
      %3853 = vmatprep.subr.mxu0 0.0
      %3854 = vmatpush1.xpose.msra.mxu0 %v3841
      %3855 = vmatprep.subr.mxu0 0.0
      %3856 = vmatpush1.xpose.msra.mxu0 %v3843
      %3857 = vmatprep.subr.mxu0 0.0
      %3858 = vmatpush1.xpose.msra.mxu0 0.0
      %3859 = vmatprep.subr.mxu0 0.0
      %3860 = vmatpush1.xpose.msra.mxu0 0.0
      %3861 = vmatprep.subr.mxu0 0.0
      %3862 = vmatpush1.xpose.msra.mxu0 0.0
      %3863 = vmatprep.subr.mxu0 0.0
      %3864 = vmatpush1.xpose.msra.mxu0 0.0
      %3865 = vmatprep.subr.mxu0 0.0
      %3866 = vmatpush1.xpose.msra.mxu0 0.0
      %3867 = vmatprep.subr.mxu0 0.0
      %3868 = vmatpush1.xpose.msra.mxu0 0.0
      %3869 = vmatprep.subr.mxu0 0.0
      %3870 = vmatpush1.xpose.msra.mxu0 0.0
      %3871 = vmatprep.subr.mxu0 0.0
      %3872 = vmatpush1.xpose.msra.mxu0 0.0
      %3873 = vmatprep.subr.mxu0 0.0
      %3874 = vmatpush1.xpose.msra.mxu0 0.0
      %3875 = vmatprep.subr.mxu0 0.0
      %3876 = vmatpush1.xpose.msra.mxu0 0.0
      %3877 = vmatprep.subr.mxu0 0.0
      %3878 = vmatpush1.xpose.msra.mxu0 0.0
      %3879 = vmatprep.subr.mxu0 0.0
      %3880 = vmatpush1.xpose.msra.mxu0 0.0
      %3881 = vmatprep.subr.mxu0 0.0
      %3882 = vmatpush1.xpose.msra.mxu0 0.0
      %3883 = vmatprep.subr.mxu0 0.0
      %3884 = vmatpush1.xpose.msra.mxu0 0.0
      %3885 = vmatprep.subr.mxu0 0.0
      %3886 = vmatpush1.xpose.msra.mxu0 0.0
      %3887 = vmatprep.subr.mxu0 0.0
      %3888 = vmatpush1.xpose.msra.mxu0 0.0
      %3889 = vmatprep.subr.mxu0 0.0
      %3890 = vmatpush1.xpose.msra.mxu0 0.0
      %3891 = vmatprep.subr.mxu0 0.0
      %3892 = vmatpush1.xpose.msra.mxu0 0.0
      %3893 = vmatprep.subr.mxu0 0.0
      %3894 = vmatpush1.xpose.msra.mxu0 0.0
      %3895 = vmatprep.subr.mxu0 0.0
      %3896 = vmatpush1.xpose.msra.mxu0 0.0
      %3897 = vmatprep.subr.mxu0 0.0
      %3898 = vmatpush1.xpose.msra.mxu0 0.0
      %3899 = vmatprep.subr.mxu0 0.0
      %3900 = vmatpush1.xpose.msra.mxu0 0.0
      %3901 = vmatprep.subr.mxu0 0.0
      %3902 = vmatpush1.xpose.msra.mxu0 0.0
      %3903 = vmatprep.subr.mxu0 0.0
      %3904 = vmatpush1.xpose.msra.mxu0 0.0
      %3905 = vmatprep.subr.mxu0 0.0
      %3906 = vmatpush1.xpose.msra.mxu0 0.0
      %3907 = vmatprep.subr.mxu0 0.0
      %3908 = vmatpush1.xpose.msra.mxu0 0.0
      %3909 = vmatprep.mubr.f32.mxu0 0.0
      %3910 = vmatmul.mubr.f32.gmra.mrb[0].mxu0 %v3821
      %v3911 = vpop.f32.mrb[0].mxu0
      %v3912 = vadd.f32 0.0, %v3911
      %v3913 = vpop.f32.mrb[0].mxu0
      %3914 = vmatprep.mubr.f32.mxu0 0.0
      %3915 = vmatmul.mubr.f32.gmra.mrb[0].mxu0 %v3823
      %v3916 = vpop.f32.mrb[0].mxu0
      %v3917 = vadd.f32 0.0, %v3916
      %v3918 = vpop.f32.mrb[0].mxu0
      %3919 = vmatprep.mubr.f32.mxu0 0.0
      %3920 = vmatmul.mubr.f32.gmra.mrb[0].mxu0 %v3825
      %v3921 = vpop.f32.mrb[0].mxu0
      %v3922 = vadd.f32 0.0, %v3921
      %v3923 = vpop.f32.mrb[0].mxu0
      %3924 = vmatprep.mubr.f32.mxu0 0.0
      %3925 = vmatmul.mubr.f32.gmra.mrb[0].mxu0 %v3827
      %v3926 = vpop.f32.mrb[0].mxu0
      %v3927 = vadd.f32 0.0, %v3926
      %v3928 = vpop.f32.mrb[0].mxu0
      %3929 = vmatprep.mubr.f32.mxu0 0.0
      %3930 = vmatmul.mubr.f32.gmra.mrb[0].mxu0 %v3829
      %v3931 = vpop.f32.mrb[0].mxu0
      %v3932 = vadd.f32 0.0, %v3931
      %v3933 = vpop.f32.mrb[0].mxu0
      %3934 = vmatprep.mubr.f32.mxu0 0.0
      %3935 = vmatmul.mubr.f32.gmra.mrb[0].mxu0 %v3831
      %v3936 = vpop.f32.mrb[0].mxu0
      %v3937 = vadd.f32 0.0, %v3936
      %v3938 = vpop.f32.mrb[0].mxu0
      %3939 = vdwg.mxu0
      %v3940 = vmul.f32 %v3912, 0.25
      %v3941 = vmul.f32 %v3917, 0.25
      %v3942 = vmul.f32 %v3922, 0.25
      %v3943 = vmul.f32 %v3927, 0.25
      %v3944 = vmul.f32 %v3932, 0.25
      %v3945 = vmul.f32 %v3937, 0.25
      %v3946 = vsel %vm2035, %v3940, -inf
      %3947 = vmax.xlane.f32.xlu0 %v3946
      %v3948 = vpop.xlane.xlu0 %3947
      %v3949 = vsel %vm2035, %v3941, -inf
      %3950 = vmax.xlane.f32.xlu0 %v3949
      %v3951 = vpop.xlane.xlu0 %3950
      %v3952 = vsel %vm2035, %v3942, -inf
      %3953 = vmax.xlane.f32.xlu0 %v3952
      %v3954 = vpop.xlane.xlu0 %3953
      %v3955 = vsel %vm2035, %v3943, -inf
      %3956 = vmax.xlane.f32.xlu0 %v3955
      %v3957 = vpop.xlane.xlu0 %3956
      %v3958 = vsel %vm2035, %v3944, -inf
      %3959 = vmax.xlane.f32.xlu0 %v3958
      %v3960 = vpop.xlane.xlu0 %3959
      %v3961 = vsel %vm2035, %v3945, -inf
      %3962 = vmax.xlane.f32.xlu0 %v3961
      %v3963 = vpop.xlane.xlu0 %3962
      %v3964 = vsub.f32 %v3940, %v3948
      %v3965 = vsub.f32 %v3941, %v3951
      %v3966 = vsub.f32 %v3942, %v3954
      %v3967 = vsub.f32 %v3943, %v3957
      %v3968 = vsub.f32 %v3944, %v3960
      %v3969 = vsub.f32 %v3945, %v3963
      %v3970 = vmul.f32 %v3964, 1.442695
      %v3971 = vpow.pop %v3970
      %v3972 = vmul.f32 %v3965, 1.442695
      %v3973 = vpow.pop %v3972
      %v3974 = vmul.f32 %v3966, 1.442695
      %v3975 = vpow.pop %v3974
      %v3976 = vmul.f32 %v3967, 1.442695
      %v3977 = vpow.pop %v3976
      %v3978 = vmul.f32 %v3968, 1.442695
      %v3979 = vpow.pop %v3978
      %v3980 = vmul.f32 %v3969, 1.442695
      %v3981 = vpow.pop %v3980
      %v3982 = vsel %vm2035, %v3971, 0.0
      %3983 = vadd.xlane.f32.xlu0 %v3982
      %v3984 = vpop.xlane.xlu0 %3983
      %v3985 = vsel %vm2035, %v3973, 0.0
      %3986 = vadd.xlane.f32.xlu0 %v3985
      %v3987 = vpop.xlane.xlu0 %3986
      %v3988 = vsel %vm2035, %v3975, 0.0
      %3989 = vadd.xlane.f32.xlu0 %v3988
      %v3990 = vpop.xlane.xlu0 %3989
      %v3991 = vsel %vm2035, %v3977, 0.0
      %3992 = vadd.xlane.f32.xlu0 %v3991
      %v3993 = vpop.xlane.xlu0 %3992
      %v3994 = vsel %vm2035, %v3979, 0.0
      %3995 = vadd.xlane.f32.xlu0 %v3994
      %v3996 = vpop.xlane.xlu0 %3995
      %v3997 = vsel %vm2035, %v3981, 0.0
      %3998 = vadd.xlane.f32.xlu0 %v3997
      %v3999 = vpop.xlane.xlu0 %3998
      %v4000 = vrcp.pop %v3984
      %v4001 = vrcp.pop %v3987
      %v4002 = vrcp.pop %v3990
      %v4003 = vrcp.pop %v3993
      %v4004 = vrcp.pop %v3996
      %v4005 = vrcp.pop %v3999
      %v4006 = vmul.f32 %v3971, %v4000
      %v4007 = vmul.f32 %v3973, %v4001
      %v4008 = vmul.f32 %v3975, %v4002
      %v4009 = vmul.f32 %v3977, %v4003
      %v4010 = vmul.f32 %v3979, %v4004
      %v4011 = vmul.f32 %v3981, %v4005
      %4012 = vrot.lane.b32.xlu0 %v3422, 48
      %v4013 = vpop.permute.xlu0 %4012
      %4014 = vrot.lane.b32.xlu0 %v3427, 48
      %v4015 = vpop.permute.xlu0 %4014
      %4016 = vrot.lane.b32.xlu0 %v3432, 48
      %v4017 = vpop.permute.xlu0 %4016
      %4018 = vrot.lane.b32.xlu0 %v3437, 48
      %v4019 = vpop.permute.xlu0 %4018
      %4020 = vrot.lane.b32.xlu0 %v3442, 48
      %v4021 = vpop.permute.xlu0 %4020
      %4022 = vrot.lane.b32.xlu0 %v3447, 48
      %v4023 = vpop.permute.xlu0 %4022
      %v4031 = vsel %vm2035, %v4006, 0
      %v4034 = vsel %vm2035, %v4007, 0
      %v4037 = vsel %vm2035, %v4008, 0
      %v4040 = vsel %vm2035, %v4009, 0
      %v4043 = vsel %vm2035, %v4010, 0
      %v4046 = vsel %vm2035, %v4011, 0
      %4048 = vmatprep.subr.mxu0 0.0
      %4049 = vmatpush1.msra.mxu0 %v4013
      %4050 = vmatprep.subr.mxu0 0.0
      %4051 = vmatpush1.msra.mxu0 %v4015
      %4052 = vmatprep.subr.mxu0 0.0
      %4053 = vmatpush1.msra.mxu0 %v4017
      %4054 = vmatprep.subr.mxu0 0.0
      %4055 = vmatpush1.msra.mxu0 %v4019
      %4056 = vmatprep.subr.mxu0 0.0
      %4057 = vmatpush1.msra.mxu0 %v4021
      %4058 = vmatprep.subr.mxu0 0.0
      %4059 = vmatpush1.msra.mxu0 %v4023
      %4060 = vmatprep.subr.mxu0 0.0
      %4061 = vmatpush1.msra.mxu0 0.0
      %4062 = vmatprep.subr.mxu0 0.0
      %4063 = vmatpush1.msra.mxu0 0.0
      %4064 = vmatprep.subr.mxu0 0.0
      %4065 = vmatpush1.msra.mxu0 0.0
      %4066 = vmatprep.subr.mxu0 0.0
      %4067 = vmatpush1.msra.mxu0 0.0
      %4068 = vmatprep.subr.mxu0 0.0
      %4069 = vmatpush1.msra.mxu0 0.0
      %4070 = vmatprep.subr.mxu0 0.0
      %4071 = vmatpush1.msra.mxu0 0.0
      %4072 = vmatprep.subr.mxu0 0.0
      %4073 = vmatpush1.msra.mxu0 0.0
      %4074 = vmatprep.subr.mxu0 0.0
      %4075 = vmatpush1.msra.mxu0 0.0
      %4076 = vmatprep.subr.mxu0 0.0
      %4077 = vmatpush1.msra.mxu0 0.0
      %4078 = vmatprep.subr.mxu0 0.0
      %4079 = vmatpush1.msra.mxu0 0.0
      %4080 = vmatprep.subr.mxu0 0.0
      %4081 = vmatpush1.msra.mxu0 0.0
      %4082 = vmatprep.subr.mxu0 0.0
      %4083 = vmatpush1.msra.mxu0 0.0
      %4084 = vmatprep.subr.mxu0 0.0
      %4085 = vmatpush1.msra.mxu0 0.0
      %4086 = vmatprep.subr.mxu0 0.0
      %4087 = vmatpush1.msra.mxu0 0.0
      %4088 = vmatprep.subr.mxu0 0.0
      %4089 = vmatpush1.msra.mxu0 0.0
      %4090 = vmatprep.subr.mxu0 0.0
      %4091 = vmatpush1.msra.mxu0 0.0
      %4092 = vmatprep.subr.mxu0 0.0
      %4093 = vmatpush1.msra.mxu0 0.0
      %4094 = vmatprep.subr.mxu0 0.0
      %4095 = vmatpush1.msra.mxu0 0.0
      %4096 = vmatprep.subr.mxu0 0.0
      %4097 = vmatpush1.msra.mxu0 0.0
      %4098 = vmatprep.subr.mxu0 0.0
      %4099 = vmatpush1.msra.mxu0 0.0
      %4100 = vmatprep.subr.mxu0 0.0
      %4101 = vmatpush1.msra.mxu0 0.0
      %4102 = vmatprep.subr.mxu0 0.0
      %4103 = vmatpush1.msra.mxu0 0.0
      %4104 = vmatprep.subr.mxu0 0.0
      %4105 = vmatpush1.msra.mxu0 0.0
      %4106 = vmatprep.subr.mxu0 0.0
      %4107 = vmatpush1.msra.mxu0 0.0
      %4108 = vmatprep.subr.mxu0 0.0
      %4109 = vmatpush1.msra.mxu0 0.0
      %4110 = vmatprep.subr.mxu0 0.0
      %4111 = vmatpush1.msra.mxu0 0.0
      %4112 = vmatprep.mubr.f32.mxu0 0.0
      %4113 = vmatmul.mubr.f32.gmra.mrb[0].mxu0 %v4031
      %v4114 = vpop.f32.mrb[0].mxu0
      %v4115 = vadd.f32 0.0, %v4114
      %v4116 = vpop.f32.mrb[0].mxu0
      %4117 = vmatprep.mubr.f32.mxu0 0.0
      %4118 = vmatmul.mubr.f32.gmra.mrb[0].mxu0 %v4034
      %v4119 = vpop.f32.mrb[0].mxu0
      %v4120 = vadd.f32 0.0, %v4119
      %v4121 = vpop.f32.mrb[0].mxu0
      %4122 = vmatprep.mubr.f32.mxu0 0.0
      %4123 = vmatmul.mubr.f32.gmra.mrb[0].mxu0 %v4037
      %v4124 = vpop.f32.mrb[0].mxu0
      %v4125 = vadd.f32 0.0, %v4124
      %v4126 = vpop.f32.mrb[0].mxu0
      %4127 = vmatprep.mubr.f32.mxu0 0.0
      %4128 = vmatmul.mubr.f32.gmra.mrb[0].mxu0 %v4040
      %v4129 = vpop.f32.mrb[0].mxu0
      %v4130 = vadd.f32 0.0, %v4129
      %v4131 = vpop.f32.mrb[0].mxu0
      %4132 = vmatprep.mubr.f32.mxu0 0.0
      %4133 = vmatmul.mubr.f32.gmra.mrb[0].mxu0 %v4043
      %v4134 = vpop.f32.mrb[0].mxu0
      %v4135 = vadd.f32 0.0, %v4134
      %v4136 = vpop.f32.mrb[0].mxu0
      %4137 = vmatprep.mubr.f32.mxu0 0.0
      %4138 = vmatmul.mubr.f32.gmra.mrb[0].mxu0 %v4046
      %v4139 = vpop.f32.mrb[0].mxu0
      %v4140 = vadd.f32 0.0, %v4139
      %v4141 = vpop.f32.mrb[0].mxu0
      %4142 = vdwg.mxu0
      %v4144 = vsel %vm1909, %v4115, 0
      %v4147 = vsel %vm1909, %v4120, 0
      %v4150 = vsel %vm1909, %v4125, 0
      %v4153 = vsel %vm1909, %v4130, 0
      %v4156 = vsel %vm1909, %v4135, 0
      %v4159 = vsel %vm1909, %v4140, 0
      %4161 = vmatprep.subr.mxu0 0.0
      %4162 = vmatpush1.msra.mxu0 %v3453
      %4163 = vmatprep.subr.mxu0 0.0
      %4164 = vmatpush1.msra.mxu0 %v3454
      %4165 = vmatprep.subr.mxu0 0.0
      %4166 = vmatpush1.msra.mxu0 0.0
      %4167 = vmatprep.subr.mxu0 0.0
      %4168 = vmatpush1.msra.mxu0 0.0
      %4169 = vmatprep.subr.mxu0 0.0
      %4170 = vmatpush1.msra.mxu0 0.0
      %4171 = vmatprep.subr.mxu0 0.0
      %4172 = vmatpush1.msra.mxu0 0.0
      %4173 = vmatprep.subr.mxu0 0.0
      %4174 = vmatpush1.msra.mxu0 0.0
      %4175 = vmatprep.subr.mxu0 0.0
      %4176 = vmatpush1.msra.mxu0 0.0
      %4177 = vmatprep.subr.mxu0 0.0
      %4178 = vmatpush1.msra.mxu0 0.0
      %4179 = vmatprep.subr.mxu0 0.0
      %4180 = vmatpush1.msra.mxu0 0.0
      %4181 = vmatprep.subr.mxu0 0.0
      %4182 = vmatpush1.msra.mxu0 0.0
      %4183 = vmatprep.subr.mxu0 0.0
      %4184 = vmatpush1.msra.mxu0 0.0
      %4185 = vmatprep.subr.mxu0 0.0
      %4186 = vmatpush1.msra.mxu0 0.0
      %4187 = vmatprep.subr.mxu0 0.0
      %4188 = vmatpush1.msra.mxu0 0.0
      %4189 = vmatprep.subr.mxu0 0.0
      %4190 = vmatpush1.msra.mxu0 0.0
      %4191 = vmatprep.subr.mxu0 0.0
      %4192 = vmatpush1.msra.mxu0 0.0
      %4193 = vmatprep.subr.mxu0 0.0
      %4194 = vmatpush1.msra.mxu0 0.0
      %4195 = vmatprep.subr.mxu0 0.0
      %4196 = vmatpush1.msra.mxu0 0.0
      %4197 = vmatprep.subr.mxu0 0.0
      %4198 = vmatpush1.msra.mxu0 0.0
      %4199 = vmatprep.subr.mxu0 0.0
      %4200 = vmatpush1.msra.mxu0 0.0
      %4201 = vmatprep.subr.mxu0 0.0
      %4202 = vmatpush1.msra.mxu0 0.0
      %4203 = vmatprep.subr.mxu0 0.0
      %4204 = vmatpush1.msra.mxu0 0.0
      %4205 = vmatprep.subr.mxu0 0.0
      %4206 = vmatpush1.msra.mxu0 0.0
      %4207 = vmatprep.subr.mxu0 0.0
      %4208 = vmatpush1.msra.mxu0 0.0
      %4209 = vmatprep.subr.mxu0 0.0
      %4210 = vmatpush1.msra.mxu0 0.0
      %4211 = vmatprep.subr.mxu0 0.0
      %4212 = vmatpush1.msra.mxu0 0.0
      %4213 = vmatprep.subr.mxu0 0.0
      %4214 = vmatpush1.msra.mxu0 0.0
      %4215 = vmatprep.subr.mxu0 0.0
      %4216 = vmatpush1.msra.mxu0 0.0
      %4217 = vmatprep.subr.mxu0 0.0
      %4218 = vmatpush1.msra.mxu0 0.0
      %4219 = vmatprep.subr.mxu0 0.0
      %4220 = vmatpush1.msra.mxu0 0.0
      %4221 = vmatprep.subr.mxu0 0.0
      %4222 = vmatpush1.msra.mxu0 0.0
      %4223 = vmatprep.subr.mxu0 0.0
      %4224 = vmatpush1.msra.mxu0 0.0
      %4225 = vmatprep.mubr.f32.mxu0 0.0
      %4226 = vmatmul.mubr.f32.gmra.mrb[0].mxu0 %v4144
      %v4227 = vpop.f32.mrb[0].mxu0
      %v4228 = vadd.f32 0.0, %v4227
      %v4229 = vpop.f32.mrb[0].mxu0
      %4230 = vmatprep.mubr.f32.mxu0 0.0
      %4231 = vmatmul.mubr.f32.gmra.mrb[0].mxu0 %v4147
      %v4232 = vpop.f32.mrb[0].mxu0
      %v4233 = vadd.f32 0.0, %v4232
      %v4234 = vpop.f32.mrb[0].mxu0
      %4235 = vmatprep.mubr.f32.mxu0 0.0
      %4236 = vmatmul.mubr.f32.gmra.mrb[0].mxu0 %v4150
      %v4237 = vpop.f32.mrb[0].mxu0
      %v4238 = vadd.f32 0.0, %v4237
      %v4239 = vpop.f32.mrb[0].mxu0
      %4240 = vmatprep.mubr.f32.mxu0 0.0
      %4241 = vmatmul.mubr.f32.gmra.mrb[0].mxu0 %v4153
      %v4242 = vpop.f32.mrb[0].mxu0
      %v4243 = vadd.f32 0.0, %v4242
      %v4244 = vpop.f32.mrb[0].mxu0
      %4245 = vmatprep.mubr.f32.mxu0 0.0
      %4246 = vmatmul.mubr.f32.gmra.mrb[0].mxu0 %v4156
      %v4247 = vpop.f32.mrb[0].mxu0
      %v4248 = vadd.f32 0.0, %v4247
      %v4249 = vpop.f32.mrb[0].mxu0
      %4250 = vmatprep.mubr.f32.mxu0 0.0
      %4251 = vmatmul.mubr.f32.gmra.mrb[0].mxu0 %v4159
      %v4252 = vpop.f32.mrb[0].mxu0
      %v4253 = vadd.f32 0.0, %v4252
      %v4254 = vpop.f32.mrb[0].mxu0
      %4255 = vdwg.mxu0
      %v4257 = vsel %vm1909, %v3769, 0
      %v4260 = vsel %vm1909, %v3774, 0
      %v4263 = vsel %vm1909, %v3779, 0
      %v4266 = vsel %vm1909, %v3784, 0
      %v4269 = vsel %vm1909, %v3789, 0
      %v4272 = vsel %vm1909, %v3794, 0
      %4274 = vmatprep.subr.mxu0 0.0
      %4275 = vmatpush1.msra.mxu0 %v3451
      %4276 = vmatprep.subr.mxu0 0.0
      %4277 = vmatpush1.msra.mxu0 %v3452
      %4278 = vmatprep.subr.mxu0 0.0
      %4279 = vmatpush1.msra.mxu0 0.0
      %4280 = vmatprep.subr.mxu0 0.0
      %4281 = vmatpush1.msra.mxu0 0.0
      %4282 = vmatprep.subr.mxu0 0.0
      %4283 = vmatpush1.msra.mxu0 0.0
      %4284 = vmatprep.subr.mxu0 0.0
      %4285 = vmatpush1.msra.mxu0 0.0
      %4286 = vmatprep.subr.mxu0 0.0
      %4287 = vmatpush1.msra.mxu0 0.0
      %4288 = vmatprep.subr.mxu0 0.0
      %4289 = vmatpush1.msra.mxu0 0.0
      %4290 = vmatprep.subr.mxu0 0.0
      %4291 = vmatpush1.msra.mxu0 0.0
      %4292 = vmatprep.subr.mxu0 0.0
      %4293 = vmatpush1.msra.mxu0 0.0
      %4294 = vmatprep.subr.mxu0 0.0
      %4295 = vmatpush1.msra.mxu0 0.0
      %4296 = vmatprep.subr.mxu0 0.0
      %4297 = vmatpush1.msra.mxu0 0.0
      %4298 = vmatprep.subr.mxu0 0.0
      %4299 = vmatpush1.msra.mxu0 0.0
      %4300 = vmatprep.subr.mxu0 0.0
      %4301 = vmatpush1.msra.mxu0 0.0
      %4302 = vmatprep.subr.mxu0 0.0
      %4303 = vmatpush1.msra.mxu0 0.0
      %4304 = vmatprep.subr.mxu0 0.0
      %4305 = vmatpush1.msra.mxu0 0.0
      %4306 = vmatprep.subr.mxu0 0.0
      %4307 = vmatpush1.msra.mxu0 0.0
      %4308 = vmatprep.subr.mxu0 0.0
      %4309 = vmatpush1.msra.mxu0 0.0
      %4310 = vmatprep.subr.mxu0 0.0
      %4311 = vmatpush1.msra.mxu0 0.0
      %4312 = vmatprep.subr.mxu0 0.0
      %4313 = vmatpush1.msra.mxu0 0.0
      %4314 = vmatprep.subr.mxu0 0.0
      %4315 = vmatpush1.msra.mxu0 0.0
      %4316 = vmatprep.subr.mxu0 0.0
      %4317 = vmatpush1.msra.mxu0 0.0
      %4318 = vmatprep.subr.mxu0 0.0
      %4319 = vmatpush1.msra.mxu0 0.0
      %4320 = vmatprep.subr.mxu0 0.0
      %4321 = vmatpush1.msra.mxu0 0.0
      %4322 = vmatprep.subr.mxu0 0.0
      %4323 = vmatpush1.msra.mxu0 0.0
      %4324 = vmatprep.subr.mxu0 0.0
      %4325 = vmatpush1.msra.mxu0 0.0
      %4326 = vmatprep.subr.mxu0 0.0
      %4327 = vmatpush1.msra.mxu0 0.0
      %4328 = vmatprep.subr.mxu0 0.0
      %4329 = vmatpush1.msra.mxu0 0.0
      %4330 = vmatprep.subr.mxu0 0.0
      %4331 = vmatpush1.msra.mxu0 0.0
      %4332 = vmatprep.subr.mxu0 0.0
      %4333 = vmatpush1.msra.mxu0 0.0
      %4334 = vmatprep.subr.mxu0 0.0
      %4335 = vmatpush1.msra.mxu0 0.0
      %4336 = vmatprep.subr.mxu0 0.0
      %4337 = vmatpush1.msra.mxu0 0.0
      %4338 = vmatprep.mubr.f32.mxu0 0.0
      %4339 = vmatmul.mubr.f32.gmra.mrb[0].mxu0 %v4257
      %v4340 = vpop.f32.mrb[0].mxu0
      %v4341 = vadd.f32 %v4228, %v4340
      %v4342 = vpop.f32.mrb[0].mxu0
      %4343 = vmatprep.mubr.f32.mxu0 0.0
      %4344 = vmatmul.mubr.f32.gmra.mrb[0].mxu0 %v4260
      %v4345 = vpop.f32.mrb[0].mxu0
      %v4346 = vadd.f32 %v4233, %v4345
      %v4347 = vpop.f32.mrb[0].mxu0
      %4348 = vmatprep.mubr.f32.mxu0 0.0
      %4349 = vmatmul.mubr.f32.gmra.mrb[0].mxu0 %v4263
      %v4350 = vpop.f32.mrb[0].mxu0
      %v4351 = vadd.f32 %v4238, %v4350
      %v4352 = vpop.f32.mrb[0].mxu0
      %4353 = vmatprep.mubr.f32.mxu0 0.0
      %4354 = vmatmul.mubr.f32.gmra.mrb[0].mxu0 %v4266
      %v4355 = vpop.f32.mrb[0].mxu0
      %v4356 = vadd.f32 %v4243, %v4355
      %v4357 = vpop.f32.mrb[0].mxu0
      %4358 = vmatprep.mubr.f32.mxu0 0.0
      %4359 = vmatmul.mubr.f32.gmra.mrb[0].mxu0 %v4269
      %v4360 = vpop.f32.mrb[0].mxu0
      %v4361 = vadd.f32 %v4248, %v4360
      %v4362 = vpop.f32.mrb[0].mxu0
      %4363 = vmatprep.mubr.f32.mxu0 0.0
      %4364 = vmatmul.mubr.f32.gmra.mrb[0].mxu0 %v4272
      %v4365 = vpop.f32.mrb[0].mxu0
      %v4366 = vadd.f32 %v4253, %v4365
      %v4367 = vpop.f32.mrb[0].mxu0
      %4368 = vdwg.mxu0
      %v4370 = vlaneseq
      %v4371 = vshrl.u32 %v4370, 7
      %v4372 = vsub.s32 0, %v4371
      %v4373 = vrot.slane %v3456, %v4372
      %v4375 = vadd.f32 %v4341, %v4373
      %v4376 = vadd.f32 %v4346, %v4373
      %v4377 = vadd.f32 %v4351, %v4373
      %v4378 = vadd.f32 %v4356, %v4373
      %v4379 = vadd.f32 %v4361, %v4373
      %v4380 = vadd.f32 %v4366, %v4373
      %v4381 = vadd.f32 %v3218, %v4375
      %v4382 = vadd.f32 %v3219, %v4376
      %v4383 = vadd.f32 %v3220, %v4377
      %v4384 = vadd.f32 %v3221, %v4378
      %v4385 = vadd.f32 %v3222, %v4379
      %v4386 = vadd.f32 %v3223, %v4380
      %s4387 = scalar_lea.vmem %s45, 2
      %v4388 = vld [vmem:[%s4387] sm:$0x3]
      %v4389 = vsel %vm1662, %v4381, 0.0
      %4390 = vadd.xlane.f32.xlu0 %v4389
      %v4391 = vpop.xlane.xlu0 %4390
      %v4392 = vsel %vm1662, %v4382, 0.0
      %4393 = vadd.xlane.f32.xlu0 %v4392
      %v4394 = vpop.xlane.xlu0 %4393
      %v4395 = vsel %vm1662, %v4383, 0.0
      %4396 = vadd.xlane.f32.xlu0 %v4395
      %v4397 = vpop.xlane.xlu0 %4396
      %v4398 = vsel %vm1662, %v4384, 0.0
      %4399 = vadd.xlane.f32.xlu0 %v4398
      %v4400 = vpop.xlane.xlu0 %4399
      %v4401 = vsel %vm1662, %v4385, 0.0
      %4402 = vadd.xlane.f32.xlu0 %v4401
      %v4403 = vpop.xlane.xlu0 %4402
      %v4404 = vsel %vm1662, %v4386, 0.0
      %4405 = vadd.xlane.f32.xlu0 %v4404
      %v4406 = vpop.xlane.xlu0 %4405
      %v4407 = vmul.f32 %v4391, %v1681
      %v4408 = vmul.f32 %v4394, %v1681
      %v4409 = vmul.f32 %v4397, %v1681
      %v4410 = vmul.f32 %v4400, %v1681
      %v4411 = vmul.f32 %v4403, %v1681
      %v4412 = vmul.f32 %v4406, %v1681
      %v4413 = vsub.f32 %v4381, %v4407
      %v4414 = vsub.f32 %v4382, %v4408
      %v4415 = vsub.f32 %v4383, %v4409
      %v4416 = vsub.f32 %v4384, %v4410
      %v4417 = vsub.f32 %v4385, %v4411
      %v4418 = vsub.f32 %v4386, %v4412
      %v4419 = vmul.f32 %v4413, %v4413
      %v4420 = vmul.f32 %v4414, %v4414
      %v4421 = vmul.f32 %v4415, %v4415
      %v4422 = vmul.f32 %v4416, %v4416
      %v4423 = vmul.f32 %v4417, %v4417
      %v4424 = vmul.f32 %v4418, %v4418
      %v4425 = vsel %vm1662, %v4419, 0.0
      %4426 = vadd.xlane.f32.xlu0 %v4425
      %v4427 = vpop.xlane.xlu0 %4426
      %v4428 = vsel %vm1662, %v4420, 0.0
      %4429 = vadd.xlane.f32.xlu0 %v4428
      %v4430 = vpop.xlane.xlu0 %4429
      %v4431 = vsel %vm1662, %v4421, 0.0
      %4432 = vadd.xlane.f32.xlu0 %v4431
      %v4433 = vpop.xlane.xlu0 %4432
      %v4434 = vsel %vm1662, %v4422, 0.0
      %4435 = vadd.xlane.f32.xlu0 %v4434
      %v4436 = vpop.xlane.xlu0 %4435
      %v4437 = vsel %vm1662, %v4423, 0.0
      %4438 = vadd.xlane.f32.xlu0 %v4437
      %v4439 = vpop.xlane.xlu0 %4438
      %v4440 = vsel %vm1662, %v4424, 0.0
      %4441 = vadd.xlane.f32.xlu0 %v4440
      %v4442 = vpop.xlane.xlu0 %4441
      %v4443 = vmul.f32 %v4427, %v1681
      %v4444 = vmul.f32 %v4430, %v1681
      %v4445 = vmul.f32 %v4433, %v1681
      %v4446 = vmul.f32 %v4436, %v1681
      %v4447 = vmul.f32 %v4439, %v1681
      %v4448 = vmul.f32 %v4442, %v1681
      %v4449 = vadd.f32 %v4443, 1e-06
      %v4450 = vadd.f32 %v4444, 1e-06
      %v4451 = vadd.f32 %v4445, 1e-06
      %v4452 = vadd.f32 %v4446, 1e-06
      %v4453 = vadd.f32 %v4447, 1e-06
      %v4454 = vadd.f32 %v4448, 1e-06
      %v4455 = vrsqrt.pop %v4449
      %v4456 = vrsqrt.pop %v4450
      %v4457 = vrsqrt.pop %v4451
      %v4458 = vrsqrt.pop %v4452
      %v4459 = vrsqrt.pop %v4453
      %v4460 = vrsqrt.pop %v4454
      %v4461 = vmul.f32 %v4413, %v4455
      %v4462 = vmul.f32 %v4414, %v4456
      %v4463 = vmul.f32 %v4415, %v4457
      %v4464 = vmul.f32 %v4416, %v4458
      %v4465 = vmul.f32 %v4417, %v4459
      %v4466 = vmul.f32 %v4418, %v4460
      %v4467 = vlaneseq
      %v4468 = vshrl.u32 %v4467, 7
      %v4469 = vsub.s32 0, %v4468
      %v4470 = vrot.slane %v4388, %v4469
      %v4471 = vmul.f32 %v4461, %v4470
      %v4472 = vmul.f32 %v4462, %v4470
      %v4473 = vmul.f32 %v4463, %v4470
      %v4474 = vmul.f32 %v4464, %v4470
      %v4475 = vmul.f32 %v4465, %v4470
      %v4476 = vmul.f32 %v4466, %v4470
      %v4477 = vlaneseq
      %v4478 = vshrl.u32 %v4477, 7
      %v4479 = vsub.s32 1, %v4478
      %v4480 = vrot.slane %v4388, %v4479
      %v4481 = vadd.f32 %v4471, %v4480
      %v4482 = vadd.f32 %v4472, %v4480
      %v4483 = vadd.f32 %v4473, %v4480
      %v4484 = vadd.f32 %v4474, %v4480
      %v4485 = vadd.f32 %v4475, %v4480
      %v4486 = vadd.f32 %v4476, %v4480
      %s4487 = scalar_lea.vmem %s47, 32
      %v4488 = vld [vmem:[%s4487] sm:$0xff]
      %v4489 = vld [vmem:[%s4487 + $0x8] sm:$0xff]
      %v4490 = vld [vmem:[%s4487 + $0x10] sm:$0xff]
      %v4491 = vld [vmem:[%s4487 + $0x18] sm:$0xff]
      %s4492 = scalar_lea.vmem %s49, 1
      %v4493 = vld [vmem:[%s4492] sm:$0x1]
      %v4495 = vlaneseq
      %v4496 = vshrl.u32 %v4495, 7
      %v4497 = vsub.s32 0, %v4496
      %v4498 = vrot.slane %v4493, %v4497
      %v4501 = vsel %vm1662, %v4481, 0
      %v4504 = vsel %vm1662, %v4482, 0
      %v4507 = vsel %vm1662, %v4483, 0
      %v4510 = vsel %vm1662, %v4484, 0
      %v4513 = vsel %vm1662, %v4485, 0
      %v4516 = vsel %vm1662, %v4486, 0
      %4518 = vmatprep.subr.mxu0 0.0
      %4519 = vmatpush1.msra.mxu0 %v4488
      %4520 = vmatprep.subr.mxu0 0.0
      %4521 = vmatpush1.msra.mxu0 %v4489
      %4522 = vmatprep.subr.mxu0 0.0
      %4523 = vmatpush1.msra.mxu0 %v4490
      %4524 = vmatprep.subr.mxu0 0.0
      %4525 = vmatpush1.msra.mxu0 %v4491
      %4526 = vmatprep.subr.mxu0 0.0
      %4527 = vmatpush1.msra.mxu0 0.0
      %4528 = vmatprep.subr.mxu0 0.0
      %4529 = vmatpush1.msra.mxu0 0.0
      %4530 = vmatprep.subr.mxu0 0.0
      %4531 = vmatpush1.msra.mxu0 0.0
      %4532 = vmatprep.subr.mxu0 0.0
      %4533 = vmatpush1.msra.mxu0 0.0
      %4534 = vmatprep.subr.mxu0 0.0
      %4535 = vmatpush1.msra.mxu0 0.0
      %4536 = vmatprep.subr.mxu0 0.0
      %4537 = vmatpush1.msra.mxu0 0.0
      %4538 = vmatprep.subr.mxu0 0.0
      %4539 = vmatpush1.msra.mxu0 0.0
      %4540 = vmatprep.subr.mxu0 0.0
      %4541 = vmatpush1.msra.mxu0 0.0
      %4542 = vmatprep.subr.mxu0 0.0
      %4543 = vmatpush1.msra.mxu0 0.0
      %4544 = vmatprep.subr.mxu0 0.0
      %4545 = vmatpush1.msra.mxu0 0.0
      %4546 = vmatprep.subr.mxu0 0.0
      %4547 = vmatpush1.msra.mxu0 0.0
      %4548 = vmatprep.subr.mxu0 0.0
      %4549 = vmatpush1.msra.mxu0 0.0
      %4550 = vmatprep.subr.mxu0 0.0
      %4551 = vmatpush1.msra.mxu0 0.0
      %4552 = vmatprep.subr.mxu0 0.0
      %4553 = vmatpush1.msra.mxu0 0.0
      %4554 = vmatprep.subr.mxu0 0.0
      %4555 = vmatpush1.msra.mxu0 0.0
      %4556 = vmatprep.subr.mxu0 0.0
      %4557 = vmatpush1.msra.mxu0 0.0
      %4558 = vmatprep.subr.mxu0 0.0
      %4559 = vmatpush1.msra.mxu0 0.0
      %4560 = vmatprep.subr.mxu0 0.0
      %4561 = vmatpush1.msra.mxu0 0.0
      %4562 = vmatprep.subr.mxu0 0.0
      %4563 = vmatpush1.msra.mxu0 0.0
      %4564 = vmatprep.subr.mxu0 0.0
      %4565 = vmatpush1.msra.mxu0 0.0
      %4566 = vmatprep.subr.mxu0 0.0
      %4567 = vmatpush1.msra.mxu0 0.0
      %4568 = vmatprep.subr.mxu0 0.0
      %4569 = vmatpush1.msra.mxu0 0.0
      %4570 = vmatprep.subr.mxu0 0.0
      %4571 = vmatpush1.msra.mxu0 0.0
      %4572 = vmatprep.subr.mxu0 0.0
      %4573 = vmatpush1.msra.mxu0 0.0
      %4574 = vmatprep.subr.mxu0 0.0
      %4575 = vmatpush1.msra.mxu0 0.0
      %4576 = vmatprep.subr.mxu0 0.0
      %4577 = vmatpush1.msra.mxu0 0.0
      %4578 = vmatprep.subr.mxu0 0.0
      %4579 = vmatpush1.msra.mxu0 0.0
      %4580 = vmatprep.subr.mxu0 0.0
      %4581 = vmatpush1.msra.mxu0 0.0
      %4582 = vmatprep.mubr.f32.mxu0 0.0
      %4583 = vmatmul.mubr.f32.gmra.mrb[0].mxu0 %v4501
      %v4584 = vpop.f32.mrb[0].mxu0
      %v4585 = vadd.f32 %v4498, %v4584
      %v4586 = vpop.f32.mrb[0].mxu0
      %4587 = vmatprep.mubr.f32.mxu0 0.0
      %4588 = vmatmul.mubr.f32.gmra.mrb[0].mxu0 %v4504
      %v4589 = vpop.f32.mrb[0].mxu0
      %v4590 = vadd.f32 %v4498, %v4589
      %v4591 = vpop.f32.mrb[0].mxu0
      %4592 = vmatprep.mubr.f32.mxu0 0.0
      %4593 = vmatmul.mubr.f32.gmra.mrb[0].mxu0 %v4507
      %v4594 = vpop.f32.mrb[0].mxu0
      %v4595 = vadd.f32 %v4498, %v4594
      %v4596 = vpop.f32.mrb[0].mxu0
      %4597 = vmatprep.mubr.f32.mxu0 0.0
      %4598 = vmatmul.mubr.f32.gmra.mrb[0].mxu0 %v4510
      %v4599 = vpop.f32.mrb[0].mxu0
      %v4600 = vadd.f32 %v4498, %v4599
      %v4601 = vpop.f32.mrb[0].mxu0
      %4602 = vmatprep.mubr.f32.mxu0 0.0
      %4603 = vmatmul.mubr.f32.gmra.mrb[0].mxu0 %v4513
      %v4604 = vpop.f32.mrb[0].mxu0
      %v4605 = vadd.f32 %v4498, %v4604
      %v4606 = vpop.f32.mrb[0].mxu0
      %4607 = vmatprep.mubr.f32.mxu0 0.0
      %4608 = vmatmul.mubr.f32.gmra.mrb[0].mxu0 %v4516
      %v4609 = vpop.f32.mrb[0].mxu0
      %v4610 = vadd.f32 %v4498, %v4609
      %v4611 = vpop.f32.mrb[0].mxu0
      %4612 = vdwg.mxu0
      %v4613 = vmul.f32 %v4585, 0.5
      %v4614 = vmul.f32 %v4590, 0.5
      %v4615 = vmul.f32 %v4595, 0.5
      %v4616 = vmul.f32 %v4600, 0.5
      %v4617 = vmul.f32 %v4605, 0.5
      %v4618 = vmul.f32 %v4610, 0.5
      %v4619 = vmul.f32 %v4585, 0.044715
      %v4620 = vmul.f32 %v4590, 0.044715
      %v4621 = vmul.f32 %v4595, 0.044715
      %v4622 = vmul.f32 %v4600, 0.044715
      %v4623 = vmul.f32 %v4605, 0.044715
      %v4624 = vmul.f32 %v4610, 0.044715
      %v4625 = vmul.f32 %v4619, %v4585
      %v4626 = vmul.f32 %v4620, %v4590
      %v4627 = vmul.f32 %v4621, %v4595
      %v4628 = vmul.f32 %v4622, %v4600
      %v4629 = vmul.f32 %v4623, %v4605
      %v4630 = vmul.f32 %v4624, %v4610
      %v4631 = vmul.f32 %v4625, %v4585
      %v4632 = vmul.f32 %v4626, %v4590
      %v4633 = vmul.f32 %v4627, %v4595
      %v4634 = vmul.f32 %v4628, %v4600
      %v4635 = vmul.f32 %v4629, %v4605
      %v4636 = vmul.f32 %v4630, %v4610
      %v4637 = vadd.f32 %v4585, %v4631
      %v4638 = vadd.f32 %v4590, %v4632
      %v4639 = vadd.f32 %v4595, %v4633
      %v4640 = vadd.f32 %v4600, %v4634
      %v4641 = vadd.f32 %v4605, %v4635
      %v4642 = vadd.f32 %v4610, %v4636
      %v4643 = vmul.f32 %v4637, 0.7978846
      %v4644 = vmul.f32 %v4638, 0.7978846
      %v4645 = vmul.f32 %v4639, 0.7978846
      %v4646 = vmul.f32 %v4640, 0.7978846
      %v4647 = vmul.f32 %v4641, 0.7978846
      %v4648 = vmul.f32 %v4642, 0.7978846
      %v4649 = vtanh.pop %v4643
      %v4650 = vtanh.pop %v4644
      %v4651 = vtanh.pop %v4645
      %v4652 = vtanh.pop %v4646
      %v4653 = vtanh.pop %v4647
      %v4654 = vtanh.pop %v4648
      %v4655 = vadd.f32 %v4649, 1.0
      %v4656 = vadd.f32 %v4650, 1.0
      %v4657 = vadd.f32 %v4651, 1.0
      %v4658 = vadd.f32 %v4652, 1.0
      %v4659 = vadd.f32 %v4653, 1.0
      %v4660 = vadd.f32 %v4654, 1.0
      %v4661 = vmul.f32 %v4613, %v4655
      %v4662 = vmul.f32 %v4614, %v4656
      %v4663 = vmul.f32 %v4615, %v4657
      %v4664 = vmul.f32 %v4616, %v4658
      %v4665 = vmul.f32 %v4617, %v4659
      %v4666 = vmul.f32 %v4618, %v4660
      %s4667 = scalar_lea.vmem %s51, 128
      %v4668 = vld [vmem:[%s4667] sm:$0xff]
      %v4669 = vld [vmem:[%s4667 + $0x8] sm:$0xff]
      %v4670 = vld [vmem:[%s4667 + $0x10] sm:$0xff]
      %v4671 = vld [vmem:[%s4667 + $0x18] sm:$0xff]
      %v4672 = vld [vmem:[%s4667 + $0x20] sm:$0xff]
      %v4673 = vld [vmem:[%s4667 + $0x28] sm:$0xff]
      %v4674 = vld [vmem:[%s4667 + $0x30] sm:$0xff]
      %v4675 = vld [vmem:[%s4667 + $0x38] sm:$0xff]
      %v4676 = vld [vmem:[%s4667 + $0x40] sm:$0xff]
      %v4677 = vld [vmem:[%s4667 + $0x48] sm:$0xff]
      %v4678 = vld [vmem:[%s4667 + $0x50] sm:$0xff]
      %v4679 = vld [vmem:[%s4667 + $0x58] sm:$0xff]
      %v4680 = vld [vmem:[%s4667 + $0x60] sm:$0xff]
      %v4681 = vld [vmem:[%s4667 + $0x68] sm:$0xff]
      %v4682 = vld [vmem:[%s4667 + $0x70] sm:$0xff]
      %v4683 = vld [vmem:[%s4667 + $0x78] sm:$0xff]
      %s4684 = scalar_lea.vmem %s53, 1
      %v4685 = vld [vmem:[%s4684] sm:$0x1]
      %v4687 = vlaneseq
      %v4688 = vshrl.u32 %v4687, 7
      %v4689 = vsub.s32 0, %v4688
      %v4690 = vrot.slane %v4685, %v4689
      %4692 = vmatprep.subr.mxu0 0.0
      %4693 = vmatpush1.msra.mxu0 %v4668
      %4694 = vmatprep.subr.mxu0 0.0
      %4695 = vmatpush1.msra.mxu0 %v4669
      %4696 = vmatprep.subr.mxu0 0.0
      %4697 = vmatpush1.msra.mxu0 %v4670
      %4698 = vmatprep.subr.mxu0 0.0
      %4699 = vmatpush1.msra.mxu0 %v4671
      %4700 = vmatprep.subr.mxu0 0.0
      %4701 = vmatpush1.msra.mxu0 %v4672
      %4702 = vmatprep.subr.mxu0 0.0
      %4703 = vmatpush1.msra.mxu0 %v4673
      %4704 = vmatprep.subr.mxu0 0.0
      %4705 = vmatpush1.msra.mxu0 %v4674
      %4706 = vmatprep.subr.mxu0 0.0
      %4707 = vmatpush1.msra.mxu0 %v4675
      %4708 = vmatprep.subr.mxu0 0.0
      %4709 = vmatpush1.msra.mxu0 %v4676
      %4710 = vmatprep.subr.mxu0 0.0
      %4711 = vmatpush1.msra.mxu0 %v4677
      %4712 = vmatprep.subr.mxu0 0.0
      %4713 = vmatpush1.msra.mxu0 %v4678
      %4714 = vmatprep.subr.mxu0 0.0
      %4715 = vmatpush1.msra.mxu0 %v4679
      %4716 = vmatprep.subr.mxu0 0.0
      %4717 = vmatpush1.msra.mxu0 %v4680
      %4718 = vmatprep.subr.mxu0 0.0
      %4719 = vmatpush1.msra.mxu0 %v4681
      %4720 = vmatprep.subr.mxu0 0.0
      %4721 = vmatpush1.msra.mxu0 %v4682
      %4722 = vmatprep.subr.mxu0 0.0
      %4723 = vmatpush1.msra.mxu0 %v4683
      %4724 = vmatprep.subr.mxu0 0.0
      %4725 = vmatpush1.msra.mxu0 0.0
      %4726 = vmatprep.subr.mxu0 0.0
      %4727 = vmatpush1.msra.mxu0 0.0
      %4728 = vmatprep.subr.mxu0 0.0
      %4729 = vmatpush1.msra.mxu0 0.0
      %4730 = vmatprep.subr.mxu0 0.0
      %4731 = vmatpush1.msra.mxu0 0.0
      %4732 = vmatprep.subr.mxu0 0.0
      %4733 = vmatpush1.msra.mxu0 0.0
      %4734 = vmatprep.subr.mxu0 0.0
      %4735 = vmatpush1.msra.mxu0 0.0
      %4736 = vmatprep.subr.mxu0 0.0
      %4737 = vmatpush1.msra.mxu0 0.0
      %4738 = vmatprep.subr.mxu0 0.0
      %4739 = vmatpush1.msra.mxu0 0.0
      %4740 = vmatprep.subr.mxu0 0.0
      %4741 = vmatpush1.msra.mxu0 0.0
      %4742 = vmatprep.subr.mxu0 0.0
      %4743 = vmatpush1.msra.mxu0 0.0
      %4744 = vmatprep.subr.mxu0 0.0
      %4745 = vmatpush1.msra.mxu0 0.0
      %4746 = vmatprep.subr.mxu0 0.0
      %4747 = vmatpush1.msra.mxu0 0.0
      %4748 = vmatprep.subr.mxu0 0.0
      %4749 = vmatpush1.msra.mxu0 0.0
      %4750 = vmatprep.subr.mxu0 0.0
      %4751 = vmatpush1.msra.mxu0 0.0
      %4752 = vmatprep.subr.mxu0 0.0
      %4753 = vmatpush1.msra.mxu0 0.0
      %4754 = vmatprep.subr.mxu0 0.0
      %4755 = vmatpush1.msra.mxu0 0.0
      %4756 = vmatprep.mubr.f32.mxu0 0.0
      %4757 = vmatmul.mubr.f32.gmra.mrb[0].mxu0 %v4661
      %v4758 = vpop.f32.mrb[0].mxu0
      %v4759 = vadd.f32 %v4690, %v4758
      %v4760 = vpop.f32.mrb[0].mxu0
      %4761 = vmatprep.mubr.f32.mxu0 0.0
      %4762 = vmatmul.mubr.f32.gmra.mrb[0].mxu0 %v4662
      %v4763 = vpop.f32.mrb[0].mxu0
      %v4764 = vadd.f32 %v4690, %v4763
      %v4765 = vpop.f32.mrb[0].mxu0
      %4766 = vmatprep.mubr.f32.mxu0 0.0
      %4767 = vmatmul.mubr.f32.gmra.mrb[0].mxu0 %v4663
      %v4768 = vpop.f32.mrb[0].mxu0
      %v4769 = vadd.f32 %v4690, %v4768
      %v4770 = vpop.f32.mrb[0].mxu0
      %4771 = vmatprep.mubr.f32.mxu0 0.0
      %4772 = vmatmul.mubr.f32.gmra.mrb[0].mxu0 %v4664
      %v4773 = vpop.f32.mrb[0].mxu0
      %v4774 = vadd.f32 %v4690, %v4773
      %v4775 = vpop.f32.mrb[0].mxu0
      %4776 = vmatprep.mubr.f32.mxu0 0.0
      %4777 = vmatmul.mubr.f32.gmra.mrb[0].mxu0 %v4665
      %v4778 = vpop.f32.mrb[0].mxu0
      %v4779 = vadd.f32 %v4690, %v4778
      %v4780 = vpop.f32.mrb[0].mxu0
      %4781 = vmatprep.mubr.f32.mxu0 0.0
      %4782 = vmatmul.mubr.f32.gmra.mrb[0].mxu0 %v4666
      %v4783 = vpop.f32.mrb[0].mxu0
      %v4784 = vadd.f32 %v4690, %v4783
      %v4785 = vpop.f32.mrb[0].mxu0
      %4786 = vdwg.mxu0
      %v4787 = vadd.f32 %v4381, %v4759
      %v4788 = vadd.f32 %v4382, %v4764
      %v4789 = vadd.f32 %v4383, %v4769
      %v4790 = vadd.f32 %v4384, %v4774
      %v4791 = vadd.f32 %v4385, %v4779
      %v4792 = vadd.f32 %v4386, %v4784
      %v4793 = vld [vmem:[%s17] sm:$0x3]
      %v4794 = vsel %vm1662, %v4787, 0.0
      %4795 = vadd.xlane.f32.xlu0 %v4794
      %v4796 = vpop.xlane.xlu0 %4795
      %v4797 = vsel %vm1662, %v4788, 0.0
      %4798 = vadd.xlane.f32.xlu0 %v4797
      %v4799 = vpop.xlane.xlu0 %4798
      %v4800 = vsel %vm1662, %v4789, 0.0
      %4801 = vadd.xlane.f32.xlu0 %v4800
      %v4802 = vpop.xlane.xlu0 %4801
      %v4803 = vsel %vm1662, %v4790, 0.0
      %4804 = vadd.xlane.f32.xlu0 %v4803
      %v4805 = vpop.xlane.xlu0 %4804
      %v4806 = vsel %vm1662, %v4791, 0.0
      %4807 = vadd.xlane.f32.xlu0 %v4806
      %v4808 = vpop.xlane.xlu0 %4807
      %v4809 = vsel %vm1662, %v4792, 0.0
      %4810 = vadd.xlane.f32.xlu0 %v4809
      %v4811 = vpop.xlane.xlu0 %4810
      %v4812 = vmul.f32 %v4796, %v1681
      %v4813 = vmul.f32 %v4799, %v1681
      %v4814 = vmul.f32 %v4802, %v1681
      %v4815 = vmul.f32 %v4805, %v1681
      %v4816 = vmul.f32 %v4808, %v1681
      %v4817 = vmul.f32 %v4811, %v1681
      %v4818 = vsub.f32 %v4787, %v4812
      %v4819 = vsub.f32 %v4788, %v4813
      %v4820 = vsub.f32 %v4789, %v4814
      %v4821 = vsub.f32 %v4790, %v4815
      %v4822 = vsub.f32 %v4791, %v4816
      %v4823 = vsub.f32 %v4792, %v4817
      %v4824 = vmul.f32 %v4818, %v4818
      %v4825 = vmul.f32 %v4819, %v4819
      %v4826 = vmul.f32 %v4820, %v4820
      %v4827 = vmul.f32 %v4821, %v4821
      %v4828 = vmul.f32 %v4822, %v4822
      %v4829 = vmul.f32 %v4823, %v4823
      %v4830 = vsel %vm1662, %v4824, 0.0
      %4831 = vadd.xlane.f32.xlu0 %v4830
      %v4832 = vpop.xlane.xlu0 %4831
      %v4833 = vsel %vm1662, %v4825, 0.0
      %4834 = vadd.xlane.f32.xlu0 %v4833
      %v4835 = vpop.xlane.xlu0 %4834
      %v4836 = vsel %vm1662, %v4826, 0.0
      %4837 = vadd.xlane.f32.xlu0 %v4836
      %v4838 = vpop.xlane.xlu0 %4837
      %v4839 = vsel %vm1662, %v4827, 0.0
      %4840 = vadd.xlane.f32.xlu0 %v4839
      %v4841 = vpop.xlane.xlu0 %4840
      %v4842 = vsel %vm1662, %v4828, 0.0
      %4843 = vadd.xlane.f32.xlu0 %v4842
      %v4844 = vpop.xlane.xlu0 %4843
      %v4845 = vsel %vm1662, %v4829, 0.0
      %4846 = vadd.xlane.f32.xlu0 %v4845
      %v4847 = vpop.xlane.xlu0 %4846
      %v4848 = vmul.f32 %v4832, %v1681
      %v4849 = vmul.f32 %v4835, %v1681
      %v4850 = vmul.f32 %v4838, %v1681
      %v4851 = vmul.f32 %v4841, %v1681
      %v4852 = vmul.f32 %v4844, %v1681
      %v4853 = vmul.f32 %v4847, %v1681
      %v4854 = vadd.f32 %v4848, 1e-06
      %v4855 = vadd.f32 %v4849, 1e-06
      %v4856 = vadd.f32 %v4850, 1e-06
      %v4857 = vadd.f32 %v4851, 1e-06
      %v4858 = vadd.f32 %v4852, 1e-06
      %v4859 = vadd.f32 %v4853, 1e-06
      %v4860 = vrsqrt.pop %v4854
      %v4861 = vrsqrt.pop %v4855
      %v4862 = vrsqrt.pop %v4856
      %v4863 = vrsqrt.pop %v4857
      %v4864 = vrsqrt.pop %v4858
      %v4865 = vrsqrt.pop %v4859
      %v4866 = vmul.f32 %v4818, %v4860
      %v4867 = vmul.f32 %v4819, %v4861
      %v4868 = vmul.f32 %v4820, %v4862
      %v4869 = vmul.f32 %v4821, %v4863
      %v4870 = vmul.f32 %v4822, %v4864
      %v4871 = vmul.f32 %v4823, %v4865
      %v4872 = vlaneseq
      %v4873 = vshrl.u32 %v4872, 7
      %v4874 = vsub.s32 0, %v4873
      %v4875 = vrot.slane %v4793, %v4874
      %v4876 = vmul.f32 %v4866, %v4875
      %v4877 = vmul.f32 %v4867, %v4875
      %v4878 = vmul.f32 %v4868, %v4875
      %v4879 = vmul.f32 %v4869, %v4875
      %v4880 = vmul.f32 %v4870, %v4875
      %v4881 = vmul.f32 %v4871, %v4875
      %v4882 = vlaneseq
      %v4883 = vshrl.u32 %v4882, 7
      %v4884 = vsub.s32 1, %v4883
      %v4885 = vrot.slane %v4793, %v4884
      %v4886 = vadd.f32 %v4876, %v4885
      %v4887 = vadd.f32 %v4877, %v4885
      %v4888 = vadd.f32 %v4878, %v4885
      %v4889 = vadd.f32 %v4879, %v4885
      %v4890 = vadd.f32 %v4880, %v4885
      %v4891 = vadd.f32 %v4881, %v4885
      %v4892 = vld [vmem:[%s19] sm:$0xff]
      %v4893 = vld [vmem:[%s19 + $0x8] sm:$0xff]
      %v4894 = vld [vmem:[%s19 + $0x10] sm:$0xff]
      %v4895 = vld [vmem:[%s19 + $0x18] sm:$0xff]
      %v4896 = vld [vmem:[%s21] sm:$0x1]
      %v4898 = vlaneseq
      %v4899 = vshrl.u32 %v4898, 7
      %v4900 = vsub.s32 0, %v4899
      %v4901 = vrot.slane %v4896, %v4900
      %v4904 = vsel %vm1662, %v1659, 0
      %v4907 = vsel %vm1662, %v1660, 0
      %4909 = vmatprep.subr.mxu0 0.0
      %4910 = vmatpush1.msra.mxu0 %v4892
      %4911 = vmatprep.subr.mxu0 0.0
      %4912 = vmatpush1.msra.mxu0 %v4893
      %4913 = vmatprep.subr.mxu0 0.0
      %4914 = vmatpush1.msra.mxu0 %v4894
      %4915 = vmatprep.subr.mxu0 0.0
      %4916 = vmatpush1.msra.mxu0 %v4895
      %4917 = vmatprep.subr.mxu0 0.0
      %4918 = vmatpush1.msra.mxu0 0.0
      %4919 = vmatprep.subr.mxu0 0.0
      %4920 = vmatpush1.msra.mxu0 0.0
      %4921 = vmatprep.subr.mxu0 0.0
      %4922 = vmatpush1.msra.mxu0 0.0
      %4923 = vmatprep.subr.mxu0 0.0
      %4924 = vmatpush1.msra.mxu0 0.0
      %4925 = vmatprep.subr.mxu0 0.0
      %4926 = vmatpush1.msra.mxu0 0.0
      %4927 = vmatprep.subr.mxu0 0.0
      %4928 = vmatpush1.msra.mxu0 0.0
      %4929 = vmatprep.subr.mxu0 0.0
      %4930 = vmatpush1.msra.mxu0 0.0
      %4931 = vmatprep.subr.mxu0 0.0
      %4932 = vmatpush1.msra.mxu0 0.0
      %4933 = vmatprep.subr.mxu0 0.0
      %4934 = vmatpush1.msra.mxu0 0.0
      %4935 = vmatprep.subr.mxu0 0.0
      %4936 = vmatpush1.msra.mxu0 0.0
      %4937 = vmatprep.subr.mxu0 0.0
      %4938 = vmatpush1.msra.mxu0 0.0
      %4939 = vmatprep.subr.mxu0 0.0
      %4940 = vmatpush1.msra.mxu0 0.0
      %4941 = vmatprep.subr.mxu0 0.0
      %4942 = vmatpush1.msra.mxu0 0.0
      %4943 = vmatprep.subr.mxu0 0.0
      %4944 = vmatpush1.msra.mxu0 0.0
      %4945 = vmatprep.subr.mxu0 0.0
      %4946 = vmatpush1.msra.mxu0 0.0
      %4947 = vmatprep.subr.mxu0 0.0
      %4948 = vmatpush1.msra.mxu0 0.0
      %4949 = vmatprep.subr.mxu0 0.0
      %4950 = vmatpush1.msra.mxu0 0.0
      %4951 = vmatprep.subr.mxu0 0.0
      %4952 = vmatpush1.msra.mxu0 0.0
      %4953 = vmatprep.subr.mxu0 0.0
      %4954 = vmatpush1.msra.mxu0 0.0
      %4955 = vmatprep.subr.mxu0 0.0
      %4956 = vmatpush1.msra.mxu0 0.0
      %4957 = vmatprep.subr.mxu0 0.0
      %4958 = vmatpush1.msra.mxu0 0.0
      %4959 = vmatprep.subr.mxu0 0.0
      %4960 = vmatpush1.msra.mxu0 0.0
      %4961 = vmatprep.subr.mxu0 0.0
      %4962 = vmatpush1.msra.mxu0 0.0
      %4963 = vmatprep.subr.mxu0 0.0
      %4964 = vmatpush1.msra.mxu0 0.0
      %4965 = vmatprep.subr.mxu0 0.0
      %4966 = vmatpush1.msra.mxu0 0.0
      %4967 = vmatprep.subr.mxu0 0.0
      %4968 = vmatpush1.msra.mxu0 0.0
      %4969 = vmatprep.subr.mxu0 0.0
      %4970 = vmatpush1.msra.mxu0 0.0
      %4971 = vmatprep.subr.mxu0 0.0
      %4972 = vmatpush1.msra.mxu0 0.0
      %4973 = vmatprep.mubr.f32.mxu0 0.0
      %4974 = vmatmul.mubr.f32.gmra.mrb[0].mxu0 %v4904
      %v4975 = vpop.f32.mrb[0].mxu0
      %v4976 = vadd.f32 %v4901, %v4975
      %v4977 = vpop.f32.mrb[0].mxu0
      %4978 = vmatprep.mubr.f32.mxu0 0.0
      %4979 = vmatmul.mubr.f32.gmra.mrb[0].mxu0 %v4907
      %v4980 = vpop.f32.mrb[0].mxu0
      %v4981 = vadd.f32 %v4901, %v4980
      %v4982 = vpop.f32.mrb[0].mxu0
      %4983 = vdwg.mxu0
      %v4984 = vld [vmem:[%s23] sm:$0xff]
      %v4985 = vld [vmem:[%s23 + $0x8] sm:$0xff]
      %v4986 = vadd.f32 %v4976, %v4984
      %v4987 = vadd.f32 %v4981, %v4985
      %v4988 = vld [vmem:[%s55] sm:$0x3]
      %v4989 = vsel %vm1662, %v4986, 0.0
      %4990 = vadd.xlane.f32.xlu0 %v4989
      %v4991 = vpop.xlane.xlu0 %4990
      %v4992 = vsel %vm1662, %v4987, 0.0
      %4993 = vadd.xlane.f32.xlu0 %v4992
      %v4994 = vpop.xlane.xlu0 %4993
      %v4995 = vmul.f32 %v4991, %v1681
      %v4996 = vmul.f32 %v4994, %v1681
      %v4997 = vsub.f32 %v4986, %v4995
      %v4998 = vsub.f32 %v4987, %v4996
      %v4999 = vmul.f32 %v4997, %v4997
      %v5000 = vmul.f32 %v4998, %v4998
      %v5001 = vsel %vm1662, %v4999, 0.0
      %5002 = vadd.xlane.f32.xlu0 %v5001
      %v5003 = vpop.xlane.xlu0 %5002
      %v5004 = vsel %vm1662, %v5000, 0.0
      %5005 = vadd.xlane.f32.xlu0 %v5004
      %v5006 = vpop.xlane.xlu0 %5005
      %v5007 = vmul.f32 %v5003, %v1681
      %v5008 = vmul.f32 %v5006, %v1681
      %v5009 = vadd.f32 %v5007, 1e-06
      %v5010 = vadd.f32 %v5008, 1e-06
      %v5011 = vrsqrt.pop %v5009
      %v5012 = vrsqrt.pop %v5010
      %v5013 = vmul.f32 %v4997, %v5011
      %v5014 = vmul.f32 %v4998, %v5012
      %v5015 = vlaneseq
      %v5016 = vshrl.u32 %v5015, 7
      %v5017 = vsub.s32 0, %v5016
      %v5018 = vrot.slane %v4988, %v5017
      %v5019 = vmul.f32 %v5013, %v5018
      %v5020 = vmul.f32 %v5014, %v5018
      %v5021 = vlaneseq
      %v5022 = vshrl.u32 %v5021, 7
      %v5023 = vsub.s32 1, %v5022
      %v5024 = vrot.slane %v4988, %v5023
      %v5025 = vadd.f32 %v5019, %v5024
      %v5026 = vadd.f32 %v5020, %v5024
      %v5027 = vld [vmem:[%s57] sm:$0xff]
      %v5028 = vld [vmem:[%s57 + $0x8] sm:$0xff]
      %v5029 = vld [vmem:[%s57 + $0x10] sm:$0xff]
      %v5030 = vld [vmem:[%s57 + $0x18] sm:$0xff]
      %v5031 = vld [vmem:[%s59] sm:$0x1]
      %v5033 = vlaneseq
      %v5034 = vshrl.u32 %v5033, 7
      %v5035 = vsub.s32 0, %v5034
      %v5036 = vrot.slane %v5031, %v5035
      %v5039 = vsel %vm1662, %v5025, 0
      %v5042 = vsel %vm1662, %v5026, 0
      %5044 = vmatprep.subr.mxu0 0.0
      %5045 = vmatpush1.msra.mxu0 %v5027
      %5046 = vmatprep.subr.mxu0 0.0
      %5047 = vmatpush1.msra.mxu0 %v5028
      %5048 = vmatprep.subr.mxu0 0.0
      %5049 = vmatpush1.msra.mxu0 %v5029
      %5050 = vmatprep.subr.mxu0 0.0
      %5051 = vmatpush1.msra.mxu0 %v5030
      %5052 = vmatprep.subr.mxu0 0.0
      %5053 = vmatpush1.msra.mxu0 0.0
      %5054 = vmatprep.subr.mxu0 0.0
      %5055 = vmatpush1.msra.mxu0 0.0
      %5056 = vmatprep.subr.mxu0 0.0
      %5057 = vmatpush1.msra.mxu0 0.0
      %5058 = vmatprep.subr.mxu0 0.0
      %5059 = vmatpush1.msra.mxu0 0.0
      %5060 = vmatprep.subr.mxu0 0.0
      %5061 = vmatpush1.msra.mxu0 0.0
      %5062 = vmatprep.subr.mxu0 0.0
      %5063 = vmatpush1.msra.mxu0 0.0
      %5064 = vmatprep.subr.mxu0 0.0
      %5065 = vmatpush1.msra.mxu0 0.0
      %5066 = vmatprep.subr.mxu0 0.0
      %5067 = vmatpush1.msra.mxu0 0.0
      %5068 = vmatprep.subr.mxu0 0.0
      %5069 = vmatpush1.msra.mxu0 0.0
      %5070 = vmatprep.subr.mxu0 0.0
      %5071 = vmatpush1.msra.mxu0 0.0
      %5072 = vmatprep.subr.mxu0 0.0
      %5073 = vmatpush1.msra.mxu0 0.0
      %5074 = vmatprep.subr.mxu0 0.0
      %5075 = vmatpush1.msra.mxu0 0.0
      %5076 = vmatprep.subr.mxu0 0.0
      %5077 = vmatpush1.msra.mxu0 0.0
      %5078 = vmatprep.subr.mxu0 0.0
      %5079 = vmatpush1.msra.mxu0 0.0
      %5080 = vmatprep.subr.mxu0 0.0
      %5081 = vmatpush1.msra.mxu0 0.0
      %5082 = vmatprep.subr.mxu0 0.0
      %5083 = vmatpush1.msra.mxu0 0.0
      %5084 = vmatprep.subr.mxu0 0.0
      %5085 = vmatpush1.msra.mxu0 0.0
      %5086 = vmatprep.subr.mxu0 0.0
      %5087 = vmatpush1.msra.mxu0 0.0
      %5088 = vmatprep.subr.mxu0 0.0
      %5089 = vmatpush1.msra.mxu0 0.0
      %5090 = vmatprep.subr.mxu0 0.0
      %5091 = vmatpush1.msra.mxu0 0.0
      %5092 = vmatprep.subr.mxu0 0.0
      %5093 = vmatpush1.msra.mxu0 0.0
      %5094 = vmatprep.subr.mxu0 0.0
      %5095 = vmatpush1.msra.mxu0 0.0
      %5096 = vmatprep.subr.mxu0 0.0
      %5097 = vmatpush1.msra.mxu0 0.0
      %5098 = vmatprep.subr.mxu0 0.0
      %5099 = vmatpush1.msra.mxu0 0.0
      %5100 = vmatprep.subr.mxu0 0.0
      %5101 = vmatpush1.msra.mxu0 0.0
      %5102 = vmatprep.subr.mxu0 0.0
      %5103 = vmatpush1.msra.mxu0 0.0
      %5104 = vmatprep.subr.mxu0 0.0
      %5105 = vmatpush1.msra.mxu0 0.0
      %5106 = vmatprep.subr.mxu0 0.0
      %5107 = vmatpush1.msra.mxu0 0.0
      %5108 = vmatprep.mubr.f32.mxu0 0.0
      %5109 = vmatmul.mubr.f32.gmra.mrb[0].mxu0 %v5039
      %v5110 = vpop.f32.mrb[0].mxu0
      %v5111 = vadd.f32 %v5036, %v5110
      %v5112 = vpop.f32.mrb[0].mxu0
      %5113 = vmatprep.mubr.f32.mxu0 0.0
      %5114 = vmatmul.mubr.f32.gmra.mrb[0].mxu0 %v5042
      %v5115 = vpop.f32.mrb[0].mxu0
      %v5116 = vadd.f32 %v5036, %v5115
      %v5117 = vpop.f32.mrb[0].mxu0
      %5118 = vdwg.mxu0
      %v5119 = vld [vmem:[%s61] sm:$0xff]
      %v5120 = vld [vmem:[%s61 + $0x8] sm:$0xff]
      %v5121 = vld [vmem:[%s61 + $0x10] sm:$0xff]
      %v5122 = vld [vmem:[%s61 + $0x18] sm:$0xff]
      %v5123 = vld [vmem:[%s63] sm:$0x1]
      %5126 = vrot.lane.b32.xlu0 %v5111, 96
      %v5127 = vpop.permute.xlu0 %5126
      %5128 = vrot.lane.b32.xlu0 %v5116, 96
      %v5129 = vpop.permute.xlu0 %5128
      %v5130 = vsel %vm1909, %v5111, 0
      %v5132 = vsel %vm1909, %v5116, 0
      %v5134 = vsel %vm1909, %v5127, 0
      %v5136 = vsel %vm1909, %v5129, 0
      %5138 = vmatprep.subr.mxu0 0.0
      %5139 = vmatpush1.xpose.msra.mxu0 %v5134
      %5140 = vmatprep.subr.mxu0 0.0
      %5141 = vmatpush1.xpose.msra.mxu0 %v5136
      %5142 = vmatprep.subr.mxu0 0.0
      %5143 = vmatpush1.xpose.msra.mxu0 0.0
      %5144 = vmatprep.subr.mxu0 0.0
      %5145 = vmatpush1.xpose.msra.mxu0 0.0
      %5146 = vmatprep.subr.mxu0 0.0
      %5147 = vmatpush1.xpose.msra.mxu0 0.0
      %5148 = vmatprep.subr.mxu0 0.0
      %5149 = vmatpush1.xpose.msra.mxu0 0.0
      %5150 = vmatprep.subr.mxu0 0.0
      %5151 = vmatpush1.xpose.msra.mxu0 0.0
      %5152 = vmatprep.subr.mxu0 0.0
      %5153 = vmatpush1.xpose.msra.mxu0 0.0
      %5154 = vmatprep.subr.mxu0 0.0
      %5155 = vmatpush1.xpose.msra.mxu0 0.0
      %5156 = vmatprep.subr.mxu0 0.0
      %5157 = vmatpush1.xpose.msra.mxu0 0.0
      %5158 = vmatprep.subr.mxu0 0.0
      %5159 = vmatpush1.xpose.msra.mxu0 0.0
      %5160 = vmatprep.subr.mxu0 0.0
      %5161 = vmatpush1.xpose.msra.mxu0 0.0
      %5162 = vmatprep.subr.mxu0 0.0
      %5163 = vmatpush1.xpose.msra.mxu0 0.0
      %5164 = vmatprep.subr.mxu0 0.0
      %5165 = vmatpush1.xpose.msra.mxu0 0.0
      %5166 = vmatprep.subr.mxu0 0.0
      %5167 = vmatpush1.xpose.msra.mxu0 0.0
      %5168 = vmatprep.subr.mxu0 0.0
      %5169 = vmatpush1.xpose.msra.mxu0 0.0
      %5170 = vmatprep.subr.mxu0 0.0
      %5171 = vmatpush1.xpose.msra.mxu0 0.0
      %5172 = vmatprep.subr.mxu0 0.0
      %5173 = vmatpush1.xpose.msra.mxu0 0.0
      %5174 = vmatprep.subr.mxu0 0.0
      %5175 = vmatpush1.xpose.msra.mxu0 0.0
      %5176 = vmatprep.subr.mxu0 0.0
      %5177 = vmatpush1.xpose.msra.mxu0 0.0
      %5178 = vmatprep.subr.mxu0 0.0
      %5179 = vmatpush1.xpose.msra.mxu0 0.0
      %5180 = vmatprep.subr.mxu0 0.0
      %5181 = vmatpush1.xpose.msra.mxu0 0.0
      %5182 = vmatprep.subr.mxu0 0.0
      %5183 = vmatpush1.xpose.msra.mxu0 0.0
      %5184 = vmatprep.subr.mxu0 0.0
      %5185 = vmatpush1.xpose.msra.mxu0 0.0
      %5186 = vmatprep.subr.mxu0 0.0
      %5187 = vmatpush1.xpose.msra.mxu0 0.0
      %5188 = vmatprep.subr.mxu0 0.0
      %5189 = vmatpush1.xpose.msra.mxu0 0.0
      %5190 = vmatprep.subr.mxu0 0.0
      %5191 = vmatpush1.xpose.msra.mxu0 0.0
      %5192 = vmatprep.subr.mxu0 0.0
      %5193 = vmatpush1.xpose.msra.mxu0 0.0
      %5194 = vmatprep.subr.mxu0 0.0
      %5195 = vmatpush1.xpose.msra.mxu0 0.0
      %5196 = vmatprep.subr.mxu0 0.0
      %5197 = vmatpush1.xpose.msra.mxu0 0.0
      %5198 = vmatprep.subr.mxu0 0.0
      %5199 = vmatpush1.xpose.msra.mxu0 0.0
      %5200 = vmatprep.subr.mxu0 0.0
      %5201 = vmatpush1.xpose.msra.mxu0 0.0
      %5202 = vmatprep.mubr.f32.mxu0 0.0
      %5203 = vmatmul.mubr.f32.gmra.mrb[0].mxu0 %v5130
      %v5204 = vpop.f32.mrb[0].mxu0
      %v5205 = vadd.f32 0.0, %v5204
      %v5206 = vpop.f32.mrb[0].mxu0
      %5207 = vmatprep.mubr.f32.mxu0 0.0
      %5208 = vmatmul.mubr.f32.gmra.mrb[0].mxu0 %v5132
      %v5209 = vpop.f32.mrb[0].mxu0
      %v5210 = vadd.f32 0.0, %v5209
      %v5211 = vpop.f32.mrb[0].mxu0
      %5212 = vdwg.mxu0
      %v5213 = vmul.f32 %v5205, 0.25
      %v5214 = vmul.f32 %v5210, 0.25
      %v5215 = vsel %vm1909, %v5213, -inf
      %5216 = vmax.xlane.f32.xlu0 %v5215
      %v5217 = vpop.xlane.xlu0 %5216
      %v5218 = vsel %vm1909, %v5214, -inf
      %5219 = vmax.xlane.f32.xlu0 %v5218
      %v5220 = vpop.xlane.xlu0 %5219
      %v5221 = vsub.f32 %v5213, %v5217
      %v5222 = vsub.f32 %v5214, %v5220
      %v5223 = vmul.f32 %v5221, 1.442695
      %v5224 = vpow.pop %v5223
      %v5225 = vmul.f32 %v5222, 1.442695
      %v5226 = vpow.pop %v5225
      %v5227 = vsel %vm1909, %v5224, 0.0
      %5228 = vadd.xlane.f32.xlu0 %v5227
      %v5229 = vpop.xlane.xlu0 %5228
      %v5230 = vsel %vm1909, %v5226, 0.0
      %5231 = vadd.xlane.f32.xlu0 %v5230
      %v5232 = vpop.xlane.xlu0 %5231
      %v5233 = vrcp.pop %v5229
      %v5234 = vrcp.pop %v5232
      %v5235 = vmul.f32 %v5224, %v5233
      %v5236 = vmul.f32 %v5226, %v5234
      %5237 = vrot.lane.b32.xlu0 %v5111, 64
      %v5238 = vpop.permute.xlu0 %5237
      %5239 = vrot.lane.b32.xlu0 %v5116, 64
      %v5240 = vpop.permute.xlu0 %5239
      %v5244 = vsel %vm1909, %v5235, 0
      %v5247 = vsel %vm1909, %v5236, 0
      %5249 = vmatprep.subr.mxu0 0.0
      %5250 = vmatpush1.msra.mxu0 %v5238
      %5251 = vmatprep.subr.mxu0 0.0
      %5252 = vmatpush1.msra.mxu0 %v5240
      %5253 = vmatprep.subr.mxu0 0.0
      %5254 = vmatpush1.msra.mxu0 0.0
      %5255 = vmatprep.subr.mxu0 0.0
      %5256 = vmatpush1.msra.mxu0 0.0
      %5257 = vmatprep.subr.mxu0 0.0
      %5258 = vmatpush1.msra.mxu0 0.0
      %5259 = vmatprep.subr.mxu0 0.0
      %5260 = vmatpush1.msra.mxu0 0.0
      %5261 = vmatprep.subr.mxu0 0.0
      %5262 = vmatpush1.msra.mxu0 0.0
      %5263 = vmatprep.subr.mxu0 0.0
      %5264 = vmatpush1.msra.mxu0 0.0
      %5265 = vmatprep.subr.mxu0 0.0
      %5266 = vmatpush1.msra.mxu0 0.0
      %5267 = vmatprep.subr.mxu0 0.0
      %5268 = vmatpush1.msra.mxu0 0.0
      %5269 = vmatprep.subr.mxu0 0.0
      %5270 = vmatpush1.msra.mxu0 0.0
      %5271 = vmatprep.subr.mxu0 0.0
      %5272 = vmatpush1.msra.mxu0 0.0
      %5273 = vmatprep.subr.mxu0 0.0
      %5274 = vmatpush1.msra.mxu0 0.0
      %5275 = vmatprep.subr.mxu0 0.0
      %5276 = vmatpush1.msra.mxu0 0.0
      %5277 = vmatprep.subr.mxu0 0.0
      %5278 = vmatpush1.msra.mxu0 0.0
      %5279 = vmatprep.subr.mxu0 0.0
      %5280 = vmatpush1.msra.mxu0 0.0
      %5281 = vmatprep.subr.mxu0 0.0
      %5282 = vmatpush1.msra.mxu0 0.0
      %5283 = vmatprep.subr.mxu0 0.0
      %5284 = vmatpush1.msra.mxu0 0.0
      %5285 = vmatprep.subr.mxu0 0.0
      %5286 = vmatpush1.msra.mxu0 0.0
      %5287 = vmatprep.subr.mxu0 0.0
      %5288 = vmatpush1.msra.mxu0 0.0
      %5289 = vmatprep.subr.mxu0 0.0
      %5290 = vmatpush1.msra.mxu0 0.0
      %5291 = vmatprep.subr.mxu0 0.0
      %5292 = vmatpush1.msra.mxu0 0.0
      %5293 = vmatprep.subr.mxu0 0.0
      %5294 = vmatpush1.msra.mxu0 0.0
      %5295 = vmatprep.subr.mxu0 0.0
      %5296 = vmatpush1.msra.mxu0 0.0
      %5297 = vmatprep.subr.mxu0 0.0
      %5298 = vmatpush1.msra.mxu0 0.0
      %5299 = vmatprep.subr.mxu0 0.0
      %5300 = vmatpush1.msra.mxu0 0.0
      %5301 = vmatprep.subr.mxu0 0.0
      %5302 = vmatpush1.msra.mxu0 0.0
      %5303 = vmatprep.subr.mxu0 0.0
      %5304 = vmatpush1.msra.mxu0 0.0
      %5305 = vmatprep.subr.mxu0 0.0
      %5306 = vmatpush1.msra.mxu0 0.0
      %5307 = vmatprep.subr.mxu0 0.0
      %5308 = vmatpush1.msra.mxu0 0.0
      %5309 = vmatprep.subr.mxu0 0.0
      %5310 = vmatpush1.msra.mxu0 0.0
      %5311 = vmatprep.subr.mxu0 0.0
      %5312 = vmatpush1.msra.mxu0 0.0
      %5313 = vmatprep.mubr.f32.mxu0 0.0
      %5314 = vmatmul.mubr.f32.gmra.mrb[0].mxu0 %v5244
      %v5315 = vpop.f32.mrb[0].mxu0
      %v5316 = vadd.f32 0.0, %v5315
      %v5317 = vpop.f32.mrb[0].mxu0
      %5318 = vmatprep.mubr.f32.mxu0 0.0
      %5319 = vmatmul.mubr.f32.gmra.mrb[0].mxu0 %v5247
      %v5320 = vpop.f32.mrb[0].mxu0
      %v5321 = vadd.f32 0.0, %v5320
      %v5322 = vpop.f32.mrb[0].mxu0
      %5323 = vdwg.mxu0
      %5324 = vrot.lane.b32.xlu0 %v5111, 112
      %v5325 = vpop.permute.xlu0 %5324
      %5326 = vrot.lane.b32.xlu0 %v5116, 112
      %v5327 = vpop.permute.xlu0 %5326
      %5328 = vrot.lane.b32.xlu0 %v5111, 80
      %v5329 = vpop.permute.xlu0 %5328
      %5330 = vrot.lane.b32.xlu0 %v5116, 80
      %v5331 = vpop.permute.xlu0 %5330
      %v5332 = vsel %vm1909, %v5325, 0
      %v5334 = vsel %vm1909, %v5327, 0
      %v5336 = vsel %vm1909, %v5329, 0
      %v5338 = vsel %vm1909, %v5331, 0
      %5340 = vmatprep.subr.mxu0 0.0
      %5341 = vmatpush1.xpose.msra.mxu0 %v5336
      %5342 = vmatprep.subr.mxu0 0.0
      %5343 = vmatpush1.xpose.msra.mxu0 %v5338
      %5344 = vmatprep.subr.mxu0 0.0
      %5345 = vmatpush1.xpose.msra.mxu0 0.0
      %5346 = vmatprep.subr.mxu0 0.0
      %5347 = vmatpush1.xpose.msra.mxu0 0.0
      %5348 = vmatprep.subr.mxu0 0.0
      %5349 = vmatpush1.xpose.msra.mxu0 0.0
      %5350 = vmatprep.subr.mxu0 0.0
      %5351 = vmatpush1.xpose.msra.mxu0 0.0
      %5352 = vmatprep.subr.mxu0 0.0
      %5353 = vmatpush1.xpose.msra.mxu0 0.0
      %5354 = vmatprep.subr.mxu0 0.0
      %5355 = vmatpush1.xpose.msra.mxu0 0.0
      %5356 = vmatprep.subr.mxu0 0.0
      %5357 = vmatpush1.xpose.msra.mxu0 0.0
      %5358 = vmatprep.subr.mxu0 0.0
      %5359 = vmatpush1.xpose.msra.mxu0 0.0
      %5360 = vmatprep.subr.mxu0 0.0
      %5361 = vmatpush1.xpose.msra.mxu0 0.0
      %5362 = vmatprep.subr.mxu0 0.0
      %5363 = vmatpush1.xpose.msra.mxu0 0.0
      %5364 = vmatprep.subr.mxu0 0.0
      %5365 = vmatpush1.xpose.msra.mxu0 0.0
      %5366 = vmatprep.subr.mxu0 0.0
      %5367 = vmatpush1.xpose.msra.mxu0 0.0
      %5368 = vmatprep.subr.mxu0 0.0
      %5369 = vmatpush1.xpose.msra.mxu0 0.0
      %5370 = vmatprep.subr.mxu0 0.0
      %5371 = vmatpush1.xpose.msra.mxu0 0.0
      %5372 = vmatprep.subr.mxu0 0.0
      %5373 = vmatpush1.xpose.msra.mxu0 0.0
      %5374 = vmatprep.subr.mxu0 0.0
      %5375 = vmatpush1.xpose.msra.mxu0 0.0
      %5376 = vmatprep.subr.mxu0 0.0
      %5377 = vmatpush1.xpose.msra.mxu0 0.0
      %5378 = vmatprep.subr.mxu0 0.0
      %5379 = vmatpush1.xpose.msra.mxu0 0.0
      %5380 = vmatprep.subr.mxu0 0.0
      %5381 = vmatpush1.xpose.msra.mxu0 0.0
      %5382 = vmatprep.subr.mxu0 0.0
      %5383 = vmatpush1.xpose.msra.mxu0 0.0
      %5384 = vmatprep.subr.mxu0 0.0
      %5385 = vmatpush1.xpose.msra.mxu0 0.0
      %5386 = vmatprep.subr.mxu0 0.0
      %5387 = vmatpush1.xpose.msra.mxu0 0.0
      %5388 = vmatprep.subr.mxu0 0.0
      %5389 = vmatpush1.xpose.msra.mxu0 0.0
      %5390 = vmatprep.subr.mxu0 0.0
      %5391 = vmatpush1.xpose.msra.mxu0 0.0
      %5392 = vmatprep.subr.mxu0 0.0
      %5393 = vmatpush1.xpose.msra.mxu0 0.0
      %5394 = vmatprep.subr.mxu0 0.0
      %5395 = vmatpush1.xpose.msra.mxu0 0.0
      %5396 = vmatprep.subr.mxu0 0.0
      %5397 = vmatpush1.xpose.msra.mxu0 0.0
      %5398 = vmatprep.subr.mxu0 0.0
      %5399 = vmatpush1.xpose.msra.mxu0 0.0
      %5400 = vmatprep.subr.mxu0 0.0
      %5401 = vmatpush1.xpose.msra.mxu0 0.0
      %5402 = vmatprep.subr.mxu0 0.0
      %5403 = vmatpush1.xpose.msra.mxu0 0.0
      %5404 = vmatprep.mubr.f32.mxu0 0.0
      %5405 = vmatmul.mubr.f32.gmra.mrb[0].mxu0 %v5332
      %v5406 = vpop.f32.mrb[0].mxu0
      %v5407 = vadd.f32 0.0, %v5406
      %v5408 = vpop.f32.mrb[0].mxu0
      %5409 = vmatprep.mubr.f32.mxu0 0.0
      %5410 = vmatmul.mubr.f32.gmra.mrb[0].mxu0 %v5334
      %v5411 = vpop.f32.mrb[0].mxu0
      %v5412 = vadd.f32 0.0, %v5411
      %v5413 = vpop.f32.mrb[0].mxu0
      %5414 = vdwg.mxu0
      %v5415 = vmul.f32 %v5407, 0.25
      %v5416 = vmul.f32 %v5412, 0.25
      %v5417 = vsel %vm1909, %v5415, -inf
      %5418 = vmax.xlane.f32.xlu0 %v5417
      %v5419 = vpop.xlane.xlu0 %5418
      %v5420 = vsel %vm1909, %v5416, -inf
      %5421 = vmax.xlane.f32.xlu0 %v5420
      %v5422 = vpop.xlane.xlu0 %5421
      %v5423 = vsub.f32 %v5415, %v5419
      %v5424 = vsub.f32 %v5416, %v5422
      %v5425 = vmul.f32 %v5423, 1.442695
      %v5426 = vpow.pop %v5425
      %v5427 = vmul.f32 %v5424, 1.442695
      %v5428 = vpow.pop %v5427
      %v5429 = vsel %vm1909, %v5426, 0.0
      %5430 = vadd.xlane.f32.xlu0 %v5429
      %v5431 = vpop.xlane.xlu0 %5430
      %v5432 = vsel %vm1909, %v5428, 0.0
      %5433 = vadd.xlane.f32.xlu0 %v5432
      %v5434 = vpop.xlane.xlu0 %5433
      %v5435 = vrcp.pop %v5431
      %v5436 = vrcp.pop %v5434
      %v5437 = vmul.f32 %v5426, %v5435
      %v5438 = vmul.f32 %v5428, %v5436
      %5439 = vrot.lane.b32.xlu0 %v5111, 48
      %v5440 = vpop.permute.xlu0 %5439
      %5441 = vrot.lane.b32.xlu0 %v5116, 48
      %v5442 = vpop.permute.xlu0 %5441
      %v5446 = vsel %vm1909, %v5437, 0
      %v5449 = vsel %vm1909, %v5438, 0
      %5451 = vmatprep.subr.mxu0 0.0
      %5452 = vmatpush1.msra.mxu0 %v5440
      %5453 = vmatprep.subr.mxu0 0.0
      %5454 = vmatpush1.msra.mxu0 %v5442
      %5455 = vmatprep.subr.mxu0 0.0
      %5456 = vmatpush1.msra.mxu0 0.0
      %5457 = vmatprep.subr.mxu0 0.0
      %5458 = vmatpush1.msra.mxu0 0.0
      %5459 = vmatprep.subr.mxu0 0.0
      %5460 = vmatpush1.msra.mxu0 0.0
      %5461 = vmatprep.subr.mxu0 0.0
      %5462 = vmatpush1.msra.mxu0 0.0
      %5463 = vmatprep.subr.mxu0 0.0
      %5464 = vmatpush1.msra.mxu0 0.0
      %5465 = vmatprep.subr.mxu0 0.0
      %5466 = vmatpush1.msra.mxu0 0.0
      %5467 = vmatprep.subr.mxu0 0.0
      %5468 = vmatpush1.msra.mxu0 0.0
      %5469 = vmatprep.subr.mxu0 0.0
      %5470 = vmatpush1.msra.mxu0 0.0
      %5471 = vmatprep.subr.mxu0 0.0
      %5472 = vmatpush1.msra.mxu0 0.0
      %5473 = vmatprep.subr.mxu0 0.0
      %5474 = vmatpush1.msra.mxu0 0.0
      %5475 = vmatprep.subr.mxu0 0.0
      %5476 = vmatpush1.msra.mxu0 0.0
      %5477 = vmatprep.subr.mxu0 0.0
      %5478 = vmatpush1.msra.mxu0 0.0
      %5479 = vmatprep.subr.mxu0 0.0
      %5480 = vmatpush1.msra.mxu0 0.0
      %5481 = vmatprep.subr.mxu0 0.0
      %5482 = vmatpush1.msra.mxu0 0.0
      %5483 = vmatprep.subr.mxu0 0.0
      %5484 = vmatpush1.msra.mxu0 0.0
      %5485 = vmatprep.subr.mxu0 0.0
      %5486 = vmatpush1.msra.mxu0 0.0
      %5487 = vmatprep.subr.mxu0 0.0
      %5488 = vmatpush1.msra.mxu0 0.0
      %5489 = vmatprep.subr.mxu0 0.0
      %5490 = vmatpush1.msra.mxu0 0.0
      %5491 = vmatprep.subr.mxu0 0.0
      %5492 = vmatpush1.msra.mxu0 0.0
      %5493 = vmatprep.subr.mxu0 0.0
      %5494 = vmatpush1.msra.mxu0 0.0
      %5495 = vmatprep.subr.mxu0 0.0
      %5496 = vmatpush1.msra.mxu0 0.0
      %5497 = vmatprep.subr.mxu0 0.0
      %5498 = vmatpush1.msra.mxu0 0.0
      %5499 = vmatprep.subr.mxu0 0.0
      %5500 = vmatpush1.msra.mxu0 0.0
      %5501 = vmatprep.subr.mxu0 0.0
      %5502 = vmatpush1.msra.mxu0 0.0
      %5503 = vmatprep.subr.mxu0 0.0
      %5504 = vmatpush1.msra.mxu0 0.0
      %5505 = vmatprep.subr.mxu0 0.0
      %5506 = vmatpush1.msra.mxu0 0.0
      %5507 = vmatprep.subr.mxu0 0.0
      %5508 = vmatpush1.msra.mxu0 0.0
      %5509 = vmatprep.subr.mxu0 0.0
      %5510 = vmatpush1.msra.mxu0 0.0
      %5511 = vmatprep.subr.mxu0 0.0
      %5512 = vmatpush1.msra.mxu0 0.0
      %5513 = vmatprep.subr.mxu0 0.0
      %5514 = vmatpush1.msra.mxu0 0.0
      %5515 = vmatprep.mubr.f32.mxu0 0.0
      %5516 = vmatmul.mubr.f32.gmra.mrb[0].mxu0 %v5446
      %v5517 = vpop.f32.mrb[0].mxu0
      %v5518 = vadd.f32 0.0, %v5517
      %v5519 = vpop.f32.mrb[0].mxu0
      %5520 = vmatprep.mubr.f32.mxu0 0.0
      %5521 = vmatmul.mubr.f32.gmra.mrb[0].mxu0 %v5449
      %v5522 = vpop.f32.mrb[0].mxu0
      %v5523 = vadd.f32 0.0, %v5522
      %v5524 = vpop.f32.mrb[0].mxu0
      %5525 = vdwg.mxu0
      %v5527 = vsel %vm1909, %v5518, 0
      %v5530 = vsel %vm1909, %v5523, 0
      %5532 = vmatprep.subr.mxu0 0.0
      %5533 = vmatpush1.msra.mxu0 %v5121
      %5534 = vmatprep.subr.mxu0 0.0
      %5535 = vmatpush1.msra.mxu0 %v5122
      %5536 = vmatprep.subr.mxu0 0.0
      %5537 = vmatpush1.msra.mxu0 0.0
      %5538 = vmatprep.subr.mxu0 0.0
      %5539 = vmatpush1.msra.mxu0 0.0
      %5540 = vmatprep.subr.mxu0 0.0
      %5541 = vmatpush1.msra.mxu0 0.0
      %5542 = vmatprep.subr.mxu0 0.0
      %5543 = vmatpush1.msra.mxu0 0.0
      %5544 = vmatprep.subr.mxu0 0.0
      %5545 = vmatpush1.msra.mxu0 0.0
      %5546 = vmatprep.subr.mxu0 0.0
      %5547 = vmatpush1.msra.mxu0 0.0
      %5548 = vmatprep.subr.mxu0 0.0
      %5549 = vmatpush1.msra.mxu0 0.0
      %5550 = vmatprep.subr.mxu0 0.0
      %5551 = vmatpush1.msra.mxu0 0.0
      %5552 = vmatprep.subr.mxu0 0.0
      %5553 = vmatpush1.msra.mxu0 0.0
      %5554 = vmatprep.subr.mxu0 0.0
      %5555 = vmatpush1.msra.mxu0 0.0
      %5556 = vmatprep.subr.mxu0 0.0
      %5557 = vmatpush1.msra.mxu0 0.0
      %5558 = vmatprep.subr.mxu0 0.0
      %5559 = vmatpush1.msra.mxu0 0.0
      %5560 = vmatprep.subr.mxu0 0.0
      %5561 = vmatpush1.msra.mxu0 0.0
      %5562 = vmatprep.subr.mxu0 0.0
      %5563 = vmatpush1.msra.mxu0 0.0
      %5564 = vmatprep.subr.mxu0 0.0
      %5565 = vmatpush1.msra.mxu0 0.0
      %5566 = vmatprep.subr.mxu0 0.0
      %5567 = vmatpush1.msra.mxu0 0.0
      %5568 = vmatprep.subr.mxu0 0.0
      %5569 = vmatpush1.msra.mxu0 0.0
      %5570 = vmatprep.subr.mxu0 0.0
      %5571 = vmatpush1.msra.mxu0 0.0
      %5572 = vmatprep.subr.mxu0 0.0
      %5573 = vmatpush1.msra.mxu0 0.0
      %5574 = vmatprep.subr.mxu0 0.0
      %5575 = vmatpush1.msra.mxu0 0.0
      %5576 = vmatprep.subr.mxu0 0.0
      %5577 = vmatpush1.msra.mxu0 0.0
      %5578 = vmatprep.subr.mxu0 0.0
      %5579 = vmatpush1.msra.mxu0 0.0
      %5580 = vmatprep.subr.mxu0 0.0
      %5581 = vmatpush1.msra.mxu0 0.0
      %5582 = vmatprep.subr.mxu0 0.0
      %5583 = vmatpush1.msra.mxu0 0.0
      %5584 = vmatprep.subr.mxu0 0.0
      %5585 = vmatpush1.msra.mxu0 0.0
      %5586 = vmatprep.subr.mxu0 0.0
      %5587 = vmatpush1.msra.mxu0 0.0
      %5588 = vmatprep.subr.mxu0 0.0
      %5589 = vmatpush1.msra.mxu0 0.0
      %5590 = vmatprep.subr.mxu0 0.0
      %5591 = vmatpush1.msra.mxu0 0.0
      %5592 = vmatprep.subr.mxu0 0.0
      %5593 = vmatpush1.msra.mxu0 0.0
      %5594 = vmatprep.subr.mxu0 0.0
      %5595 = vmatpush1.msra.mxu0 0.0
      %5596 = vmatprep.mubr.f32.mxu0 0.0
      %5597 = vmatmul.mubr.f32.gmra.mrb[0].mxu0 %v5527
      %v5598 = vpop.f32.mrb[0].mxu0
      %v5599 = vadd.f32 0.0, %v5598
      %v5600 = vpop.f32.mrb[0].mxu0
      %5601 = vmatprep.mubr.f32.mxu0 0.0
      %5602 = vmatmul.mubr.f32.gmra.mrb[0].mxu0 %v5530
      %v5603 = vpop.f32.mrb[0].mxu0
      %v5604 = vadd.f32 0.0, %v5603
      %v5605 = vpop.f32.mrb[0].mxu0
      %5606 = vdwg.mxu0
      %v5608 = vsel %vm1909, %v5316, 0
      %v5611 = vsel %vm1909, %v5321, 0
      %5613 = vmatprep.subr.mxu0 0.0
      %5614 = vmatpush1.msra.mxu0 %v5119
      %5615 = vmatprep.subr.mxu0 0.0
      %5616 = vmatpush1.msra.mxu0 %v5120
      %5617 = vmatprep.subr.mxu0 0.0
      %5618 = vmatpush1.msra.mxu0 0.0
      %5619 = vmatprep.subr.mxu0 0.0
      %5620 = vmatpush1.msra.mxu0 0.0
      %5621 = vmatprep.subr.mxu0 0.0
      %5622 = vmatpush1.msra.mxu0 0.0
      %5623 = vmatprep.subr.mxu0 0.0
      %5624 = vmatpush1.msra.mxu0 0.0
      %5625 = vmatprep.subr.mxu0 0.0
      %5626 = vmatpush1.msra.mxu0 0.0
      %5627 = vmatprep.subr.mxu0 0.0
      %5628 = vmatpush1.msra.mxu0 0.0
      %5629 = vmatprep.subr.mxu0 0.0
      %5630 = vmatpush1.msra.mxu0 0.0
      %5631 = vmatprep.subr.mxu0 0.0
      %5632 = vmatpush1.msra.mxu0 0.0
      %5633 = vmatprep.subr.mxu0 0.0
      %5634 = vmatpush1.msra.mxu0 0.0
      %5635 = vmatprep.subr.mxu0 0.0
      %5636 = vmatpush1.msra.mxu0 0.0
      %5637 = vmatprep.subr.mxu0 0.0
      %5638 = vmatpush1.msra.mxu0 0.0
      %5639 = vmatprep.subr.mxu0 0.0
      %5640 = vmatpush1.msra.mxu0 0.0
      %5641 = vmatprep.subr.mxu0 0.0
      %5642 = vmatpush1.msra.mxu0 0.0
      %5643 = vmatprep.subr.mxu0 0.0
      %5644 = vmatpush1.msra.mxu0 0.0
      %5645 = vmatprep.subr.mxu0 0.0
      %5646 = vmatpush1.msra.mxu0 0.0
      %5647 = vmatprep.subr.mxu0 0.0
      %5648 = vmatpush1.msra.mxu0 0.0
      %5649 = vmatprep.subr.mxu0 0.0
      %5650 = vmatpush1.msra.mxu0 0.0
      %5651 = vmatprep.subr.mxu0 0.0
      %5652 = vmatpush1.msra.mxu0 0.0
      %5653 = vmatprep.subr.mxu0 0.0
      %5654 = vmatpush1.msra.mxu0 0.0
      %5655 = vmatprep.subr.mxu0 0.0
      %5656 = vmatpush1.msra.mxu0 0.0
      %5657 = vmatprep.subr.mxu0 0.0
      %5658 = vmatpush1.msra.mxu0 0.0
      %5659 = vmatprep.subr.mxu0 0.0
      %5660 = vmatpush1.msra.mxu0 0.0
      %5661 = vmatprep.subr.mxu0 0.0
      %5662 = vmatpush1.msra.mxu0 0.0
      %5663 = vmatprep.subr.mxu0 0.0
      %5664 = vmatpush1.msra.mxu0 0.0
      %5665 = vmatprep.subr.mxu0 0.0
      %5666 = vmatpush1.msra.mxu0 0.0
      %5667 = vmatprep.subr.mxu0 0.0
      %5668 = vmatpush1.msra.mxu0 0.0
      %5669 = vmatprep.subr.mxu0 0.0
      %5670 = vmatpush1.msra.mxu0 0.0
      %5671 = vmatprep.subr.mxu0 0.0
      %5672 = vmatpush1.msra.mxu0 0.0
      %5673 = vmatprep.subr.mxu0 0.0
      %5674 = vmatpush1.msra.mxu0 0.0
      %5675 = vmatprep.subr.mxu0 0.0
      %5676 = vmatpush1.msra.mxu0 0.0
      %5677 = vmatprep.mubr.f32.mxu0 0.0
      %5678 = vmatmul.mubr.f32.gmra.mrb[0].mxu0 %v5608
      %v5679 = vpop.f32.mrb[0].mxu0
      %v5680 = vadd.f32 %v5599, %v5679
      %v5681 = vpop.f32.mrb[0].mxu0
      %5682 = vmatprep.mubr.f32.mxu0 0.0
      %5683 = vmatmul.mubr.f32.gmra.mrb[0].mxu0 %v5611
      %v5684 = vpop.f32.mrb[0].mxu0
      %v5685 = vadd.f32 %v5604, %v5684
      %v5686 = vpop.f32.mrb[0].mxu0
      %5687 = vdwg.mxu0
      %v5689 = vlaneseq
      %v5690 = vshrl.u32 %v5689, 7
      %v5691 = vsub.s32 0, %v5690
      %v5692 = vrot.slane %v5123, %v5691
      %v5694 = vadd.f32 %v5680, %v5692
      %v5695 = vadd.f32 %v5685, %v5692
      %v5696 = vadd.f32 %v4986, %v5694
      %v5697 = vadd.f32 %v4987, %v5695
      %v5698 = vld [vmem:[%s65] sm:$0x3]
      %v5699 = vsel %vm1662, %v5696, 0.0
      %5700 = vadd.xlane.f32.xlu0 %v5699
      %v5701 = vpop.xlane.xlu0 %5700
      %v5702 = vsel %vm1662, %v5697, 0.0
      %5703 = vadd.xlane.f32.xlu0 %v5702
      %v5704 = vpop.xlane.xlu0 %5703
      %v5705 = vmul.f32 %v5701, %v1681
      %v5706 = vmul.f32 %v5704, %v1681
      %v5707 = vsub.f32 %v5696, %v5705
      %v5708 = vsub.f32 %v5697, %v5706
      %v5709 = vmul.f32 %v5707, %v5707
      %v5710 = vmul.f32 %v5708, %v5708
      %v5711 = vsel %vm1662, %v5709, 0.0
      %5712 = vadd.xlane.f32.xlu0 %v5711
      %v5713 = vpop.xlane.xlu0 %5712
      %v5714 = vsel %vm1662, %v5710, 0.0
      %5715 = vadd.xlane.f32.xlu0 %v5714
      %v5716 = vpop.xlane.xlu0 %5715
      %v5717 = vmul.f32 %v5713, %v1681
      %v5718 = vmul.f32 %v5716, %v1681
      %v5719 = vadd.f32 %v5717, 1e-06
      %v5720 = vadd.f32 %v5718, 1e-06
      %v5721 = vrsqrt.pop %v5719
      %v5722 = vrsqrt.pop %v5720
      %v5723 = vmul.f32 %v5707, %v5721
      %v5724 = vmul.f32 %v5708, %v5722
      %v5725 = vlaneseq
      %v5726 = vshrl.u32 %v5725, 7
      %v5727 = vsub.s32 0, %v5726
      %v5728 = vrot.slane %v5698, %v5727
      %v5729 = vmul.f32 %v5723, %v5728
      %v5730 = vmul.f32 %v5724, %v5728
      %v5731 = vlaneseq
      %v5732 = vshrl.u32 %v5731, 7
      %v5733 = vsub.s32 1, %v5732
      %v5734 = vrot.slane %v5698, %v5733
      %v5735 = vadd.f32 %v5729, %v5734
      %v5736 = vadd.f32 %v5730, %v5734
      %v5737 = vld [vmem:[%s67] sm:$0xff]
      %v5738 = vld [vmem:[%s67 + $0x8] sm:$0xff]
      %v5739 = vld [vmem:[%s67 + $0x10] sm:$0xff]
      %v5740 = vld [vmem:[%s67 + $0x18] sm:$0xff]
      %v5741 = vld [vmem:[%s69] sm:$0x1]
      %v5743 = vlaneseq
      %v5744 = vshrl.u32 %v5743, 7
      %v5745 = vsub.s32 0, %v5744
      %v5746 = vrot.slane %v5741, %v5745
      %v5749 = vsel %vm1662, %v5735, 0
      %v5752 = vsel %vm1662, %v5736, 0
      %5754 = vmatprep.subr.mxu0 0.0
      %5755 = vmatpush1.msra.mxu0 %v5737
      %5756 = vmatprep.subr.mxu0 0.0
      %5757 = vmatpush1.msra.mxu0 %v5738
      %5758 = vmatprep.subr.mxu0 0.0
      %5759 = vmatpush1.msra.mxu0 %v5739
      %5760 = vmatprep.subr.mxu0 0.0
      %5761 = vmatpush1.msra.mxu0 %v5740
      %5762 = vmatprep.subr.mxu0 0.0
      %5763 = vmatpush1.msra.mxu0 0.0
      %5764 = vmatprep.subr.mxu0 0.0
      %5765 = vmatpush1.msra.mxu0 0.0
      %5766 = vmatprep.subr.mxu0 0.0
      %5767 = vmatpush1.msra.mxu0 0.0
      %5768 = vmatprep.subr.mxu0 0.0
      %5769 = vmatpush1.msra.mxu0 0.0
      %5770 = vmatprep.subr.mxu0 0.0
      %5771 = vmatpush1.msra.mxu0 0.0
      %5772 = vmatprep.subr.mxu0 0.0
      %5773 = vmatpush1.msra.mxu0 0.0
      %5774 = vmatprep.subr.mxu0 0.0
      %5775 = vmatpush1.msra.mxu0 0.0
      %5776 = vmatprep.subr.mxu0 0.0
      %5777 = vmatpush1.msra.mxu0 0.0
      %5778 = vmatprep.subr.mxu0 0.0
      %5779 = vmatpush1.msra.mxu0 0.0
      %5780 = vmatprep.subr.mxu0 0.0
      %5781 = vmatpush1.msra.mxu0 0.0
      %5782 = vmatprep.subr.mxu0 0.0
      %5783 = vmatpush1.msra.mxu0 0.0
      %5784 = vmatprep.subr.mxu0 0.0
      %5785 = vmatpush1.msra.mxu0 0.0
      %5786 = vmatprep.subr.mxu0 0.0
      %5787 = vmatpush1.msra.mxu0 0.0
      %5788 = vmatprep.subr.mxu0 0.0
      %5789 = vmatpush1.msra.mxu0 0.0
      %5790 = vmatprep.subr.mxu0 0.0
      %5791 = vmatpush1.msra.mxu0 0.0
      %5792 = vmatprep.subr.mxu0 0.0
      %5793 = vmatpush1.msra.mxu0 0.0
      %5794 = vmatprep.subr.mxu0 0.0
      %5795 = vmatpush1.msra.mxu0 0.0
      %5796 = vmatprep.subr.mxu0 0.0
      %5797 = vmatpush1.msra.mxu0 0.0
      %5798 = vmatprep.subr.mxu0 0.0
      %5799 = vmatpush1.msra.mxu0 0.0
      %5800 = vmatprep.subr.mxu0 0.0
      %5801 = vmatpush1.msra.mxu0 0.0
      %5802 = vmatprep.subr.mxu0 0.0
      %5803 = vmatpush1.msra.mxu0 0.0
      %5804 = vmatprep.subr.mxu0 0.0
      %5805 = vmatpush1.msra.mxu0 0.0
      %5806 = vmatprep.subr.mxu0 0.0
      %5807 = vmatpush1.msra.mxu0 0.0
      %5808 = vmatprep.subr.mxu0 0.0
      %5809 = vmatpush1.msra.mxu0 0.0
      %5810 = vmatprep.subr.mxu0 0.0
      %5811 = vmatpush1.msra.mxu0 0.0
      %5812 = vmatprep.subr.mxu0 0.0
      %5813 = vmatpush1.msra.mxu0 0.0
      %5814 = vmatprep.subr.mxu0 0.0
      %5815 = vmatpush1.msra.mxu0 0.0
      %5816 = vmatprep.subr.mxu0 0.0
      %5817 = vmatpush1.msra.mxu0 0.0
      %5818 = vmatprep.mubr.f32.mxu0 0.0
      %5819 = vmatmul.mubr.f32.gmra.mrb[0].mxu0 %v5749
      %v5820 = vpop.f32.mrb[0].mxu0
      %v5821 = vadd.f32 %v5746, %v5820
      %v5822 = vpop.f32.mrb[0].mxu0
      %5823 = vmatprep.mubr.f32.mxu0 0.0
      %5824 = vmatmul.mubr.f32.gmra.mrb[0].mxu0 %v5752
      %v5825 = vpop.f32.mrb[0].mxu0
      %v5826 = vadd.f32 %v5746, %v5825
      %v5827 = vpop.f32.mrb[0].mxu0
      %5828 = vdwg.mxu0
      %v5829 = vld [vmem:[%s71] sm:$0xff]
      %v5830 = vld [vmem:[%s71 + $0x8] sm:$0xff]
      %v5831 = vld [vmem:[%s71 + $0x10] sm:$0xff]
      %v5832 = vld [vmem:[%s71 + $0x18] sm:$0xff]
      %v5833 = vld [vmem:[%s73] sm:$0x1]
      %v5835 = vlaneseq
      %v5836 = vshrl.u32 %v5835, 7
      %v5837 = vsub.s32 0, %v5836
      %v5838 = vrot.slane %v5833, %v5837
      %v5841 = vsel %vm1662, %v4886, 0
      %v5844 = vsel %vm1662, %v4887, 0
      %v5847 = vsel %vm1662, %v4888, 0
      %v5850 = vsel %vm1662, %v4889, 0
      %v5853 = vsel %vm1662, %v4890, 0
      %v5856 = vsel %vm1662, %v4891, 0
      %5858 = vmatprep.subr.mxu0 0.0
      %5859 = vmatpush1.msra.mxu0 %v5829
      %5860 = vmatprep.subr.mxu0 0.0
      %5861 = vmatpush1.msra.mxu0 %v5830
      %5862 = vmatprep.subr.mxu0 0.0
      %5863 = vmatpush1.msra.mxu0 %v5831
      %5864 = vmatprep.subr.mxu0 0.0
      %5865 = vmatpush1.msra.mxu0 %v5832
      %5866 = vmatprep.subr.mxu0 0.0
      %5867 = vmatpush1.msra.mxu0 0.0
      %5868 = vmatprep.subr.mxu0 0.0
      %5869 = vmatpush1.msra.mxu0 0.0
      %5870 = vmatprep.subr.mxu0 0.0
      %5871 = vmatpush1.msra.mxu0 0.0
      %5872 = vmatprep.subr.mxu0 0.0
      %5873 = vmatpush1.msra.mxu0 0.0
      %5874 = vmatprep.subr.mxu0 0.0
      %5875 = vmatpush1.msra.mxu0 0.0
      %5876 = vmatprep.subr.mxu0 0.0
      %5877 = vmatpush1.msra.mxu0 0.0
      %5878 = vmatprep.subr.mxu0 0.0
      %5879 = vmatpush1.msra.mxu0 0.0
      %5880 = vmatprep.subr.mxu0 0.0
      %5881 = vmatpush1.msra.mxu0 0.0
      %5882 = vmatprep.subr.mxu0 0.0
      %5883 = vmatpush1.msra.mxu0 0.0
      %5884 = vmatprep.subr.mxu0 0.0
      %5885 = vmatpush1.msra.mxu0 0.0
      %5886 = vmatprep.subr.mxu0 0.0
      %5887 = vmatpush1.msra.mxu0 0.0
      %5888 = vmatprep.subr.mxu0 0.0
      %5889 = vmatpush1.msra.mxu0 0.0
      %5890 = vmatprep.subr.mxu0 0.0
      %5891 = vmatpush1.msra.mxu0 0.0
      %5892 = vmatprep.subr.mxu0 0.0
      %5893 = vmatpush1.msra.mxu0 0.0
      %5894 = vmatprep.subr.mxu0 0.0
      %5895 = vmatpush1.msra.mxu0 0.0
      %5896 = vmatprep.subr.mxu0 0.0
      %5897 = vmatpush1.msra.mxu0 0.0
      %5898 = vmatprep.subr.mxu0 0.0
      %5899 = vmatpush1.msra.mxu0 0.0
      %5900 = vmatprep.subr.mxu0 0.0
      %5901 = vmatpush1.msra.mxu0 0.0
      %5902 = vmatprep.subr.mxu0 0.0
      %5903 = vmatpush1.msra.mxu0 0.0
      %5904 = vmatprep.subr.mxu0 0.0
      %5905 = vmatpush1.msra.mxu0 0.0
      %5906 = vmatprep.subr.mxu0 0.0
      %5907 = vmatpush1.msra.mxu0 0.0
      %5908 = vmatprep.subr.mxu0 0.0
      %5909 = vmatpush1.msra.mxu0 0.0
      %5910 = vmatprep.subr.mxu0 0.0
      %5911 = vmatpush1.msra.mxu0 0.0
      %5912 = vmatprep.subr.mxu0 0.0
      %5913 = vmatpush1.msra.mxu0 0.0
      %5914 = vmatprep.subr.mxu0 0.0
      %5915 = vmatpush1.msra.mxu0 0.0
      %5916 = vmatprep.subr.mxu0 0.0
      %5917 = vmatpush1.msra.mxu0 0.0
      %5918 = vmatprep.subr.mxu0 0.0
      %5919 = vmatpush1.msra.mxu0 0.0
      %5920 = vmatprep.subr.mxu0 0.0
      %5921 = vmatpush1.msra.mxu0 0.0
      %5922 = vmatprep.mubr.f32.mxu0 0.0
      %5923 = vmatmul.mubr.f32.gmra.mrb[0].mxu0 %v5841
      %v5924 = vpop.f32.mrb[0].mxu0
      %v5925 = vadd.f32 %v5838, %v5924
      %v5926 = vpop.f32.mrb[0].mxu0
      %5927 = vmatprep.mubr.f32.mxu0 0.0
      %5928 = vmatmul.mubr.f32.gmra.mrb[0].mxu0 %v5844
      %v5929 = vpop.f32.mrb[0].mxu0
      %v5930 = vadd.f32 %v5838, %v5929
      %v5931 = vpop.f32.mrb[0].mxu0
      %5932 = vmatprep.mubr.f32.mxu0 0.0
      %5933 = vmatmul.mubr.f32.gmra.mrb[0].mxu0 %v5847
      %v5934 = vpop.f32.mrb[0].mxu0
      %v5935 = vadd.f32 %v5838, %v5934
      %v5936 = vpop.f32.mrb[0].mxu0
      %5937 = vmatprep.mubr.f32.mxu0 0.0
      %5938 = vmatmul.mubr.f32.gmra.mrb[0].mxu0 %v5850
      %v5939 = vpop.f32.mrb[0].mxu0
      %v5940 = vadd.f32 %v5838, %v5939
      %v5941 = vpop.f32.mrb[0].mxu0
      %5942 = vmatprep.mubr.f32.mxu0 0.0
      %5943 = vmatmul.mubr.f32.gmra.mrb[0].mxu0 %v5853
      %v5944 = vpop.f32.mrb[0].mxu0
      %v5945 = vadd.f32 %v5838, %v5944
      %v5946 = vpop.f32.mrb[0].mxu0
      %5947 = vmatprep.mubr.f32.mxu0 0.0
      %5948 = vmatmul.mubr.f32.gmra.mrb[0].mxu0 %v5856
      %v5949 = vpop.f32.mrb[0].mxu0
      %v5950 = vadd.f32 %v5838, %v5949
      %v5951 = vpop.f32.mrb[0].mxu0
      %5952 = vdwg.mxu0
      %v5953 = vld [vmem:[%s75] sm:$0xff]
      %v5954 = vld [vmem:[%s75 + $0x8] sm:$0xff]
      %v5955 = vld [vmem:[%s75 + $0x10] sm:$0xff]
      %v5956 = vld [vmem:[%s75 + $0x18] sm:$0xff]
      %v5957 = vld [vmem:[%s77] sm:$0x1]
      %v5959 = vsel %vm1909, %v5821, 0
      %v5962 = vsel %vm1909, %v5826, 0
      %v5965 = vsel %vm1909, %v5925, 0
      %v5968 = vsel %vm1909, %v5930, 0
      %v5971 = vsel %vm1909, %v5935, 0
      %v5974 = vsel %vm1909, %v5940, 0
      %v5977 = vsel %vm1909, %v5945, 0
      %v5980 = vsel %vm1909, %v5950, 0
      %5982 = vmatprep.subr.mxu0 0.0
      %5983 = vmatpush1.xpose.msra.mxu0 %v5965
      %5984 = vmatprep.subr.mxu0 0.0
      %5985 = vmatpush1.xpose.msra.mxu0 %v5968
      %5986 = vmatprep.subr.mxu0 0.0
      %5987 = vmatpush1.xpose.msra.mxu0 %v5971
      %5988 = vmatprep.subr.mxu0 0.0
      %5989 = vmatpush1.xpose.msra.mxu0 %v5974
      %5990 = vmatprep.subr.mxu0 0.0
      %5991 = vmatpush1.xpose.msra.mxu0 %v5977
      %5992 = vmatprep.subr.mxu0 0.0
      %5993 = vmatpush1.xpose.msra.mxu0 %v5980
      %5994 = vmatprep.subr.mxu0 0.0
      %5995 = vmatpush1.xpose.msra.mxu0 0.0
      %5996 = vmatprep.subr.mxu0 0.0
      %5997 = vmatpush1.xpose.msra.mxu0 0.0
      %5998 = vmatprep.subr.mxu0 0.0
      %5999 = vmatpush1.xpose.msra.mxu0 0.0
      %6000 = vmatprep.subr.mxu0 0.0
      %6001 = vmatpush1.xpose.msra.mxu0 0.0
      %6002 = vmatprep.subr.mxu0 0.0
      %6003 = vmatpush1.xpose.msra.mxu0 0.0
      %6004 = vmatprep.subr.mxu0 0.0
      %6005 = vmatpush1.xpose.msra.mxu0 0.0
      %6006 = vmatprep.subr.mxu0 0.0
      %6007 = vmatpush1.xpose.msra.mxu0 0.0
      %6008 = vmatprep.subr.mxu0 0.0
      %6009 = vmatpush1.xpose.msra.mxu0 0.0
      %6010 = vmatprep.subr.mxu0 0.0
      %6011 = vmatpush1.xpose.msra.mxu0 0.0
      %6012 = vmatprep.subr.mxu0 0.0
      %6013 = vmatpush1.xpose.msra.mxu0 0.0
      %6014 = vmatprep.subr.mxu0 0.0
      %6015 = vmatpush1.xpose.msra.mxu0 0.0
      %6016 = vmatprep.subr.mxu0 0.0
      %6017 = vmatpush1.xpose.msra.mxu0 0.0
      %6018 = vmatprep.subr.mxu0 0.0
      %6019 = vmatpush1.xpose.msra.mxu0 0.0
      %6020 = vmatprep.subr.mxu0 0.0
      %6021 = vmatpush1.xpose.msra.mxu0 0.0
      %6022 = vmatprep.subr.mxu0 0.0
      %6023 = vmatpush1.xpose.msra.mxu0 0.0
      %6024 = vmatprep.subr.mxu0 0.0
      %6025 = vmatpush1.xpose.msra.mxu0 0.0
      %6026 = vmatprep.subr.mxu0 0.0
      %6027 = vmatpush1.xpose.msra.mxu0 0.0
      %6028 = vmatprep.subr.mxu0 0.0
      %6029 = vmatpush1.xpose.msra.mxu0 0.0
      %6030 = vmatprep.subr.mxu0 0.0
      %6031 = vmatpush1.xpose.msra.mxu0 0.0
      %6032 = vmatprep.subr.mxu0 0.0
      %6033 = vmatpush1.xpose.msra.mxu0 0.0
      %6034 = vmatprep.subr.mxu0 0.0
      %6035 = vmatpush1.xpose.msra.mxu0 0.0
      %6036 = vmatprep.subr.mxu0 0.0
      %6037 = vmatpush1.xpose.msra.mxu0 0.0
      %6038 = vmatprep.subr.mxu0 0.0
      %6039 = vmatpush1.xpose.msra.mxu0 0.0
      %6040 = vmatprep.subr.mxu0 0.0
      %6041 = vmatpush1.xpose.msra.mxu0 0.0
      %6042 = vmatprep.subr.mxu0 0.0
      %6043 = vmatpush1.xpose.msra.mxu0 0.0
      %6044 = vmatprep.subr.mxu0 0.0
      %6045 = vmatpush1.xpose.msra.mxu0 0.0
      %6046 = vmatprep.mubr.f32.mxu0 0.0
      %6047 = vmatmul.mubr.f32.gmra.mrb[0].mxu0 %v5959
      %v6048 = vpop.f32.mrb[0].mxu0
      %v6049 = vadd.f32 0.0, %v6048
      %v6050 = vpop.f32.mrb[0].mxu0
      %6051 = vmatprep.mubr.f32.mxu0 0.0
      %6052 = vmatmul.mubr.f32.gmra.mrb[0].mxu0 %v5962
      %v6053 = vpop.f32.mrb[0].mxu0
      %v6054 = vadd.f32 0.0, %v6053
      %v6055 = vpop.f32.mrb[0].mxu0
      %6056 = vdwg.mxu0
      %v6057 = vmul.f32 %v6049, 0.25
      %v6058 = vmul.f32 %v6054, 0.25
      %v6059 = vsel %vm2035, %v6057, -inf
      %6060 = vmax.xlane.f32.xlu0 %v6059
      %v6061 = vpop.xlane.xlu0 %6060
      %v6062 = vsel %vm2035, %v6058, -inf
      %6063 = vmax.xlane.f32.xlu0 %v6062
      %v6064 = vpop.xlane.xlu0 %6063
      %v6065 = vsub.f32 %v6057, %v6061
      %v6066 = vsub.f32 %v6058, %v6064
      %v6067 = vmul.f32 %v6065, 1.442695
      %v6068 = vpow.pop %v6067
      %v6069 = vmul.f32 %v6066, 1.442695
      %v6070 = vpow.pop %v6069
      %v6071 = vsel %vm2035, %v6068, 0.0
      %6072 = vadd.xlane.f32.xlu0 %v6071
      %v6073 = vpop.xlane.xlu0 %6072
      %v6074 = vsel %vm2035, %v6070, 0.0
      %6075 = vadd.xlane.f32.xlu0 %v6074
      %v6076 = vpop.xlane.xlu0 %6075
      %v6077 = vrcp.pop %v6073
      %v6078 = vrcp.pop %v6076
      %v6079 = vmul.f32 %v6068, %v6077
      %v6080 = vmul.f32 %v6070, %v6078
      %6081 = vrot.lane.b32.xlu0 %v5925, 96
      %v6082 = vpop.permute.xlu0 %6081
      %6083 = vrot.lane.b32.xlu0 %v5930, 96
      %v6084 = vpop.permute.xlu0 %6083
      %6085 = vrot.lane.b32.xlu0 %v5935, 96
      %v6086 = vpop.permute.xlu0 %6085
      %6087 = vrot.lane.b32.xlu0 %v5940, 96
      %v6088 = vpop.permute.xlu0 %6087
      %6089 = vrot.lane.b32.xlu0 %v5945, 96
      %v6090 = vpop.permute.xlu0 %6089
      %6091 = vrot.lane.b32.xlu0 %v5950, 96
      %v6092 = vpop.permute.xlu0 %6091
      %v6100 = vsel %vm2035, %v6079, 0
      %v6103 = vsel %vm2035, %v6080, 0
      %6105 = vmatprep.subr.mxu0 0.0
      %6106 = vmatpush1.msra.mxu0 %v6082
      %6107 = vmatprep.subr.mxu0 0.0
      %6108 = vmatpush1.msra.mxu0 %v6084
      %6109 = vmatprep.subr.mxu0 0.0
      %6110 = vmatpush1.msra.mxu0 %v6086
      %6111 = vmatprep.subr.mxu0 0.0
      %6112 = vmatpush1.msra.mxu0 %v6088
      %6113 = vmatprep.subr.mxu0 0.0
      %6114 = vmatpush1.msra.mxu0 %v6090
      %6115 = vmatprep.subr.mxu0 0.0
      %6116 = vmatpush1.msra.mxu0 %v6092
      %6117 = vmatprep.subr.mxu0 0.0
      %6118 = vmatpush1.msra.mxu0 0.0
      %6119 = vmatprep.subr.mxu0 0.0
      %6120 = vmatpush1.msra.mxu0 0.0
      %6121 = vmatprep.subr.mxu0 0.0
      %6122 = vmatpush1.msra.mxu0 0.0
      %6123 = vmatprep.subr.mxu0 0.0
      %6124 = vmatpush1.msra.mxu0 0.0
      %6125 = vmatprep.subr.mxu0 0.0
      %6126 = vmatpush1.msra.mxu0 0.0
      %6127 = vmatprep.subr.mxu0 0.0
      %6128 = vmatpush1.msra.mxu0 0.0
      %6129 = vmatprep.subr.mxu0 0.0
      %6130 = vmatpush1.msra.mxu0 0.0
      %6131 = vmatprep.subr.mxu0 0.0
      %6132 = vmatpush1.msra.mxu0 0.0
      %6133 = vmatprep.subr.mxu0 0.0
      %6134 = vmatpush1.msra.mxu0 0.0
      %6135 = vmatprep.subr.mxu0 0.0
      %6136 = vmatpush1.msra.mxu0 0.0
      %6137 = vmatprep.subr.mxu0 0.0
      %6138 = vmatpush1.msra.mxu0 0.0
      %6139 = vmatprep.subr.mxu0 0.0
      %6140 = vmatpush1.msra.mxu0 0.0
      %6141 = vmatprep.subr.mxu0 0.0
      %6142 = vmatpush1.msra.mxu0 0.0
      %6143 = vmatprep.subr.mxu0 0.0
      %6144 = vmatpush1.msra.mxu0 0.0
      %6145 = vmatprep.subr.mxu0 0.0
      %6146 = vmatpush1.msra.mxu0 0.0
      %6147 = vmatprep.subr.mxu0 0.0
      %6148 = vmatpush1.msra.mxu0 0.0
      %6149 = vmatprep.subr.mxu0 0.0
      %6150 = vmatpush1.msra.mxu0 0.0
      %6151 = vmatprep.subr.mxu0 0.0
      %6152 = vmatpush1.msra.mxu0 0.0
      %6153 = vmatprep.subr.mxu0 0.0
      %6154 = vmatpush1.msra.mxu0 0.0
      %6155 = vmatprep.subr.mxu0 0.0
      %6156 = vmatpush1.msra.mxu0 0.0
      %6157 = vmatprep.subr.mxu0 0.0
      %6158 = vmatpush1.msra.mxu0 0.0
      %6159 = vmatprep.subr.mxu0 0.0
      %6160 = vmatpush1.msra.mxu0 0.0
      %6161 = vmatprep.subr.mxu0 0.0
      %6162 = vmatpush1.msra.mxu0 0.0
      %6163 = vmatprep.subr.mxu0 0.0
      %6164 = vmatpush1.msra.mxu0 0.0
      %6165 = vmatprep.subr.mxu0 0.0
      %6166 = vmatpush1.msra.mxu0 0.0
      %6167 = vmatprep.subr.mxu0 0.0
      %6168 = vmatpush1.msra.mxu0 0.0
      %6169 = vmatprep.mubr.f32.mxu0 0.0
      %6170 = vmatmul.mubr.f32.gmra.mrb[0].mxu0 %v6100
      %v6171 = vpop.f32.mrb[0].mxu0
      %v6172 = vadd.f32 0.0, %v6171
      %v6173 = vpop.f32.mrb[0].mxu0
      %6174 = vmatprep.mubr.f32.mxu0 0.0
      %6175 = vmatmul.mubr.f32.gmra.mrb[0].mxu0 %v6103
      %v6176 = vpop.f32.mrb[0].mxu0
      %v6177 = vadd.f32 0.0, %v6176
      %v6178 = vpop.f32.mrb[0].mxu0
      %6179 = vdwg.mxu0
      %6180 = vrot.lane.b32.xlu0 %v5821, 112
      %v6181 = vpop.permute.xlu0 %6180
      %6182 = vrot.lane.b32.xlu0 %v5826, 112
      %v6183 = vpop.permute.xlu0 %6182
      %6184 = vrot.lane.b32.xlu0 %v5925, 112
      %v6185 = vpop.permute.xlu0 %6184
      %6186 = vrot.lane.b32.xlu0 %v5930, 112
      %v6187 = vpop.permute.xlu0 %6186
      %6188 = vrot.lane.b32.xlu0 %v5935, 112
      %v6189 = vpop.permute.xlu0 %6188
      %6190 = vrot.lane.b32.xlu0 %v5940, 112
      %v6191 = vpop.permute.xlu0 %6190
      %6192 = vrot.lane.b32.xlu0 %v5945, 112
      %v6193 = vpop.permute.xlu0 %6192
      %6194 = vrot.lane.b32.xlu0 %v5950, 112
      %v6195 = vpop.permute.xlu0 %6194
      %v6196 = vsel %vm1909, %v6181, 0
      %v6198 = vsel %vm1909, %v6183, 0
      %v6200 = vsel %vm1909, %v6185, 0
      %v6202 = vsel %vm1909, %v6187, 0
      %v6204 = vsel %vm1909, %v6189, 0
      %v6206 = vsel %vm1909, %v6191, 0
      %v6208 = vsel %vm1909, %v6193, 0
      %v6210 = vsel %vm1909, %v6195, 0
      %6212 = vmatprep.subr.mxu0 0.0
      %6213 = vmatpush1.xpose.msra.mxu0 %v6200
      %6214 = vmatprep.subr.mxu0 0.0
      %6215 = vmatpush1.xpose.msra.mxu0 %v6202
      %6216 = vmatprep.subr.mxu0 0.0
      %6217 = vmatpush1.xpose.msra.mxu0 %v6204
      %6218 = vmatprep.subr.mxu0 0.0
      %6219 = vmatpush1.xpose.msra.mxu0 %v6206
      %6220 = vmatprep.subr.mxu0 0.0
      %6221 = vmatpush1.xpose.msra.mxu0 %v6208
      %6222 = vmatprep.subr.mxu0 0.0
      %6223 = vmatpush1.xpose.msra.mxu0 %v6210
      %6224 = vmatprep.subr.mxu0 0.0
      %6225 = vmatpush1.xpose.msra.mxu0 0.0
      %6226 = vmatprep.subr.mxu0 0.0
      %6227 = vmatpush1.xpose.msra.mxu0 0.0
      %6228 = vmatprep.subr.mxu0 0.0
      %6229 = vmatpush1.xpose.msra.mxu0 0.0
      %6230 = vmatprep.subr.mxu0 0.0
      %6231 = vmatpush1.xpose.msra.mxu0 0.0
      %6232 = vmatprep.subr.mxu0 0.0
      %6233 = vmatpush1.xpose.msra.mxu0 0.0
      %6234 = vmatprep.subr.mxu0 0.0
      %6235 = vmatpush1.xpose.msra.mxu0 0.0
      %6236 = vmatprep.subr.mxu0 0.0
      %6237 = vmatpush1.xpose.msra.mxu0 0.0
      %6238 = vmatprep.subr.mxu0 0.0
      %6239 = vmatpush1.xpose.msra.mxu0 0.0
      %6240 = vmatprep.subr.mxu0 0.0
      %6241 = vmatpush1.xpose.msra.mxu0 0.0
      %6242 = vmatprep.subr.mxu0 0.0
      %6243 = vmatpush1.xpose.msra.mxu0 0.0
      %6244 = vmatprep.subr.mxu0 0.0
      %6245 = vmatpush1.xpose.msra.mxu0 0.0
      %6246 = vmatprep.subr.mxu0 0.0
      %6247 = vmatpush1.xpose.msra.mxu0 0.0
      %6248 = vmatprep.subr.mxu0 0.0
      %6249 = vmatpush1.xpose.msra.mxu0 0.0
      %6250 = vmatprep.subr.mxu0 0.0
      %6251 = vmatpush1.xpose.msra.mxu0 0.0
      %6252 = vmatprep.subr.mxu0 0.0
      %6253 = vmatpush1.xpose.msra.mxu0 0.0
      %6254 = vmatprep.subr.mxu0 0.0
      %6255 = vmatpush1.xpose.msra.mxu0 0.0
      %6256 = vmatprep.subr.mxu0 0.0
      %6257 = vmatpush1.xpose.msra.mxu0 0.0
      %6258 = vmatprep.subr.mxu0 0.0
      %6259 = vmatpush1.xpose.msra.mxu0 0.0
      %6260 = vmatprep.subr.mxu0 0.0
      %6261 = vmatpush1.xpose.msra.mxu0 0.0
      %6262 = vmatprep.subr.mxu0 0.0
      %6263 = vmatpush1.xpose.msra.mxu0 0.0
      %6264 = vmatprep.subr.mxu0 0.0
      %6265 = vmatpush1.xpose.msra.mxu0 0.0
      %6266 = vmatprep.subr.mxu0 0.0
      %6267 = vmatpush1.xpose.msra.mxu0 0.0
      %6268 = vmatprep.subr.mxu0 0.0
      %6269 = vmatpush1.xpose.msra.mxu0 0.0
      %6270 = vmatprep.subr.mxu0 0.0
      %6271 = vmatpush1.xpose.msra.mxu0 0.0
      %6272 = vmatprep.subr.mxu0 0.0
      %6273 = vmatpush1.xpose.msra.mxu0 0.0
      %6274 = vmatprep.subr.mxu0 0.0
      %6275 = vmatpush1.xpose.msra.mxu0 0.0
      %6276 = vmatprep.mubr.f32.mxu0 0.0
      %6277 = vmatmul.mubr.f32.gmra.mrb[0].mxu0 %v6196
      %v6278 = vpop.f32.mrb[0].mxu0
      %v6279 = vadd.f32 0.0, %v6278
      %v6280 = vpop.f32.mrb[0].mxu0
      %6281 = vmatprep.mubr.f32.mxu0 0.0
      %6282 = vmatmul.mubr.f32.gmra.mrb[0].mxu0 %v6198
      %v6283 = vpop.f32.mrb[0].mxu0
      %v6284 = vadd.f32 0.0, %v6283
      %v6285 = vpop.f32.mrb[0].mxu0
      %6286 = vdwg.mxu0
      %v6287 = vmul.f32 %v6279, 0.25
      %v6288 = vmul.f32 %v6284, 0.25
      %v6289 = vsel %vm2035, %v6287, -inf
      %6290 = vmax.xlane.f32.xlu0 %v6289
      %v6291 = vpop.xlane.xlu0 %6290
      %v6292 = vsel %vm2035, %v6288, -inf
      %6293 = vmax.xlane.f32.xlu0 %v6292
      %v6294 = vpop.xlane.xlu0 %6293
      %v6295 = vsub.f32 %v6287, %v6291
      %v6296 = vsub.f32 %v6288, %v6294
      %v6297 = vmul.f32 %v6295, 1.442695
      %v6298 = vpow.pop %v6297
      %v6299 = vmul.f32 %v6296, 1.442695
      %v6300 = vpow.pop %v6299
      %v6301 = vsel %vm2035, %v6298, 0.0
      %6302 = vadd.xlane.f32.xlu0 %v6301
      %v6303 = vpop.xlane.xlu0 %6302
      %v6304 = vsel %vm2035, %v6300, 0.0
      %6305 = vadd.xlane.f32.xlu0 %v6304
      %v6306 = vpop.xlane.xlu0 %6305
      %v6307 = vrcp.pop %v6303
      %v6308 = vrcp.pop %v6306
      %v6309 = vmul.f32 %v6298, %v6307
      %v6310 = vmul.f32 %v6300, %v6308
      %6311 = vrot.lane.b32.xlu0 %v5925, 80
      %v6312 = vpop.permute.xlu0 %6311
      %6313 = vrot.lane.b32.xlu0 %v5930, 80
      %v6314 = vpop.permute.xlu0 %6313
      %6315 = vrot.lane.b32.xlu0 %v5935, 80
      %v6316 = vpop.permute.xlu0 %6315
      %6317 = vrot.lane.b32.xlu0 %v5940, 80
      %v6318 = vpop.permute.xlu0 %6317
      %6319 = vrot.lane.b32.xlu0 %v5945, 80
      %v6320 = vpop.permute.xlu0 %6319
      %6321 = vrot.lane.b32.xlu0 %v5950, 80
      %v6322 = vpop.permute.xlu0 %6321
      %v6330 = vsel %vm2035, %v6309, 0
      %v6333 = vsel %vm2035, %v6310, 0
      %6335 = vmatprep.subr.mxu0 0.0
      %6336 = vmatpush1.msra.mxu0 %v6312
      %6337 = vmatprep.subr.mxu0 0.0
      %6338 = vmatpush1.msra.mxu0 %v6314
      %6339 = vmatprep.subr.mxu0 0.0
      %6340 = vmatpush1.msra.mxu0 %v6316
      %6341 = vmatprep.subr.mxu0 0.0
      %6342 = vmatpush1.msra.mxu0 %v6318
      %6343 = vmatprep.subr.mxu0 0.0
      %6344 = vmatpush1.msra.mxu0 %v6320
      %6345 = vmatprep.subr.mxu0 0.0
      %6346 = vmatpush1.msra.mxu0 %v6322
      %6347 = vmatprep.subr.mxu0 0.0
      %6348 = vmatpush1.msra.mxu0 0.0
      %6349 = vmatprep.subr.mxu0 0.0
      %6350 = vmatpush1.msra.mxu0 0.0
      %6351 = vmatprep.subr.mxu0 0.0
      %6352 = vmatpush1.msra.mxu0 0.0
      %6353 = vmatprep.subr.mxu0 0.0
      %6354 = vmatpush1.msra.mxu0 0.0
      %6355 = vmatprep.subr.mxu0 0.0
      %6356 = vmatpush1.msra.mxu0 0.0
      %6357 = vmatprep.subr.mxu0 0.0
      %6358 = vmatpush1.msra.mxu0 0.0
      %6359 = vmatprep.subr.mxu0 0.0
      %6360 = vmatpush1.msra.mxu0 0.0
      %6361 = vmatprep.subr.mxu0 0.0
      %6362 = vmatpush1.msra.mxu0 0.0
      %6363 = vmatprep.subr.mxu0 0.0
      %6364 = vmatpush1.msra.mxu0 0.0
      %6365 = vmatprep.subr.mxu0 0.0
      %6366 = vmatpush1.msra.mxu0 0.0
      %6367 = vmatprep.subr.mxu0 0.0
      %6368 = vmatpush1.msra.mxu0 0.0
      %6369 = vmatprep.subr.mxu0 0.0
      %6370 = vmatpush1.msra.mxu0 0.0
      %6371 = vmatprep.subr.mxu0 0.0
      %6372 = vmatpush1.msra.mxu0 0.0
      %6373 = vmatprep.subr.mxu0 0.0
      %6374 = vmatpush1.msra.mxu0 0.0
      %6375 = vmatprep.subr.mxu0 0.0
      %6376 = vmatpush1.msra.mxu0 0.0
      %6377 = vmatprep.subr.mxu0 0.0
      %6378 = vmatpush1.msra.mxu0 0.0
      %6379 = vmatprep.subr.mxu0 0.0
      %6380 = vmatpush1.msra.mxu0 0.0
      %6381 = vmatprep.subr.mxu0 0.0
      %6382 = vmatpush1.msra.mxu0 0.0
      %6383 = vmatprep.subr.mxu0 0.0
      %6384 = vmatpush1.msra.mxu0 0.0
      %6385 = vmatprep.subr.mxu0 0.0
      %6386 = vmatpush1.msra.mxu0 0.0
      %6387 = vmatprep.subr.mxu0 0.0
      %6388 = vmatpush1.msra.mxu0 0.0
      %6389 = vmatprep.subr.mxu0 0.0
      %6390 = vmatpush1.msra.mxu0 0.0
      %6391 = vmatprep.subr.mxu0 0.0
      %6392 = vmatpush1.msra.mxu0 0.0
      %6393 = vmatprep.subr.mxu0 0.0
      %6394 = vmatpush1.msra.mxu0 0.0
      %6395 = vmatprep.subr.mxu0 0.0
      %6396 = vmatpush1.msra.mxu0 0.0
      %6397 = vmatprep.subr.mxu0 0.0
      %6398 = vmatpush1.msra.mxu0 0.0
      %6399 = vmatprep.mubr.f32.mxu0 0.0
      %6400 = vmatmul.mubr.f32.gmra.mrb[0].mxu0 %v6330
      %v6401 = vpop.f32.mrb[0].mxu0
      %v6402 = vadd.f32 0.0, %v6401
      %v6403 = vpop.f32.mrb[0].mxu0
      %6404 = vmatprep.mubr.f32.mxu0 0.0
      %6405 = vmatmul.mubr.f32.gmra.mrb[0].mxu0 %v6333
      %v6406 = vpop.f32.mrb[0].mxu0
      %v6407 = vadd.f32 0.0, %v6406
      %v6408 = vpop.f32.mrb[0].mxu0
      %6409 = vdwg.mxu0
      %v6411 = vsel %vm1909, %v6402, 0
      %v6414 = vsel %vm1909, %v6407, 0
      %6416 = vmatprep.subr.mxu0 0.0
      %6417 = vmatpush1.msra.mxu0 %v5955
      %6418 = vmatprep.subr.mxu0 0.0
      %6419 = vmatpush1.msra.mxu0 %v5956
      %6420 = vmatprep.subr.mxu0 0.0
      %6421 = vmatpush1.msra.mxu0 0.0
      %6422 = vmatprep.subr.mxu0 0.0
      %6423 = vmatpush1.msra.mxu0 0.0
      %6424 = vmatprep.subr.mxu0 0.0
      %6425 = vmatpush1.msra.mxu0 0.0
      %6426 = vmatprep.subr.mxu0 0.0
      %6427 = vmatpush1.msra.mxu0 0.0
      %6428 = vmatprep.subr.mxu0 0.0
      %6429 = vmatpush1.msra.mxu0 0.0
      %6430 = vmatprep.subr.mxu0 0.0
      %6431 = vmatpush1.msra.mxu0 0.0
      %6432 = vmatprep.subr.mxu0 0.0
      %6433 = vmatpush1.msra.mxu0 0.0
      %6434 = vmatprep.subr.mxu0 0.0
      %6435 = vmatpush1.msra.mxu0 0.0
      %6436 = vmatprep.subr.mxu0 0.0
      %6437 = vmatpush1.msra.mxu0 0.0
      %6438 = vmatprep.subr.mxu0 0.0
      %6439 = vmatpush1.msra.mxu0 0.0
      %6440 = vmatprep.subr.mxu0 0.0
      %6441 = vmatpush1.msra.mxu0 0.0
      %6442 = vmatprep.subr.mxu0 0.0
      %6443 = vmatpush1.msra.mxu0 0.0
      %6444 = vmatprep.subr.mxu0 0.0
      %6445 = vmatpush1.msra.mxu0 0.0
      %6446 = vmatprep.subr.mxu0 0.0
      %6447 = vmatpush1.msra.mxu0 0.0
      %6448 = vmatprep.subr.mxu0 0.0
      %6449 = vmatpush1.msra.mxu0 0.0
      %6450 = vmatprep.subr.mxu0 0.0
      %6451 = vmatpush1.msra.mxu0 0.0
      %6452 = vmatprep.subr.mxu0 0.0
      %6453 = vmatpush1.msra.mxu0 0.0
      %6454 = vmatprep.subr.mxu0 0.0
      %6455 = vmatpush1.msra.mxu0 0.0
      %6456 = vmatprep.subr.mxu0 0.0
      %6457 = vmatpush1.msra.mxu0 0.0
      %6458 = vmatprep.subr.mxu0 0.0
      %6459 = vmatpush1.msra.mxu0 0.0
      %6460 = vmatprep.subr.mxu0 0.0
      %6461 = vmatpush1.msra.mxu0 0.0
      %6462 = vmatprep.subr.mxu0 0.0
      %6463 = vmatpush1.msra.mxu0 0.0
      %6464 = vmatprep.subr.mxu0 0.0
      %6465 = vmatpush1.msra.mxu0 0.0
      %6466 = vmatprep.subr.mxu0 0.0
      %6467 = vmatpush1.msra.mxu0 0.0
      %6468 = vmatprep.subr.mxu0 0.0
      %6469 = vmatpush1.msra.mxu0 0.0
      %6470 = vmatprep.subr.mxu0 0.0
      %6471 = vmatpush1.msra.mxu0 0.0
      %6472 = vmatprep.subr.mxu0 0.0
      %6473 = vmatpush1.msra.mxu0 0.0
      %6474 = vmatprep.subr.mxu0 0.0
      %6475 = vmatpush1.msra.mxu0 0.0
      %6476 = vmatprep.subr.mxu0 0.0
      %6477 = vmatpush1.msra.mxu0 0.0
      %6478 = vmatprep.subr.mxu0 0.0
      %6479 = vmatpush1.msra.mxu0 0.0
      %6480 = vmatprep.mubr.f32.mxu0 0.0
      %6481 = vmatmul.mubr.f32.gmra.mrb[0].mxu0 %v6411
      %v6482 = vpop.f32.mrb[0].mxu0
      %v6483 = vadd.f32 0.0, %v6482
      %v6484 = vpop.f32.mrb[0].mxu0
      %6485 = vmatprep.mubr.f32.mxu0 0.0
      %6486 = vmatmul.mubr.f32.gmra.mrb[0].mxu0 %v6414
      %v6487 = vpop.f32.mrb[0].mxu0
      %v6488 = vadd.f32 0.0, %v6487
      %v6489 = vpop.f32.mrb[0].mxu0
      %6490 = vdwg.mxu0
      %v6492 = vsel %vm1909, %v6172, 0
      %v6495 = vsel %vm1909, %v6177, 0
      %6497 = vmatprep.subr.mxu0 0.0
      %6498 = vmatpush1.msra.mxu0 %v5953
      %6499 = vmatprep.subr.mxu0 0.0
      %6500 = vmatpush1.msra.mxu0 %v5954
      %6501 = vmatprep.subr.mxu0 0.0
      %6502 = vmatpush1.msra.mxu0 0.0
      %6503 = vmatprep.subr.mxu0 0.0
      %6504 = vmatpush1.msra.mxu0 0.0
      %6505 = vmatprep.subr.mxu0 0.0
      %6506 = vmatpush1.msra.mxu0 0.0
      %6507 = vmatprep.subr.mxu0 0.0
      %6508 = vmatpush1.msra.mxu0 0.0
      %6509 = vmatprep.subr.mxu0 0.0
      %6510 = vmatpush1.msra.mxu0 0.0
      %6511 = vmatprep.subr.mxu0 0.0
      %6512 = vmatpush1.msra.mxu0 0.0
      %6513 = vmatprep.subr.mxu0 0.0
      %6514 = vmatpush1.msra.mxu0 0.0
      %6515 = vmatprep.subr.mxu0 0.0
      %6516 = vmatpush1.msra.mxu0 0.0
      %6517 = vmatprep.subr.mxu0 0.0
      %6518 = vmatpush1.msra.mxu0 0.0
      %6519 = vmatprep.subr.mxu0 0.0
      %6520 = vmatpush1.msra.mxu0 0.0
      %6521 = vmatprep.subr.mxu0 0.0
      %6522 = vmatpush1.msra.mxu0 0.0
      %6523 = vmatprep.subr.mxu0 0.0
      %6524 = vmatpush1.msra.mxu0 0.0
      %6525 = vmatprep.subr.mxu0 0.0
      %6526 = vmatpush1.msra.mxu0 0.0
      %6527 = vmatprep.subr.mxu0 0.0
      %6528 = vmatpush1.msra.mxu0 0.0
      %6529 = vmatprep.subr.mxu0 0.0
      %6530 = vmatpush1.msra.mxu0 0.0
      %6531 = vmatprep.subr.mxu0 0.0
      %6532 = vmatpush1.msra.mxu0 0.0
      %6533 = vmatprep.subr.mxu0 0.0
      %6534 = vmatpush1.msra.mxu0 0.0
      %6535 = vmatprep.subr.mxu0 0.0
      %6536 = vmatpush1.msra.mxu0 0.0
      %6537 = vmatprep.subr.mxu0 0.0
      %6538 = vmatpush1.msra.mxu0 0.0
      %6539 = vmatprep.subr.mxu0 0.0
      %6540 = vmatpush1.msra.mxu0 0.0
      %6541 = vmatprep.subr.mxu0 0.0
      %6542 = vmatpush1.msra.mxu0 0.0
      %6543 = vmatprep.subr.mxu0 0.0
      %6544 = vmatpush1.msra.mxu0 0.0
      %6545 = vmatprep.subr.mxu0 0.0
      %6546 = vmatpush1.msra.mxu0 0.0
      %6547 = vmatprep.subr.mxu0 0.0
      %6548 = vmatpush1.msra.mxu0 0.0
      %6549 = vmatprep.subr.mxu0 0.0
      %6550 = vmatpush1.msra.mxu0 0.0
      %6551 = vmatprep.subr.mxu0 0.0
      %6552 = vmatpush1.msra.mxu0 0.0
      %6553 = vmatprep.subr.mxu0 0.0
      %6554 = vmatpush1.msra.mxu0 0.0
      %6555 = vmatprep.subr.mxu0 0.0
      %6556 = vmatpush1.msra.mxu0 0.0
      %6557 = vmatprep.subr.mxu0 0.0
      %6558 = vmatpush1.msra.mxu0 0.0
      %6559 = vmatprep.subr.mxu0 0.0
      %6560 = vmatpush1.msra.mxu0 0.0
      %6561 = vmatprep.mubr.f32.mxu0 0.0
      %6562 = vmatmul.mubr.f32.gmra.mrb[0].mxu0 %v6492
      %v6563 = vpop.f32.mrb[0].mxu0
      %v6564 = vadd.f32 %v6483, %v6563
      %v6565 = vpop.f32.mrb[0].mxu0
      %6566 = vmatprep.mubr.f32.mxu0 0.0
      %6567 = vmatmul.mubr.f32.gmra.mrb[0].mxu0 %v6495
      %v6568 = vpop.f32.mrb[0].mxu0
      %v6569 = vadd.f32 %v6488, %v6568
      %v6570 = vpop.f32.mrb[0].mxu0
      %6571 = vdwg.mxu0
      %v6573 = vlaneseq
      %v6574 = vshrl.u32 %v6573, 7
      %v6575 = vsub.s32 0, %v6574
      %v6576 = vrot.slane %v5957, %v6575
      %v6578 = vadd.f32 %v6564, %v6576
      %v6579 = vadd.f32 %v6569, %v6576
      %v6580 = vadd.f32 %v5696, %v6578
      %v6581 = vadd.f32 %v5697, %v6579
      %v6582 = vld [vmem:[%s79] sm:$0x3]
      %v6583 = vsel %vm1662, %v6580, 0.0
      %6584 = vadd.xlane.f32.xlu0 %v6583
      %v6585 = vpop.xlane.xlu0 %6584
      %v6586 = vsel %vm1662, %v6581, 0.0
      %6587 = vadd.xlane.f32.xlu0 %v6586
      %v6588 = vpop.xlane.xlu0 %6587
      %v6589 = vmul.f32 %v6585, %v1681
      %v6590 = vmul.f32 %v6588, %v1681
      %v6591 = vsub.f32 %v6580, %v6589
      %v6592 = vsub.f32 %v6581, %v6590
      %v6593 = vmul.f32 %v6591, %v6591
      %v6594 = vmul.f32 %v6592, %v6592
      %v6595 = vsel %vm1662, %v6593, 0.0
      %6596 = vadd.xlane.f32.xlu0 %v6595
      %v6597 = vpop.xlane.xlu0 %6596
      %v6598 = vsel %vm1662, %v6594, 0.0
      %6599 = vadd.xlane.f32.xlu0 %v6598
      %v6600 = vpop.xlane.xlu0 %6599
      %v6601 = vmul.f32 %v6597, %v1681
      %v6602 = vmul.f32 %v6600, %v1681
      %v6603 = vadd.f32 %v6601, 1e-06
      %v6604 = vadd.f32 %v6602, 1e-06
      %v6605 = vrsqrt.pop %v6603
      %v6606 = vrsqrt.pop %v6604
      %v6607 = vmul.f32 %v6591, %v6605
      %v6608 = vmul.f32 %v6592, %v6606
      %v6609 = vlaneseq
      %v6610 = vshrl.u32 %v6609, 7
      %v6611 = vsub.s32 0, %v6610
      %v6612 = vrot.slane %v6582, %v6611
      %v6613 = vmul.f32 %v6607, %v6612
      %v6614 = vmul.f32 %v6608, %v6612
      %v6615 = vlaneseq
      %v6616 = vshrl.u32 %v6615, 7
      %v6617 = vsub.s32 1, %v6616
      %v6618 = vrot.slane %v6582, %v6617
      %v6619 = vadd.f32 %v6613, %v6618
      %v6620 = vadd.f32 %v6614, %v6618
      %v6621 = vld [vmem:[%s81] sm:$0xff]
      %v6622 = vld [vmem:[%s81 + $0x8] sm:$0xff]
      %v6623 = vld [vmem:[%s81 + $0x10] sm:$0xff]
      %v6624 = vld [vmem:[%s81 + $0x18] sm:$0xff]
      %v6625 = vld [vmem:[%s83] sm:$0x1]
      %v6627 = vlaneseq
      %v6628 = vshrl.u32 %v6627, 7
      %v6629 = vsub.s32 0, %v6628
      %v6630 = vrot.slane %v6625, %v6629
      %v6633 = vsel %vm1662, %v6619, 0
      %v6636 = vsel %vm1662, %v6620, 0
      %6638 = vmatprep.subr.mxu0 0.0
      %6639 = vmatpush1.msra.mxu0 %v6621
      %6640 = vmatprep.subr.mxu0 0.0
      %6641 = vmatpush1.msra.mxu0 %v6622
      %6642 = vmatprep.subr.mxu0 0.0
      %6643 = vmatpush1.msra.mxu0 %v6623
      %6644 = vmatprep.subr.mxu0 0.0
      %6645 = vmatpush1.msra.mxu0 %v6624
      %6646 = vmatprep.subr.mxu0 0.0
      %6647 = vmatpush1.msra.mxu0 0.0
      %6648 = vmatprep.subr.mxu0 0.0
      %6649 = vmatpush1.msra.mxu0 0.0
      %6650 = vmatprep.subr.mxu0 0.0
      %6651 = vmatpush1.msra.mxu0 0.0
      %6652 = vmatprep.subr.mxu0 0.0
      %6653 = vmatpush1.msra.mxu0 0.0
      %6654 = vmatprep.subr.mxu0 0.0
      %6655 = vmatpush1.msra.mxu0 0.0
      %6656 = vmatprep.subr.mxu0 0.0
      %6657 = vmatpush1.msra.mxu0 0.0
      %6658 = vmatprep.subr.mxu0 0.0
      %6659 = vmatpush1.msra.mxu0 0.0
      %6660 = vmatprep.subr.mxu0 0.0
      %6661 = vmatpush1.msra.mxu0 0.0
      %6662 = vmatprep.subr.mxu0 0.0
      %6663 = vmatpush1.msra.mxu0 0.0
      %6664 = vmatprep.subr.mxu0 0.0
      %6665 = vmatpush1.msra.mxu0 0.0
      %6666 = vmatprep.subr.mxu0 0.0
      %6667 = vmatpush1.msra.mxu0 0.0
      %6668 = vmatprep.subr.mxu0 0.0
      %6669 = vmatpush1.msra.mxu0 0.0
      %6670 = vmatprep.subr.mxu0 0.0
      %6671 = vmatpush1.msra.mxu0 0.0
      %6672 = vmatprep.subr.mxu0 0.0
      %6673 = vmatpush1.msra.mxu0 0.0
      %6674 = vmatprep.subr.mxu0 0.0
      %6675 = vmatpush1.msra.mxu0 0.0
      %6676 = vmatprep.subr.mxu0 0.0
      %6677 = vmatpush1.msra.mxu0 0.0
      %6678 = vmatprep.subr.mxu0 0.0
      %6679 = vmatpush1.msra.mxu0 0.0
      %6680 = vmatprep.subr.mxu0 0.0
      %6681 = vmatpush1.msra.mxu0 0.0
      %6682 = vmatprep.subr.mxu0 0.0
      %6683 = vmatpush1.msra.mxu0 0.0
      %6684 = vmatprep.subr.mxu0 0.0
      %6685 = vmatpush1.msra.mxu0 0.0
      %6686 = vmatprep.subr.mxu0 0.0
      %6687 = vmatpush1.msra.mxu0 0.0
      %6688 = vmatprep.subr.mxu0 0.0
      %6689 = vmatpush1.msra.mxu0 0.0
      %6690 = vmatprep.subr.mxu0 0.0
      %6691 = vmatpush1.msra.mxu0 0.0
      %6692 = vmatprep.subr.mxu0 0.0
      %6693 = vmatpush1.msra.mxu0 0.0
      %6694 = vmatprep.subr.mxu0 0.0
      %6695 = vmatpush1.msra.mxu0 0.0
      %6696 = vmatprep.subr.mxu0 0.0
      %6697 = vmatpush1.msra.mxu0 0.0
      %6698 = vmatprep.subr.mxu0 0.0
      %6699 = vmatpush1.msra.mxu0 0.0
      %6700 = vmatprep.subr.mxu0 0.0
      %6701 = vmatpush1.msra.mxu0 0.0
      %6702 = vmatprep.mubr.f32.mxu0 0.0
      %6703 = vmatmul.mubr.f32.gmra.mrb[0].mxu0 %v6633
      %v6704 = vpop.f32.mrb[0].mxu0
      %v6705 = vadd.f32 %v6630, %v6704
      %v6706 = vpop.f32.mrb[0].mxu0
      %6707 = vmatprep.mubr.f32.mxu0 0.0
      %6708 = vmatmul.mubr.f32.gmra.mrb[0].mxu0 %v6636
      %v6709 = vpop.f32.mrb[0].mxu0
      %v6710 = vadd.f32 %v6630, %v6709
      %v6711 = vpop.f32.mrb[0].mxu0
      %6712 = vdwg.mxu0
      %v6713 = vmul.f32 %v6705, 0.5
      %v6714 = vmul.f32 %v6710, 0.5
      %v6715 = vmul.f32 %v6705, 0.044715
      %v6716 = vmul.f32 %v6710, 0.044715
      %v6717 = vmul.f32 %v6715, %v6705
      %v6718 = vmul.f32 %v6716, %v6710
      %v6719 = vmul.f32 %v6717, %v6705
      %v6720 = vmul.f32 %v6718, %v6710
      %v6721 = vadd.f32 %v6705, %v6719
      %v6722 = vadd.f32 %v6710, %v6720
      %v6723 = vmul.f32 %v6721, 0.7978846
      %v6724 = vmul.f32 %v6722, 0.7978846
      %v6725 = vtanh.pop %v6723
      %v6726 = vtanh.pop %v6724
      %v6727 = vadd.f32 %v6725, 1.0
      %v6728 = vadd.f32 %v6726, 1.0
      %v6729 = vmul.f32 %v6713, %v6727
      %v6730 = vmul.f32 %v6714, %v6728
      %v6731 = vld [vmem:[%s85] sm:$0xff]
      %v6732 = vld [vmem:[%s85 + $0x8] sm:$0xff]
      %v6733 = vld [vmem:[%s85 + $0x10] sm:$0xff]
      %v6734 = vld [vmem:[%s85 + $0x18] sm:$0xff]
      %v6735 = vld [vmem:[%s85 + $0x20] sm:$0xff]
      %v6736 = vld [vmem:[%s85 + $0x28] sm:$0xff]
      %v6737 = vld [vmem:[%s85 + $0x30] sm:$0xff]
      %v6738 = vld [vmem:[%s85 + $0x38] sm:$0xff]
      %v6739 = vld [vmem:[%s85 + $0x40] sm:$0xff]
      %v6740 = vld [vmem:[%s85 + $0x48] sm:$0xff]
      %v6741 = vld [vmem:[%s85 + $0x50] sm:$0xff]
      %v6742 = vld [vmem:[%s85 + $0x58] sm:$0xff]
      %v6743 = vld [vmem:[%s85 + $0x60] sm:$0xff]
      %v6744 = vld [vmem:[%s85 + $0x68] sm:$0xff]
      %v6745 = vld [vmem:[%s85 + $0x70] sm:$0xff]
      %v6746 = vld [vmem:[%s85 + $0x78] sm:$0xff]
      %v6747 = vld [vmem:[%s87] sm:$0x1]
      %v6749 = vlaneseq
      %v6750 = vshrl.u32 %v6749, 7
      %v6751 = vsub.s32 0, %v6750
      %v6752 = vrot.slane %v6747, %v6751
      %6754 = vmatprep.subr.mxu0 0.0
      %6755 = vmatpush1.msra.mxu0 %v6731
      %6756 = vmatprep.subr.mxu0 0.0
      %6757 = vmatpush1.msra.mxu0 %v6732
      %6758 = vmatprep.subr.mxu0 0.0
      %6759 = vmatpush1.msra.mxu0 %v6733
      %6760 = vmatprep.subr.mxu0 0.0
      %6761 = vmatpush1.msra.mxu0 %v6734
      %6762 = vmatprep.subr.mxu0 0.0
      %6763 = vmatpush1.msra.mxu0 %v6735
      %6764 = vmatprep.subr.mxu0 0.0
      %6765 = vmatpush1.msra.mxu0 %v6736
      %6766 = vmatprep.subr.mxu0 0.0
      %6767 = vmatpush1.msra.mxu0 %v6737
      %6768 = vmatprep.subr.mxu0 0.0
      %6769 = vmatpush1.msra.mxu0 %v6738
      %6770 = vmatprep.subr.mxu0 0.0
      %6771 = vmatpush1.msra.mxu0 %v6739
      %6772 = vmatprep.subr.mxu0 0.0
      %6773 = vmatpush1.msra.mxu0 %v6740
      %6774 = vmatprep.subr.mxu0 0.0
      %6775 = vmatpush1.msra.mxu0 %v6741
      %6776 = vmatprep.subr.mxu0 0.0
      %6777 = vmatpush1.msra.mxu0 %v6742
      %6778 = vmatprep.subr.mxu0 0.0
      %6779 = vmatpush1.msra.mxu0 %v6743
      %6780 = vmatprep.subr.mxu0 0.0
      %6781 = vmatpush1.msra.mxu0 %v6744
      %6782 = vmatprep.subr.mxu0 0.0
      %6783 = vmatpush1.msra.mxu0 %v6745
      %6784 = vmatprep.subr.mxu0 0.0
      %6785 = vmatpush1.msra.mxu0 %v6746
      %6786 = vmatprep.subr.mxu0 0.0
      %6787 = vmatpush1.msra.mxu0 0.0
      %6788 = vmatprep.subr.mxu0 0.0
      %6789 = vmatpush1.msra.mxu0 0.0
      %6790 = vmatprep.subr.mxu0 0.0
      %6791 = vmatpush1.msra.mxu0 0.0
      %6792 = vmatprep.subr.mxu0 0.0
      %6793 = vmatpush1.msra.mxu0 0.0
      %6794 = vmatprep.subr.mxu0 0.0
      %6795 = vmatpush1.msra.mxu0 0.0
      %6796 = vmatprep.subr.mxu0 0.0
      %6797 = vmatpush1.msra.mxu0 0.0
      %6798 = vmatprep.subr.mxu0 0.0
      %6799 = vmatpush1.msra.mxu0 0.0
      %6800 = vmatprep.subr.mxu0 0.0
      %6801 = vmatpush1.msra.mxu0 0.0
      %6802 = vmatprep.subr.mxu0 0.0
      %6803 = vmatpush1.msra.mxu0 0.0
      %6804 = vmatprep.subr.mxu0 0.0
      %6805 = vmatpush1.msra.mxu0 0.0
      %6806 = vmatprep.subr.mxu0 0.0
      %6807 = vmatpush1.msra.mxu0 0.0
      %6808 = vmatprep.subr.mxu0 0.0
      %6809 = vmatpush1.msra.mxu0 0.0
      %6810 = vmatprep.subr.mxu0 0.0
      %6811 = vmatpush1.msra.mxu0 0.0
      %6812 = vmatprep.subr.mxu0 0.0
      %6813 = vmatpush1.msra.mxu0 0.0
      %6814 = vmatprep.subr.mxu0 0.0
      %6815 = vmatpush1.msra.mxu0 0.0
      %6816 = vmatprep.subr.mxu0 0.0
      %6817 = vmatpush1.msra.mxu0 0.0
      %6818 = vmatprep.mubr.f32.mxu0 0.0
      %6819 = vmatmul.mubr.f32.gmra.mrb[0].mxu0 %v6729
      %v6820 = vpop.f32.mrb[0].mxu0
      %v6821 = vadd.f32 %v6752, %v6820
      %v6822 = vpop.f32.mrb[0].mxu0
      %6823 = vmatprep.mubr.f32.mxu0 0.0
      %6824 = vmatmul.mubr.f32.gmra.mrb[0].mxu0 %v6730
      %v6825 = vpop.f32.mrb[0].mxu0
      %v6826 = vadd.f32 %v6752, %v6825
      %v6827 = vpop.f32.mrb[0].mxu0
      %6828 = vdwg.mxu0
      %v6829 = vadd.f32 %v6580, %v6821
      %v6830 = vadd.f32 %v6581, %v6826
      %s6831 = scalar_lea.vmem %s55, 2
      %v6832 = vld [vmem:[%s6831] sm:$0x3]
      %v6833 = vsel %vm1662, %v6829, 0.0
      %6834 = vadd.xlane.f32.xlu0 %v6833
      %v6835 = vpop.xlane.xlu0 %6834
      %v6836 = vsel %vm1662, %v6830, 0.0
      %6837 = vadd.xlane.f32.xlu0 %v6836
      %v6838 = vpop.xlane.xlu0 %6837
      %v6839 = vmul.f32 %v6835, %v1681
      %v6840 = vmul.f32 %v6838, %v1681
      %v6841 = vsub.f32 %v6829, %v6839
      %v6842 = vsub.f32 %v6830, %v6840
      %v6843 = vmul.f32 %v6841, %v6841
      %v6844 = vmul.f32 %v6842, %v6842
      %v6845 = vsel %vm1662, %v6843, 0.0
      %6846 = vadd.xlane.f32.xlu0 %v6845
      %v6847 = vpop.xlane.xlu0 %6846
      %v6848 = vsel %vm1662, %v6844, 0.0
      %6849 = vadd.xlane.f32.xlu0 %v6848
      %v6850 = vpop.xlane.xlu0 %6849
      %v6851 = vmul.f32 %v6847, %v1681
      %v6852 = vmul.f32 %v6850, %v1681
      %v6853 = vadd.f32 %v6851, 1e-06
      %v6854 = vadd.f32 %v6852, 1e-06
      %v6855 = vrsqrt.pop %v6853
      %v6856 = vrsqrt.pop %v6854
      %v6857 = vmul.f32 %v6841, %v6855
      %v6858 = vmul.f32 %v6842, %v6856
      %v6859 = vlaneseq
      %v6860 = vshrl.u32 %v6859, 7
      %v6861 = vsub.s32 0, %v6860
      %v6862 = vrot.slane %v6832, %v6861
      %v6863 = vmul.f32 %v6857, %v6862
      %v6864 = vmul.f32 %v6858, %v6862
      %v6865 = vlaneseq
      %v6866 = vshrl.u32 %v6865, 7
      %v6867 = vsub.s32 1, %v6866
      %v6868 = vrot.slane %v6832, %v6867
      %v6869 = vadd.f32 %v6863, %v6868
      %v6870 = vadd.f32 %v6864, %v6868
      %s6871 = scalar_lea.vmem %s57, 32
      %v6872 = vld [vmem:[%s6871] sm:$0xff]
      %v6873 = vld [vmem:[%s6871 + $0x8] sm:$0xff]
      %v6874 = vld [vmem:[%s6871 + $0x10] sm:$0xff]
      %v6875 = vld [vmem:[%s6871 + $0x18] sm:$0xff]
      %s6876 = scalar_lea.vmem %s59, 1
      %v6877 = vld [vmem:[%s6876] sm:$0x1]
      %v6879 = vlaneseq
      %v6880 = vshrl.u32 %v6879, 7
      %v6881 = vsub.s32 0, %v6880
      %v6882 = vrot.slane %v6877, %v6881
      %v6885 = vsel %vm1662, %v6869, 0
      %v6888 = vsel %vm1662, %v6870, 0
      %6890 = vmatprep.subr.mxu0 0.0
      %6891 = vmatpush1.msra.mxu0 %v6872
      %6892 = vmatprep.subr.mxu0 0.0
      %6893 = vmatpush1.msra.mxu0 %v6873
      %6894 = vmatprep.subr.mxu0 0.0
      %6895 = vmatpush1.msra.mxu0 %v6874
      %6896 = vmatprep.subr.mxu0 0.0
      %6897 = vmatpush1.msra.mxu0 %v6875
      %6898 = vmatprep.subr.mxu0 0.0
      %6899 = vmatpush1.msra.mxu0 0.0
      %6900 = vmatprep.subr.mxu0 0.0
      %6901 = vmatpush1.msra.mxu0 0.0
      %6902 = vmatprep.subr.mxu0 0.0
      %6903 = vmatpush1.msra.mxu0 0.0
      %6904 = vmatprep.subr.mxu0 0.0
      %6905 = vmatpush1.msra.mxu0 0.0
      %6906 = vmatprep.subr.mxu0 0.0
      %6907 = vmatpush1.msra.mxu0 0.0
      %6908 = vmatprep.subr.mxu0 0.0
      %6909 = vmatpush1.msra.mxu0 0.0
      %6910 = vmatprep.subr.mxu0 0.0
      %6911 = vmatpush1.msra.mxu0 0.0
      %6912 = vmatprep.subr.mxu0 0.0
      %6913 = vmatpush1.msra.mxu0 0.0
      %6914 = vmatprep.subr.mxu0 0.0
      %6915 = vmatpush1.msra.mxu0 0.0
      %6916 = vmatprep.subr.mxu0 0.0
      %6917 = vmatpush1.msra.mxu0 0.0
      %6918 = vmatprep.subr.mxu0 0.0
      %6919 = vmatpush1.msra.mxu0 0.0
      %6920 = vmatprep.subr.mxu0 0.0
      %6921 = vmatpush1.msra.mxu0 0.0
      %6922 = vmatprep.subr.mxu0 0.0
      %6923 = vmatpush1.msra.mxu0 0.0
      %6924 = vmatprep.subr.mxu0 0.0
      %6925 = vmatpush1.msra.mxu0 0.0
      %6926 = vmatprep.subr.mxu0 0.0
      %6927 = vmatpush1.msra.mxu0 0.0
      %6928 = vmatprep.subr.mxu0 0.0
      %6929 = vmatpush1.msra.mxu0 0.0
      %6930 = vmatprep.subr.mxu0 0.0
      %6931 = vmatpush1.msra.mxu0 0.0
      %6932 = vmatprep.subr.mxu0 0.0
      %6933 = vmatpush1.msra.mxu0 0.0
      %6934 = vmatprep.subr.mxu0 0.0
      %6935 = vmatpush1.msra.mxu0 0.0
      %6936 = vmatprep.subr.mxu0 0.0
      %6937 = vmatpush1.msra.mxu0 0.0
      %6938 = vmatprep.subr.mxu0 0.0
      %6939 = vmatpush1.msra.mxu0 0.0
      %6940 = vmatprep.subr.mxu0 0.0
      %6941 = vmatpush1.msra.mxu0 0.0
      %6942 = vmatprep.subr.mxu0 0.0
      %6943 = vmatpush1.msra.mxu0 0.0
      %6944 = vmatprep.subr.mxu0 0.0
      %6945 = vmatpush1.msra.mxu0 0.0
      %6946 = vmatprep.subr.mxu0 0.0
      %6947 = vmatpush1.msra.mxu0 0.0
      %6948 = vmatprep.subr.mxu0 0.0
      %6949 = vmatpush1.msra.mxu0 0.0
      %6950 = vmatprep.subr.mxu0 0.0
      %6951 = vmatpush1.msra.mxu0 0.0
      %6952 = vmatprep.subr.mxu0 0.0
      %6953 = vmatpush1.msra.mxu0 0.0
      %6954 = vmatprep.mubr.f32.mxu0 0.0
      %6955 = vmatmul.mubr.f32.gmra.mrb[0].mxu0 %v6885
      %v6956 = vpop.f32.mrb[0].mxu0
      %v6957 = vadd.f32 %v6882, %v6956
      %v6958 = vpop.f32.mrb[0].mxu0
      %6959 = vmatprep.mubr.f32.mxu0 0.0
      %6960 = vmatmul.mubr.f32.gmra.mrb[0].mxu0 %v6888
      %v6961 = vpop.f32.mrb[0].mxu0
      %v6962 = vadd.f32 %v6882, %v6961
      %v6963 = vpop.f32.mrb[0].mxu0
      %6964 = vdwg.mxu0
      %s6965 = scalar_lea.vmem %s61, 32
      %v6966 = vld [vmem:[%s6965] sm:$0xff]
      %v6967 = vld [vmem:[%s6965 + $0x8] sm:$0xff]
      %v6968 = vld [vmem:[%s6965 + $0x10] sm:$0xff]
      %v6969 = vld [vmem:[%s6965 + $0x18] sm:$0xff]
      %s6970 = scalar_lea.vmem %s63, 1
      %v6971 = vld [vmem:[%s6970] sm:$0x1]
      %6974 = vrot.lane.b32.xlu0 %v6957, 96
      %v6975 = vpop.permute.xlu0 %6974
      %6976 = vrot.lane.b32.xlu0 %v6962, 96
      %v6977 = vpop.permute.xlu0 %6976
      %v6978 = vsel %vm1909, %v6957, 0
      %v6980 = vsel %vm1909, %v6962, 0
      %v6982 = vsel %vm1909, %v6975, 0
      %v6984 = vsel %vm1909, %v6977, 0
      %6986 = vmatprep.subr.mxu0 0.0
      %6987 = vmatpush1.xpose.msra.mxu0 %v6982
      %6988 = vmatprep.subr.mxu0 0.0
      %6989 = vmatpush1.xpose.msra.mxu0 %v6984
      %6990 = vmatprep.subr.mxu0 0.0
      %6991 = vmatpush1.xpose.msra.mxu0 0.0
      %6992 = vmatprep.subr.mxu0 0.0
      %6993 = vmatpush1.xpose.msra.mxu0 0.0
      %6994 = vmatprep.subr.mxu0 0.0
      %6995 = vmatpush1.xpose.msra.mxu0 0.0
      %6996 = vmatprep.subr.mxu0 0.0
      %6997 = vmatpush1.xpose.msra.mxu0 0.0
      %6998 = vmatprep.subr.mxu0 0.0
      %6999 = vmatpush1.xpose.msra.mxu0 0.0
      %7000 = vmatprep.subr.mxu0 0.0
      %7001 = vmatpush1.xpose.msra.mxu0 0.0
      %7002 = vmatprep.subr.mxu0 0.0
      %7003 = vmatpush1.xpose.msra.mxu0 0.0
      %7004 = vmatprep.subr.mxu0 0.0
      %7005 = vmatpush1.xpose.msra.mxu0 0.0
      %7006 = vmatprep.subr.mxu0 0.0
      %7007 = vmatpush1.xpose.msra.mxu0 0.0
      %7008 = vmatprep.subr.mxu0 0.0
      %7009 = vmatpush1.xpose.msra.mxu0 0.0
      %7010 = vmatprep.subr.mxu0 0.0
      %7011 = vmatpush1.xpose.msra.mxu0 0.0
      %7012 = vmatprep.subr.mxu0 0.0
      %7013 = vmatpush1.xpose.msra.mxu0 0.0
      %7014 = vmatprep.subr.mxu0 0.0
      %7015 = vmatpush1.xpose.msra.mxu0 0.0
      %7016 = vmatprep.subr.mxu0 0.0
      %7017 = vmatpush1.xpose.msra.mxu0 0.0
      %7018 = vmatprep.subr.mxu0 0.0
      %7019 = vmatpush1.xpose.msra.mxu0 0.0
      %7020 = vmatprep.subr.mxu0 0.0
      %7021 = vmatpush1.xpose.msra.mxu0 0.0
      %7022 = vmatprep.subr.mxu0 0.0
      %7023 = vmatpush1.xpose.msra.mxu0 0.0
      %7024 = vmatprep.subr.mxu0 0.0
      %7025 = vmatpush1.xpose.msra.mxu0 0.0
      %7026 = vmatprep.subr.mxu0 0.0
      %7027 = vmatpush1.xpose.msra.mxu0 0.0
      %7028 = vmatprep.subr.mxu0 0.0
      %7029 = vmatpush1.xpose.msra.mxu0 0.0
      %7030 = vmatprep.subr.mxu0 0.0
      %7031 = vmatpush1.xpose.msra.mxu0 0.0
      %7032 = vmatprep.subr.mxu0 0.0
      %7033 = vmatpush1.xpose.msra.mxu0 0.0
      %7034 = vmatprep.subr.mxu0 0.0
      %7035 = vmatpush1.xpose.msra.mxu0 0.0
      %7036 = vmatprep.subr.mxu0 0.0
      %7037 = vmatpush1.xpose.msra.mxu0 0.0
      %7038 = vmatprep.subr.mxu0 0.0
      %7039 = vmatpush1.xpose.msra.mxu0 0.0
      %7040 = vmatprep.subr.mxu0 0.0
      %7041 = vmatpush1.xpose.msra.mxu0 0.0
      %7042 = vmatprep.subr.mxu0 0.0
      %7043 = vmatpush1.xpose.msra.mxu0 0.0
      %7044 = vmatprep.subr.mxu0 0.0
      %7045 = vmatpush1.xpose.msra.mxu0 0.0
      %7046 = vmatprep.subr.mxu0 0.0
      %7047 = vmatpush1.xpose.msra.mxu0 0.0
      %7048 = vmatprep.subr.mxu0 0.0
      %7049 = vmatpush1.xpose.msra.mxu0 0.0
      %7050 = vmatprep.mubr.f32.mxu0 0.0
      %7051 = vmatmul.mubr.f32.gmra.mrb[0].mxu0 %v6978
      %v7052 = vpop.f32.mrb[0].mxu0
      %v7053 = vadd.f32 0.0, %v7052
      %v7054 = vpop.f32.mrb[0].mxu0
      %7055 = vmatprep.mubr.f32.mxu0 0.0
      %7056 = vmatmul.mubr.f32.gmra.mrb[0].mxu0 %v6980
      %v7057 = vpop.f32.mrb[0].mxu0
      %v7058 = vadd.f32 0.0, %v7057
      %v7059 = vpop.f32.mrb[0].mxu0
      %7060 = vdwg.mxu0
      %v7061 = vmul.f32 %v7053, 0.25
      %v7062 = vmul.f32 %v7058, 0.25
      %v7063 = vsel %vm1909, %v7061, -inf
      %7064 = vmax.xlane.f32.xlu0 %v7063
      %v7065 = vpop.xlane.xlu0 %7064
      %v7066 = vsel %vm1909, %v7062, -inf
      %7067 = vmax.xlane.f32.xlu0 %v7066
      %v7068 = vpop.xlane.xlu0 %7067
      %v7069 = vsub.f32 %v7061, %v7065
      %v7070 = vsub.f32 %v7062, %v7068
      %v7071 = vmul.f32 %v7069, 1.442695
      %v7072 = vpow.pop %v7071
      %v7073 = vmul.f32 %v7070, 1.442695
      %v7074 = vpow.pop %v7073
      %v7075 = vsel %vm1909, %v7072, 0.0
      %7076 = vadd.xlane.f32.xlu0 %v7075
      %v7077 = vpop.xlane.xlu0 %7076
      %v7078 = vsel %vm1909, %v7074, 0.0
      %7079 = vadd.xlane.f32.xlu0 %v7078
      %v7080 = vpop.xlane.xlu0 %7079
      %v7081 = vrcp.pop %v7077
      %v7082 = vrcp.pop %v7080
      %v7083 = vmul.f32 %v7072, %v7081
      %v7084 = vmul.f32 %v7074, %v7082
      %7085 = vrot.lane.b32.xlu0 %v6957, 64
      %v7086 = vpop.permute.xlu0 %7085
      %7087 = vrot.lane.b32.xlu0 %v6962, 64
      %v7088 = vpop.permute.xlu0 %7087
      %v7092 = vsel %vm1909, %v7083, 0
      %v7095 = vsel %vm1909, %v7084, 0
      %7097 = vmatprep.subr.mxu0 0.0
      %7098 = vmatpush1.msra.mxu0 %v7086
      %7099 = vmatprep.subr.mxu0 0.0
      %7100 = vmatpush1.msra.mxu0 %v7088
      %7101 = vmatprep.subr.mxu0 0.0
      %7102 = vmatpush1.msra.mxu0 0.0
      %7103 = vmatprep.subr.mxu0 0.0
      %7104 = vmatpush1.msra.mxu0 0.0
      %7105 = vmatprep.subr.mxu0 0.0
      %7106 = vmatpush1.msra.mxu0 0.0
      %7107 = vmatprep.subr.mxu0 0.0
      %7108 = vmatpush1.msra.mxu0 0.0
      %7109 = vmatprep.subr.mxu0 0.0
      %7110 = vmatpush1.msra.mxu0 0.0
      %7111 = vmatprep.subr.mxu0 0.0
      %7112 = vmatpush1.msra.mxu0 0.0
      %7113 = vmatprep.subr.mxu0 0.0
      %7114 = vmatpush1.msra.mxu0 0.0
      %7115 = vmatprep.subr.mxu0 0.0
      %7116 = vmatpush1.msra.mxu0 0.0
      %7117 = vmatprep.subr.mxu0 0.0
      %7118 = vmatpush1.msra.mxu0 0.0
      %7119 = vmatprep.subr.mxu0 0.0
      %7120 = vmatpush1.msra.mxu0 0.0
      %7121 = vmatprep.subr.mxu0 0.0
      %7122 = vmatpush1.msra.mxu0 0.0
      %7123 = vmatprep.subr.mxu0 0.0
      %7124 = vmatpush1.msra.mxu0 0.0
      %7125 = vmatprep.subr.mxu0 0.0
      %7126 = vmatpush1.msra.mxu0 0.0
      %7127 = vmatprep.subr.mxu0 0.0
      %7128 = vmatpush1.msra.mxu0 0.0
      %7129 = vmatprep.subr.mxu0 0.0
      %7130 = vmatpush1.msra.mxu0 0.0
      %7131 = vmatprep.subr.mxu0 0.0
      %7132 = vmatpush1.msra.mxu0 0.0
      %7133 = vmatprep.subr.mxu0 0.0
      %7134 = vmatpush1.msra.mxu0 0.0
      %7135 = vmatprep.subr.mxu0 0.0
      %7136 = vmatpush1.msra.mxu0 0.0
      %7137 = vmatprep.subr.mxu0 0.0
      %7138 = vmatpush1.msra.mxu0 0.0
      %7139 = vmatprep.subr.mxu0 0.0
      %7140 = vmatpush1.msra.mxu0 0.0
      %7141 = vmatprep.subr.mxu0 0.0
      %7142 = vmatpush1.msra.mxu0 0.0
      %7143 = vmatprep.subr.mxu0 0.0
      %7144 = vmatpush1.msra.mxu0 0.0
      %7145 = vmatprep.subr.mxu0 0.0
      %7146 = vmatpush1.msra.mxu0 0.0
      %7147 = vmatprep.subr.mxu0 0.0
      %7148 = vmatpush1.msra.mxu0 0.0
      %7149 = vmatprep.subr.mxu0 0.0
      %7150 = vmatpush1.msra.mxu0 0.0
      %7151 = vmatprep.subr.mxu0 0.0
      %7152 = vmatpush1.msra.mxu0 0.0
      %7153 = vmatprep.subr.mxu0 0.0
      %7154 = vmatpush1.msra.mxu0 0.0
      %7155 = vmatprep.subr.mxu0 0.0
      %7156 = vmatpush1.msra.mxu0 0.0
      %7157 = vmatprep.subr.mxu0 0.0
      %7158 = vmatpush1.msra.mxu0 0.0
      %7159 = vmatprep.subr.mxu0 0.0
      %7160 = vmatpush1.msra.mxu0 0.0
      %7161 = vmatprep.mubr.f32.mxu0 0.0
      %7162 = vmatmul.mubr.f32.gmra.mrb[0].mxu0 %v7092
      %v7163 = vpop.f32.mrb[0].mxu0
      %v7164 = vadd.f32 0.0, %v7163
      %v7165 = vpop.f32.mrb[0].mxu0
      %7166 = vmatprep.mubr.f32.mxu0 0.0
      %7167 = vmatmul.mubr.f32.gmra.mrb[0].mxu0 %v7095
      %v7168 = vpop.f32.mrb[0].mxu0
      %v7169 = vadd.f32 0.0, %v7168
      %v7170 = vpop.f32.mrb[0].mxu0
      %7171 = vdwg.mxu0
      %7172 = vrot.lane.b32.xlu0 %v6957, 112
      %v7173 = vpop.permute.xlu0 %7172
      %7174 = vrot.lane.b32.xlu0 %v6962, 112
      %v7175 = vpop.permute.xlu0 %7174
      %7176 = vrot.lane.b32.xlu0 %v6957, 80
      %v7177 = vpop.permute.xlu0 %7176
      %7178 = vrot.lane.b32.xlu0 %v6962, 80
      %v7179 = vpop.permute.xlu0 %7178
      %v7180 = vsel %vm1909, %v7173, 0
      %v7182 = vsel %vm1909, %v7175, 0
      %v7184 = vsel %vm1909, %v7177, 0
      %v7186 = vsel %vm1909, %v7179, 0
      %7188 = vmatprep.subr.mxu0 0.0
      %7189 = vmatpush1.xpose.msra.mxu0 %v7184
      %7190 = vmatprep.subr.mxu0 0.0
      %7191 = vmatpush1.xpose.msra.mxu0 %v7186
      %7192 = vmatprep.subr.mxu0 0.0
      %7193 = vmatpush1.xpose.msra.mxu0 0.0
      %7194 = vmatprep.subr.mxu0 0.0
      %7195 = vmatpush1.xpose.msra.mxu0 0.0
      %7196 = vmatprep.subr.mxu0 0.0
      %7197 = vmatpush1.xpose.msra.mxu0 0.0
      %7198 = vmatprep.subr.mxu0 0.0
      %7199 = vmatpush1.xpose.msra.mxu0 0.0
      %7200 = vmatprep.subr.mxu0 0.0
      %7201 = vmatpush1.xpose.msra.mxu0 0.0
      %7202 = vmatprep.subr.mxu0 0.0
      %7203 = vmatpush1.xpose.msra.mxu0 0.0
      %7204 = vmatprep.subr.mxu0 0.0
      %7205 = vmatpush1.xpose.msra.mxu0 0.0
      %7206 = vmatprep.subr.mxu0 0.0
      %7207 = vmatpush1.xpose.msra.mxu0 0.0
      %7208 = vmatprep.subr.mxu0 0.0
      %7209 = vmatpush1.xpose.msra.mxu0 0.0
      %7210 = vmatprep.subr.mxu0 0.0
      %7211 = vmatpush1.xpose.msra.mxu0 0.0
      %7212 = vmatprep.subr.mxu0 0.0
      %7213 = vmatpush1.xpose.msra.mxu0 0.0
      %7214 = vmatprep.subr.mxu0 0.0
      %7215 = vmatpush1.xpose.msra.mxu0 0.0
      %7216 = vmatprep.subr.mxu0 0.0
      %7217 = vmatpush1.xpose.msra.mxu0 0.0
      %7218 = vmatprep.subr.mxu0 0.0
      %7219 = vmatpush1.xpose.msra.mxu0 0.0
      %7220 = vmatprep.subr.mxu0 0.0
      %7221 = vmatpush1.xpose.msra.mxu0 0.0
      %7222 = vmatprep.subr.mxu0 0.0
      %7223 = vmatpush1.xpose.msra.mxu0 0.0
      %7224 = vmatprep.subr.mxu0 0.0
      %7225 = vmatpush1.xpose.msra.mxu0 0.0
      %7226 = vmatprep.subr.mxu0 0.0
      %7227 = vmatpush1.xpose.msra.mxu0 0.0
      %7228 = vmatprep.subr.mxu0 0.0
      %7229 = vmatpush1.xpose.msra.mxu0 0.0
      %7230 = vmatprep.subr.mxu0 0.0
      %7231 = vmatpush1.xpose.msra.mxu0 0.0
      %7232 = vmatprep.subr.mxu0 0.0
      %7233 = vmatpush1.xpose.msra.mxu0 0.0
      %7234 = vmatprep.subr.mxu0 0.0
      %7235 = vmatpush1.xpose.msra.mxu0 0.0
      %7236 = vmatprep.subr.mxu0 0.0
      %7237 = vmatpush1.xpose.msra.mxu0 0.0
      %7238 = vmatprep.subr.mxu0 0.0
      %7239 = vmatpush1.xpose.msra.mxu0 0.0
      %7240 = vmatprep.subr.mxu0 0.0
      %7241 = vmatpush1.xpose.msra.mxu0 0.0
      %7242 = vmatprep.subr.mxu0 0.0
      %7243 = vmatpush1.xpose.msra.mxu0 0.0
      %7244 = vmatprep.subr.mxu0 0.0
      %7245 = vmatpush1.xpose.msra.mxu0 0.0
      %7246 = vmatprep.subr.mxu0 0.0
      %7247 = vmatpush1.xpose.msra.mxu0 0.0
      %7248 = vmatprep.subr.mxu0 0.0
      %7249 = vmatpush1.xpose.msra.mxu0 0.0
      %7250 = vmatprep.subr.mxu0 0.0
      %7251 = vmatpush1.xpose.msra.mxu0 0.0
      %7252 = vmatprep.mubr.f32.mxu0 0.0
      %7253 = vmatmul.mubr.f32.gmra.mrb[0].mxu0 %v7180
      %v7254 = vpop.f32.mrb[0].mxu0
      %v7255 = vadd.f32 0.0, %v7254
      %v7256 = vpop.f32.mrb[0].mxu0
      %7257 = vmatprep.mubr.f32.mxu0 0.0
      %7258 = vmatmul.mubr.f32.gmra.mrb[0].mxu0 %v7182
      %v7259 = vpop.f32.mrb[0].mxu0
      %v7260 = vadd.f32 0.0, %v7259
      %v7261 = vpop.f32.mrb[0].mxu0
      %7262 = vdwg.mxu0
      %v7263 = vmul.f32 %v7255, 0.25
      %v7264 = vmul.f32 %v7260, 0.25
      %v7265 = vsel %vm1909, %v7263, -inf
      %7266 = vmax.xlane.f32.xlu0 %v7265
      %v7267 = vpop.xlane.xlu0 %7266
      %v7268 = vsel %vm1909, %v7264, -inf
      %7269 = vmax.xlane.f32.xlu0 %v7268
      %v7270 = vpop.xlane.xlu0 %7269
      %v7271 = vsub.f32 %v7263, %v7267
      %v7272 = vsub.f32 %v7264, %v7270
      %v7273 = vmul.f32 %v7271, 1.442695
      %v7274 = vpow.pop %v7273
      %v7275 = vmul.f32 %v7272, 1.442695
      %v7276 = vpow.pop %v7275
      %v7277 = vsel %vm1909, %v7274, 0.0
      %7278 = vadd.xlane.f32.xlu0 %v7277
      %v7279 = vpop.xlane.xlu0 %7278
      %v7280 = vsel %vm1909, %v7276, 0.0
      %7281 = vadd.xlane.f32.xlu0 %v7280
      %v7282 = vpop.xlane.xlu0 %7281
      %v7283 = vrcp.pop %v7279
      %v7284 = vrcp.pop %v7282
      %v7285 = vmul.f32 %v7274, %v7283
      %v7286 = vmul.f32 %v7276, %v7284
      %7287 = vrot.lane.b32.xlu0 %v6957, 48
      %v7288 = vpop.permute.xlu0 %7287
      %7289 = vrot.lane.b32.xlu0 %v6962, 48
      %v7290 = vpop.permute.xlu0 %7289
      %v7294 = vsel %vm1909, %v7285, 0
      %v7297 = vsel %vm1909, %v7286, 0
      %7299 = vmatprep.subr.mxu0 0.0
      %7300 = vmatpush1.msra.mxu0 %v7288
      %7301 = vmatprep.subr.mxu0 0.0
      %7302 = vmatpush1.msra.mxu0 %v7290
      %7303 = vmatprep.subr.mxu0 0.0
      %7304 = vmatpush1.msra.mxu0 0.0
      %7305 = vmatprep.subr.mxu0 0.0
      %7306 = vmatpush1.msra.mxu0 0.0
      %7307 = vmatprep.subr.mxu0 0.0
      %7308 = vmatpush1.msra.mxu0 0.0
      %7309 = vmatprep.subr.mxu0 0.0
      %7310 = vmatpush1.msra.mxu0 0.0
      %7311 = vmatprep.subr.mxu0 0.0
      %7312 = vmatpush1.msra.mxu0 0.0
      %7313 = vmatprep.subr.mxu0 0.0
      %7314 = vmatpush1.msra.mxu0 0.0
      %7315 = vmatprep.subr.mxu0 0.0
      %7316 = vmatpush1.msra.mxu0 0.0
      %7317 = vmatprep.subr.mxu0 0.0
      %7318 = vmatpush1.msra.mxu0 0.0
      %7319 = vmatprep.subr.mxu0 0.0
      %7320 = vmatpush1.msra.mxu0 0.0
      %7321 = vmatprep.subr.mxu0 0.0
      %7322 = vmatpush1.msra.mxu0 0.0
      %7323 = vmatprep.subr.mxu0 0.0
      %7324 = vmatpush1.msra.mxu0 0.0
      %7325 = vmatprep.subr.mxu0 0.0
      %7326 = vmatpush1.msra.mxu0 0.0
      %7327 = vmatprep.subr.mxu0 0.0
      %7328 = vmatpush1.msra.mxu0 0.0
      %7329 = vmatprep.subr.mxu0 0.0
      %7330 = vmatpush1.msra.mxu0 0.0
      %7331 = vmatprep.subr.mxu0 0.0
      %7332 = vmatpush1.msra.mxu0 0.0
      %7333 = vmatprep.subr.mxu0 0.0
      %7334 = vmatpush1.msra.mxu0 0.0
      %7335 = vmatprep.subr.mxu0 0.0
      %7336 = vmatpush1.msra.mxu0 0.0
      %7337 = vmatprep.subr.mxu0 0.0
      %7338 = vmatpush1.msra.mxu0 0.0
      %7339 = vmatprep.subr.mxu0 0.0
      %7340 = vmatpush1.msra.mxu0 0.0
      %7341 = vmatprep.subr.mxu0 0.0
      %7342 = vmatpush1.msra.mxu0 0.0
      %7343 = vmatprep.subr.mxu0 0.0
      %7344 = vmatpush1.msra.mxu0 0.0
      %7345 = vmatprep.subr.mxu0 0.0
      %7346 = vmatpush1.msra.mxu0 0.0
      %7347 = vmatprep.subr.mxu0 0.0
      %7348 = vmatpush1.msra.mxu0 0.0
      %7349 = vmatprep.subr.mxu0 0.0
      %7350 = vmatpush1.msra.mxu0 0.0
      %7351 = vmatprep.subr.mxu0 0.0
      %7352 = vmatpush1.msra.mxu0 0.0
      %7353 = vmatprep.subr.mxu0 0.0
      %7354 = vmatpush1.msra.mxu0 0.0
      %7355 = vmatprep.subr.mxu0 0.0
      %7356 = vmatpush1.msra.mxu0 0.0
      %7357 = vmatprep.subr.mxu0 0.0
      %7358 = vmatpush1.msra.mxu0 0.0
      %7359 = vmatprep.subr.mxu0 0.0
      %7360 = vmatpush1.msra.mxu0 0.0
      %7361 = vmatprep.subr.mxu0 0.0
      %7362 = vmatpush1.msra.mxu0 0.0
      %7363 = vmatprep.mubr.f32.mxu0 0.0
      %7364 = vmatmul.mubr.f32.gmra.mrb[0].mxu0 %v7294
      %v7365 = vpop.f32.mrb[0].mxu0
      %v7366 = vadd.f32 0.0, %v7365
      %v7367 = vpop.f32.mrb[0].mxu0
      %7368 = vmatprep.mubr.f32.mxu0 0.0
      %7369 = vmatmul.mubr.f32.gmra.mrb[0].mxu0 %v7297
      %v7370 = vpop.f32.mrb[0].mxu0
      %v7371 = vadd.f32 0.0, %v7370
      %v7372 = vpop.f32.mrb[0].mxu0
      %7373 = vdwg.mxu0
      %v7375 = vsel %vm1909, %v7366, 0
      %v7378 = vsel %vm1909, %v7371, 0
      %7380 = vmatprep.subr.mxu0 0.0
      %7381 = vmatpush1.msra.mxu0 %v6968
      %7382 = vmatprep.subr.mxu0 0.0
      %7383 = vmatpush1.msra.mxu0 %v6969
      %7384 = vmatprep.subr.mxu0 0.0
      %7385 = vmatpush1.msra.mxu0 0.0
      %7386 = vmatprep.subr.mxu0 0.0
      %7387 = vmatpush1.msra.mxu0 0.0
      %7388 = vmatprep.subr.mxu0 0.0
      %7389 = vmatpush1.msra.mxu0 0.0
      %7390 = vmatprep.subr.mxu0 0.0
      %7391 = vmatpush1.msra.mxu0 0.0
      %7392 = vmatprep.subr.mxu0 0.0
      %7393 = vmatpush1.msra.mxu0 0.0
      %7394 = vmatprep.subr.mxu0 0.0
      %7395 = vmatpush1.msra.mxu0 0.0
      %7396 = vmatprep.subr.mxu0 0.0
      %7397 = vmatpush1.msra.mxu0 0.0
      %7398 = vmatprep.subr.mxu0 0.0
      %7399 = vmatpush1.msra.mxu0 0.0
      %7400 = vmatprep.subr.mxu0 0.0
      %7401 = vmatpush1.msra.mxu0 0.0
      %7402 = vmatprep.subr.mxu0 0.0
      %7403 = vmatpush1.msra.mxu0 0.0
      %7404 = vmatprep.subr.mxu0 0.0
      %7405 = vmatpush1.msra.mxu0 0.0
      %7406 = vmatprep.subr.mxu0 0.0
      %7407 = vmatpush1.msra.mxu0 0.0
      %7408 = vmatprep.subr.mxu0 0.0
      %7409 = vmatpush1.msra.mxu0 0.0
      %7410 = vmatprep.subr.mxu0 0.0
      %7411 = vmatpush1.msra.mxu0 0.0
      %7412 = vmatprep.subr.mxu0 0.0
      %7413 = vmatpush1.msra.mxu0 0.0
      %7414 = vmatprep.subr.mxu0 0.0
      %7415 = vmatpush1.msra.mxu0 0.0
      %7416 = vmatprep.subr.mxu0 0.0
      %7417 = vmatpush1.msra.mxu0 0.0
      %7418 = vmatprep.subr.mxu0 0.0
      %7419 = vmatpush1.msra.mxu0 0.0
      %7420 = vmatprep.subr.mxu0 0.0
      %7421 = vmatpush1.msra.mxu0 0.0
      %7422 = vmatprep.subr.mxu0 0.0
      %7423 = vmatpush1.msra.mxu0 0.0
      %7424 = vmatprep.subr.mxu0 0.0
      %7425 = vmatpush1.msra.mxu0 0.0
      %7426 = vmatprep.subr.mxu0 0.0
      %7427 = vmatpush1.msra.mxu0 0.0
      %7428 = vmatprep.subr.mxu0 0.0
      %7429 = vmatpush1.msra.mxu0 0.0
      %7430 = vmatprep.subr.mxu0 0.0
      %7431 = vmatpush1.msra.mxu0 0.0
      %7432 = vmatprep.subr.mxu0 0.0
      %7433 = vmatpush1.msra.mxu0 0.0
      %7434 = vmatprep.subr.mxu0 0.0
      %7435 = vmatpush1.msra.mxu0 0.0
      %7436 = vmatprep.subr.mxu0 0.0
      %7437 = vmatpush1.msra.mxu0 0.0
      %7438 = vmatprep.subr.mxu0 0.0
      %7439 = vmatpush1.msra.mxu0 0.0
      %7440 = vmatprep.subr.mxu0 0.0
      %7441 = vmatpush1.msra.mxu0 0.0
      %7442 = vmatprep.subr.mxu0 0.0
      %7443 = vmatpush1.msra.mxu0 0.0
      %7444 = vmatprep.mubr.f32.mxu0 0.0
      %7445 = vmatmul.mubr.f32.gmra.mrb[0].mxu0 %v7375
      %v7446 = vpop.f32.mrb[0].mxu0
      %v7447 = vadd.f32 0.0, %v7446
      %v7448 = vpop.f32.mrb[0].mxu0
      %7449 = vmatprep.mubr.f32.mxu0 0.0
      %7450 = vmatmul.mubr.f32.gmra.mrb[0].mxu0 %v7378
      %v7451 = vpop.f32.mrb[0].mxu0
      %v7452 = vadd.f32 0.0, %v7451
      %v7453 = vpop.f32.mrb[0].mxu0
      %7454 = vdwg.mxu0
      %v7456 = vsel %vm1909, %v7164, 0
      %v7459 = vsel %vm1909, %v7169, 0
      %7461 = vmatprep.subr.mxu0 0.0
      %7462 = vmatpush1.msra.mxu0 %v6966
      %7463 = vmatprep.subr.mxu0 0.0
      %7464 = vmatpush1.msra.mxu0 %v6967
      %7465 = vmatprep.subr.mxu0 0.0
      %7466 = vmatpush1.msra.mxu0 0.0
      %7467 = vmatprep.subr.mxu0 0.0
      %7468 = vmatpush1.msra.mxu0 0.0
      %7469 = vmatprep.subr.mxu0 0.0
      %7470 = vmatpush1.msra.mxu0 0.0
      %7471 = vmatprep.subr.mxu0 0.0
      %7472 = vmatpush1.msra.mxu0 0.0
      %7473 = vmatprep.subr.mxu0 0.0
      %7474 = vmatpush1.msra.mxu0 0.0
      %7475 = vmatprep.subr.mxu0 0.0
      %7476 = vmatpush1.msra.mxu0 0.0
      %7477 = vmatprep.subr.mxu0 0.0
      %7478 = vmatpush1.msra.mxu0 0.0
      %7479 = vmatprep.subr.mxu0 0.0
      %7480 = vmatpush1.msra.mxu0 0.0
      %7481 = vmatprep.subr.mxu0 0.0
      %7482 = vmatpush1.msra.mxu0 0.0
      %7483 = vmatprep.subr.mxu0 0.0
      %7484 = vmatpush1.msra.mxu0 0.0
      %7485 = vmatprep.subr.mxu0 0.0
      %7486 = vmatpush1.msra.mxu0 0.0
      %7487 = vmatprep.subr.mxu0 0.0
      %7488 = vmatpush1.msra.mxu0 0.0
      %7489 = vmatprep.subr.mxu0 0.0
      %7490 = vmatpush1.msra.mxu0 0.0
      %7491 = vmatprep.subr.mxu0 0.0
      %7492 = vmatpush1.msra.mxu0 0.0
      %7493 = vmatprep.subr.mxu0 0.0
      %7494 = vmatpush1.msra.mxu0 0.0
      %7495 = vmatprep.subr.mxu0 0.0
      %7496 = vmatpush1.msra.mxu0 0.0
      %7497 = vmatprep.subr.mxu0 0.0
      %7498 = vmatpush1.msra.mxu0 0.0
      %7499 = vmatprep.subr.mxu0 0.0
      %7500 = vmatpush1.msra.mxu0 0.0
      %7501 = vmatprep.subr.mxu0 0.0
      %7502 = vmatpush1.msra.mxu0 0.0
      %7503 = vmatprep.subr.mxu0 0.0
      %7504 = vmatpush1.msra.mxu0 0.0
      %7505 = vmatprep.subr.mxu0 0.0
      %7506 = vmatpush1.msra.mxu0 0.0
      %7507 = vmatprep.subr.mxu0 0.0
      %7508 = vmatpush1.msra.mxu0 0.0
      %7509 = vmatprep.subr.mxu0 0.0
      %7510 = vmatpush1.msra.mxu0 0.0
      %7511 = vmatprep.subr.mxu0 0.0
      %7512 = vmatpush1.msra.mxu0 0.0
      %7513 = vmatprep.subr.mxu0 0.0
      %7514 = vmatpush1.msra.mxu0 0.0
      %7515 = vmatprep.subr.mxu0 0.0
      %7516 = vmatpush1.msra.mxu0 0.0
      %7517 = vmatprep.subr.mxu0 0.0
      %7518 = vmatpush1.msra.mxu0 0.0
      %7519 = vmatprep.subr.mxu0 0.0
      %7520 = vmatpush1.msra.mxu0 0.0
      %7521 = vmatprep.subr.mxu0 0.0
      %7522 = vmatpush1.msra.mxu0 0.0
      %7523 = vmatprep.subr.mxu0 0.0
      %7524 = vmatpush1.msra.mxu0 0.0
      %7525 = vmatprep.mubr.f32.mxu0 0.0
      %7526 = vmatmul.mubr.f32.gmra.mrb[0].mxu0 %v7456
      %v7527 = vpop.f32.mrb[0].mxu0
      %v7528 = vadd.f32 %v7447, %v7527
      %v7529 = vpop.f32.mrb[0].mxu0
      %7530 = vmatprep.mubr.f32.mxu0 0.0
      %7531 = vmatmul.mubr.f32.gmra.mrb[0].mxu0 %v7459
      %v7532 = vpop.f32.mrb[0].mxu0
      %v7533 = vadd.f32 %v7452, %v7532
      %v7534 = vpop.f32.mrb[0].mxu0
      %7535 = vdwg.mxu0
      %v7537 = vlaneseq
      %v7538 = vshrl.u32 %v7537, 7
      %v7539 = vsub.s32 0, %v7538
      %v7540 = vrot.slane %v6971, %v7539
      %v7542 = vadd.f32 %v7528, %v7540
      %v7543 = vadd.f32 %v7533, %v7540
      %v7544 = vadd.f32 %v6829, %v7542
      %v7545 = vadd.f32 %v6830, %v7543
      %s7546 = scalar_lea.vmem %s65, 2
      %v7547 = vld [vmem:[%s7546] sm:$0x3]
      %v7548 = vsel %vm1662, %v7544, 0.0
      %7549 = vadd.xlane.f32.xlu0 %v7548
      %v7550 = vpop.xlane.xlu0 %7549
      %v7551 = vsel %vm1662, %v7545, 0.0
      %7552 = vadd.xlane.f32.xlu0 %v7551
      %v7553 = vpop.xlane.xlu0 %7552
      %v7554 = vmul.f32 %v7550, %v1681
      %v7555 = vmul.f32 %v7553, %v1681
      %v7556 = vsub.f32 %v7544, %v7554
      %v7557 = vsub.f32 %v7545, %v7555
      %v7558 = vmul.f32 %v7556, %v7556
      %v7559 = vmul.f32 %v7557, %v7557
      %v7560 = vsel %vm1662, %v7558, 0.0
      %7561 = vadd.xlane.f32.xlu0 %v7560
      %v7562 = vpop.xlane.xlu0 %7561
      %v7563 = vsel %vm1662, %v7559, 0.0
      %7564 = vadd.xlane.f32.xlu0 %v7563
      %v7565 = vpop.xlane.xlu0 %7564
      %v7566 = vmul.f32 %v7562, %v1681
      %v7567 = vmul.f32 %v7565, %v1681
      %v7568 = vadd.f32 %v7566, 1e-06
      %v7569 = vadd.f32 %v7567, 1e-06
      %v7570 = vrsqrt.pop %v7568
      %v7571 = vrsqrt.pop %v7569
      %v7572 = vmul.f32 %v7556, %v7570
      %v7573 = vmul.f32 %v7557, %v7571
      %v7574 = vlaneseq
      %v7575 = vshrl.u32 %v7574, 7
      %v7576 = vsub.s32 0, %v7575
      %v7577 = vrot.slane %v7547, %v7576
      %v7578 = vmul.f32 %v7572, %v7577
      %v7579 = vmul.f32 %v7573, %v7577
      %v7580 = vlaneseq
      %v7581 = vshrl.u32 %v7580, 7
      %v7582 = vsub.s32 1, %v7581
      %v7583 = vrot.slane %v7547, %v7582
      %v7584 = vadd.f32 %v7578, %v7583
      %v7585 = vadd.f32 %v7579, %v7583
      %s7586 = scalar_lea.vmem %s67, 32
      %v7587 = vld [vmem:[%s7586] sm:$0xff]
      %v7588 = vld [vmem:[%s7586 + $0x8] sm:$0xff]
      %v7589 = vld [vmem:[%s7586 + $0x10] sm:$0xff]
      %v7590 = vld [vmem:[%s7586 + $0x18] sm:$0xff]
      %s7591 = scalar_lea.vmem %s69, 1
      %v7592 = vld [vmem:[%s7591] sm:$0x1]
      %v7594 = vlaneseq
      %v7595 = vshrl.u32 %v7594, 7
      %v7596 = vsub.s32 0, %v7595
      %v7597 = vrot.slane %v7592, %v7596
      %v7600 = vsel %vm1662, %v7584, 0
      %v7603 = vsel %vm1662, %v7585, 0
      %7605 = vmatprep.subr.mxu0 0.0
      %7606 = vmatpush1.msra.mxu0 %v7587
      %7607 = vmatprep.subr.mxu0 0.0
      %7608 = vmatpush1.msra.mxu0 %v7588
      %7609 = vmatprep.subr.mxu0 0.0
      %7610 = vmatpush1.msra.mxu0 %v7589
      %7611 = vmatprep.subr.mxu0 0.0
      %7612 = vmatpush1.msra.mxu0 %v7590
      %7613 = vmatprep.subr.mxu0 0.0
      %7614 = vmatpush1.msra.mxu0 0.0
      %7615 = vmatprep.subr.mxu0 0.0
      %7616 = vmatpush1.msra.mxu0 0.0
      %7617 = vmatprep.subr.mxu0 0.0
      %7618 = vmatpush1.msra.mxu0 0.0
      %7619 = vmatprep.subr.mxu0 0.0
      %7620 = vmatpush1.msra.mxu0 0.0
      %7621 = vmatprep.subr.mxu0 0.0
      %7622 = vmatpush1.msra.mxu0 0.0
      %7623 = vmatprep.subr.mxu0 0.0
      %7624 = vmatpush1.msra.mxu0 0.0
      %7625 = vmatprep.subr.mxu0 0.0
      %7626 = vmatpush1.msra.mxu0 0.0
      %7627 = vmatprep.subr.mxu0 0.0
      %7628 = vmatpush1.msra.mxu0 0.0
      %7629 = vmatprep.subr.mxu0 0.0
      %7630 = vmatpush1.msra.mxu0 0.0
      %7631 = vmatprep.subr.mxu0 0.0
      %7632 = vmatpush1.msra.mxu0 0.0
      %7633 = vmatprep.subr.mxu0 0.0
      %7634 = vmatpush1.msra.mxu0 0.0
      %7635 = vmatprep.subr.mxu0 0.0
      %7636 = vmatpush1.msra.mxu0 0.0
      %7637 = vmatprep.subr.mxu0 0.0
      %7638 = vmatpush1.msra.mxu0 0.0
      %7639 = vmatprep.subr.mxu0 0.0
      %7640 = vmatpush1.msra.mxu0 0.0
      %7641 = vmatprep.subr.mxu0 0.0
      %7642 = vmatpush1.msra.mxu0 0.0
      %7643 = vmatprep.subr.mxu0 0.0
      %7644 = vmatpush1.msra.mxu0 0.0
      %7645 = vmatprep.subr.mxu0 0.0
      %7646 = vmatpush1.msra.mxu0 0.0
      %7647 = vmatprep.subr.mxu0 0.0
      %7648 = vmatpush1.msra.mxu0 0.0
      %7649 = vmatprep.subr.mxu0 0.0
      %7650 = vmatpush1.msra.mxu0 0.0
      %7651 = vmatprep.subr.mxu0 0.0
      %7652 = vmatpush1.msra.mxu0 0.0
      %7653 = vmatprep.subr.mxu0 0.0
      %7654 = vmatpush1.msra.mxu0 0.0
      %7655 = vmatprep.subr.mxu0 0.0
      %7656 = vmatpush1.msra.mxu0 0.0
      %7657 = vmatprep.subr.mxu0 0.0
      %7658 = vmatpush1.msra.mxu0 0.0
      %7659 = vmatprep.subr.mxu0 0.0
      %7660 = vmatpush1.msra.mxu0 0.0
      %7661 = vmatprep.subr.mxu0 0.0
      %7662 = vmatpush1.msra.mxu0 0.0
      %7663 = vmatprep.subr.mxu0 0.0
      %7664 = vmatpush1.msra.mxu0 0.0
      %7665 = vmatprep.subr.mxu0 0.0
      %7666 = vmatpush1.msra.mxu0 0.0
      %7667 = vmatprep.subr.mxu0 0.0
      %7668 = vmatpush1.msra.mxu0 0.0
      %7669 = vmatprep.mubr.f32.mxu0 0.0
      %7670 = vmatmul.mubr.f32.gmra.mrb[0].mxu0 %v7600
      %v7671 = vpop.f32.mrb[0].mxu0
      %v7672 = vadd.f32 %v7597, %v7671
      %v7673 = vpop.f32.mrb[0].mxu0
      %7674 = vmatprep.mubr.f32.mxu0 0.0
      %7675 = vmatmul.mubr.f32.gmra.mrb[0].mxu0 %v7603
      %v7676 = vpop.f32.mrb[0].mxu0
      %v7677 = vadd.f32 %v7597, %v7676
      %v7678 = vpop.f32.mrb[0].mxu0
      %7679 = vdwg.mxu0
      %s7680 = scalar_lea.vmem %s71, 32
      %v7681 = vld [vmem:[%s7680] sm:$0xff]
      %v7682 = vld [vmem:[%s7680 + $0x8] sm:$0xff]
      %v7683 = vld [vmem:[%s7680 + $0x10] sm:$0xff]
      %v7684 = vld [vmem:[%s7680 + $0x18] sm:$0xff]
      %s7685 = scalar_lea.vmem %s73, 1
      %v7686 = vld [vmem:[%s7685] sm:$0x1]
      %v7688 = vlaneseq
      %v7689 = vshrl.u32 %v7688, 7
      %v7690 = vsub.s32 0, %v7689
      %v7691 = vrot.slane %v7686, %v7690
      %v7694 = vsel %vm1662, %v3218, 0
      %v7697 = vsel %vm1662, %v3219, 0
      %v7700 = vsel %vm1662, %v3220, 0
      %v7703 = vsel %vm1662, %v3221, 0
      %v7706 = vsel %vm1662, %v3222, 0
      %v7709 = vsel %vm1662, %v3223, 0
      %7711 = vmatprep.subr.mxu0 0.0
      %7712 = vmatpush1.msra.mxu0 %v7681
      %7713 = vmatprep.subr.mxu0 0.0
      %7714 = vmatpush1.msra.mxu0 %v7682
      %7715 = vmatprep.subr.mxu0 0.0
      %7716 = vmatpush1.msra.mxu0 %v7683
      %7717 = vmatprep.subr.mxu0 0.0
      %7718 = vmatpush1.msra.mxu0 %v7684
      %7719 = vmatprep.subr.mxu0 0.0
      %7720 = vmatpush1.msra.mxu0 0.0
      %7721 = vmatprep.subr.mxu0 0.0
      %7722 = vmatpush1.msra.mxu0 0.0
      %7723 = vmatprep.subr.mxu0 0.0
      %7724 = vmatpush1.msra.mxu0 0.0
      %7725 = vmatprep.subr.mxu0 0.0
      %7726 = vmatpush1.msra.mxu0 0.0
      %7727 = vmatprep.subr.mxu0 0.0
      %7728 = vmatpush1.msra.mxu0 0.0
      %7729 = vmatprep.subr.mxu0 0.0
      %7730 = vmatpush1.msra.mxu0 0.0
      %7731 = vmatprep.subr.mxu0 0.0
      %7732 = vmatpush1.msra.mxu0 0.0
      %7733 = vmatprep.subr.mxu0 0.0
      %7734 = vmatpush1.msra.mxu0 0.0
      %7735 = vmatprep.subr.mxu0 0.0
      %7736 = vmatpush1.msra.mxu0 0.0
      %7737 = vmatprep.subr.mxu0 0.0
      %7738 = vmatpush1.msra.mxu0 0.0
      %7739 = vmatprep.subr.mxu0 0.0
      %7740 = vmatpush1.msra.mxu0 0.0
      %7741 = vmatprep.subr.mxu0 0.0
      %7742 = vmatpush1.msra.mxu0 0.0
      %7743 = vmatprep.subr.mxu0 0.0
      %7744 = vmatpush1.msra.mxu0 0.0
      %7745 = vmatprep.subr.mxu0 0.0
      %7746 = vmatpush1.msra.mxu0 0.0
      %7747 = vmatprep.subr.mxu0 0.0
      %7748 = vmatpush1.msra.mxu0 0.0
      %7749 = vmatprep.subr.mxu0 0.0
      %7750 = vmatpush1.msra.mxu0 0.0
      %7751 = vmatprep.subr.mxu0 0.0
      %7752 = vmatpush1.msra.mxu0 0.0
      %7753 = vmatprep.subr.mxu0 0.0
      %7754 = vmatpush1.msra.mxu0 0.0
      %7755 = vmatprep.subr.mxu0 0.0
      %7756 = vmatpush1.msra.mxu0 0.0
      %7757 = vmatprep.subr.mxu0 0.0
      %7758 = vmatpush1.msra.mxu0 0.0
      %7759 = vmatprep.subr.mxu0 0.0
      %7760 = vmatpush1.msra.mxu0 0.0
      %7761 = vmatprep.subr.mxu0 0.0
      %7762 = vmatpush1.msra.mxu0 0.0
      %7763 = vmatprep.subr.mxu0 0.0
      %7764 = vmatpush1.msra.mxu0 0.0
      %7765 = vmatprep.subr.mxu0 0.0
      %7766 = vmatpush1.msra.mxu0 0.0
      %7767 = vmatprep.subr.mxu0 0.0
      %7768 = vmatpush1.msra.mxu0 0.0
      %7769 = vmatprep.subr.mxu0 0.0
      %7770 = vmatpush1.msra.mxu0 0.0
      %7771 = vmatprep.subr.mxu0 0.0
      %7772 = vmatpush1.msra.mxu0 0.0
      %7773 = vmatprep.subr.mxu0 0.0
      %7774 = vmatpush1.msra.mxu0 0.0
      %7775 = vmatprep.mubr.f32.mxu0 0.0
      %7776 = vmatmul.mubr.f32.gmra.mrb[0].mxu0 %v7694
      %v7777 = vpop.f32.mrb[0].mxu0
      %v7778 = vadd.f32 %v7691, %v7777
      %v7779 = vpop.f32.mrb[0].mxu0
      %7780 = vmatprep.mubr.f32.mxu0 0.0
      %7781 = vmatmul.mubr.f32.gmra.mrb[0].mxu0 %v7697
      %v7782 = vpop.f32.mrb[0].mxu0
      %v7783 = vadd.f32 %v7691, %v7782
      %v7784 = vpop.f32.mrb[0].mxu0
      %7785 = vmatprep.mubr.f32.mxu0 0.0
      %7786 = vmatmul.mubr.f32.gmra.mrb[0].mxu0 %v7700
      %v7787 = vpop.f32.mrb[0].mxu0
      %v7788 = vadd.f32 %v7691, %v7787
      %v7789 = vpop.f32.mrb[0].mxu0
      %7790 = vmatprep.mubr.f32.mxu0 0.0
      %7791 = vmatmul.mubr.f32.gmra.mrb[0].mxu0 %v7703
      %v7792 = vpop.f32.mrb[0].mxu0
      %v7793 = vadd.f32 %v7691, %v7792
      %v7794 = vpop.f32.mrb[0].mxu0
      %7795 = vmatprep.mubr.f32.mxu0 0.0
      %7796 = vmatmul.mubr.f32.gmra.mrb[0].mxu0 %v7706
      %v7797 = vpop.f32.mrb[0].mxu0
      %v7798 = vadd.f32 %v7691, %v7797
      %v7799 = vpop.f32.mrb[0].mxu0
      %7800 = vmatprep.mubr.f32.mxu0 0.0
      %7801 = vmatmul.mubr.f32.gmra.mrb[0].mxu0 %v7709
      %v7802 = vpop.f32.mrb[0].mxu0
      %v7803 = vadd.f32 %v7691, %v7802
      %v7804 = vpop.f32.mrb[0].mxu0
      %7805 = vdwg.mxu0
      %s7806 = scalar_lea.vmem %s75, 32
      %v7807 = vld [vmem:[%s7806] sm:$0xff]
      %v7808 = vld [vmem:[%s7806 + $0x8] sm:$0xff]
      %v7809 = vld [vmem:[%s7806 + $0x10] sm:$0xff]
      %v7810 = vld [vmem:[%s7806 + $0x18] sm:$0xff]
      %s7811 = scalar_lea.vmem %s77, 1
      %v7812 = vld [vmem:[%s7811] sm:$0x1]
      %v7814 = vsel %vm1909, %v7672, 0
      %v7817 = vsel %vm1909, %v7677, 0
      %v7820 = vsel %vm1909, %v7778, 0
      %v7823 = vsel %vm1909, %v7783, 0
      %v7826 = vsel %vm1909, %v7788, 0
      %v7829 = vsel %vm1909, %v7793, 0
      %v7832 = vsel %vm1909, %v7798, 0
      %v7835 = vsel %vm1909, %v7803, 0
      %7837 = vmatprep.subr.mxu0 0.0
      %7838 = vmatpush1.xpose.msra.mxu0 %v7820
      %7839 = vmatprep.subr.mxu0 0.0
      %7840 = vmatpush1.xpose.msra.mxu0 %v7823
      %7841 = vmatprep.subr.mxu0 0.0
      %7842 = vmatpush1.xpose.msra.mxu0 %v7826
      %7843 = vmatprep.subr.mxu0 0.0
      %7844 = vmatpush1.xpose.msra.mxu0 %v7829
      %7845 = vmatprep.subr.mxu0 0.0
      %7846 = vmatpush1.xpose.msra.mxu0 %v7832
      %7847 = vmatprep.subr.mxu0 0.0
      %7848 = vmatpush1.xpose.msra.mxu0 %v7835
      %7849 = vmatprep.subr.mxu0 0.0
      %7850 = vmatpush1.xpose.msra.mxu0 0.0
      %7851 = vmatprep.subr.mxu0 0.0
      %7852 = vmatpush1.xpose.msra.mxu0 0.0
      %7853 = vmatprep.subr.mxu0 0.0
      %7854 = vmatpush1.xpose.msra.mxu0 0.0
      %7855 = vmatprep.subr.mxu0 0.0
      %7856 = vmatpush1.xpose.msra.mxu0 0.0
      %7857 = vmatprep.subr.mxu0 0.0
      %7858 = vmatpush1.xpose.msra.mxu0 0.0
      %7859 = vmatprep.subr.mxu0 0.0
      %7860 = vmatpush1.xpose.msra.mxu0 0.0
      %7861 = vmatprep.subr.mxu0 0.0
      %7862 = vmatpush1.xpose.msra.mxu0 0.0
      %7863 = vmatprep.subr.mxu0 0.0
      %7864 = vmatpush1.xpose.msra.mxu0 0.0
      %7865 = vmatprep.subr.mxu0 0.0
      %7866 = vmatpush1.xpose.msra.mxu0 0.0
      %7867 = vmatprep.subr.mxu0 0.0
      %7868 = vmatpush1.xpose.msra.mxu0 0.0
      %7869 = vmatprep.subr.mxu0 0.0
      %7870 = vmatpush1.xpose.msra.mxu0 0.0
      %7871 = vmatprep.subr.mxu0 0.0
      %7872 = vmatpush1.xpose.msra.mxu0 0.0
      %7873 = vmatprep.subr.mxu0 0.0
      %7874 = vmatpush1.xpose.msra.mxu0 0.0
      %7875 = vmatprep.subr.mxu0 0.0
      %7876 = vmatpush1.xpose.msra.mxu0 0.0
      %7877 = vmatprep.subr.mxu0 0.0
      %7878 = vmatpush1.xpose.msra.mxu0 0.0
      %7879 = vmatprep.subr.mxu0 0.0
      %7880 = vmatpush1.xpose.msra.mxu0 0.0
      %7881 = vmatprep.subr.mxu0 0.0
      %7882 = vmatpush1.xpose.msra.mxu0 0.0
      %7883 = vmatprep.subr.mxu0 0.0
      %7884 = vmatpush1.xpose.msra.mxu0 0.0
      %7885 = vmatprep.subr.mxu0 0.0
      %7886 = vmatpush1.xpose.msra.mxu0 0.0
      %7887 = vmatprep.subr.mxu0 0.0
      %7888 = vmatpush1.xpose.msra.mxu0 0.0
      %7889 = vmatprep.subr.mxu0 0.0
      %7890 = vmatpush1.xpose.msra.mxu0 0.0
      %7891 = vmatprep.subr.mxu0 0.0
      %7892 = vmatpush1.xpose.msra.mxu0 0.0
      %7893 = vmatprep.subr.mxu0 0.0
      %7894 = vmatpush1.xpose.msra.mxu0 0.0
      %7895 = vmatprep.subr.mxu0 0.0
      %7896 = vmatpush1.xpose.msra.mxu0 0.0
      %7897 = vmatprep.subr.mxu0 0.0
      %7898 = vmatpush1.xpose.msra.mxu0 0.0
      %7899 = vmatprep.subr.mxu0 0.0
      %7900 = vmatpush1.xpose.msra.mxu0 0.0
      %7901 = vmatprep.mubr.f32.mxu0 0.0
      %7902 = vmatmul.mubr.f32.gmra.mrb[0].mxu0 %v7814
      %v7903 = vpop.f32.mrb[0].mxu0
      %v7904 = vadd.f32 0.0, %v7903
      %v7905 = vpop.f32.mrb[0].mxu0
      %7906 = vmatprep.mubr.f32.mxu0 0.0
      %7907 = vmatmul.mubr.f32.gmra.mrb[0].mxu0 %v7817
      %v7908 = vpop.f32.mrb[0].mxu0
      %v7909 = vadd.f32 0.0, %v7908
      %v7910 = vpop.f32.mrb[0].mxu0
      %7911 = vdwg.mxu0
      %v7912 = vmul.f32 %v7904, 0.25
      %v7913 = vmul.f32 %v7909, 0.25
      %v7914 = vsel %vm2035, %v7912, -inf
      %7915 = vmax.xlane.f32.xlu0 %v7914
      %v7916 = vpop.xlane.xlu0 %7915
      %v7917 = vsel %vm2035, %v7913, -inf
      %7918 = vmax.xlane.f32.xlu0 %v7917
      %v7919 = vpop.xlane.xlu0 %7918
      %v7920 = vsub.f32 %v7912, %v7916
      %v7921 = vsub.f32 %v7913, %v7919
      %v7922 = vmul.f32 %v7920, 1.442695
      %v7923 = vpow.pop %v7922
      %v7924 = vmul.f32 %v7921, 1.442695
      %v7925 = vpow.pop %v7924
      %v7926 = vsel %vm2035, %v7923, 0.0
      %7927 = vadd.xlane.f32.xlu0 %v7926
      %v7928 = vpop.xlane.xlu0 %7927
      %v7929 = vsel %vm2035, %v7925, 0.0
      %7930 = vadd.xlane.f32.xlu0 %v7929
      %v7931 = vpop.xlane.xlu0 %7930
      %v7932 = vrcp.pop %v7928
      %v7933 = vrcp.pop %v7931
      %v7934 = vmul.f32 %v7923, %v7932
      %v7935 = vmul.f32 %v7925, %v7933
      %7936 = vrot.lane.b32.xlu0 %v7778, 96
      %v7937 = vpop.permute.xlu0 %7936
      %7938 = vrot.lane.b32.xlu0 %v7783, 96
      %v7939 = vpop.permute.xlu0 %7938
      %7940 = vrot.lane.b32.xlu0 %v7788, 96
      %v7941 = vpop.permute.xlu0 %7940
      %7942 = vrot.lane.b32.xlu0 %v7793, 96
      %v7943 = vpop.permute.xlu0 %7942
      %7944 = vrot.lane.b32.xlu0 %v7798, 96
      %v7945 = vpop.permute.xlu0 %7944
      %7946 = vrot.lane.b32.xlu0 %v7803, 96
      %v7947 = vpop.permute.xlu0 %7946
      %v7955 = vsel %vm2035, %v7934, 0
      %v7958 = vsel %vm2035, %v7935, 0
      %7960 = vmatprep.subr.mxu0 0.0
      %7961 = vmatpush1.msra.mxu0 %v7937
      %7962 = vmatprep.subr.mxu0 0.0
      %7963 = vmatpush1.msra.mxu0 %v7939
      %7964 = vmatprep.subr.mxu0 0.0
      %7965 = vmatpush1.msra.mxu0 %v7941
      %7966 = vmatprep.subr.mxu0 0.0
      %7967 = vmatpush1.msra.mxu0 %v7943
      %7968 = vmatprep.subr.mxu0 0.0
      %7969 = vmatpush1.msra.mxu0 %v7945
      %7970 = vmatprep.subr.mxu0 0.0
      %7971 = vmatpush1.msra.mxu0 %v7947
      %7972 = vmatprep.subr.mxu0 0.0
      %7973 = vmatpush1.msra.mxu0 0.0
      %7974 = vmatprep.subr.mxu0 0.0
      %7975 = vmatpush1.msra.mxu0 0.0
      %7976 = vmatprep.subr.mxu0 0.0
      %7977 = vmatpush1.msra.mxu0 0.0
      %7978 = vmatprep.subr.mxu0 0.0
      %7979 = vmatpush1.msra.mxu0 0.0
      %7980 = vmatprep.subr.mxu0 0.0
      %7981 = vmatpush1.msra.mxu0 0.0
      %7982 = vmatprep.subr.mxu0 0.0
      %7983 = vmatpush1.msra.mxu0 0.0
      %7984 = vmatprep.subr.mxu0 0.0
      %7985 = vmatpush1.msra.mxu0 0.0
      %7986 = vmatprep.subr.mxu0 0.0
      %7987 = vmatpush1.msra.mxu0 0.0
      %7988 = vmatprep.subr.mxu0 0.0
      %7989 = vmatpush1.msra.mxu0 0.0
      %7990 = vmatprep.subr.mxu0 0.0
      %7991 = vmatpush1.msra.mxu0 0.0
      %7992 = vmatprep.subr.mxu0 0.0
      %7993 = vmatpush1.msra.mxu0 0.0
      %7994 = vmatprep.subr.mxu0 0.0
      %7995 = vmatpush1.msra.mxu0 0.0
      %7996 = vmatprep.subr.mxu0 0.0
      %7997 = vmatpush1.msra.mxu0 0.0
      %7998 = vmatprep.subr.mxu0 0.0
      %7999 = vmatpush1.msra.mxu0 0.0
      %8000 = vmatprep.subr.mxu0 0.0
      %8001 = vmatpush1.msra.mxu0 0.0
      %8002 = vmatprep.subr.mxu0 0.0
      %8003 = vmatpush1.msra.mxu0 0.0
      %8004 = vmatprep.subr.mxu0 0.0
      %8005 = vmatpush1.msra.mxu0 0.0
      %8006 = vmatprep.subr.mxu0 0.0
      %8007 = vmatpush1.msra.mxu0 0.0
      %8008 = vmatprep.subr.mxu0 0.0
      %8009 = vmatpush1.msra.mxu0 0.0
      %8010 = vmatprep.subr.mxu0 0.0
      %8011 = vmatpush1.msra.mxu0 0.0
      %8012 = vmatprep.subr.mxu0 0.0
      %8013 = vmatpush1.msra.mxu0 0.0
      %8014 = vmatprep.subr.mxu0 0.0
      %8015 = vmatpush1.msra.mxu0 0.0
      %8016 = vmatprep.subr.mxu0 0.0
      %8017 = vmatpush1.msra.mxu0 0.0
      %8018 = vmatprep.subr.mxu0 0.0
      %8019 = vmatpush1.msra.mxu0 0.0
      %8020 = vmatprep.subr.mxu0 0.0
      %8021 = vmatpush1.msra.mxu0 0.0
      %8022 = vmatprep.subr.mxu0 0.0
      %8023 = vmatpush1.msra.mxu0 0.0
      %8024 = vmatprep.mubr.f32.mxu0 0.0
      %8025 = vmatmul.mubr.f32.gmra.mrb[0].mxu0 %v7955
      %v8026 = vpop.f32.mrb[0].mxu0
      %v8027 = vadd.f32 0.0, %v8026
      %v8028 = vpop.f32.mrb[0].mxu0
      %8029 = vmatprep.mubr.f32.mxu0 0.0
      %8030 = vmatmul.mubr.f32.gmra.mrb[0].mxu0 %v7958
      %v8031 = vpop.f32.mrb[0].mxu0
      %v8032 = vadd.f32 0.0, %v8031
      %v8033 = vpop.f32.mrb[0].mxu0
      %8034 = vdwg.mxu0
      %8035 = vrot.lane.b32.xlu0 %v7672, 112
      %v8036 = vpop.permute.xlu0 %8035
      %8037 = vrot.lane.b32.xlu0 %v7677, 112
      %v8038 = vpop.permute.xlu0 %8037
      %8039 = vrot.lane.b32.xlu0 %v7778, 112
      %v8040 = vpop.permute.xlu0 %8039
      %8041 = vrot.lane.b32.xlu0 %v7783, 112
      %v8042 = vpop.permute.xlu0 %8041
      %8043 = vrot.lane.b32.xlu0 %v7788, 112
      %v8044 = vpop.permute.xlu0 %8043
      %8045 = vrot.lane.b32.xlu0 %v7793, 112
      %v8046 = vpop.permute.xlu0 %8045
      %8047 = vrot.lane.b32.xlu0 %v7798, 112
      %v8048 = vpop.permute.xlu0 %8047
      %8049 = vrot.lane.b32.xlu0 %v7803, 112
      %v8050 = vpop.permute.xlu0 %8049
      %v8051 = vsel %vm1909, %v8036, 0
      %v8053 = vsel %vm1909, %v8038, 0
      %v8055 = vsel %vm1909, %v8040, 0
      %v8057 = vsel %vm1909, %v8042, 0
      %v8059 = vsel %vm1909, %v8044, 0
      %v8061 = vsel %vm1909, %v8046, 0
      %v8063 = vsel %vm1909, %v8048, 0
      %v8065 = vsel %vm1909, %v8050, 0
      %8067 = vmatprep.subr.mxu0 0.0
      %8068 = vmatpush1.xpose.msra.mxu0 %v8055
      %8069 = vmatprep.subr.mxu0 0.0
      %8070 = vmatpush1.xpose.msra.mxu0 %v8057
      %8071 = vmatprep.subr.mxu0 0.0
      %8072 = vmatpush1.xpose.msra.mxu0 %v8059
      %8073 = vmatprep.subr.mxu0 0.0
      %8074 = vmatpush1.xpose.msra.mxu0 %v8061
      %8075 = vmatprep.subr.mxu0 0.0
      %8076 = vmatpush1.xpose.msra.mxu0 %v8063
      %8077 = vmatprep.subr.mxu0 0.0
      %8078 = vmatpush1.xpose.msra.mxu0 %v8065
      %8079 = vmatprep.subr.mxu0 0.0
      %8080 = vmatpush1.xpose.msra.mxu0 0.0
      %8081 = vmatprep.subr.mxu0 0.0
      %8082 = vmatpush1.xpose.msra.mxu0 0.0
      %8083 = vmatprep.subr.mxu0 0.0
      %8084 = vmatpush1.xpose.msra.mxu0 0.0
      %8085 = vmatprep.subr.mxu0 0.0
      %8086 = vmatpush1.xpose.msra.mxu0 0.0
      %8087 = vmatprep.subr.mxu0 0.0
      %8088 = vmatpush1.xpose.msra.mxu0 0.0
      %8089 = vmatprep.subr.mxu0 0.0
      %8090 = vmatpush1.xpose.msra.mxu0 0.0
      %8091 = vmatprep.subr.mxu0 0.0
      %8092 = vmatpush1.xpose.msra.mxu0 0.0
      %8093 = vmatprep.subr.mxu0 0.0
      %8094 = vmatpush1.xpose.msra.mxu0 0.0
      %8095 = vmatprep.subr.mxu0 0.0
      %8096 = vmatpush1.xpose.msra.mxu0 0.0
      %8097 = vmatprep.subr.mxu0 0.0
      %8098 = vmatpush1.xpose.msra.mxu0 0.0
      %8099 = vmatprep.subr.mxu0 0.0
      %8100 = vmatpush1.xpose.msra.mxu0 0.0
      %8101 = vmatprep.subr.mxu0 0.0
      %8102 = vmatpush1.xpose.msra.mxu0 0.0
      %8103 = vmatprep.subr.mxu0 0.0
      %8104 = vmatpush1.xpose.msra.mxu0 0.0
      %8105 = vmatprep.subr.mxu0 0.0
      %8106 = vmatpush1.xpose.msra.mxu0 0.0
      %8107 = vmatprep.subr.mxu0 0.0
      %8108 = vmatpush1.xpose.msra.mxu0 0.0
      %8109 = vmatprep.subr.mxu0 0.0
      %8110 = vmatpush1.xpose.msra.mxu0 0.0
      %8111 = vmatprep.subr.mxu0 0.0
      %8112 = vmatpush1.xpose.msra.mxu0 0.0
      %8113 = vmatprep.subr.mxu0 0.0
      %8114 = vmatpush1.xpose.msra.mxu0 0.0
      %8115 = vmatprep.subr.mxu0 0.0
      %8116 = vmatpush1.xpose.msra.mxu0 0.0
      %8117 = vmatprep.subr.mxu0 0.0
      %8118 = vmatpush1.xpose.msra.mxu0 0.0
      %8119 = vmatprep.subr.mxu0 0.0
      %8120 = vmatpush1.xpose.msra.mxu0 0.0
      %8121 = vmatprep.subr.mxu0 0.0
      %8122 = vmatpush1.xpose.msra.mxu0 0.0
      %8123 = vmatprep.subr.mxu0 0.0
      %8124 = vmatpush1.xpose.msra.mxu0 0.0
      %8125 = vmatprep.subr.mxu0 0.0
      %8126 = vmatpush1.xpose.msra.mxu0 0.0
      %8127 = vmatprep.subr.mxu0 0.0
      %8128 = vmatpush1.xpose.msra.mxu0 0.0
      %8129 = vmatprep.subr.mxu0 0.0
      %8130 = vmatpush1.xpose.msra.mxu0 0.0
      %8131 = vmatprep.mubr.f32.mxu0 0.0
      %8132 = vmatmul.mubr.f32.gmra.mrb[0].mxu0 %v8051
      %v8133 = vpop.f32.mrb[0].mxu0
      %v8134 = vadd.f32 0.0, %v8133
      %v8135 = vpop.f32.mrb[0].mxu0
      %8136 = vmatprep.mubr.f32.mxu0 0.0
      %8137 = vmatmul.mubr.f32.gmra.mrb[0].mxu0 %v8053
      %v8138 = vpop.f32.mrb[0].mxu0
      %v8139 = vadd.f32 0.0, %v8138
      %v8140 = vpop.f32.mrb[0].mxu0
      %8141 = vdwg.mxu0
      %v8142 = vmul.f32 %v8134, 0.25
      %v8143 = vmul.f32 %v8139, 0.25
      %v8144 = vsel %vm2035, %v8142, -inf
      %8145 = vmax.xlane.f32.xlu0 %v8144
      %v8146 = vpop.xlane.xlu0 %8145
      %v8147 = vsel %vm2035, %v8143, -inf
      %8148 = vmax.xlane.f32.xlu0 %v8147
      %v8149 = vpop.xlane.xlu0 %8148
      %v8150 = vsub.f32 %v8142, %v8146
      %v8151 = vsub.f32 %v8143, %v8149
      %v8152 = vmul.f32 %v8150, 1.442695
      %v8153 = vpow.pop %v8152
      %v8154 = vmul.f32 %v8151, 1.442695
      %v8155 = vpow.pop %v8154
      %v8156 = vsel %vm2035, %v8153, 0.0
      %8157 = vadd.xlane.f32.xlu0 %v8156
      %v8158 = vpop.xlane.xlu0 %8157
      %v8159 = vsel %vm2035, %v8155, 0.0
      %8160 = vadd.xlane.f32.xlu0 %v8159
      %v8161 = vpop.xlane.xlu0 %8160
      %v8162 = vrcp.pop %v8158
      %v8163 = vrcp.pop %v8161
      %v8164 = vmul.f32 %v8153, %v8162
      %v8165 = vmul.f32 %v8155, %v8163
      %8166 = vrot.lane.b32.xlu0 %v7778, 80
      %v8167 = vpop.permute.xlu0 %8166
      %8168 = vrot.lane.b32.xlu0 %v7783, 80
      %v8169 = vpop.permute.xlu0 %8168
      %8170 = vrot.lane.b32.xlu0 %v7788, 80
      %v8171 = vpop.permute.xlu0 %8170
      %8172 = vrot.lane.b32.xlu0 %v7793, 80
      %v8173 = vpop.permute.xlu0 %8172
      %8174 = vrot.lane.b32.xlu0 %v7798, 80
      %v8175 = vpop.permute.xlu0 %8174
      %8176 = vrot.lane.b32.xlu0 %v7803, 80
      %v8177 = vpop.permute.xlu0 %8176
      %v8185 = vsel %vm2035, %v8164, 0
      %v8188 = vsel %vm2035, %v8165, 0
      %8190 = vmatprep.subr.mxu0 0.0
      %8191 = vmatpush1.msra.mxu0 %v8167
      %8192 = vmatprep.subr.mxu0 0.0
      %8193 = vmatpush1.msra.mxu0 %v8169
      %8194 = vmatprep.subr.mxu0 0.0
      %8195 = vmatpush1.msra.mxu0 %v8171
      %8196 = vmatprep.subr.mxu0 0.0
      %8197 = vmatpush1.msra.mxu0 %v8173
      %8198 = vmatprep.subr.mxu0 0.0
      %8199 = vmatpush1.msra.mxu0 %v8175
      %8200 = vmatprep.subr.mxu0 0.0
      %8201 = vmatpush1.msra.mxu0 %v8177
      %8202 = vmatprep.subr.mxu0 0.0
      %8203 = vmatpush1.msra.mxu0 0.0
      %8204 = vmatprep.subr.mxu0 0.0
      %8205 = vmatpush1.msra.mxu0 0.0
      %8206 = vmatprep.subr.mxu0 0.0
      %8207 = vmatpush1.msra.mxu0 0.0
      %8208 = vmatprep.subr.mxu0 0.0
      %8209 = vmatpush1.msra.mxu0 0.0
      %8210 = vmatprep.subr.mxu0 0.0
      %8211 = vmatpush1.msra.mxu0 0.0
      %8212 = vmatprep.subr.mxu0 0.0
      %8213 = vmatpush1.msra.mxu0 0.0
      %8214 = vmatprep.subr.mxu0 0.0
      %8215 = vmatpush1.msra.mxu0 0.0
      %8216 = vmatprep.subr.mxu0 0.0
      %8217 = vmatpush1.msra.mxu0 0.0
      %8218 = vmatprep.subr.mxu0 0.0
      %8219 = vmatpush1.msra.mxu0 0.0
      %8220 = vmatprep.subr.mxu0 0.0
      %8221 = vmatpush1.msra.mxu0 0.0
      %8222 = vmatprep.subr.mxu0 0.0
      %8223 = vmatpush1.msra.mxu0 0.0
      %8224 = vmatprep.subr.mxu0 0.0
      %8225 = vmatpush1.msra.mxu0 0.0
      %8226 = vmatprep.subr.mxu0 0.0
      %8227 = vmatpush1.msra.mxu0 0.0
      %8228 = vmatprep.subr.mxu0 0.0
      %8229 = vmatpush1.msra.mxu0 0.0
      %8230 = vmatprep.subr.mxu0 0.0
      %8231 = vmatpush1.msra.mxu0 0.0
      %8232 = vmatprep.subr.mxu0 0.0
      %8233 = vmatpush1.msra.mxu0 0.0
      %8234 = vmatprep.subr.mxu0 0.0
      %8235 = vmatpush1.msra.mxu0 0.0
      %8236 = vmatprep.subr.mxu0 0.0
      %8237 = vmatpush1.msra.mxu0 0.0
      %8238 = vmatprep.subr.mxu0 0.0
      %8239 = vmatpush1.msra.mxu0 0.0
      %8240 = vmatprep.subr.mxu0 0.0
      %8241 = vmatpush1.msra.mxu0 0.0
      %8242 = vmatprep.subr.mxu0 0.0
      %8243 = vmatpush1.msra.mxu0 0.0
      %8244 = vmatprep.subr.mxu0 0.0
      %8245 = vmatpush1.msra.mxu0 0.0
      %8246 = vmatprep.subr.mxu0 0.0
      %8247 = vmatpush1.msra.mxu0 0.0
      %8248 = vmatprep.subr.mxu0 0.0
      %8249 = vmatpush1.msra.mxu0 0.0
      %8250 = vmatprep.subr.mxu0 0.0
      %8251 = vmatpush1.msra.mxu0 0.0
      %8252 = vmatprep.subr.mxu0 0.0
      %8253 = vmatpush1.msra.mxu0 0.0
      %8254 = vmatprep.mubr.f32.mxu0 0.0
      %8255 = vmatmul.mubr.f32.gmra.mrb[0].mxu0 %v8185
      %v8256 = vpop.f32.mrb[0].mxu0
      %v8257 = vadd.f32 0.0, %v8256
      %v8258 = vpop.f32.mrb[0].mxu0
      %8259 = vmatprep.mubr.f32.mxu0 0.0
      %8260 = vmatmul.mubr.f32.gmra.mrb[0].mxu0 %v8188
      %v8261 = vpop.f32.mrb[0].mxu0
      %v8262 = vadd.f32 0.0, %v8261
      %v8263 = vpop.f32.mrb[0].mxu0
      %8264 = vdwg.mxu0
      %v8266 = vsel %vm1909, %v8257, 0
      %v8269 = vsel %vm1909, %v8262, 0
      %8271 = vmatprep.subr.mxu0 0.0
      %8272 = vmatpush1.msra.mxu0 %v7809
      %8273 = vmatprep.subr.mxu0 0.0
      %8274 = vmatpush1.msra.mxu0 %v7810
      %8275 = vmatprep.subr.mxu0 0.0
      %8276 = vmatpush1.msra.mxu0 0.0
      %8277 = vmatprep.subr.mxu0 0.0
      %8278 = vmatpush1.msra.mxu0 0.0
      %8279 = vmatprep.subr.mxu0 0.0
      %8280 = vmatpush1.msra.mxu0 0.0
      %8281 = vmatprep.subr.mxu0 0.0
      %8282 = vmatpush1.msra.mxu0 0.0
      %8283 = vmatprep.subr.mxu0 0.0
      %8284 = vmatpush1.msra.mxu0 0.0
      %8285 = vmatprep.subr.mxu0 0.0
      %8286 = vmatpush1.msra.mxu0 0.0
      %8287 = vmatprep.subr.mxu0 0.0
      %8288 = vmatpush1.msra.mxu0 0.0
      %8289 = vmatprep.subr.mxu0 0.0
      %8290 = vmatpush1.msra.mxu0 0.0
      %8291 = vmatprep.subr.mxu0 0.0
      %8292 = vmatpush1.msra.mxu0 0.0
      %8293 = vmatprep.subr.mxu0 0.0
      %8294 = vmatpush1.msra.mxu0 0.0
      %8295 = vmatprep.subr.mxu0 0.0
      %8296 = vmatpush1.msra.mxu0 0.0
      %8297 = vmatprep.subr.mxu0 0.0
      %8298 = vmatpush1.msra.mxu0 0.0
      %8299 = vmatprep.subr.mxu0 0.0
      %8300 = vmatpush1.msra.mxu0 0.0
      %8301 = vmatprep.subr.mxu0 0.0
      %8302 = vmatpush1.msra.mxu0 0.0
      %8303 = vmatprep.subr.mxu0 0.0
      %8304 = vmatpush1.msra.mxu0 0.0
      %8305 = vmatprep.subr.mxu0 0.0
      %8306 = vmatpush1.msra.mxu0 0.0
      %8307 = vmatprep.subr.mxu0 0.0
      %8308 = vmatpush1.msra.mxu0 0.0
      %8309 = vmatprep.subr.mxu0 0.0
      %8310 = vmatpush1.msra.mxu0 0.0
      %8311 = vmatprep.subr.mxu0 0.0
      %8312 = vmatpush1.msra.mxu0 0.0
      %8313 = vmatprep.subr.mxu0 0.0
      %8314 = vmatpush1.msra.mxu0 0.0
      %8315 = vmatprep.subr.mxu0 0.0
      %8316 = vmatpush1.msra.mxu0 0.0
      %8317 = vmatprep.subr.mxu0 0.0
      %8318 = vmatpush1.msra.mxu0 0.0
      %8319 = vmatprep.subr.mxu0 0.0
      %8320 = vmatpush1.msra.mxu0 0.0
      %8321 = vmatprep.subr.mxu0 0.0
      %8322 = vmatpush1.msra.mxu0 0.0
      %8323 = vmatprep.subr.mxu0 0.0
      %8324 = vmatpush1.msra.mxu0 0.0
      %8325 = vmatprep.subr.mxu0 0.0
      %8326 = vmatpush1.msra.mxu0 0.0
      %8327 = vmatprep.subr.mxu0 0.0
      %8328 = vmatpush1.msra.mxu0 0.0
      %8329 = vmatprep.subr.mxu0 0.0
      %8330 = vmatpush1.msra.mxu0 0.0
      %8331 = vmatprep.subr.mxu0 0.0
      %8332 = vmatpush1.msra.mxu0 0.0
      %8333 = vmatprep.subr.mxu0 0.0
      %8334 = vmatpush1.msra.mxu0 0.0
      %8335 = vmatprep.mubr.f32.mxu0 0.0
      %8336 = vmatmul.mubr.f32.gmra.mrb[0].mxu0 %v8266
      %v8337 = vpop.f32.mrb[0].mxu0
      %v8338 = vadd.f32 0.0, %v8337
      %v8339 = vpop.f32.mrb[0].mxu0
      %8340 = vmatprep.mubr.f32.mxu0 0.0
      %8341 = vmatmul.mubr.f32.gmra.mrb[0].mxu0 %v8269
      %v8342 = vpop.f32.mrb[0].mxu0
      %v8343 = vadd.f32 0.0, %v8342
      %v8344 = vpop.f32.mrb[0].mxu0
      %8345 = vdwg.mxu0
      %v8347 = vsel %vm1909, %v8027, 0
      %v8350 = vsel %vm1909, %v8032, 0
      %8352 = vmatprep.subr.mxu0 0.0
      %8353 = vmatpush1.msra.mxu0 %v7807
      %8354 = vmatprep.subr.mxu0 0.0
      %8355 = vmatpush1.msra.mxu0 %v7808
      %8356 = vmatprep.subr.mxu0 0.0
      %8357 = vmatpush1.msra.mxu0 0.0
      %8358 = vmatprep.subr.mxu0 0.0
      %8359 = vmatpush1.msra.mxu0 0.0
      %8360 = vmatprep.subr.mxu0 0.0
      %8361 = vmatpush1.msra.mxu0 0.0
      %8362 = vmatprep.subr.mxu0 0.0
      %8363 = vmatpush1.msra.mxu0 0.0
      %8364 = vmatprep.subr.mxu0 0.0
      %8365 = vmatpush1.msra.mxu0 0.0
      %8366 = vmatprep.subr.mxu0 0.0
      %8367 = vmatpush1.msra.mxu0 0.0
      %8368 = vmatprep.subr.mxu0 0.0
      %8369 = vmatpush1.msra.mxu0 0.0
      %8370 = vmatprep.subr.mxu0 0.0
      %8371 = vmatpush1.msra.mxu0 0.0
      %8372 = vmatprep.subr.mxu0 0.0
      %8373 = vmatpush1.msra.mxu0 0.0
      %8374 = vmatprep.subr.mxu0 0.0
      %8375 = vmatpush1.msra.mxu0 0.0
      %8376 = vmatprep.subr.mxu0 0.0
      %8377 = vmatpush1.msra.mxu0 0.0
      %8378 = vmatprep.subr.mxu0 0.0
      %8379 = vmatpush1.msra.mxu0 0.0
      %8380 = vmatprep.subr.mxu0 0.0
      %8381 = vmatpush1.msra.mxu0 0.0
      %8382 = vmatprep.subr.mxu0 0.0
      %8383 = vmatpush1.msra.mxu0 0.0
      %8384 = vmatprep.subr.mxu0 0.0
      %8385 = vmatpush1.msra.mxu0 0.0
      %8386 = vmatprep.subr.mxu0 0.0
      %8387 = vmatpush1.msra.mxu0 0.0
      %8388 = vmatprep.subr.mxu0 0.0
      %8389 = vmatpush1.msra.mxu0 0.0
      %8390 = vmatprep.subr.mxu0 0.0
      %8391 = vmatpush1.msra.mxu0 0.0
      %8392 = vmatprep.subr.mxu0 0.0
      %8393 = vmatpush1.msra.mxu0 0.0
      %8394 = vmatprep.subr.mxu0 0.0
      %8395 = vmatpush1.msra.mxu0 0.0
      %8396 = vmatprep.subr.mxu0 0.0
      %8397 = vmatpush1.msra.mxu0 0.0
      %8398 = vmatprep.subr.mxu0 0.0
      %8399 = vmatpush1.msra.mxu0 0.0
      %8400 = vmatprep.subr.mxu0 0.0
      %8401 = vmatpush1.msra.mxu0 0.0
      %8402 = vmatprep.subr.mxu0 0.0
      %8403 = vmatpush1.msra.mxu0 0.0
      %8404 = vmatprep.subr.mxu0 0.0
      %8405 = vmatpush1.msra.mxu0 0.0
      %8406 = vmatprep.subr.mxu0 0.0
      %8407 = vmatpush1.msra.mxu0 0.0
      %8408 = vmatprep.subr.mxu0 0.0
      %8409 = vmatpush1.msra.mxu0 0.0
      %8410 = vmatprep.subr.mxu0 0.0
      %8411 = vmatpush1.msra.mxu0 0.0
      %8412 = vmatprep.subr.mxu0 0.0
      %8413 = vmatpush1.msra.mxu0 0.0
      %8414 = vmatprep.subr.mxu0 0.0
      %8415 = vmatpush1.msra.mxu0 0.0
      %8416 = vmatprep.mubr.f32.mxu0 0.0
      %8417 = vmatmul.mubr.f32.gmra.mrb[0].mxu0 %v8347
      %v8418 = vpop.f32.mrb[0].mxu0
      %v8419 = vadd.f32 %v8338, %v8418
      %v8420 = vpop.f32.mrb[0].mxu0
      %8421 = vmatprep.mubr.f32.mxu0 0.0
      %8422 = vmatmul.mubr.f32.gmra.mrb[0].mxu0 %v8350
      %v8423 = vpop.f32.mrb[0].mxu0
      %v8424 = vadd.f32 %v8343, %v8423
      %v8425 = vpop.f32.mrb[0].mxu0
      %8426 = vdwg.mxu0
      %v8428 = vlaneseq
      %v8429 = vshrl.u32 %v8428, 7
      %v8430 = vsub.s32 0, %v8429
      %v8431 = vrot.slane %v7812, %v8430
      %v8433 = vadd.f32 %v8419, %v8431
      %v8434 = vadd.f32 %v8424, %v8431
      %v8435 = vadd.f32 %v7544, %v8433
      %v8436 = vadd.f32 %v7545, %v8434
      %s8437 = scalar_lea.vmem %s79, 2
      %v8438 = vld [vmem:[%s8437] sm:$0x3]
      %v8439 = vsel %vm1662, %v8435, 0.0
      %8440 = vadd.xlane.f32.xlu0 %v8439
      %v8441 = vpop.xlane.xlu0 %8440
      %v8442 = vsel %vm1662, %v8436, 0.0
      %8443 = vadd.xlane.f32.xlu0 %v8442
      %v8444 = vpop.xlane.xlu0 %8443
      %v8445 = vmul.f32 %v8441, %v1681
      %v8446 = vmul.f32 %v8444, %v1681
      %v8447 = vsub.f32 %v8435, %v8445
      %v8448 = vsub.f32 %v8436, %v8446
      %v8449 = vmul.f32 %v8447, %v8447
      %v8450 = vmul.f32 %v8448, %v8448
      %v8451 = vsel %vm1662, %v8449, 0.0
      %8452 = vadd.xlane.f32.xlu0 %v8451
      %v8453 = vpop.xlane.xlu0 %8452
      %v8454 = vsel %vm1662, %v8450, 0.0
      %8455 = vadd.xlane.f32.xlu0 %v8454
      %v8456 = vpop.xlane.xlu0 %8455
      %v8457 = vmul.f32 %v8453, %v1681
      %v8458 = vmul.f32 %v8456, %v1681
      %v8459 = vadd.f32 %v8457, 1e-06
      %v8460 = vadd.f32 %v8458, 1e-06
      %v8461 = vrsqrt.pop %v8459
      %v8462 = vrsqrt.pop %v8460
      %v8463 = vmul.f32 %v8447, %v8461
      %v8464 = vmul.f32 %v8448, %v8462
      %v8465 = vlaneseq
      %v8466 = vshrl.u32 %v8465, 7
      %v8467 = vsub.s32 0, %v8466
      %v8468 = vrot.slane %v8438, %v8467
      %v8469 = vmul.f32 %v8463, %v8468
      %v8470 = vmul.f32 %v8464, %v8468
      %v8471 = vlaneseq
      %v8472 = vshrl.u32 %v8471, 7
      %v8473 = vsub.s32 1, %v8472
      %v8474 = vrot.slane %v8438, %v8473
      %v8475 = vadd.f32 %v8469, %v8474
      %v8476 = vadd.f32 %v8470, %v8474
      %s8477 = scalar_lea.vmem %s81, 32
      %v8478 = vld [vmem:[%s8477] sm:$0xff]
      %v8479 = vld [vmem:[%s8477 + $0x8] sm:$0xff]
      %v8480 = vld [vmem:[%s8477 + $0x10] sm:$0xff]
      %v8481 = vld [vmem:[%s8477 + $0x18] sm:$0xff]
      %s8482 = scalar_lea.vmem %s83, 1
      %v8483 = vld [vmem:[%s8482] sm:$0x1]
      %v8485 = vlaneseq
      %v8486 = vshrl.u32 %v8485, 7
      %v8487 = vsub.s32 0, %v8486
      %v8488 = vrot.slane %v8483, %v8487
      %v8491 = vsel %vm1662, %v8475, 0
      %v8494 = vsel %vm1662, %v8476, 0
      %8496 = vmatprep.subr.mxu0 0.0
      %8497 = vmatpush1.msra.mxu0 %v8478
      %8498 = vmatprep.subr.mxu0 0.0
      %8499 = vmatpush1.msra.mxu0 %v8479
      %8500 = vmatprep.subr.mxu0 0.0
      %8501 = vmatpush1.msra.mxu0 %v8480
      %8502 = vmatprep.subr.mxu0 0.0
      %8503 = vmatpush1.msra.mxu0 %v8481
      %8504 = vmatprep.subr.mxu0 0.0
      %8505 = vmatpush1.msra.mxu0 0.0
      %8506 = vmatprep.subr.mxu0 0.0
      %8507 = vmatpush1.msra.mxu0 0.0
      %8508 = vmatprep.subr.mxu0 0.0
      %8509 = vmatpush1.msra.mxu0 0.0
      %8510 = vmatprep.subr.mxu0 0.0
      %8511 = vmatpush1.msra.mxu0 0.0
      %8512 = vmatprep.subr.mxu0 0.0
      %8513 = vmatpush1.msra.mxu0 0.0
      %8514 = vmatprep.subr.mxu0 0.0
      %8515 = vmatpush1.msra.mxu0 0.0
      %8516 = vmatprep.subr.mxu0 0.0
      %8517 = vmatpush1.msra.mxu0 0.0
      %8518 = vmatprep.subr.mxu0 0.0
      %8519 = vmatpush1.msra.mxu0 0.0
      %8520 = vmatprep.subr.mxu0 0.0
      %8521 = vmatpush1.msra.mxu0 0.0
      %8522 = vmatprep.subr.mxu0 0.0
      %8523 = vmatpush1.msra.mxu0 0.0
      %8524 = vmatprep.subr.mxu0 0.0
      %8525 = vmatpush1.msra.mxu0 0.0
      %8526 = vmatprep.subr.mxu0 0.0
      %8527 = vmatpush1.msra.mxu0 0.0
      %8528 = vmatprep.subr.mxu0 0.0
      %8529 = vmatpush1.msra.mxu0 0.0
      %8530 = vmatprep.subr.mxu0 0.0
      %8531 = vmatpush1.msra.mxu0 0.0
      %8532 = vmatprep.subr.mxu0 0.0
      %8533 = vmatpush1.msra.mxu0 0.0
      %8534 = vmatprep.subr.mxu0 0.0
      %8535 = vmatpush1.msra.mxu0 0.0
      %8536 = vmatprep.subr.mxu0 0.0
      %8537 = vmatpush1.msra.mxu0 0.0
      %8538 = vmatprep.subr.mxu0 0.0
      %8539 = vmatpush1.msra.mxu0 0.0
      %8540 = vmatprep.subr.mxu0 0.0
      %8541 = vmatpush1.msra.mxu0 0.0
      %8542 = vmatprep.subr.mxu0 0.0
      %8543 = vmatpush1.msra.mxu0 0.0
      %8544 = vmatprep.subr.mxu0 0.0
      %8545 = vmatpush1.msra.mxu0 0.0
      %8546 = vmatprep.subr.mxu0 0.0
      %8547 = vmatpush1.msra.mxu0 0.0
      %8548 = vmatprep.subr.mxu0 0.0
      %8549 = vmatpush1.msra.mxu0 0.0
      %8550 = vmatprep.subr.mxu0 0.0
      %8551 = vmatpush1.msra.mxu0 0.0
      %8552 = vmatprep.subr.mxu0 0.0
      %8553 = vmatpush1.msra.mxu0 0.0
      %8554 = vmatprep.subr.mxu0 0.0
      %8555 = vmatpush1.msra.mxu0 0.0
      %8556 = vmatprep.subr.mxu0 0.0
      %8557 = vmatpush1.msra.mxu0 0.0
      %8558 = vmatprep.subr.mxu0 0.0
      %8559 = vmatpush1.msra.mxu0 0.0
      %8560 = vmatprep.mubr.f32.mxu0 0.0
      %8561 = vmatmul.mubr.f32.gmra.mrb[0].mxu0 %v8491
      %v8562 = vpop.f32.mrb[0].mxu0
      %v8563 = vadd.f32 %v8488, %v8562
      %v8564 = vpop.f32.mrb[0].mxu0
      %8565 = vmatprep.mubr.f32.mxu0 0.0
      %8566 = vmatmul.mubr.f32.gmra.mrb[0].mxu0 %v8494
      %v8567 = vpop.f32.mrb[0].mxu0
      %v8568 = vadd.f32 %v8488, %v8567
      %v8569 = vpop.f32.mrb[0].mxu0
      %8570 = vdwg.mxu0
      %v8571 = vmul.f32 %v8563, 0.5
      %v8572 = vmul.f32 %v8568, 0.5
      %v8573 = vmul.f32 %v8563, 0.044715
      %v8574 = vmul.f32 %v8568, 0.044715
      %v8575 = vmul.f32 %v8573, %v8563
      %v8576 = vmul.f32 %v8574, %v8568
      %v8577 = vmul.f32 %v8575, %v8563
      %v8578 = vmul.f32 %v8576, %v8568
      %v8579 = vadd.f32 %v8563, %v8577
      %v8580 = vadd.f32 %v8568, %v8578
      %v8581 = vmul.f32 %v8579, 0.7978846
      %v8582 = vmul.f32 %v8580, 0.7978846
      %v8583 = vtanh.pop %v8581
      %v8584 = vtanh.pop %v8582
      %v8585 = vadd.f32 %v8583, 1.0
      %v8586 = vadd.f32 %v8584, 1.0
      %v8587 = vmul.f32 %v8571, %v8585
      %v8588 = vmul.f32 %v8572, %v8586
      %s8589 = scalar_lea.vmem %s85, 128
      %v8590 = vld [vmem:[%s8589] sm:$0xff]
      %v8591 = vld [vmem:[%s8589 + $0x8] sm:$0xff]
      %v8592 = vld [vmem:[%s8589 + $0x10] sm:$0xff]
      %v8593 = vld [vmem:[%s8589 + $0x18] sm:$0xff]
      %v8594 = vld [vmem:[%s8589 + $0x20] sm:$0xff]
      %v8595 = vld [vmem:[%s8589 + $0x28] sm:$0xff]
      %v8596 = vld [vmem:[%s8589 + $0x30] sm:$0xff]
      %v8597 = vld [vmem:[%s8589 + $0x38] sm:$0xff]
      %v8598 = vld [vmem:[%s8589 + $0x40] sm:$0xff]
      %v8599 = vld [vmem:[%s8589 + $0x48] sm:$0xff]
      %v8600 = vld [vmem:[%s8589 + $0x50] sm:$0xff]
      %v8601 = vld [vmem:[%s8589 + $0x58] sm:$0xff]
      %v8602 = vld [vmem:[%s8589 + $0x60] sm:$0xff]
      %v8603 = vld [vmem:[%s8589 + $0x68] sm:$0xff]
      %v8604 = vld [vmem:[%s8589 + $0x70] sm:$0xff]
      %v8605 = vld [vmem:[%s8589 + $0x78] sm:$0xff]
      %s8606 = scalar_lea.vmem %s87, 1
      %v8607 = vld [vmem:[%s8606] sm:$0x1]
      %v8609 = vlaneseq
      %v8610 = vshrl.u32 %v8609, 7
      %v8611 = vsub.s32 0, %v8610
      %v8612 = vrot.slane %v8607, %v8611
      %8614 = vmatprep.subr.mxu0 0.0
      %8615 = vmatpush1.msra.mxu0 %v8590
      %8616 = vmatprep.subr.mxu0 0.0
      %8617 = vmatpush1.msra.mxu0 %v8591
      %8618 = vmatprep.subr.mxu0 0.0
      %8619 = vmatpush1.msra.mxu0 %v8592
      %8620 = vmatprep.subr.mxu0 0.0
      %8621 = vmatpush1.msra.mxu0 %v8593
      %8622 = vmatprep.subr.mxu0 0.0
      %8623 = vmatpush1.msra.mxu0 %v8594
      %8624 = vmatprep.subr.mxu0 0.0
      %8625 = vmatpush1.msra.mxu0 %v8595
      %8626 = vmatprep.subr.mxu0 0.0
      %8627 = vmatpush1.msra.mxu0 %v8596
      %8628 = vmatprep.subr.mxu0 0.0
      %8629 = vmatpush1.msra.mxu0 %v8597
      %8630 = vmatprep.subr.mxu0 0.0
      %8631 = vmatpush1.msra.mxu0 %v8598
      %8632 = vmatprep.subr.mxu0 0.0
      %8633 = vmatpush1.msra.mxu0 %v8599
      %8634 = vmatprep.subr.mxu0 0.0
      %8635 = vmatpush1.msra.mxu0 %v8600
      %8636 = vmatprep.subr.mxu0 0.0
      %8637 = vmatpush1.msra.mxu0 %v8601
      %8638 = vmatprep.subr.mxu0 0.0
      %8639 = vmatpush1.msra.mxu0 %v8602
      %8640 = vmatprep.subr.mxu0 0.0
      %8641 = vmatpush1.msra.mxu0 %v8603
      %8642 = vmatprep.subr.mxu0 0.0
      %8643 = vmatpush1.msra.mxu0 %v8604
      %8644 = vmatprep.subr.mxu0 0.0
      %8645 = vmatpush1.msra.mxu0 %v8605
      %8646 = vmatprep.subr.mxu0 0.0
      %8647 = vmatpush1.msra.mxu0 0.0
      %8648 = vmatprep.subr.mxu0 0.0
      %8649 = vmatpush1.msra.mxu0 0.0
      %8650 = vmatprep.subr.mxu0 0.0
      %8651 = vmatpush1.msra.mxu0 0.0
      %8652 = vmatprep.subr.mxu0 0.0
      %8653 = vmatpush1.msra.mxu0 0.0
      %8654 = vmatprep.subr.mxu0 0.0
      %8655 = vmatpush1.msra.mxu0 0.0
      %8656 = vmatprep.subr.mxu0 0.0
      %8657 = vmatpush1.msra.mxu0 0.0
      %8658 = vmatprep.subr.mxu0 0.0
      %8659 = vmatpush1.msra.mxu0 0.0
      %8660 = vmatprep.subr.mxu0 0.0
      %8661 = vmatpush1.msra.mxu0 0.0
      %8662 = vmatprep.subr.mxu0 0.0
      %8663 = vmatpush1.msra.mxu0 0.0
      %8664 = vmatprep.subr.mxu0 0.0
      %8665 = vmatpush1.msra.mxu0 0.0
      %8666 = vmatprep.subr.mxu0 0.0
      %8667 = vmatpush1.msra.mxu0 0.0
      %8668 = vmatprep.subr.mxu0 0.0
      %8669 = vmatpush1.msra.mxu0 0.0
      %8670 = vmatprep.subr.mxu0 0.0
      %8671 = vmatpush1.msra.mxu0 0.0
      %8672 = vmatprep.subr.mxu0 0.0
      %8673 = vmatpush1.msra.mxu0 0.0
      %8674 = vmatprep.subr.mxu0 0.0
      %8675 = vmatpush1.msra.mxu0 0.0
      %8676 = vmatprep.subr.mxu0 0.0
      %8677 = vmatpush1.msra.mxu0 0.0
      %8678 = vmatprep.mubr.f32.mxu0 0.0
      %8679 = vmatmul.mubr.f32.gmra.mrb[0].mxu0 %v8587
      %v8680 = vpop.f32.mrb[0].mxu0
      %v8681 = vadd.f32 %v8612, %v8680
      %v8682 = vpop.f32.mrb[0].mxu0
      %8683 = vmatprep.mubr.f32.mxu0 0.0
      %8684 = vmatmul.mubr.f32.gmra.mrb[0].mxu0 %v8588
      %v8685 = vpop.f32.mrb[0].mxu0
      %v8686 = vadd.f32 %v8612, %v8685
      %v8687 = vpop.f32.mrb[0].mxu0
      %8688 = vdwg.mxu0
      %v8689 = vadd.f32 %v8435, %v8681
      %v8690 = vadd.f32 %v8436, %v8686
      %v8691 = vld [vmem:[%s25] sm:$0x3]
      %v8692 = vsel %vm1662, %v8689, 0.0
      %8693 = vadd.xlane.f32.xlu0 %v8692
      %v8694 = vpop.xlane.xlu0 %8693
      %v8695 = vsel %vm1662, %v8690, 0.0
      %8696 = vadd.xlane.f32.xlu0 %v8695
      %v8697 = vpop.xlane.xlu0 %8696
      %v8698 = vmul.f32 %v8694, %v1681
      %v8699 = vmul.f32 %v8697, %v1681
      %v8700 = vsub.f32 %v8689, %v8698
      %v8701 = vsub.f32 %v8690, %v8699
      %v8702 = vmul.f32 %v8700, %v8700
      %v8703 = vmul.f32 %v8701, %v8701
      %v8704 = vsel %vm1662, %v8702, 0.0
      %8705 = vadd.xlane.f32.xlu0 %v8704
      %v8706 = vpop.xlane.xlu0 %8705
      %v8707 = vsel %vm1662, %v8703, 0.0
      %8708 = vadd.xlane.f32.xlu0 %v8707
      %v8709 = vpop.xlane.xlu0 %8708
      %v8710 = vmul.f32 %v8706, %v1681
      %v8711 = vmul.f32 %v8709, %v1681
      %v8712 = vadd.f32 %v8710, 1e-06
      %v8713 = vadd.f32 %v8711, 1e-06
      %v8714 = vrsqrt.pop %v8712
      %v8715 = vrsqrt.pop %v8713
      %v8716 = vmul.f32 %v8700, %v8714
      %v8717 = vmul.f32 %v8701, %v8715
      %v8718 = vlaneseq
      %v8719 = vshrl.u32 %v8718, 7
      %v8720 = vsub.s32 0, %v8719
      %v8721 = vrot.slane %v8691, %v8720
      %v8722 = vmul.f32 %v8716, %v8721
      %v8723 = vmul.f32 %v8717, %v8721
      %v8724 = vlaneseq
      %v8725 = vshrl.u32 %v8724, 7
      %v8726 = vsub.s32 1, %v8725
      %v8727 = vrot.slane %v8691, %v8726
      %v8728 = vadd.f32 %v8722, %v8727
      %v8729 = vadd.f32 %v8723, %v8727
      %v8730 = vld [vmem:[%s27] sm:$0xff]
      %v8731 = vld [vmem:[%s27 + $0x8] sm:$0xff]
      %v8732 = vld [vmem:[%s27 + $0x10] sm:$0xff]
      %v8733 = vld [vmem:[%s27 + $0x18] sm:$0xff]
      %v8734 = vld [vmem:[%s29] sm:$0x1]
      %v8736 = vlaneseq
      %v8737 = vshrl.u32 %v8736, 7
      %v8738 = vsub.s32 0, %v8737
      %v8739 = vrot.slane %v8734, %v8738
      %v8742 = vsel %vm1662, %v8728, 0
      %v8745 = vsel %vm1662, %v8729, 0
      %8747 = vmatprep.subr.mxu0 0.0
      %8748 = vmatpush1.msra.mxu0 %v8730
      %8749 = vmatprep.subr.mxu0 0.0
      %8750 = vmatpush1.msra.mxu0 %v8731
      %8751 = vmatprep.subr.mxu0 0.0
      %8752 = vmatpush1.msra.mxu0 %v8732
      %8753 = vmatprep.subr.mxu0 0.0
      %8754 = vmatpush1.msra.mxu0 %v8733
      %8755 = vmatprep.subr.mxu0 0.0
      %8756 = vmatpush1.msra.mxu0 0.0
      %8757 = vmatprep.subr.mxu0 0.0
      %8758 = vmatpush1.msra.mxu0 0.0
      %8759 = vmatprep.subr.mxu0 0.0
      %8760 = vmatpush1.msra.mxu0 0.0
      %8761 = vmatprep.subr.mxu0 0.0
      %8762 = vmatpush1.msra.mxu0 0.0
      %8763 = vmatprep.subr.mxu0 0.0
      %8764 = vmatpush1.msra.mxu0 0.0
      %8765 = vmatprep.subr.mxu0 0.0
      %8766 = vmatpush1.msra.mxu0 0.0
      %8767 = vmatprep.subr.mxu0 0.0
      %8768 = vmatpush1.msra.mxu0 0.0
      %8769 = vmatprep.subr.mxu0 0.0
      %8770 = vmatpush1.msra.mxu0 0.0
      %8771 = vmatprep.subr.mxu0 0.0
      %8772 = vmatpush1.msra.mxu0 0.0
      %8773 = vmatprep.subr.mxu0 0.0
      %8774 = vmatpush1.msra.mxu0 0.0
      %8775 = vmatprep.subr.mxu0 0.0
      %8776 = vmatpush1.msra.mxu0 0.0
      %8777 = vmatprep.subr.mxu0 0.0
      %8778 = vmatpush1.msra.mxu0 0.0
      %8779 = vmatprep.subr.mxu0 0.0
      %8780 = vmatpush1.msra.mxu0 0.0
      %8781 = vmatprep.subr.mxu0 0.0
      %8782 = vmatpush1.msra.mxu0 0.0
      %8783 = vmatprep.subr.mxu0 0.0
      %8784 = vmatpush1.msra.mxu0 0.0
      %8785 = vmatprep.subr.mxu0 0.0
      %8786 = vmatpush1.msra.mxu0 0.0
      %8787 = vmatprep.subr.mxu0 0.0
      %8788 = vmatpush1.msra.mxu0 0.0
      %8789 = vmatprep.subr.mxu0 0.0
      %8790 = vmatpush1.msra.mxu0 0.0
      %8791 = vmatprep.subr.mxu0 0.0
      %8792 = vmatpush1.msra.mxu0 0.0
      %8793 = vmatprep.subr.mxu0 0.0
      %8794 = vmatpush1.msra.mxu0 0.0
      %8795 = vmatprep.subr.mxu0 0.0
      %8796 = vmatpush1.msra.mxu0 0.0
      %8797 = vmatprep.subr.mxu0 0.0
      %8798 = vmatpush1.msra.mxu0 0.0
      %8799 = vmatprep.subr.mxu0 0.0
      %8800 = vmatpush1.msra.mxu0 0.0
      %8801 = vmatprep.subr.mxu0 0.0
      %8802 = vmatpush1.msra.mxu0 0.0
      %8803 = vmatprep.subr.mxu0 0.0
      %8804 = vmatpush1.msra.mxu0 0.0
      %8805 = vmatprep.subr.mxu0 0.0
      %8806 = vmatpush1.msra.mxu0 0.0
      %8807 = vmatprep.subr.mxu0 0.0
      %8808 = vmatpush1.msra.mxu0 0.0
      %8809 = vmatprep.subr.mxu0 0.0
      %8810 = vmatpush1.msra.mxu0 0.0
      %8811 = vmatprep.mubr.f32.mxu0 0.0
      %8812 = vmatmul.mubr.f32.gmra.mrb[0].mxu0 %v8742
      %v8813 = vpop.f32.mrb[0].mxu0
      %v8814 = vadd.f32 %v8739, %v8813
      %v8815 = vpop.f32.mrb[0].mxu0
      %8816 = vmatprep.mubr.f32.mxu0 0.0
      %8817 = vmatmul.mubr.f32.gmra.mrb[0].mxu0 %v8745
      %v8818 = vpop.f32.mrb[0].mxu0
      %v8819 = vadd.f32 %v8739, %v8818
      %v8820 = vpop.f32.mrb[0].mxu0
      %8821 = vdwg.mxu0
      %8822 = vst.msk [vmem:[%s1410] sm:$0xff] %vm1430, %v8814
      %8823 = vst.msk [vmem:[%s1410 + $0x8] sm:$0xff] %vm1430, %v8819
      %v8824 = vsub.f32 %v8814, %v1420
      %v8825 = vsub.f32 %v8819, %v1421
      %v8826 = vmul.f32 %v8824, 10.0
      %v8827 = vmul.f32 %v8825, 10.0
      %v8828 = vmul.f32 %v8826, %v8824
      %v8829 = vmul.f32 %v8827, %v8825
      %v8830 = vld [vmem:[%s33] sm:$0x1]
      %v8832 = vlaneseq
      %v8833 = vshrl.u32 %v8832, 7
      %v8834 = vsub.s32 0, %v8833
      %v8835 = vrot.slane %v8830, %v8834
      %v8837 = vmul.f32 %v8828, %v8835
      %v8838 = vmul.f32 %v8829, %v8835
      %v8839 = vld [vmem:[%s31] sm:$0x1]
      %v8841 = vlaneseq
      %v8842 = vshrl.u32 %v8841, 7
      %v8843 = vsub.s32 0, %v8842
      %v8844 = vrot.slane %v8839, %v8843
      %v8846 = vadd.f32 %v8837, %v8844
      %v8847 = vadd.f32 %v8838, %v8844
      %v8848 = vsel %vm1430, %v8846, 0.0
      %v8849 = vsel %vm1430, %v8847, 0.0
      %v8850 = vadd.f32 %v8848, %v8849
      %8851 = vadd.xlane.f32.xlu0 %v8850
      %v8852 = vpop.xlane.xlu0 %8851
      %v8853 = vrot.slane %v8852, 4
      %v8854 = vadd.f32 %v8852, %v8853
      %v8855 = vrot.slane %v8854, 2
      %v8856 = vadd.f32 %v8854, %v8855
      %v8857 = vrot.slane %v8856, 1
      %v8858 = vadd.f32 %v8856, %v8857
      %s8859 = vtos %v8858
      %v8860 = vstv %s8859
      %v8861 = vmul.f32 %v8860, 0.25
      %vm8862 = vcmask 0
      %8863 = vst.msk [vmem:[%s1413] sm:$0x1] %vm8862, %v8861
      %p8864 = scmp.lt.s32.totalorder %s103, 1
      %s8865 = scalar_select %p8864, %s103, 1
      %s8866 = smul.addr %s8865, 2
      %s8867 = smul.addr %s8866, 8
      %s8868 = scalar_lea.vmem %s89, %s8867
      %p8869 = scmp.lt.s32.totalorder %s103, 1
      %s8870 = scalar_select %p8869, %s103, 1
      %s8871 = scalar_lea.vmem %s91, %s8870
      // Predicated region
      $region197: #{diffmae_forward.21} parent=195 // pred_check
        %p8872 = pneg %p1065
      $region198: #{diffmae_forward.21} parent=195 // pred_check_branch
        %8874 = sbr.rel (%p8872) target = $region200
      $region199: #{diffmae_forward.21} parent=195 // pred_region
        _
      $region200: #{diffmae_forward.21} parent=195 // pred_fallthru
        _
      // Predicated region
      $region201: #{diffmae_forward.21} parent=195 // pred_check
        %p8875 = pneg %p1091
      $region202: #{diffmae_forward.21} parent=195 // pred_check_branch
        %8877 = sbr.rel (%p8875) target = $region204
      $region203: #{diffmae_forward.21} parent=195 // pred_region
        _
      $region204: #{diffmae_forward.21} parent=195 // pred_fallthru
        _
    $region196: #{diffmae_forward.21} parent=5 // pred_fallthru
      _
    %p8878 = scmp.le.s32.totalorder 2, %s98
    // Predicated region
    $region205: #{diffmae_forward.21} parent=5 // pred_check
      %p8879 = pneg %p8878
    $region206: #{diffmae_forward.21} parent=5 // pred_check_branch
      %8881 = sbr.rel (%p8879) target = $region208
    $region207: #{diffmae_forward.21} parent=5 // pred_region
      %s8882 = ssub.s32 %s98, 2
      // Predicated region
      $region209: #{diffmae_forward.21} parent=207 // pred_check
        %p8883 = pneg %p1071
      $region210: #{diffmae_forward.21} parent=207 // pred_check_branch
        %8885 = sbr.rel (%p8883) target = $region212
      $region211: #{diffmae_forward.21} parent=207 // pred_region
        %p8886 = scmp.lt.s32.totalorder %s104, 1
        %s8887 = scalar_select %p8886, %s104, 1
        %s8888 = smul.addr %s8887, 2
        %s8889 = smul.addr %s8888, 8
        %s8890 = scalar_lea.vmem %s89, %s8889
      $region212: #{diffmae_forward.21} parent=207 // pred_fallthru
        _
      // Predicated region
      $region213: #{diffmae_forward.21} parent=207 // pred_check
        %p8891 = pneg %p1097
      $region214: #{diffmae_forward.21} parent=207 // pred_check_branch
        %8893 = sbr.rel (%p8891) target = $region216
      $region215: #{diffmae_forward.21} parent=207 // pred_region
        %p8894 = scmp.lt.s32.totalorder %s104, 1
        %s8895 = scalar_select %p8894, %s104, 1
        %s8896 = scalar_lea.vmem %s91, %s8895
      $region216: #{diffmae_forward.21} parent=207 // pred_fallthru
        _
    $region208: #{diffmae_forward.21} parent=5 // pred_fallthru
      _
  $region6: #{diffmae_forward.21} parent=0 // loop_footer
    %s102 = sadd.s32 1, %s98
  $region7: #{diffmae_forward.21} parent=0 // loop_footer_branch
    %97 = sbr.rel target = $region3
  $region8: #{diffmae_forward.21} parent=0 // loop_exit
    _

</llo_original>
